<compile_context>
chip_gen: v6e
topology: v6e:2x2x1
jax: 0.10.0
libtpu: 0.0.40
codegen_flags: <defaults>
</compile_context>

<pallas_src>
import functools

import jax
import jax.numpy as jnp
from jax.experimental import pallas as pl
from jax.experimental.pallas import tpu as pltpu

IN_FEATURES = 3 * 112 * 112    # 37632 = 294 * 128
HIDDEN = 512
TK_F32 = 6272                  # 49 * 128  -> 6 reduction steps (f32 W1)
TK_NARROW = 12544              # 98 * 128  -> 3 reduction steps (bf16/int8 W1)
VMEM_LIMIT_BYTES = 56 << 20    # fits worst-case tiles + dequant temporaries everywhere


def _disc_kernel(x_ref, w1_ref, scale_ref, b1_ref, w2t_ref, o_ref, acc_ref, *,
                 compute_dtype):
    """Grid = (hidden_splits, K // TK); axis 0 parallel/core-parallel, axis 1 reduction."""
    k = pl.program_id(1)

    @pl.when(k == 0)
    def _():
        acc_ref[...] = jnp.zeros_like(acc_ref)

    # x stays f32 in HBM; any narrowing happens here in VMEM (free under the
    # HBM-bound regime).  For int8 W1 this is the value dequant (scale applied
    # per-column in the epilogue, so the matmul sees exact small integers).
    xv = x_ref[...].astype(compute_dtype)
    wv = w1_ref[...].astype(compute_dtype)
    acc_ref[...] += jnp.dot(xv, wv, preferred_element_type=jnp.float32)

    @pl.when(k == pl.num_programs(1) - 1)
    def _():
        h = acc_ref[...] * scale_ref[...] + b1_ref[...]   # per-column dequant + bias
        h = jnp.where(h > 0, h, 0.2 * h)                  # LeakyReLU(0.2)
        # 512 -> 1 projection as a VPU multiply + lane reduction (avoids an
        # N=1 MXU matmul); runs once per split.
        partial = jnp.sum(h * w2t_ref[...], axis=-1, keepdims=True)   # [B, 1]
        o_ref[...] = partial.reshape(o_ref.shape).astype(o_ref.dtype)


def _device_kind():
    try:
        return (jax.devices()[0].device_kind or "").lower()
    except Exception:
        return ""


def _tensorcores_per_chip():
    """Robust-ish TC count: explicit attribute if present, else device_kind match."""
    try:
        d = jax.devices()[0]
    except Exception:
        return 1
    n = getattr(d, "num_cores", None)
    if isinstance(n, int) and n in (1, 2):
        return n
    kind = (getattr(d, "device_kind", "") or "").lower()
    if "v7" in kind or "7x" in kind:
        return 2
    return 1


def quantize_w1_int8(w1_f32):
    """Symmetric per-output-column int8 quantization of W1 ([K, HIDDEN])."""
    amax = jnp.max(jnp.abs(w1_f32), axis=0)
    scale = jnp.maximum(amax, 1e-30) / 127.0                      # [HIDDEN] f32
    q = jnp.clip(jnp.round(w1_f32 / scale), -127.0, 127.0).astype(jnp.int8)
    return q, scale


def discriminator_forward(x, w1, b1, w2, b2, *, w1_scale=None,
                          hidden_splits=None, core_parallel=None):
    """x: [B, 3, 112, 112] -> [B, 1] float32 sigmoid probabilities.

    w1: [IN_FEATURES, HIDDEN] stored transposed vs. torch, dtype f32 / bf16 / int8.
    w1_scale: per-column f32 dequant scale for quantized W1 (None -> ones).
    b1: [HIDDEN], w2: [HIDDEN, 1], b2: [1]  (all f32).
    """
    B = x.shape[0]
    x_flat = x.reshape(B, -1).astype(jnp.float32)     # torch.nn.Flatten on NCHW
    K = x_flat.shape[1]
    assert K == IN_FEATURES

    is_v7x = _tensorcores_per_chip() >= 2
    S = (2 if is_v7x else 1) if hidden_splits is None else hidden_splits
    assert HIDDEN % S == 0 and (HIDDEN // S) % 128 == 0
    Hs = HIDDEN // S
    use_core_parallel = (is_v7x if core_parallel is None else core_parallel) and S > 1

    w1_itemsize = w1.dtype.itemsize
    tk = TK_F32 if w1_itemsize >= 4 else TK_NARROW
    assert K % tk == 0
    # bf16 W1 -> bf16 MXU matmul (f32 accumulation); f32 / int8 W1 -> f32 matmul
    # (int8 values are exactly representable, scale applied in the epilogue).
    compute_dtype = jnp.bfloat16 if w1.dtype == jnp.bfloat16 else jnp.float32

    if w1_scale is None:
        w1_scale = jnp.ones((HIDDEN,), jnp.float32)
    scale_2d = w1_scale.reshape(1, HIDDEN).astype(jnp.float32)
    b1_2d = b1.reshape(1, HIDDEN).astype(jnp.float32)
    # w2 is [HIDDEN, 1]; reshape(1, HIDDEN) equals w2.T since trailing dim is 1.
    w2t = w2.reshape(1, HIDDEN).astype(jnp.float32)

    # Advisory cost hint so XLA schedules around a mem-bound custom call.
    bytes_accessed = int(w1.size * w1_itemsize + S * x_flat.size * 4
                         + 3 * HIDDEN * 4 + S * B * 4)
    cost = pl.CostEstimate(flops=2 * B * K * HIDDEN + 2 * B * HIDDEN,
                           transcendentals=0, bytes_accessed=bytes_accessed)

    kernel = functools.partial(_disc_kernel, compute_dtype=compute_dtype)

    def run(leading_semantics):
        return pl.pallas_call(
            kernel,
            out_shape=jax.ShapeDtypeStruct((S, B, 1), jnp.float32),
            grid_spec=pltpu.PrefetchScalarGridSpec(
                num_scalar_prefetch=0,
                grid=(S, K // tk),                               # reduction axis last
                in_specs=[
                    pl.BlockSpec((B, tk), lambda n, k: (0, k)),      # x tile (f32)
                    pl.BlockSpec((tk, Hs), lambda n, k: (k, n)),     # W1 tile (hot stream)
                    pl.BlockSpec((1, Hs), lambda n, k: (0, n)),      # dequant scale slice
                    pl.BlockSpec((1, Hs), lambda n, k: (0, n)),      # b1 slice
                    pl.BlockSpec((1, Hs), lambda n, k: (0, n)),      # w2^T slice
                ],
                out_specs=pl.BlockSpec((1, B, 1), lambda n, k: (n, 0, 0)),
                scratch_shapes=[pltpu.VMEM((B, Hs), jnp.float32)],
            ),
            compiler_params=pltpu.CompilerParams(
                dimension_semantics=(leading_semantics, pltpu.ARBITRARY),
                vmem_limit_bytes=VMEM_LIMIT_BYTES,
            ),
            cost_estimate=cost,
        )(x_flat, w1, scale_2d, b1_2d, w2t)

    if use_core_parallel:
        # v7x: shard the 2-way hidden split across both TensorCores so each
        # streams half of W1 (~2x aggregate HBM BW).  Fall back to a plain
        # parallel axis if core-parallel lowering is unavailable.
        try:
            partials = run(pltpu.CORE_PARALLEL)
        except Exception:
            partials = run(pltpu.PARALLEL)
    else:
        partials = run(pltpu.PARALLEL)

    # Combine per-split partial logits (<= 2 scalars per row), add the output
    # bias, apply the sigmoid.  O(B) work, negligible vs. the W1 stream.
    logits = jnp.sum(partials, axis=0) + b2.reshape(1, 1)
    return jax.nn.sigmoid(logits)


def _init_params(key):
    """Deterministic init mirroring torch.nn.Linear default (U(+-1/sqrt(fan_in)))."""
    k1, k2, k3, k4 = jax.random.split(key, 4)
    bound1 = 1.0 / jnp.sqrt(IN_FEATURES)
    bound2 = 1.0 / jnp.sqrt(HIDDEN)
    w1 = jax.random.uniform(k1, (IN_FEATURES, HIDDEN), jnp.float32, -bound1, bound1)
    b1 = jax.random.uniform(k2, (HIDDEN,), jnp.float32, -bound1, bound1)
    w2 = jax.random.uniform(k3, (HIDDEN, 1), jnp.float32, -bound2, bound2)
    b2 = jax.random.uniform(k4, (1,), jnp.float32, -bound2, bound2)
    return w1, b1, w2, b2


def _reference(x, w1, b1, w2, b2):
    """Pure-JAX reference with full-f32 matmuls (HIGHEST precision)."""
    xf = x.reshape(x.shape[0], -1)
    h = jnp.dot(xf, w1, precision=jax.lax.Precision.HIGHEST) + b1
    h = jnp.where(h > 0, h, 0.2 * h)
    logits = jnp.dot(h, w2, precision=jax.lax.Precision.HIGHEST) + b2
    return jax.nn.sigmoid(logits)


if __name__ == "__main__":
    key = jax.random.PRNGKey(0)
    kx, kp = jax.random.split(key)

    B = 2
    x = jax.random.normal(kx, (B, 3, 112, 112), jnp.float32)
    w1, b1, w2, b2 = _init_params(kp)

    ref = _reference(x, w1, b1, w2, b2)

    # 1) f32 W1 baseline (exact path).
    out_f32 = jax.block_until_ready(discriminator_forward(x, w1, b1, w2, b2))
    assert out_f32.shape == (B, 1)
    assert jnp.allclose(out_f32, ref, atol=1e-3, rtol=1e-3), (out_f32, ref)

    # 2) W1 stored PERSISTENTLY as bf16 (done once here; in a real model this
    #    happens at init / checkpoint load, never per forward call).
    w1_bf16 = w1.astype(jnp.bfloat16)
    out_bf16 = jax.block_until_ready(discriminator_forward(x, w1_bf16, b1, w2, b2))
    assert jnp.allclose(out_bf16, ref, atol=2e-2, rtol=2e-2), (out_bf16, ref)

    # 3) W1 stored PERSISTENTLY as int8 with per-column f32 scales (4x fewer
    #    HBM bytes on the dominant stream; dequant scale applied in epilogue).
    w1_q, w1_scale = quantize_w1_int8(w1)
    out_int8 = jax.block_until_ready(
        discriminator_forward(x, w1_q, b1, w2, b2, w1_scale=w1_scale))
    assert jnp.allclose(out_int8, ref, atol=3e-2, rtol=3e-2), (out_int8, ref)

    # 4) Explicit 2-way hidden split (the v7x dual-TensorCore path) — correct
    #    on every generation, merely serialized on single-TensorCore chips.
    out_split = jax.block_until_ready(
        discriminator_forward(x, w1_bf16, b1, w2, b2, hidden_splits=2))
    assert jnp.allclose(out_split, ref, atol=2e-2, rtol=2e-2), (out_split, ref)

    print("KERNEL_OK")
</pallas_src>

<mosaic_0001>
module attributes {stable_mosaic.version = 11 : i64} {
  func.func @_disc_kernel(%arg0: i32, %arg1: i32, %arg2: memref<2x6272xf32, #tpu.memory_space<vmem>>, %arg3: memref<6272x512xf32, #tpu.memory_space<vmem>>, %arg4: memref<1x512xf32, #tpu.memory_space<vmem>>, %arg5: memref<1x512xf32, #tpu.memory_space<vmem>>, %arg6: memref<1x512xf32, #tpu.memory_space<vmem>>, %arg7: memref<1x2x1xf32, #tpu.memory_space<vmem>>, %arg8: memref<2x512xf32, #tpu.memory_space<vmem>>) attributes {dimension_semantics = [#tpu.dimension_semantics<parallel>, #tpu.dimension_semantics<arbitrary>], iteration_bounds = array<i64: 1, 6>, scalar_prefetch = 0 : i64, scratch_operands = 1 : i64, tpu.core_type = #tpu.core_type<tc>, window_params = [{transform_indices = @transform_0, window_bounds = array<i64: 2, 6272>}, {transform_indices = @transform_1, window_bounds = array<i64: 6272, 512>}, {transform_indices = @transform_2, window_bounds = array<i64: 1, 512>}, {transform_indices = @transform_3, window_bounds = array<i64: 1, 512>}, {transform_indices = @transform_4, window_bounds = array<i64: 1, 512>}, {transform_indices = @transform_5, window_bounds = array<i64: 1, 2, 1>}]} {
    %c0_i32 = arith.constant 0 : i32
    %0 = arith.cmpi eq, %arg1, %c0_i32 : i32
    %1 = arith.extui %0 : i1 to i32
    %c0_i32_0 = arith.constant 0 : i32
    %2 = arith.cmpi ne, %1, %c0_i32_0 : i32
    scf.if %2 {
      %cst_9 = arith.constant 0.000000e+00 : f32
      %12 = vector.broadcast %cst_9 : f32 to vector<2x512xf32>
      %c0_10 = arith.constant 0 : index
      %c0_11 = arith.constant 0 : index
      %13 = vector.load %arg8[%c0_10, %c0_11] : memref<2x512xf32, #tpu.memory_space<vmem>>, vector<2x512xf32>
      tpu.vector_store %arg8[%c0_10, %c0_11], %12 {strides = array<i32>} : memref<2x512xf32, #tpu.memory_space<vmem>>, vector<2x512xf32>,
    } else {
    }
    %c0 = arith.constant 0 : index
    %c0_1 = arith.constant 0 : index
    %3 = vector.load %arg2[%c0, %c0_1] : memref<2x6272xf32, #tpu.memory_space<vmem>>, vector<2x6272xf32>
    %c0_2 = arith.constant 0 : index
    %c0_3 = arith.constant 0 : index
    %4 = vector.load %arg3[%c0_2, %c0_3] : memref<6272x512xf32, #tpu.memory_space<vmem>>, vector<6272x512xf32>
    %c0_4 = arith.constant 0 : index
    %c0_5 = arith.constant 0 : index
    %5 = vector.load %arg8[%c0_4, %c0_5] : memref<2x512xf32, #tpu.memory_space<vmem>>, vector<2x512xf32>
    %cst = arith.constant dense<0.000000e+00> : vector<2x512xf32>
    %6 = tpu.matmul %3, %4, %cst {dimension_numbers = #tpu.dot_dimension_numbers<[1], [0], [0], [1], [0, 0, 1, 1], [], []>} : vector<2x6272xf32>, vector<6272x512xf32>, vector<2x512xf32> -> vector<2x512xf32>
    %7 = arith.addf %5, %6 : vector<2x512xf32>
    %c0_6 = arith.constant 0 : index
    %c0_7 = arith.constant 0 : index
    %8 = vector.load %arg8[%c0_6, %c0_7] : memref<2x512xf32, #tpu.memory_space<vmem>>, vector<2x512xf32>
    tpu.vector_store %arg8[%c0_6, %c0_7], %7 {strides = array<i32>} : memref<2x512xf32, #tpu.memory_space<vmem>>, vector<2x512xf32>,
    %c5_i32 = arith.constant 5 : i32
    %9 = arith.cmpi eq, %arg1, %c5_i32 : i32
    %10 = arith.extui %9 : i1 to i32
    %c0_i32_8 = arith.constant 0 : i32
    %11 = arith.cmpi ne, %10, %c0_i32_8 : i32
    scf.if %11 {
      %c0_9 = arith.constant 0 : index
      %c0_10 = arith.constant 0 : index
      %12 = vector.load %arg8[%c0_9, %c0_10] : memref<2x512xf32, #tpu.memory_space<vmem>>, vector<2x512xf32>
      %c0_11 = arith.constant 0 : index
      %c0_12 = arith.constant 0 : index
      %13 = vector.load %arg4[%c0_11, %c0_12] : memref<1x512xf32, #tpu.memory_space<vmem>>, vector<1x512xf32>
      %14 = vector.broadcast %13 : vector<1x512xf32> to vector<2x512xf32>
      %15 = arith.mulf %12, %14 : vector<2x512xf32>
      %c0_13 = arith.constant 0 : index
      %c0_14 = arith.constant 0 : index
      %16 = vector.load %arg5[%c0_13, %c0_14] : memref<1x512xf32, #tpu.memory_space<vmem>>, vector<1x512xf32>
      %17 = vector.broadcast %16 : vector<1x512xf32> to vector<2x512xf32>
      %18 = arith.addf %15, %17 : vector<2x512xf32>
      %cst_15 = arith.constant 0.000000e+00 : f32
      %19 = vector.broadcast %cst_15 : f32 to vector<2x512xf32>
      %20 = arith.cmpf ogt, %18, %19 : vector<2x512xf32>
      %cst_16 = arith.constant 2.000000e-01 : f32
      %21 = vector.broadcast %cst_16 : f32 to vector<2x512xf32>
      %22 = arith.mulf %21, %18 : vector<2x512xf32>
      %23 = arith.select %20, %18, %22 : vector<2x512xi1>, vector<2x512xf32>
      %c0_17 = arith.constant 0 : index
      %c0_18 = arith.constant 0 : index
      %24 = vector.load %arg6[%c0_17, %c0_18] : memref<1x512xf32, #tpu.memory_space<vmem>>, vector<1x512xf32>
      %25 = vector.broadcast %24 : vector<1x512xf32> to vector<2x512xf32>
      %26 = arith.mulf %23, %25 : vector<2x512xf32>
      %cst_19 = arith.constant dense<0.000000e+00> : vector<2xf32>
      %27 = vector.multi_reduction <add>, %26, %cst_19 [1] : vector<2x512xf32> to vector<2xf32>
      %28 = vector.shape_cast %27 : vector<2xf32> to vector<2x1xf32>
      %29 = vector.shape_cast %28 : vector<2x1xf32> to vector<1x2x1xf32>
      %c0_20 = arith.constant 0 : index
      %c0_21 = arith.constant 0 : index
      %c0_22 = arith.constant 0 : index
      %30 = vector.load %arg7[%c0_20, %c0_21, %c0_22] : memref<1x2x1xf32, #tpu.memory_space<vmem>>, vector<1x2x1xf32>
      tpu.vector_store %arg7[%c0_20, %c0_21, %c0_22], %29 {strides = array<i32>} : memref<1x2x1xf32, #tpu.memory_space<vmem>>, vector<1x2x1xf32>,
    } else {
    }
    return
  }
  func.func @transform_0(%arg0: i32, %arg1: i32) -> (i32, i32) {
    %c0_i32 = arith.constant 0 : i32
    %c0_i32_0 = arith.constant 0 : i32
    return %c0_i32, %arg1 : i32, i32
  }
  func.func @transform_1(%arg0: i32, %arg1: i32) -> (i32, i32) {
    %c0_i32 = arith.constant 0 : i32
    return %arg1, %arg0 : i32, i32
  }
  func.func @transform_2(%arg0: i32, %arg1: i32) -> (i32, i32) {
    %c0_i32 = arith.constant 0 : i32
    %c0_i32_0 = arith.constant 0 : i32
    return %c0_i32, %arg0 : i32, i32
  }
  func.func @transform_3(%arg0: i32, %arg1: i32) -> (i32, i32) {
    %c0_i32 = arith.constant 0 : i32
    %c0_i32_0 = arith.constant 0 : i32
    return %c0_i32, %arg0 : i32, i32
  }
  func.func @transform_4(%arg0: i32, %arg1: i32) -> (i32, i32) {
    %c0_i32 = arith.constant 0 : i32
    %c0_i32_0 = arith.constant 0 : i32
    return %c0_i32, %arg0 : i32, i32
  }
  func.func @transform_5(%arg0: i32, %arg1: i32) -> (i32, i32, i32) {
    %c0_i32 = arith.constant 0 : i32
    %c0_i32_0 = arith.constant 0 : i32
    %c0_i32_1 = arith.constant 0 : i32
    return %arg0, %c0_i32, %c0_i32_0 : i32, i32, i32
  }
}

</mosaic_0001>

<llo_original>
// kernel: tpu_custom_call.1
$region0: #{tpu_custom_call.1}
  #allocation0 [shape = 'u32[]', space=smem, size = 0x4, offset = 0x4, fixed_abs, tag = 'smem constant byte address 0x4 - core index']
  #allocation1 [shape = 'u32[144,128]{1,0:T(1,128)}', space=vmem, size = 0x12000, scoped, tag = 'internal scratch']
  #allocation2 [shape = 'f32[2,512]{1,0:T(2,128)}', space=vmem, size = 0x1000, scoped, tag = 'scratch operand']
  %s0 = inlined_call_operand.hbm [shape: f32[2,37632], index: 0, kind: input, shape index: {}]
  %s1 = inlined_call_operand.hbm [shape: f32[37632,512], index: 1, kind: input, shape index: {}]
  %s2 = inlined_call_operand.hbm [shape: f32[1,512], index: 2, kind: input, shape index: {}]
  %s3 = inlined_call_operand.hbm [shape: f32[1,512], index: 3, kind: input, shape index: {}]
  %s4 = inlined_call_operand.hbm [shape: f32[1,512], index: 4, kind: input, shape index: {}]
  %s5 = inlined_call_operand.vmem [shape: f32[1,2,1], index: 5, kind: output, shape index: {}]
  %s6 = sld [smem:[#allocation0]]
  $region81: #{tpu_custom_call.1} parent=0
    _
  %s8 = ssub.s32 1, %s6
  %s9 = scalar_select 0, %s8, %s6
  $region1: #{tpu_custom_call.1} parent=0
    #allocation3 [shape = 'u8[100352]{0}', space=vmem, size = 0x18800, scoped, tag = 'input window, operand 0']
    #allocation4 [shape = 's32[2]{0}', space=sflag, size = 0x8, scoped, tag = 'scoped memory for tpu_custom_call.1']
    #allocation5 [shape = 'u8[25690112]{0}', space=vmem, size = 0x1880000, scoped, tag = 'input window, operand 1']
    #allocation6 [shape = 's32[2]{0}', space=sflag, size = 0x8, scoped, tag = 'scoped memory for tpu_custom_call.1']
    #allocation7 [shape = 'u8[2048]{0}', space=vmem, size = 0x800, scoped, tag = 'input window, operand 2, single buffered']
    #allocation8 [shape = 'u8[2048]{0}', space=vmem, size = 0x800, scoped, tag = 'input window, operand 3, single buffered']
    #allocation9 [shape = 's32[1]{0}', space=sflag, size = 0x4, scoped, tag = 'scoped memory for tpu_custom_call.1']
    #allocation10 [shape = 'u8[2048]{0}', space=vmem, size = 0x800, scoped, tag = 'input window, operand 4, single buffered']
    %10 = vsyncpa [#allocation4], 0
    %s11 = scalar_lea.sflag [#allocation4], 1
    %12 = vsyncpa %s11, 0
    %13 = vsyncpa [#allocation6], 0
    %s14 = scalar_lea.sflag [#allocation6], 1
    %15 = vsyncpa %s14, 0
    %16 = vsyncpa [#allocation9], 0
    loop: start=0, step=1, limit=8
    $region2: #{tpu_custom_call.1} parent=1 // loop_pre_header
      _
    $region3: #{tpu_custom_call.1} parent=1 // loop_header
      %s18 = sphi 0, %s22
      %p19 = scmp.ge.s32.totalorder %s18, 8
      %s25 = sphi 0, %s37
      %s26 = sphi 0, %s33
      %s27 = sphi 0, %s25
      %s28 = sphi 0, %s26
      %s29 = sphi 0, %s27
      %s30 = sphi 0, %s28
      %s40 = sphi 0, %s42
      %s43 = sphi 0, %s40
      %s44 = sphi 0, %s43
      %s60 = sphi 0, %s44
      %s68 = sphi 0, %s70
      %s71 = sphi 0, %s68
      %s72 = sphi 0, %s71
      %s88 = sphi 0, %s72
      %s94 = sphi 0, %s96
      %s97 = sphi 0, %s94
      %s98 = sphi 0, %s97
      %s114 = sphi 0, %s98
      %s120 = sphi 0, %s122
      %s123 = sphi 0, %s120
      %s124 = sphi 0, %s123
      %s140 = sphi 0, %s124
      %s146 = sphi 0, %s148
      %s149 = sphi 0, %s146
      %s150 = sphi 0, %s149
      %s166 = sphi 0, %s150
      %s172 = sphi 0, %s174
      %s175 = sphi 0, %s172
      %s176 = sphi 0, %s175
      %s192 = sphi 0, %s176
    $region4: #{tpu_custom_call.1} parent=1 // loop_header_branch
      %21 = sbr.rel (%p19) target = $region8
    $region5: #{tpu_custom_call.1} parent=1 // loop_body
      %s23 = ssub.s32 %s18, 1
      %s24 = ssub.s32 %s18, 2
      %s31 = sadd.s32 1, %s26
      %p32 = scmp.ge.s32.totalorder %s31, 6
      %s33 = scalar_select %p32, 0, %s31
      %s34 = sadd.s32 1, %s25
      %s35 = scalar_select %p32, %s34, %s25
      %p36 = scmp.ge.s32.totalorder %s35, 1
      %s37 = scalar_select %p36, 0, %s35
      %s38 = ssub.s32 %s26, %s33
      %p39 = scmp.eq.s32.totalorder %s38, 0
      %s41 = sadd.s32 %s40, 1
      %s42 = scalar_select %p39, %s40, %s41
      %p45 = pneg %p39
      %p46 = scmp.eq.s32.totalorder %s18, 5
      %p47 = por %p45, %p46
      %p48 = scmp.ne.s32.totalorder %s40, %s43
      %p49 = scmp.eq.s32.totalorder %s18, 0
      %p50 = por %p48, %p49
      %p51 = scmp.ne.s32.totalorder %s40, %s43
      %p52 = scmp.eq.s32.totalorder %s23, 5
      %p53 = por %p51, %p52
      %p54 = scmp.ne.s32.totalorder %s43, %s44
      %p55 = scmp.eq.s32.totalorder %s23, 0
      %p56 = por %p54, %p55
      %p57 = scmp.ne.s32.totalorder %s43, %s44
      %p58 = scmp.eq.s32.totalorder %s24, 5
      %p59 = por %p57, %p58
      %p61 = scmp.ne.s32.totalorder %s44, %s60
      %p62 = scmp.eq.s32.totalorder %s24, 0
      %p63 = por %p61, %p62
      %s64 = ssub.s32 %s26, %s33
      %s65 = ssub.s32 %s25, %s37
      %s66 = sor.u32 %s64, %s65
      %p67 = scmp.eq.s32.totalorder %s66, 0
      %s69 = sadd.s32 %s68, 1
      %s70 = scalar_select %p67, %s68, %s69
      %p73 = pneg %p67
      %p74 = scmp.eq.s32.totalorder %s18, 5
      %p75 = por %p73, %p74
      %p76 = scmp.ne.s32.totalorder %s68, %s71
      %p77 = scmp.eq.s32.totalorder %s18, 0
      %p78 = por %p76, %p77
      %p79 = scmp.ne.s32.totalorder %s68, %s71
      %p80 = scmp.eq.s32.totalorder %s23, 5
      %p81 = por %p79, %p80
      %p82 = scmp.ne.s32.totalorder %s71, %s72
      %p83 = scmp.eq.s32.totalorder %s23, 0
      %p84 = por %p82, %p83
      %p85 = scmp.ne.s32.totalorder %s71, %s72
      %p86 = scmp.eq.s32.totalorder %s24, 5
      %p87 = por %p85, %p86
      %p89 = scmp.ne.s32.totalorder %s72, %s88
      %p90 = scmp.eq.s32.totalorder %s24, 0
      %p91 = por %p89, %p90
      %s92 = ssub.s32 %s25, %s37
      %p93 = scmp.eq.s32.totalorder %s92, 0
      %s95 = sadd.s32 %s94, 1
      %s96 = scalar_select %p93, %s94, %s95
      %p99 = pneg %p93
      %p100 = scmp.eq.s32.totalorder %s18, 5
      %p101 = por %p99, %p100
      %p102 = scmp.ne.s32.totalorder %s94, %s97
      %p103 = scmp.eq.s32.totalorder %s18, 0
      %p104 = por %p102, %p103
      %p105 = scmp.ne.s32.totalorder %s94, %s97
      %p106 = scmp.eq.s32.totalorder %s23, 5
      %p107 = por %p105, %p106
      %p108 = scmp.ne.s32.totalorder %s97, %s98
      %p109 = scmp.eq.s32.totalorder %s23, 0
      %p110 = por %p108, %p109
      %p111 = scmp.ne.s32.totalorder %s97, %s98
      %p112 = scmp.eq.s32.totalorder %s24, 5
      %p113 = por %p111, %p112
      %p115 = scmp.ne.s32.totalorder %s98, %s114
      %p116 = scmp.eq.s32.totalorder %s24, 0
      %p117 = por %p115, %p116
      %s118 = ssub.s32 %s25, %s37
      %p119 = scmp.eq.s32.totalorder %s118, 0
      %s121 = sadd.s32 %s120, 1
      %s122 = scalar_select %p119, %s120, %s121
      %p125 = pneg %p119
      %p126 = scmp.eq.s32.totalorder %s18, 5
      %p127 = por %p125, %p126
      %p128 = scmp.ne.s32.totalorder %s120, %s123
      %p129 = scmp.eq.s32.totalorder %s18, 0
      %p130 = por %p128, %p129
      %p131 = scmp.ne.s32.totalorder %s120, %s123
      %p132 = scmp.eq.s32.totalorder %s23, 5
      %p133 = por %p131, %p132
      %p134 = scmp.ne.s32.totalorder %s123, %s124
      %p135 = scmp.eq.s32.totalorder %s23, 0
      %p136 = por %p134, %p135
      %p137 = scmp.ne.s32.totalorder %s123, %s124
      %p138 = scmp.eq.s32.totalorder %s24, 5
      %p139 = por %p137, %p138
      %p141 = scmp.ne.s32.totalorder %s124, %s140
      %p142 = scmp.eq.s32.totalorder %s24, 0
      %p143 = por %p141, %p142
      %s144 = ssub.s32 %s25, %s37
      %p145 = scmp.eq.s32.totalorder %s144, 0
      %s147 = sadd.s32 %s146, 1
      %s148 = scalar_select %p145, %s146, %s147
      %p151 = pneg %p145
      %p152 = scmp.eq.s32.totalorder %s18, 5
      %p153 = por %p151, %p152
      %p154 = scmp.ne.s32.totalorder %s146, %s149
      %p155 = scmp.eq.s32.totalorder %s18, 0
      %p156 = por %p154, %p155
      %p157 = scmp.ne.s32.totalorder %s146, %s149
      %p158 = scmp.eq.s32.totalorder %s23, 5
      %p159 = por %p157, %p158
      %p160 = scmp.ne.s32.totalorder %s149, %s150
      %p161 = scmp.eq.s32.totalorder %s23, 0
      %p162 = por %p160, %p161
      %p163 = scmp.ne.s32.totalorder %s149, %s150
      %p164 = scmp.eq.s32.totalorder %s24, 5
      %p165 = por %p163, %p164
      %p167 = scmp.ne.s32.totalorder %s150, %s166
      %p168 = scmp.eq.s32.totalorder %s24, 0
      %p169 = por %p167, %p168
      %s170 = ssub.s32 %s25, %s37
      %p171 = scmp.eq.s32.totalorder %s170, 0
      %s173 = sadd.s32 %s172, 1
      %s174 = scalar_select %p171, %s172, %s173
      %p177 = pneg %p171
      %p178 = scmp.eq.s32.totalorder %s18, 5
      %p179 = por %p177, %p178
      %p180 = scmp.ne.s32.totalorder %s172, %s175
      %p181 = scmp.eq.s32.totalorder %s18, 0
      %p182 = por %p180, %p181
      %p183 = scmp.ne.s32.totalorder %s172, %s175
      %p184 = scmp.eq.s32.totalorder %s23, 5
      %p185 = por %p183, %p184
      %p186 = scmp.ne.s32.totalorder %s175, %s176
      %p187 = scmp.eq.s32.totalorder %s23, 0
      %p188 = por %p186, %p187
      %p189 = scmp.ne.s32.totalorder %s175, %s176
      %p190 = scmp.eq.s32.totalorder %s24, 5
      %p191 = por %p189, %p190
      %p193 = scmp.ne.s32.totalorder %s176, %s192
      %p194 = scmp.eq.s32.totalorder %s24, 0
      %p195 = por %p193, %p194
      %p196 = scmp.le.s32.totalorder 1, %s18
      %p197 = scmp.lt.s32.totalorder %s18, 7
      %p198 = pnand %p196, %p197
      %p199 = pneg %p198
      // Predicated region
      $region9: #{tpu_custom_call.1} parent=5 // pred_check
        _
      $region10: #{tpu_custom_call.1} parent=5 // pred_check_branch
        %201 = sbr.rel (%p198) target = $region12
      $region11: #{tpu_custom_call.1} parent=5 // pred_region
        %s202 = ssub.s32 %s18, 1
        // Predicated region
        $region13: #{tpu_custom_call.1} parent=11 // pred_check
          %p203 = pneg %p110
        $region14: #{tpu_custom_call.1} parent=11 // pred_check_branch
          %205 = sbr.rel (%p203) target = $region16
        $region15: #{tpu_custom_call.1} parent=11 // pred_region
          %s206 = smul.u32 4, %s27
          %s208 = ssub.s32 64, 64
          %209 = vsyncadd [#allocation6], %s208
          %s210 = smul.addr %s206, 16
          %s211 = scalar_lea.hbm %s2, %s210
          %s213 = sshll.u32 [#allocation7], 4
          %s214 = int_to_ptr.vmem [resolvable:$true] %s213
          %216 = dma.hbm_to_vmem [thread:$0]  %s211, 64, %s214, [#allocation6]
        $region16: #{tpu_custom_call.1} parent=11 // pred_fallthru
          _
        // Predicated region
        $region17: #{tpu_custom_call.1} parent=11 // pred_check
          %p217 = pneg %p136
        $region18: #{tpu_custom_call.1} parent=11 // pred_check_branch
          %219 = sbr.rel (%p217) target = $region20
        $region19: #{tpu_custom_call.1} parent=11 // pred_region
          %s220 = smul.u32 4, %s27
          %s222 = ssub.s32 64, 64
          %223 = vsyncadd [#allocation9], %s222
          %s224 = smul.addr %s220, 16
          %s225 = scalar_lea.hbm %s3, %s224
          %s227 = sshll.u32 [#allocation8], 4
          %s228 = int_to_ptr.vmem [resolvable:$true] %s227
          %230 = dma.hbm_to_vmem [thread:$0]  %s225, 64, %s228, [#allocation9]
        $region20: #{tpu_custom_call.1} parent=11 // pred_fallthru
          _
        // Predicated region
        $region21: #{tpu_custom_call.1} parent=11 // pred_check
          %p231 = pneg %p162
        $region22: #{tpu_custom_call.1} parent=11 // pred_check_branch
          %233 = sbr.rel (%p231) target = $region24
        $region23: #{tpu_custom_call.1} parent=11 // pred_region
          %s234 = smul.u32 4, %s27
          %s236 = ssub.s32 64, 64
          %237 = vsyncadd [#allocation9], %s236
          %s238 = smul.addr %s234, 16
          %s239 = scalar_lea.hbm %s4, %s238
          %s241 = sshll.u32 [#allocation10], 4
          %s242 = int_to_ptr.vmem [resolvable:$true] %s241
          %244 = dma.hbm_to_vmem [thread:$0]  %s239, 64, %s242, [#allocation9]
        $region24: #{tpu_custom_call.1} parent=11 // pred_fallthru
          _
      $region12: #{tpu_custom_call.1} parent=5 // pred_fallthru
        _
      %p245 = scmp.lt.s32.totalorder %s18, 6
      // Predicated region
      $region25: #{tpu_custom_call.1} parent=5 // pred_check
        %p246 = pneg %p245
      $region26: #{tpu_custom_call.1} parent=5 // pred_check_branch
        %248 = sbr.rel (%p246) target = $region28
      $region27: #{tpu_custom_call.1} parent=5 // pred_region
        // Predicated region
        $region29: #{tpu_custom_call.1} parent=27 // pred_check
          %p249 = pneg %p50
        $region30: #{tpu_custom_call.1} parent=27 // pred_check_branch
          %251 = sbr.rel (%p249) target = $region32
        $region31: #{tpu_custom_call.1} parent=27 // pred_region
          %s252 = sand.u32 %s40, 1
          %s253 = scalar_lea.sflag [#allocation4], %s252
          %s254 = sand.u32 %s40, 1
          %s255 = smul.addr %s254, 98
          %s256 = scalar_lea.vmem [#allocation3], %s255
          %s257 = smul.u32 49, %s26
          %s259 = ssub.s32 1568, 1568
          %260 = vsyncadd %s253, %s259
          %s261 = smul.addr %s257, 32
          %s262 = scalar_lea.hbm %s0, %s261
          %s264 = sshll.u32 %s256, 4
          %s265 = int_to_ptr.vmem [resolvable:$true] %s264
          %267 = dma.hbm_to_vmem [thread:$0]  %s262, 1568, %s265, %s253
        $region32: #{tpu_custom_call.1} parent=27 // pred_fallthru
          _
        // Predicated region
        $region33: #{tpu_custom_call.1} parent=27 // pred_check
          %p268 = pneg %p78
        $region34: #{tpu_custom_call.1} parent=27 // pred_check_branch
          %270 = sbr.rel (%p268) target = $region36
        $region35: #{tpu_custom_call.1} parent=27 // pred_region
          %s271 = sand.u32 %s18, 1
          %s272 = scalar_lea.sflag [#allocation6], %s271
          %s273 = sand.u32 %s68, 1
          %s274 = smul.addr %s273, 25088
          %s275 = scalar_lea.vmem [#allocation5], %s274
          %s276 = smul.u32 784, %s26
          %s277 = smul.u32 4, %s25
          %s279 = ssub.s32 401408, 401408
          %280 = vsyncadd %s272, %s279
          %s281 = smul.addr %s276, 4
          %s282 = sadd.s32 %s277, %s281
          %s283 = smul.addr %s282, 128
          %s284 = scalar_lea.hbm %s1, %s283
          %s285 = sshll.u32 %s275, 4
          %s286 = int_to_ptr.vmem [resolvable:$true] %s285
          %291 = dma.hbm_to_vmem [thread:$0]  %s284, 401408, %s286, %s272, 512, 512, 32
        $region36: #{tpu_custom_call.1} parent=27 // pred_fallthru
          _
      $region28: #{tpu_custom_call.1} parent=5 // pred_fallthru
        _
      %p292 = scmp.le.s32.totalorder 1, %s18
      %p293 = scmp.lt.s32.totalorder %s18, 7
      %p294 = pnand %p292, %p293
      %p295 = pneg %p294
      // Predicated region
      $region37: #{tpu_custom_call.1} parent=5 // pred_check
        _
      $region38: #{tpu_custom_call.1} parent=5 // pred_check_branch
        %297 = sbr.rel (%p294) target = $region40
      $region39: #{tpu_custom_call.1} parent=5 // pred_region
        %s298 = ssub.s32 %s18, 1
        %s299 = sand.u32 %s43, 1
        %s300 = scalar_lea.sflag [#allocation4], %s299
        %s301 = sand.u32 %s43, 1
        %s302 = smul.addr %s301, 98
        %s303 = scalar_lea.vmem [#allocation3], %s302
        // Predicated region
        $region41: #{tpu_custom_call.1} parent=39 // pred_check
          %p304 = pneg %p56
        $region42: #{tpu_custom_call.1} parent=39 // pred_check_branch
          %306 = sbr.rel (%p304) target = $region44
        $region43: #{tpu_custom_call.1} parent=39 // pred_region
          %307 = dma.done %s300, 1568
        $region44: #{tpu_custom_call.1} parent=39 // pred_fallthru
          _
        %s308 = sand.u32 %s23, 1
        %s309 = scalar_lea.sflag [#allocation6], %s308
        %s310 = sand.u32 %s71, 1
        %s311 = smul.addr %s310, 25088
        %s312 = scalar_lea.vmem [#allocation5], %s311
        // Predicated region
        $region45: #{tpu_custom_call.1} parent=39 // pred_check
          %p313 = pneg %p84
        $region46: #{tpu_custom_call.1} parent=39 // pred_check_branch
          %315 = sbr.rel (%p313) target = $region48
        $region47: #{tpu_custom_call.1} parent=39 // pred_region
          %316 = dma.done %s309, 401408
        $region48: #{tpu_custom_call.1} parent=39 // pred_fallthru
          _
        // Predicated region
        $region49: #{tpu_custom_call.1} parent=39 // pred_check
          %p317 = pneg %p110
        $region50: #{tpu_custom_call.1} parent=39 // pred_check_branch
          %319 = sbr.rel (%p317) target = $region52
        $region51: #{tpu_custom_call.1} parent=39 // pred_region
          %320 = dma.done [#allocation6], 64
        $region52: #{tpu_custom_call.1} parent=39 // pred_fallthru
          _
        // Predicated region
        $region53: #{tpu_custom_call.1} parent=39 // pred_check
          %p321 = pneg %p136
        $region54: #{tpu_custom_call.1} parent=39 // pred_check_branch
          %323 = sbr.rel (%p321) target = $region56
        $region55: #{tpu_custom_call.1} parent=39 // pred_region
          %324 = dma.done [#allocation9], 64
        $region56: #{tpu_custom_call.1} parent=39 // pred_fallthru
          _
        // Predicated region
        $region57: #{tpu_custom_call.1} parent=39 // pred_check
          %p325 = pneg %p162
        $region58: #{tpu_custom_call.1} parent=39 // pred_check_branch
          %327 = sbr.rel (%p325) target = $region60
        $region59: #{tpu_custom_call.1} parent=39 // pred_region
          %328 = dma.done [#allocation9], 64
        $region60: #{tpu_custom_call.1} parent=39 // pred_fallthru
          _
        %s329 = sand.u32 %s43, 1
        %s330 = scalar_lea.sflag [#allocation4], %s329
        %s331 = sand.u32 %s43, 1
        %s332 = smul.addr %s331, 98
        %s333 = scalar_lea.vmem [#allocation3], %s332
        %p334 = pneg %p56
        %p335 = pneg %p53
        %s336 = sand.u32 %s23, 1
        %s337 = scalar_lea.sflag [#allocation6], %s336
        %s338 = sand.u32 %s71, 1
        %s339 = smul.addr %s338, 25088
        %s340 = scalar_lea.vmem [#allocation5], %s339
        %p341 = pneg %p84
        %p342 = pneg %p81
        %p343 = pneg %p110
        %p344 = pneg %p107
        %p345 = pneg %p136
        %p346 = pneg %p133
        %p347 = pneg %p162
        %p348 = pneg %p159
        %p349 = pneg %p188
        %p350 = pneg %p185
        %p351 = scmp.lt.s32.totalorder %s27, 0
        %s352 = scalar_select %p351, %s27, 0
        %s353 = smul.addr %s352, 2
        %s354 = scalar_lea.vmem %s5, %s353
        %s355 = smul.u32 49, %s28
        %s356 = smul.u32 784, %s28
        %s357 = smul.u32 4, %s27
        %s358 = smul.u32 4, %s27
        %s359 = smul.u32 4, %s27
        %s360 = smul.u32 4, %s27
        %p361 = scmp.lt.s32.totalorder %s27, 0
        %s362 = scalar_select %p361, %s27, 0
        %s363 = smul.addr %s362, 2
        %s364 = scalar_lea.vmem %s5, %s363
        %p365 = scmp.eq.s32.totalorder %s28, 0
        // Predicated region
        $region61: #{tpu_custom_call.1} parent=39 // pred_check
          %p366 = pneg %p365
        $region62: #{tpu_custom_call.1} parent=39 // pred_check_branch
          %368 = sbr.rel (%p366) target = $region64
        $region63: #{tpu_custom_call.1} parent=39 // pred_region
          %369 = vst [vmem:[#allocation2] sm:$0xff] 0.0
        $region64: #{tpu_custom_call.1} parent=39 // pred_fallthru
          _
        %v370 = vld [vmem:[%s303] sm:$0xff]
        %v371 = vld [vmem:[%s303 + $0x8] sm:$0xff]
        %v372 = vld [vmem:[%s303 + $0x10] sm:$0xff]
        %v373 = vld [vmem:[%s303 + $0x18] sm:$0xff]
        %v374 = vld [vmem:[%s303 + $0x20] sm:$0xff]
        %v375 = vld [vmem:[%s303 + $0x28] sm:$0xff]
        %v376 = vld [vmem:[%s303 + $0x30] sm:$0xff]
        %v377 = vld [vmem:[%s303 + $0x38] sm:$0xff]
        %v378 = vld [vmem:[%s303 + $0x40] sm:$0xff]
        %v379 = vld [vmem:[%s303 + $0x48] sm:$0xff]
        %v380 = vld [vmem:[%s303 + $0x50] sm:$0xff]
        %v381 = vld [vmem:[%s303 + $0x58] sm:$0xff]
        %v382 = vld [vmem:[%s303 + $0x60] sm:$0x3]
        %v383 = vld [vmem:[%s312] sm:$0xff]
        %v384 = vld [vmem:[%s312 + $0x8] sm:$0xff]
        %v385 = vld [vmem:[%s312 + $0x10] sm:$0xff]
        %v386 = vld [vmem:[%s312 + $0x18] sm:$0xff]
        %v387 = vld [vmem:[%s312 + $0x20] sm:$0xff]
        %v388 = vld [vmem:[%s312 + $0x28] sm:$0xff]
        %v389 = vld [vmem:[%s312 + $0x30] sm:$0xff]
        %v390 = vld [vmem:[%s312 + $0x38] sm:$0xff]
        %v391 = vld [vmem:[%s312 + $0x40] sm:$0xff]
        %v392 = vld [vmem:[%s312 + $0x48] sm:$0xff]
        %v393 = vld [vmem:[%s312 + $0x50] sm:$0xff]
        %v394 = vld [vmem:[%s312 + $0x58] sm:$0xff]
        %v395 = vld [vmem:[%s312 + $0x60] sm:$0xff]
        %v396 = vld [vmem:[%s312 + $0x68] sm:$0xff]
        %v397 = vld [vmem:[%s312 + $0x70] sm:$0xff]
        %v398 = vld [vmem:[%s312 + $0x78] sm:$0xff]
        %v399 = vld [vmem:[%s312 + $0x80] sm:$0xff]
        %v400 = vld [vmem:[%s312 + $0x88] sm:$0xff]
        %v401 = vld [vmem:[%s312 + $0x90] sm:$0xff]
        %v402 = vld [vmem:[%s312 + $0x98] sm:$0xff]
        %v403 = vld [vmem:[%s312 + $0xa0] sm:$0xff]
        %v404 = vld [vmem:[%s312 + $0xa8] sm:$0xff]
        %v405 = vld [vmem:[%s312 + $0xb0] sm:$0xff]
        %v406 = vld [vmem:[%s312 + $0xb8] sm:$0xff]
        %v407 = vld [vmem:[%s312 + $0xc0] sm:$0xff]
        %v408 = vld [vmem:[%s312 + $0xc8] sm:$0xff]
        %v409 = vld [vmem:[%s312 + $0xd0] sm:$0xff]
        %v410 = vld [vmem:[%s312 + $0xd8] sm:$0xff]
        %v411 = vld [vmem:[%s312 + $0xe0] sm:$0xff]
        %v412 = vld [vmem:[%s312 + $0xe8] sm:$0xff]
        %v413 = vld [vmem:[%s312 + $0xf0] sm:$0xff]
        %v414 = vld [vmem:[%s312 + $0xf8] sm:$0xff]
        %v415 = vld [vmem:[%s312 + $0x100] sm:$0xff]
        %v416 = vld [vmem:[%s312 + $0x108] sm:$0xff]
        %v417 = vld [vmem:[%s312 + $0x110] sm:$0xff]
        %v418 = vld [vmem:[%s312 + $0x118] sm:$0xff]
        %v419 = vld [vmem:[%s312 + $0x120] sm:$0xff]
        %v420 = vld [vmem:[%s312 + $0x128] sm:$0xff]
        %v421 = vld [vmem:[%s312 + $0x130] sm:$0xff]
        %v422 = vld [vmem:[%s312 + $0x138] sm:$0xff]
        %v423 = vld [vmem:[%s312 + $0x140] sm:$0xff]
        %v424 = vld [vmem:[%s312 + $0x148] sm:$0xff]
        %v425 = vld [vmem:[%s312 + $0x150] sm:$0xff]
        %v426 = vld [vmem:[%s312 + $0x158] sm:$0xff]
        %v427 = vld [vmem:[%s312 + $0x160] sm:$0xff]
        %v428 = vld [vmem:[%s312 + $0x168] sm:$0xff]
        %v429 = vld [vmem:[%s312 + $0x170] sm:$0xff]
        %v430 = vld [vmem:[%s312 + $0x178] sm:$0xff]
        %v431 = vld [vmem:[%s312 + $0x180] sm:$0xff]
        %v432 = vld [vmem:[%s312 + $0x188] sm:$0xff]
        %v433 = vld [vmem:[%s312 + $0x190] sm:$0xff]
        %v434 = vld [vmem:[%s312 + $0x198] sm:$0xff]
        %v435 = vld [vmem:[%s312 + $0x1a0] sm:$0xff]
        %v436 = vld [vmem:[%s312 + $0x1a8] sm:$0xff]
        %v437 = vld [vmem:[%s312 + $0x1b0] sm:$0xff]
        %v438 = vld [vmem:[%s312 + $0x1b8] sm:$0xff]
        %v439 = vld [vmem:[%s312 + $0x1c0] sm:$0xff]
        %v440 = vld [vmem:[%s312 + $0x1c8] sm:$0xff]
        %v441 = vld [vmem:[%s312 + $0x1d0] sm:$0xff]
        %v442 = vld [vmem:[%s312 + $0x1d8] sm:$0xff]
        %v443 = vld [vmem:[%s312 + $0x1e0] sm:$0xff]
        %v444 = vld [vmem:[%s312 + $0x1e8] sm:$0xff]
        %v445 = vld [vmem:[%s312 + $0x1f0] sm:$0xff]
        %v446 = vld [vmem:[%s312 + $0x1f8] sm:$0xff]
        %v447 = vld [vmem:[%s312 + $0x200] sm:$0xff]
        %v448 = vld [vmem:[%s312 + $0x208] sm:$0xff]
        %v449 = vld [vmem:[%s312 + $0x210] sm:$0xff]
        %v450 = vld [vmem:[%s312 + $0x218] sm:$0xff]
        %v451 = vld [vmem:[%s312 + $0x220] sm:$0xff]
        %v452 = vld [vmem:[%s312 + $0x228] sm:$0xff]
        %v453 = vld [vmem:[%s312 + $0x230] sm:$0xff]
        %v454 = vld [vmem:[%s312 + $0x238] sm:$0xff]
        %v455 = vld [vmem:[%s312 + $0x240] sm:$0xff]
        %v456 = vld [vmem:[%s312 + $0x248] sm:$0xff]
        %v457 = vld [vmem:[%s312 + $0x250] sm:$0xff]
        %v458 = vld [vmem:[%s312 + $0x258] sm:$0xff]
        %v459 = vld [vmem:[%s312 + $0x260] sm:$0xff]
        %v460 = vld [vmem:[%s312 + $0x268] sm:$0xff]
        %v461 = vld [vmem:[%s312 + $0x270] sm:$0xff]
        %v462 = vld [vmem:[%s312 + $0x278] sm:$0xff]
        %v463 = vld [vmem:[%s312 + $0x280] sm:$0xff]
        %v464 = vld [vmem:[%s312 + $0x288] sm:$0xff]
        %v465 = vld [vmem:[%s312 + $0x290] sm:$0xff]
        %v466 = vld [vmem:[%s312 + $0x298] sm:$0xff]
        %v467 = vld [vmem:[%s312 + $0x2a0] sm:$0xff]
        %v468 = vld [vmem:[%s312 + $0x2a8] sm:$0xff]
        %v469 = vld [vmem:[%s312 + $0x2b0] sm:$0xff]
        %v470 = vld [vmem:[%s312 + $0x2b8] sm:$0xff]
        %v471 = vld [vmem:[%s312 + $0x2c0] sm:$0xff]
        %v472 = vld [vmem:[%s312 + $0x2c8] sm:$0xff]
        %v473 = vld [vmem:[%s312 + $0x2d0] sm:$0xff]
        %v474 = vld [vmem:[%s312 + $0x2d8] sm:$0xff]
        %v475 = vld [vmem:[%s312 + $0x2e0] sm:$0xff]
        %v476 = vld [vmem:[%s312 + $0x2e8] sm:$0xff]
        %v477 = vld [vmem:[%s312 + $0x2f0] sm:$0xff]
        %v478 = vld [vmem:[%s312 + $0x2f8] sm:$0xff]
        %v479 = vld [vmem:[%s312 + $0x300] sm:$0xff]
        %v480 = vld [vmem:[%s312 + $0x308] sm:$0xff]
        %v481 = vld [vmem:[%s312 + $0x310] sm:$0xff]
        %v482 = vld [vmem:[%s312 + $0x318] sm:$0xff]
        %v483 = vld [vmem:[%s312 + $0x320] sm:$0xff]
        %v484 = vld [vmem:[%s312 + $0x328] sm:$0xff]
        %v485 = vld [vmem:[%s312 + $0x330] sm:$0xff]
        %v486 = vld [vmem:[%s312 + $0x338] sm:$0xff]
        %v487 = vld [vmem:[%s312 + $0x340] sm:$0xff]
        %v488 = vld [vmem:[%s312 + $0x348] sm:$0xff]
        %v489 = vld [vmem:[%s312 + $0x350] sm:$0xff]
        %v490 = vld [vmem:[%s312 + $0x358] sm:$0xff]
        %v491 = vld [vmem:[%s312 + $0x360] sm:$0xff]
        %v492 = vld [vmem:[%s312 + $0x368] sm:$0xff]
        %v493 = vld [vmem:[%s312 + $0x370] sm:$0xff]
        %v494 = vld [vmem:[%s312 + $0x378] sm:$0xff]
        %v495 = vld [vmem:[%s312 + $0x380] sm:$0xff]
        %v496 = vld [vmem:[%s312 + $0x388] sm:$0xff]
        %v497 = vld [vmem:[%s312 + $0x390] sm:$0xff]
        %v498 = vld [vmem:[%s312 + $0x398] sm:$0xff]
        %v499 = vld [vmem:[%s312 + $0x3a0] sm:$0xff]
        %v500 = vld [vmem:[%s312 + $0x3a8] sm:$0xff]
        %v501 = vld [vmem:[%s312 + $0x3b0] sm:$0xff]
        %v502 = vld [vmem:[%s312 + $0x3b8] sm:$0xff]
        %v503 = vld [vmem:[%s312 + $0x3c0] sm:$0xff]
        %v504 = vld [vmem:[%s312 + $0x3c8] sm:$0xff]
        %v505 = vld [vmem:[%s312 + $0x3d0] sm:$0xff]
        %v506 = vld [vmem:[%s312 + $0x3d8] sm:$0xff]
        %v507 = vld [vmem:[%s312 + $0x3e0] sm:$0xff]
        %v508 = vld [vmem:[%s312 + $0x3e8] sm:$0xff]
        %v509 = vld [vmem:[%s312 + $0x3f0] sm:$0xff]
        %v510 = vld [vmem:[%s312 + $0x3f8] sm:$0xff]
        %v511 = vld [vmem:[%s312 + $0x400] sm:$0xff]
        %v512 = vld [vmem:[%s312 + $0x408] sm:$0xff]
        %v513 = vld [vmem:[%s312 + $0x410] sm:$0xff]
        %v514 = vld [vmem:[%s312 + $0x418] sm:$0xff]
        %v515 = vld [vmem:[%s312 + $0x420] sm:$0xff]
        %v516 = vld [vmem:[%s312 + $0x428] sm:$0xff]
        %v517 = vld [vmem:[%s312 + $0x430] sm:$0xff]
        %v518 = vld [vmem:[%s312 + $0x438] sm:$0xff]
        %v519 = vld [vmem:[%s312 + $0x440] sm:$0xff]
        %v520 = vld [vmem:[%s312 + $0x448] sm:$0xff]
        %v521 = vld [vmem:[%s312 + $0x450] sm:$0xff]
        %v522 = vld [vmem:[%s312 + $0x458] sm:$0xff]
        %v523 = vld [vmem:[%s312 + $0x460] sm:$0xff]
        %v524 = vld [vmem:[%s312 + $0x468] sm:$0xff]
        %v525 = vld [vmem:[%s312 + $0x470] sm:$0xff]
        %v526 = vld [vmem:[%s312 + $0x478] sm:$0xff]
        %v527 = vld [vmem:[%s312 + $0x480] sm:$0xff]
        %v528 = vld [vmem:[%s312 + $0x488] sm:$0xff]
        %v529 = vld [vmem:[%s312 + $0x490] sm:$0xff]
        %v530 = vld [vmem:[%s312 + $0x498] sm:$0xff]
        %v531 = vld [vmem:[%s312 + $0x4a0] sm:$0xff]
        %v532 = vld [vmem:[%s312 + $0x4a8] sm:$0xff]
        %v533 = vld [vmem:[%s312 + $0x4b0] sm:$0xff]
        %v534 = vld [vmem:[%s312 + $0x4b8] sm:$0xff]
        %v535 = vld [vmem:[%s312 + $0x4c0] sm:$0xff]
        %v536 = vld [vmem:[%s312 + $0x4c8] sm:$0xff]
        %v537 = vld [vmem:[%s312 + $0x4d0] sm:$0xff]
        %v538 = vld [vmem:[%s312 + $0x4d8] sm:$0xff]
        %v539 = vld [vmem:[%s312 + $0x4e0] sm:$0xff]
        %v540 = vld [vmem:[%s312 + $0x4e8] sm:$0xff]
        %v541 = vld [vmem:[%s312 + $0x4f0] sm:$0xff]
        %v542 = vld [vmem:[%s312 + $0x4f8] sm:$0xff]
        %v543 = vld [vmem:[%s312 + $0x500] sm:$0xff]
        %v544 = vld [vmem:[%s312 + $0x508] sm:$0xff]
        %v545 = vld [vmem:[%s312 + $0x510] sm:$0xff]
        %v546 = vld [vmem:[%s312 + $0x518] sm:$0xff]
        %v547 = vld [vmem:[%s312 + $0x520] sm:$0xff]
        %v548 = vld [vmem:[%s312 + $0x528] sm:$0xff]
        %v549 = vld [vmem:[%s312 + $0x530] sm:$0xff]
        %v550 = vld [vmem:[%s312 + $0x538] sm:$0xff]
        %v551 = vld [vmem:[%s312 + $0x540] sm:$0xff]
        %v552 = vld [vmem:[%s312 + $0x548] sm:$0xff]
        %v553 = vld [vmem:[%s312 + $0x550] sm:$0xff]
        %v554 = vld [vmem:[%s312 + $0x558] sm:$0xff]
        %v555 = vld [vmem:[%s312 + $0x560] sm:$0xff]
        %v556 = vld [vmem:[%s312 + $0x568] sm:$0xff]
        %v557 = vld [vmem:[%s312 + $0x570] sm:$0xff]
        %v558 = vld [vmem:[%s312 + $0x578] sm:$0xff]
        %v559 = vld [vmem:[%s312 + $0x580] sm:$0xff]
        %v560 = vld [vmem:[%s312 + $0x588] sm:$0xff]
        %v561 = vld [vmem:[%s312 + $0x590] sm:$0xff]
        %v562 = vld [vmem:[%s312 + $0x598] sm:$0xff]
        %v563 = vld [vmem:[%s312 + $0x5a0] sm:$0xff]
        %v564 = vld [vmem:[%s312 + $0x5a8] sm:$0xff]
        %v565 = vld [vmem:[%s312 + $0x5b0] sm:$0xff]
        %v566 = vld [vmem:[%s312 + $0x5b8] sm:$0xff]
        %v567 = vld [vmem:[%s312 + $0x5c0] sm:$0xff]
        %v568 = vld [vmem:[%s312 + $0x5c8] sm:$0xff]
        %v569 = vld [vmem:[%s312 + $0x5d0] sm:$0xff]
        %v570 = vld [vmem:[%s312 + $0x5d8] sm:$0xff]
        %v571 = vld [vmem:[%s312 + $0x5e0] sm:$0xff]
        %v572 = vld [vmem:[%s312 + $0x5e8] sm:$0xff]
        %v573 = vld [vmem:[%s312 + $0x5f0] sm:$0xff]
        %v574 = vld [vmem:[%s312 + $0x5f8] sm:$0xff]
        %v575 = vld [vmem:[%s312 + $0x600] sm:$0xff]
        %v576 = vld [vmem:[%s312 + $0x608] sm:$0xff]
        %v577 = vld [vmem:[%s312 + $0x610] sm:$0xff]
        %v578 = vld [vmem:[%s312 + $0x618] sm:$0xff]
        %v579 = vld [vmem:[%s312 + $0x620] sm:$0xff]
        %v580 = vld [vmem:[%s312 + $0x628] sm:$0xff]
        %v581 = vld [vmem:[%s312 + $0x630] sm:$0xff]
        %v582 = vld [vmem:[%s312 + $0x638] sm:$0xff]
        %v583 = vld [vmem:[%s312 + $0x640] sm:$0xff]
        %v584 = vld [vmem:[%s312 + $0x648] sm:$0xff]
        %v585 = vld [vmem:[%s312 + $0x650] sm:$0xff]
        %v586 = vld [vmem:[%s312 + $0x658] sm:$0xff]
        %v587 = vld [vmem:[%s312 + $0x660] sm:$0xff]
        %v588 = vld [vmem:[%s312 + $0x668] sm:$0xff]
        %v589 = vld [vmem:[%s312 + $0x670] sm:$0xff]
        %v590 = vld [vmem:[%s312 + $0x678] sm:$0xff]
        %v591 = vld [vmem:[%s312 + $0x680] sm:$0xff]
        %v592 = vld [vmem:[%s312 + $0x688] sm:$0xff]
        %v593 = vld [vmem:[%s312 + $0x690] sm:$0xff]
        %v594 = vld [vmem:[%s312 + $0x698] sm:$0xff]
        %v595 = vld [vmem:[%s312 + $0x6a0] sm:$0xff]
        %v596 = vld [vmem:[%s312 + $0x6a8] sm:$0xff]
        %v597 = vld [vmem:[%s312 + $0x6b0] sm:$0xff]
        %v598 = vld [vmem:[%s312 + $0x6b8] sm:$0xff]
        %v599 = vld [vmem:[%s312 + $0x6c0] sm:$0xff]
        %v600 = vld [vmem:[%s312 + $0x6c8] sm:$0xff]
        %v601 = vld [vmem:[%s312 + $0x6d0] sm:$0xff]
        %v602 = vld [vmem:[%s312 + $0x6d8] sm:$0xff]
        %v603 = vld [vmem:[%s312 + $0x6e0] sm:$0xff]
        %v604 = vld [vmem:[%s312 + $0x6e8] sm:$0xff]
        %v605 = vld [vmem:[%s312 + $0x6f0] sm:$0xff]
        %v606 = vld [vmem:[%s312 + $0x6f8] sm:$0xff]
        %v607 = vld [vmem:[%s312 + $0x700] sm:$0xff]
        %v608 = vld [vmem:[%s312 + $0x708] sm:$0xff]
        %v609 = vld [vmem:[%s312 + $0x710] sm:$0xff]
        %v610 = vld [vmem:[%s312 + $0x718] sm:$0xff]
        %v611 = vld [vmem:[%s312 + $0x720] sm:$0xff]
        %v612 = vld [vmem:[%s312 + $0x728] sm:$0xff]
        %v613 = vld [vmem:[%s312 + $0x730] sm:$0xff]
        %v614 = vld [vmem:[%s312 + $0x738] sm:$0xff]
        %v615 = vld [vmem:[%s312 + $0x740] sm:$0xff]
        %v616 = vld [vmem:[%s312 + $0x748] sm:$0xff]
        %v617 = vld [vmem:[%s312 + $0x750] sm:$0xff]
        %v618 = vld [vmem:[%s312 + $0x758] sm:$0xff]
        %v619 = vld [vmem:[%s312 + $0x760] sm:$0xff]
        %v620 = vld [vmem:[%s312 + $0x768] sm:$0xff]
        %v621 = vld [vmem:[%s312 + $0x770] sm:$0xff]
        %v622 = vld [vmem:[%s312 + $0x778] sm:$0xff]
        %v623 = vld [vmem:[%s312 + $0x780] sm:$0xff]
        %v624 = vld [vmem:[%s312 + $0x788] sm:$0xff]
        %v625 = vld [vmem:[%s312 + $0x790] sm:$0xff]
        %v626 = vld [vmem:[%s312 + $0x798] sm:$0xff]
        %v627 = vld [vmem:[%s312 + $0x7a0] sm:$0xff]
        %v628 = vld [vmem:[%s312 + $0x7a8] sm:$0xff]
        %v629 = vld [vmem:[%s312 + $0x7b0] sm:$0xff]
        %v630 = vld [vmem:[%s312 + $0x7b8] sm:$0xff]
        %v631 = vld [vmem:[%s312 + $0x7c0] sm:$0xff]
        %v632 = vld [vmem:[%s312 + $0x7c8] sm:$0xff]
        %v633 = vld [vmem:[%s312 + $0x7d0] sm:$0xff]
        %v634 = vld [vmem:[%s312 + $0x7d8] sm:$0xff]
        %v635 = vld [vmem:[%s312 + $0x7e0] sm:$0xff]
        %v636 = vld [vmem:[%s312 + $0x7e8] sm:$0xff]
        %v637 = vld [vmem:[%s312 + $0x7f0] sm:$0xff]
        %v638 = vld [vmem:[%s312 + $0x7f8] sm:$0xff]
        %v639 = vld [vmem:[%s312 + $0x800] sm:$0xff]
        %v640 = vld [vmem:[%s312 + $0x808] sm:$0xff]
        %v641 = vld [vmem:[%s312 + $0x810] sm:$0xff]
        %v642 = vld [vmem:[%s312 + $0x818] sm:$0xff]
        %v643 = vld [vmem:[%s312 + $0x820] sm:$0xff]
        %v644 = vld [vmem:[%s312 + $0x828] sm:$0xff]
        %v645 = vld [vmem:[%s312 + $0x830] sm:$0xff]
        %v646 = vld [vmem:[%s312 + $0x838] sm:$0xff]
        %v647 = vld [vmem:[%s312 + $0x840] sm:$0xff]
        %v648 = vld [vmem:[%s312 + $0x848] sm:$0xff]
        %v649 = vld [vmem:[%s312 + $0x850] sm:$0xff]
        %v650 = vld [vmem:[%s312 + $0x858] sm:$0xff]
        %v651 = vld [vmem:[%s312 + $0x860] sm:$0xff]
        %v652 = vld [vmem:[%s312 + $0x868] sm:$0xff]
        %v653 = vld [vmem:[%s312 + $0x870] sm:$0xff]
        %v654 = vld [vmem:[%s312 + $0x878] sm:$0xff]
        %v655 = vld [vmem:[%s312 + $0x880] sm:$0xff]
        %v656 = vld [vmem:[%s312 + $0x888] sm:$0xff]
        %v657 = vld [vmem:[%s312 + $0x890] sm:$0xff]
        %v658 = vld [vmem:[%s312 + $0x898] sm:$0xff]
        %v659 = vld [vmem:[%s312 + $0x8a0] sm:$0xff]
        %v660 = vld [vmem:[%s312 + $0x8a8] sm:$0xff]
        %v661 = vld [vmem:[%s312 + $0x8b0] sm:$0xff]
        %v662 = vld [vmem:[%s312 + $0x8b8] sm:$0xff]
        %v663 = vld [vmem:[%s312 + $0x8c0] sm:$0xff]
        %v664 = vld [vmem:[%s312 + $0x8c8] sm:$0xff]
        %v665 = vld [vmem:[%s312 + $0x8d0] sm:$0xff]
        %v666 = vld [vmem:[%s312 + $0x8d8] sm:$0xff]
        %v667 = vld [vmem:[%s312 + $0x8e0] sm:$0xff]
        %v668 = vld [vmem:[%s312 + $0x8e8] sm:$0xff]
        %v669 = vld [vmem:[%s312 + $0x8f0] sm:$0xff]
        %v670 = vld [vmem:[%s312 + $0x8f8] sm:$0xff]
        %v671 = vld [vmem:[%s312 + $0x900] sm:$0xff]
        %v672 = vld [vmem:[%s312 + $0x908] sm:$0xff]
        %v673 = vld [vmem:[%s312 + $0x910] sm:$0xff]
        %v674 = vld [vmem:[%s312 + $0x918] sm:$0xff]
        %v675 = vld [vmem:[%s312 + $0x920] sm:$0xff]
        %v676 = vld [vmem:[%s312 + $0x928] sm:$0xff]
        %v677 = vld [vmem:[%s312 + $0x930] sm:$0xff]
        %v678 = vld [vmem:[%s312 + $0x938] sm:$0xff]
        %v679 = vld [vmem:[%s312 + $0x940] sm:$0xff]
        %v680 = vld [vmem:[%s312 + $0x948] sm:$0xff]
        %v681 = vld [vmem:[%s312 + $0x950] sm:$0xff]
        %v682 = vld [vmem:[%s312 + $0x958] sm:$0xff]
        %v683 = vld [vmem:[%s312 + $0x960] sm:$0xff]
        %v684 = vld [vmem:[%s312 + $0x968] sm:$0xff]
        %v685 = vld [vmem:[%s312 + $0x970] sm:$0xff]
        %v686 = vld [vmem:[%s312 + $0x978] sm:$0xff]
        %v687 = vld [vmem:[%s312 + $0x980] sm:$0xff]
        %v688 = vld [vmem:[%s312 + $0x988] sm:$0xff]
        %v689 = vld [vmem:[%s312 + $0x990] sm:$0xff]
        %v690 = vld [vmem:[%s312 + $0x998] sm:$0xff]
        %v691 = vld [vmem:[%s312 + $0x9a0] sm:$0xff]
        %v692 = vld [vmem:[%s312 + $0x9a8] sm:$0xff]
        %v693 = vld [vmem:[%s312 + $0x9b0] sm:$0xff]
        %v694 = vld [vmem:[%s312 + $0x9b8] sm:$0xff]
        %v695 = vld [vmem:[%s312 + $0x9c0] sm:$0xff]
        %v696 = vld [vmem:[%s312 + $0x9c8] sm:$0xff]
        %v697 = vld [vmem:[%s312 + $0x9d0] sm:$0xff]
        %v698 = vld [vmem:[%s312 + $0x9d8] sm:$0xff]
        %v699 = vld [vmem:[%s312 + $0x9e0] sm:$0xff]
        %v700 = vld [vmem:[%s312 + $0x9e8] sm:$0xff]
        %v701 = vld [vmem:[%s312 + $0x9f0] sm:$0xff]
        %v702 = vld [vmem:[%s312 + $0x9f8] sm:$0xff]
        %v703 = vld [vmem:[%s312 + $0xa00] sm:$0xff]
        %v704 = vld [vmem:[%s312 + $0xa08] sm:$0xff]
        %v705 = vld [vmem:[%s312 + $0xa10] sm:$0xff]
        %v706 = vld [vmem:[%s312 + $0xa18] sm:$0xff]
        %v707 = vld [vmem:[%s312 + $0xa20] sm:$0xff]
        %v708 = vld [vmem:[%s312 + $0xa28] sm:$0xff]
        %v709 = vld [vmem:[%s312 + $0xa30] sm:$0xff]
        %v710 = vld [vmem:[%s312 + $0xa38] sm:$0xff]
        %v711 = vld [vmem:[%s312 + $0xa40] sm:$0xff]
        %v712 = vld [vmem:[%s312 + $0xa48] sm:$0xff]
        %v713 = vld [vmem:[%s312 + $0xa50] sm:$0xff]
        %v714 = vld [vmem:[%s312 + $0xa58] sm:$0xff]
        %v715 = vld [vmem:[%s312 + $0xa60] sm:$0xff]
        %v716 = vld [vmem:[%s312 + $0xa68] sm:$0xff]
        %v717 = vld [vmem:[%s312 + $0xa70] sm:$0xff]
        %v718 = vld [vmem:[%s312 + $0xa78] sm:$0xff]
        %v719 = vld [vmem:[%s312 + $0xa80] sm:$0xff]
        %v720 = vld [vmem:[%s312 + $0xa88] sm:$0xff]
        %v721 = vld [vmem:[%s312 + $0xa90] sm:$0xff]
        %v722 = vld [vmem:[%s312 + $0xa98] sm:$0xff]
        %v723 = vld [vmem:[%s312 + $0xaa0] sm:$0xff]
        %v724 = vld [vmem:[%s312 + $0xaa8] sm:$0xff]
        %v725 = vld [vmem:[%s312 + $0xab0] sm:$0xff]
        %v726 = vld [vmem:[%s312 + $0xab8] sm:$0xff]
        %v727 = vld [vmem:[%s312 + $0xac0] sm:$0xff]
        %v728 = vld [vmem:[%s312 + $0xac8] sm:$0xff]
        %v729 = vld [vmem:[%s312 + $0xad0] sm:$0xff]
        %v730 = vld [vmem:[%s312 + $0xad8] sm:$0xff]
        %v731 = vld [vmem:[%s312 + $0xae0] sm:$0xff]
        %v732 = vld [vmem:[%s312 + $0xae8] sm:$0xff]
        %v733 = vld [vmem:[%s312 + $0xaf0] sm:$0xff]
        %v734 = vld [vmem:[%s312 + $0xaf8] sm:$0xff]
        %v735 = vld [vmem:[%s312 + $0xb00] sm:$0xff]
        %v736 = vld [vmem:[%s312 + $0xb08] sm:$0xff]
        %v737 = vld [vmem:[%s312 + $0xb10] sm:$0xff]
        %v738 = vld [vmem:[%s312 + $0xb18] sm:$0xff]
        %v739 = vld [vmem:[%s312 + $0xb20] sm:$0xff]
        %v740 = vld [vmem:[%s312 + $0xb28] sm:$0xff]
        %v741 = vld [vmem:[%s312 + $0xb30] sm:$0xff]
        %v742 = vld [vmem:[%s312 + $0xb38] sm:$0xff]
        %v743 = vld [vmem:[%s312 + $0xb40] sm:$0xff]
        %v744 = vld [vmem:[%s312 + $0xb48] sm:$0xff]
        %v745 = vld [vmem:[%s312 + $0xb50] sm:$0xff]
        %v746 = vld [vmem:[%s312 + $0xb58] sm:$0xff]
        %v747 = vld [vmem:[%s312 + $0xb60] sm:$0xff]
        %v748 = vld [vmem:[%s312 + $0xb68] sm:$0xff]
        %v749 = vld [vmem:[%s312 + $0xb70] sm:$0xff]
        %v750 = vld [vmem:[%s312 + $0xb78] sm:$0xff]
        %v751 = vld [vmem:[%s312 + $0xb80] sm:$0xff]
        %v752 = vld [vmem:[%s312 + $0xb88] sm:$0xff]
        %v753 = vld [vmem:[%s312 + $0xb90] sm:$0xff]
        %v754 = vld [vmem:[%s312 + $0xb98] sm:$0xff]
        %v755 = vld [vmem:[%s312 + $0xba0] sm:$0xff]
        %v756 = vld [vmem:[%s312 + $0xba8] sm:$0xff]
        %v757 = vld [vmem:[%s312 + $0xbb0] sm:$0xff]
        %v758 = vld [vmem:[%s312 + $0xbb8] sm:$0xff]
        %v759 = vld [vmem:[%s312 + $0xbc0] sm:$0xff]
        %v760 = vld [vmem:[%s312 + $0xbc8] sm:$0xff]
        %v761 = vld [vmem:[%s312 + $0xbd0] sm:$0xff]
        %v762 = vld [vmem:[%s312 + $0xbd8] sm:$0xff]
        %v763 = vld [vmem:[%s312 + $0xbe0] sm:$0xff]
        %v764 = vld [vmem:[%s312 + $0xbe8] sm:$0xff]
        %v765 = vld [vmem:[%s312 + $0xbf0] sm:$0xff]
        %v766 = vld [vmem:[%s312 + $0xbf8] sm:$0xff]
        %v767 = vld [vmem:[%s312 + $0xc00] sm:$0xff]
        %v768 = vld [vmem:[%s312 + $0xc08] sm:$0xff]
        %v769 = vld [vmem:[%s312 + $0xc10] sm:$0xff]
        %v770 = vld [vmem:[%s312 + $0xc18] sm:$0xff]
        %v771 = vld [vmem:[%s312 + $0xc20] sm:$0xff]
        %v772 = vld [vmem:[%s312 + $0xc28] sm:$0xff]
        %v773 = vld [vmem:[%s312 + $0xc30] sm:$0xff]
        %v774 = vld [vmem:[%s312 + $0xc38] sm:$0xff]
        %v775 = vld [vmem:[%s312 + $0xc40] sm:$0xff]
        %v776 = vld [vmem:[%s312 + $0xc48] sm:$0xff]
        %v777 = vld [vmem:[%s312 + $0xc50] sm:$0xff]
        %v778 = vld [vmem:[%s312 + $0xc58] sm:$0xff]
        %v779 = vld [vmem:[%s312 + $0xc60] sm:$0xff]
        %v780 = vld [vmem:[%s312 + $0xc68] sm:$0xff]
        %v781 = vld [vmem:[%s312 + $0xc70] sm:$0xff]
        %v782 = vld [vmem:[%s312 + $0xc78] sm:$0xff]
        %v783 = vld [vmem:[%s312 + $0xc80] sm:$0xff]
        %v784 = vld [vmem:[%s312 + $0xc88] sm:$0xff]
        %v785 = vld [vmem:[%s312 + $0xc90] sm:$0xff]
        %v786 = vld [vmem:[%s312 + $0xc98] sm:$0xff]
        %v787 = vld [vmem:[%s312 + $0xca0] sm:$0xff]
        %v788 = vld [vmem:[%s312 + $0xca8] sm:$0xff]
        %v789 = vld [vmem:[%s312 + $0xcb0] sm:$0xff]
        %v790 = vld [vmem:[%s312 + $0xcb8] sm:$0xff]
        %v791 = vld [vmem:[%s312 + $0xcc0] sm:$0xff]
        %v792 = vld [vmem:[%s312 + $0xcc8] sm:$0xff]
        %v793 = vld [vmem:[%s312 + $0xcd0] sm:$0xff]
        %v794 = vld [vmem:[%s312 + $0xcd8] sm:$0xff]
        %v795 = vld [vmem:[%s312 + $0xce0] sm:$0xff]
        %v796 = vld [vmem:[%s312 + $0xce8] sm:$0xff]
        %v797 = vld [vmem:[%s312 + $0xcf0] sm:$0xff]
        %v798 = vld [vmem:[%s312 + $0xcf8] sm:$0xff]
        %v799 = vld [vmem:[%s312 + $0xd00] sm:$0xff]
        %v800 = vld [vmem:[%s312 + $0xd08] sm:$0xff]
        %v801 = vld [vmem:[%s312 + $0xd10] sm:$0xff]
        %v802 = vld [vmem:[%s312 + $0xd18] sm:$0xff]
        %v803 = vld [vmem:[%s312 + $0xd20] sm:$0xff]
        %v804 = vld [vmem:[%s312 + $0xd28] sm:$0xff]
        %v805 = vld [vmem:[%s312 + $0xd30] sm:$0xff]
        %v806 = vld [vmem:[%s312 + $0xd38] sm:$0xff]
        %v807 = vld [vmem:[%s312 + $0xd40] sm:$0xff]
        %v808 = vld [vmem:[%s312 + $0xd48] sm:$0xff]
        %v809 = vld [vmem:[%s312 + $0xd50] sm:$0xff]
        %v810 = vld [vmem:[%s312 + $0xd58] sm:$0xff]
        %v811 = vld [vmem:[%s312 + $0xd60] sm:$0xff]
        %v812 = vld [vmem:[%s312 + $0xd68] sm:$0xff]
        %v813 = vld [vmem:[%s312 + $0xd70] sm:$0xff]
        %v814 = vld [vmem:[%s312 + $0xd78] sm:$0xff]
        %v815 = vld [vmem:[%s312 + $0xd80] sm:$0xff]
        %v816 = vld [vmem:[%s312 + $0xd88] sm:$0xff]
        %v817 = vld [vmem:[%s312 + $0xd90] sm:$0xff]
        %v818 = vld [vmem:[%s312 + $0xd98] sm:$0xff]
        %v819 = vld [vmem:[%s312 + $0xda0] sm:$0xff]
        %v820 = vld [vmem:[%s312 + $0xda8] sm:$0xff]
        %v821 = vld [vmem:[%s312 + $0xdb0] sm:$0xff]
        %v822 = vld [vmem:[%s312 + $0xdb8] sm:$0xff]
        %v823 = vld [vmem:[%s312 + $0xdc0] sm:$0xff]
        %v824 = vld [vmem:[%s312 + $0xdc8] sm:$0xff]
        %v825 = vld [vmem:[%s312 + $0xdd0] sm:$0xff]
        %v826 = vld [vmem:[%s312 + $0xdd8] sm:$0xff]
        %v827 = vld [vmem:[%s312 + $0xde0] sm:$0xff]
        %v828 = vld [vmem:[%s312 + $0xde8] sm:$0xff]
        %v829 = vld [vmem:[%s312 + $0xdf0] sm:$0xff]
        %v830 = vld [vmem:[%s312 + $0xdf8] sm:$0xff]
        %v831 = vld [vmem:[%s312 + $0xe00] sm:$0xff]
        %v832 = vld [vmem:[%s312 + $0xe08] sm:$0xff]
        %v833 = vld [vmem:[%s312 + $0xe10] sm:$0xff]
        %v834 = vld [vmem:[%s312 + $0xe18] sm:$0xff]
        %v835 = vld [vmem:[%s312 + $0xe20] sm:$0xff]
        %v836 = vld [vmem:[%s312 + $0xe28] sm:$0xff]
        %v837 = vld [vmem:[%s312 + $0xe30] sm:$0xff]
        %v838 = vld [vmem:[%s312 + $0xe38] sm:$0xff]
        %v839 = vld [vmem:[%s312 + $0xe40] sm:$0xff]
        %v840 = vld [vmem:[%s312 + $0xe48] sm:$0xff]
        %v841 = vld [vmem:[%s312 + $0xe50] sm:$0xff]
        %v842 = vld [vmem:[%s312 + $0xe58] sm:$0xff]
        %v843 = vld [vmem:[%s312 + $0xe60] sm:$0xff]
        %v844 = vld [vmem:[%s312 + $0xe68] sm:$0xff]
        %v845 = vld [vmem:[%s312 + $0xe70] sm:$0xff]
        %v846 = vld [vmem:[%s312 + $0xe78] sm:$0xff]
        %v847 = vld [vmem:[%s312 + $0xe80] sm:$0xff]
        %v848 = vld [vmem:[%s312 + $0xe88] sm:$0xff]
        %v849 = vld [vmem:[%s312 + $0xe90] sm:$0xff]
        %v850 = vld [vmem:[%s312 + $0xe98] sm:$0xff]
        %v851 = vld [vmem:[%s312 + $0xea0] sm:$0xff]
        %v852 = vld [vmem:[%s312 + $0xea8] sm:$0xff]
        %v853 = vld [vmem:[%s312 + $0xeb0] sm:$0xff]
        %v854 = vld [vmem:[%s312 + $0xeb8] sm:$0xff]
        %v855 = vld [vmem:[%s312 + $0xec0] sm:$0xff]
        %v856 = vld [vmem:[%s312 + $0xec8] sm:$0xff]
        %v857 = vld [vmem:[%s312 + $0xed0] sm:$0xff]
        %v858 = vld [vmem:[%s312 + $0xed8] sm:$0xff]
        %v859 = vld [vmem:[%s312 + $0xee0] sm:$0xff]
        %v860 = vld [vmem:[%s312 + $0xee8] sm:$0xff]
        %v861 = vld [vmem:[%s312 + $0xef0] sm:$0xff]
        %v862 = vld [vmem:[%s312 + $0xef8] sm:$0xff]
        %v863 = vld [vmem:[%s312 + $0xf00] sm:$0xff]
        %v864 = vld [vmem:[%s312 + $0xf08] sm:$0xff]
        %v865 = vld [vmem:[%s312 + $0xf10] sm:$0xff]
        %v866 = vld [vmem:[%s312 + $0xf18] sm:$0xff]
        %v867 = vld [vmem:[%s312 + $0xf20] sm:$0xff]
        %v868 = vld [vmem:[%s312 + $0xf28] sm:$0xff]
        %v869 = vld [vmem:[%s312 + $0xf30] sm:$0xff]
        %v870 = vld [vmem:[%s312 + $0xf38] sm:$0xff]
        %v871 = vld [vmem:[%s312 + $0xf40] sm:$0xff]
        %v872 = vld [vmem:[%s312 + $0xf48] sm:$0xff]
        %v873 = vld [vmem:[%s312 + $0xf50] sm:$0xff]
        %v874 = vld [vmem:[%s312 + $0xf58] sm:$0xff]
        %v875 = vld [vmem:[%s312 + $0xf60] sm:$0xff]
        %v876 = vld [vmem:[%s312 + $0xf68] sm:$0xff]
        %v877 = vld [vmem:[%s312 + $0xf70] sm:$0xff]
        %v878 = vld [vmem:[%s312 + $0xf78] sm:$0xff]
        %v879 = vld [vmem:[%s312 + $0xf80] sm:$0xff]
        %v880 = vld [vmem:[%s312 + $0xf88] sm:$0xff]
        %v881 = vld [vmem:[%s312 + $0xf90] sm:$0xff]
        %v882 = vld [vmem:[%s312 + $0xf98] sm:$0xff]
        %v883 = vld [vmem:[%s312 + $0xfa0] sm:$0xff]
        %v884 = vld [vmem:[%s312 + $0xfa8] sm:$0xff]
        %v885 = vld [vmem:[%s312 + $0xfb0] sm:$0xff]
        %v886 = vld [vmem:[%s312 + $0xfb8] sm:$0xff]
        %v887 = vld [vmem:[%s312 + $0xfc0] sm:$0xff]
        %v888 = vld [vmem:[%s312 + $0xfc8] sm:$0xff]
        %v889 = vld [vmem:[%s312 + $0xfd0] sm:$0xff]
        %v890 = vld [vmem:[%s312 + $0xfd8] sm:$0xff]
        %v891 = vld [vmem:[%s312 + $0xfe0] sm:$0xff]
        %v892 = vld [vmem:[%s312 + $0xfe8] sm:$0xff]
        %v893 = vld [vmem:[%s312 + $0xff0] sm:$0xff]
        %v894 = vld [vmem:[%s312 + $0xff8] sm:$0xff]
        %v895 = vld [vmem:[%s312 + $0x1000] sm:$0xff]
        %v896 = vld [vmem:[%s312 + $0x1008] sm:$0xff]
        %v897 = vld [vmem:[%s312 + $0x1010] sm:$0xff]
        %v898 = vld [vmem:[%s312 + $0x1018] sm:$0xff]
        %v899 = vld [vmem:[%s312 + $0x1020] sm:$0xff]
        %v900 = vld [vmem:[%s312 + $0x1028] sm:$0xff]
        %v901 = vld [vmem:[%s312 + $0x1030] sm:$0xff]
        %v902 = vld [vmem:[%s312 + $0x1038] sm:$0xff]
        %v903 = vld [vmem:[%s312 + $0x1040] sm:$0xff]
        %v904 = vld [vmem:[%s312 + $0x1048] sm:$0xff]
        %v905 = vld [vmem:[%s312 + $0x1050] sm:$0xff]
        %v906 = vld [vmem:[%s312 + $0x1058] sm:$0xff]
        %v907 = vld [vmem:[%s312 + $0x1060] sm:$0xff]
        %v908 = vld [vmem:[%s312 + $0x1068] sm:$0xff]
        %v909 = vld [vmem:[%s312 + $0x1070] sm:$0xff]
        %v910 = vld [vmem:[%s312 + $0x1078] sm:$0xff]
        %v911 = vld [vmem:[%s312 + $0x1080] sm:$0xff]
        %v912 = vld [vmem:[%s312 + $0x1088] sm:$0xff]
        %v913 = vld [vmem:[%s312 + $0x1090] sm:$0xff]
        %v914 = vld [vmem:[%s312 + $0x1098] sm:$0xff]
        %v915 = vld [vmem:[%s312 + $0x10a0] sm:$0xff]
        %v916 = vld [vmem:[%s312 + $0x10a8] sm:$0xff]
        %v917 = vld [vmem:[%s312 + $0x10b0] sm:$0xff]
        %v918 = vld [vmem:[%s312 + $0x10b8] sm:$0xff]
        %v919 = vld [vmem:[%s312 + $0x10c0] sm:$0xff]
        %v920 = vld [vmem:[%s312 + $0x10c8] sm:$0xff]
        %v921 = vld [vmem:[%s312 + $0x10d0] sm:$0xff]
        %v922 = vld [vmem:[%s312 + $0x10d8] sm:$0xff]
        %v923 = vld [vmem:[%s312 + $0x10e0] sm:$0xff]
        %v924 = vld [vmem:[%s312 + $0x10e8] sm:$0xff]
        %v925 = vld [vmem:[%s312 + $0x10f0] sm:$0xff]
        %v926 = vld [vmem:[%s312 + $0x10f8] sm:$0xff]
        %v927 = vld [vmem:[%s312 + $0x1100] sm:$0xff]
        %v928 = vld [vmem:[%s312 + $0x1108] sm:$0xff]
        %v929 = vld [vmem:[%s312 + $0x1110] sm:$0xff]
        %v930 = vld [vmem:[%s312 + $0x1118] sm:$0xff]
        %v931 = vld [vmem:[%s312 + $0x1120] sm:$0xff]
        %v932 = vld [vmem:[%s312 + $0x1128] sm:$0xff]
        %v933 = vld [vmem:[%s312 + $0x1130] sm:$0xff]
        %v934 = vld [vmem:[%s312 + $0x1138] sm:$0xff]
        %v935 = vld [vmem:[%s312 + $0x1140] sm:$0xff]
        %v936 = vld [vmem:[%s312 + $0x1148] sm:$0xff]
        %v937 = vld [vmem:[%s312 + $0x1150] sm:$0xff]
        %v938 = vld [vmem:[%s312 + $0x1158] sm:$0xff]
        %v939 = vld [vmem:[%s312 + $0x1160] sm:$0xff]
        %v940 = vld [vmem:[%s312 + $0x1168] sm:$0xff]
        %v941 = vld [vmem:[%s312 + $0x1170] sm:$0xff]
        %v942 = vld [vmem:[%s312 + $0x1178] sm:$0xff]
        %v943 = vld [vmem:[%s312 + $0x1180] sm:$0xff]
        %v944 = vld [vmem:[%s312 + $0x1188] sm:$0xff]
        %v945 = vld [vmem:[%s312 + $0x1190] sm:$0xff]
        %v946 = vld [vmem:[%s312 + $0x1198] sm:$0xff]
        %v947 = vld [vmem:[%s312 + $0x11a0] sm:$0xff]
        %v948 = vld [vmem:[%s312 + $0x11a8] sm:$0xff]
        %v949 = vld [vmem:[%s312 + $0x11b0] sm:$0xff]
        %v950 = vld [vmem:[%s312 + $0x11b8] sm:$0xff]
        %v951 = vld [vmem:[%s312 + $0x11c0] sm:$0xff]
        %v952 = vld [vmem:[%s312 + $0x11c8] sm:$0xff]
        %v953 = vld [vmem:[%s312 + $0x11d0] sm:$0xff]
        %v954 = vld [vmem:[%s312 + $0x11d8] sm:$0xff]
        %v955 = vld [vmem:[%s312 + $0x11e0] sm:$0xff]
        %v956 = vld [vmem:[%s312 + $0x11e8] sm:$0xff]
        %v957 = vld [vmem:[%s312 + $0x11f0] sm:$0xff]
        %v958 = vld [vmem:[%s312 + $0x11f8] sm:$0xff]
        %v959 = vld [vmem:[%s312 + $0x1200] sm:$0xff]
        %v960 = vld [vmem:[%s312 + $0x1208] sm:$0xff]
        %v961 = vld [vmem:[%s312 + $0x1210] sm:$0xff]
        %v962 = vld [vmem:[%s312 + $0x1218] sm:$0xff]
        %v963 = vld [vmem:[%s312 + $0x1220] sm:$0xff]
        %v964 = vld [vmem:[%s312 + $0x1228] sm:$0xff]
        %v965 = vld [vmem:[%s312 + $0x1230] sm:$0xff]
        %v966 = vld [vmem:[%s312 + $0x1238] sm:$0xff]
        %v967 = vld [vmem:[%s312 + $0x1240] sm:$0xff]
        %v968 = vld [vmem:[%s312 + $0x1248] sm:$0xff]
        %v969 = vld [vmem:[%s312 + $0x1250] sm:$0xff]
        %v970 = vld [vmem:[%s312 + $0x1258] sm:$0xff]
        %v971 = vld [vmem:[%s312 + $0x1260] sm:$0xff]
        %v972 = vld [vmem:[%s312 + $0x1268] sm:$0xff]
        %v973 = vld [vmem:[%s312 + $0x1270] sm:$0xff]
        %v974 = vld [vmem:[%s312 + $0x1278] sm:$0xff]
        %v975 = vld [vmem:[%s312 + $0x1280] sm:$0xff]
        %v976 = vld [vmem:[%s312 + $0x1288] sm:$0xff]
        %v977 = vld [vmem:[%s312 + $0x1290] sm:$0xff]
        %v978 = vld [vmem:[%s312 + $0x1298] sm:$0xff]
        %v979 = vld [vmem:[%s312 + $0x12a0] sm:$0xff]
        %v980 = vld [vmem:[%s312 + $0x12a8] sm:$0xff]
        %v981 = vld [vmem:[%s312 + $0x12b0] sm:$0xff]
        %v982 = vld [vmem:[%s312 + $0x12b8] sm:$0xff]
        %v983 = vld [vmem:[%s312 + $0x12c0] sm:$0xff]
        %v984 = vld [vmem:[%s312 + $0x12c8] sm:$0xff]
        %v985 = vld [vmem:[%s312 + $0x12d0] sm:$0xff]
        %v986 = vld [vmem:[%s312 + $0x12d8] sm:$0xff]
        %v987 = vld [vmem:[%s312 + $0x12e0] sm:$0xff]
        %v988 = vld [vmem:[%s312 + $0x12e8] sm:$0xff]
        %v989 = vld [vmem:[%s312 + $0x12f0] sm:$0xff]
        %v990 = vld [vmem:[%s312 + $0x12f8] sm:$0xff]
        %v991 = vld [vmem:[%s312 + $0x1300] sm:$0xff]
        %v992 = vld [vmem:[%s312 + $0x1308] sm:$0xff]
        %v993 = vld [vmem:[%s312 + $0x1310] sm:$0xff]
        %v994 = vld [vmem:[%s312 + $0x1318] sm:$0xff]
        %v995 = vld [vmem:[%s312 + $0x1320] sm:$0xff]
        %v996 = vld [vmem:[%s312 + $0x1328] sm:$0xff]
        %v997 = vld [vmem:[%s312 + $0x1330] sm:$0xff]
        %v998 = vld [vmem:[%s312 + $0x1338] sm:$0xff]
        %v999 = vld [vmem:[%s312 + $0x1340] sm:$0xff]
        %v1000 = vld [vmem:[%s312 + $0x1348] sm:$0xff]
        %v1001 = vld [vmem:[%s312 + $0x1350] sm:$0xff]
        %v1002 = vld [vmem:[%s312 + $0x1358] sm:$0xff]
        %v1003 = vld [vmem:[%s312 + $0x1360] sm:$0xff]
        %v1004 = vld [vmem:[%s312 + $0x1368] sm:$0xff]
        %v1005 = vld [vmem:[%s312 + $0x1370] sm:$0xff]
        %v1006 = vld [vmem:[%s312 + $0x1378] sm:$0xff]
        %v1007 = vld [vmem:[%s312 + $0x1380] sm:$0xff]
        %v1008 = vld [vmem:[%s312 + $0x1388] sm:$0xff]
        %v1009 = vld [vmem:[%s312 + $0x1390] sm:$0xff]
        %v1010 = vld [vmem:[%s312 + $0x1398] sm:$0xff]
        %v1011 = vld [vmem:[%s312 + $0x13a0] sm:$0xff]
        %v1012 = vld [vmem:[%s312 + $0x13a8] sm:$0xff]
        %v1013 = vld [vmem:[%s312 + $0x13b0] sm:$0xff]
        %v1014 = vld [vmem:[%s312 + $0x13b8] sm:$0xff]
        %v1015 = vld [vmem:[%s312 + $0x13c0] sm:$0xff]
        %v1016 = vld [vmem:[%s312 + $0x13c8] sm:$0xff]
        %v1017 = vld [vmem:[%s312 + $0x13d0] sm:$0xff]
        %v1018 = vld [vmem:[%s312 + $0x13d8] sm:$0xff]
        %v1019 = vld [vmem:[%s312 + $0x13e0] sm:$0xff]
        %v1020 = vld [vmem:[%s312 + $0x13e8] sm:$0xff]
        %v1021 = vld [vmem:[%s312 + $0x13f0] sm:$0xff]
        %v1022 = vld [vmem:[%s312 + $0x13f8] sm:$0xff]
        %v1023 = vld [vmem:[%s312 + $0x1400] sm:$0xff]
        %v1024 = vld [vmem:[%s312 + $0x1408] sm:$0xff]
        %v1025 = vld [vmem:[%s312 + $0x1410] sm:$0xff]
        %v1026 = vld [vmem:[%s312 + $0x1418] sm:$0xff]
        %v1027 = vld [vmem:[%s312 + $0x1420] sm:$0xff]
        %v1028 = vld [vmem:[%s312 + $0x1428] sm:$0xff]
        %v1029 = vld [vmem:[%s312 + $0x1430] sm:$0xff]
        %v1030 = vld [vmem:[%s312 + $0x1438] sm:$0xff]
        %v1031 = vld [vmem:[%s312 + $0x1440] sm:$0xff]
        %v1032 = vld [vmem:[%s312 + $0x1448] sm:$0xff]
        %v1033 = vld [vmem:[%s312 + $0x1450] sm:$0xff]
        %v1034 = vld [vmem:[%s312 + $0x1458] sm:$0xff]
        %v1035 = vld [vmem:[%s312 + $0x1460] sm:$0xff]
        %v1036 = vld [vmem:[%s312 + $0x1468] sm:$0xff]
        %v1037 = vld [vmem:[%s312 + $0x1470] sm:$0xff]
        %v1038 = vld [vmem:[%s312 + $0x1478] sm:$0xff]
        %v1039 = vld [vmem:[%s312 + $0x1480] sm:$0xff]
        %v1040 = vld [vmem:[%s312 + $0x1488] sm:$0xff]
        %v1041 = vld [vmem:[%s312 + $0x1490] sm:$0xff]
        %v1042 = vld [vmem:[%s312 + $0x1498] sm:$0xff]
        %v1043 = vld [vmem:[%s312 + $0x14a0] sm:$0xff]
        %v1044 = vld [vmem:[%s312 + $0x14a8] sm:$0xff]
        %v1045 = vld [vmem:[%s312 + $0x14b0] sm:$0xff]
        %v1046 = vld [vmem:[%s312 + $0x14b8] sm:$0xff]
        %v1047 = vld [vmem:[%s312 + $0x14c0] sm:$0xff]
        %v1048 = vld [vmem:[%s312 + $0x14c8] sm:$0xff]
        %v1049 = vld [vmem:[%s312 + $0x14d0] sm:$0xff]
        %v1050 = vld [vmem:[%s312 + $0x14d8] sm:$0xff]
        %v1051 = vld [vmem:[%s312 + $0x14e0] sm:$0xff]
        %v1052 = vld [vmem:[%s312 + $0x14e8] sm:$0xff]
        %v1053 = vld [vmem:[%s312 + $0x14f0] sm:$0xff]
        %v1054 = vld [vmem:[%s312 + $0x14f8] sm:$0xff]
        %v1055 = vld [vmem:[%s312 + $0x1500] sm:$0xff]
        %v1056 = vld [vmem:[%s312 + $0x1508] sm:$0xff]
        %v1057 = vld [vmem:[%s312 + $0x1510] sm:$0xff]
        %v1058 = vld [vmem:[%s312 + $0x1518] sm:$0xff]
        %v1059 = vld [vmem:[%s312 + $0x1520] sm:$0xff]
        %v1060 = vld [vmem:[%s312 + $0x1528] sm:$0xff]
        %v1061 = vld [vmem:[%s312 + $0x1530] sm:$0xff]
        %v1062 = vld [vmem:[%s312 + $0x1538] sm:$0xff]
        %v1063 = vld [vmem:[%s312 + $0x1540] sm:$0xff]
        %v1064 = vld [vmem:[%s312 + $0x1548] sm:$0xff]
        %v1065 = vld [vmem:[%s312 + $0x1550] sm:$0xff]
        %v1066 = vld [vmem:[%s312 + $0x1558] sm:$0xff]
        %v1067 = vld [vmem:[%s312 + $0x1560] sm:$0xff]
        %v1068 = vld [vmem:[%s312 + $0x1568] sm:$0xff]
        %v1069 = vld [vmem:[%s312 + $0x1570] sm:$0xff]
        %v1070 = vld [vmem:[%s312 + $0x1578] sm:$0xff]
        %v1071 = vld [vmem:[%s312 + $0x1580] sm:$0xff]
        %v1072 = vld [vmem:[%s312 + $0x1588] sm:$0xff]
        %v1073 = vld [vmem:[%s312 + $0x1590] sm:$0xff]
        %v1074 = vld [vmem:[%s312 + $0x1598] sm:$0xff]
        %v1075 = vld [vmem:[%s312 + $0x15a0] sm:$0xff]
        %v1076 = vld [vmem:[%s312 + $0x15a8] sm:$0xff]
        %v1077 = vld [vmem:[%s312 + $0x15b0] sm:$0xff]
        %v1078 = vld [vmem:[%s312 + $0x15b8] sm:$0xff]
        %v1079 = vld [vmem:[%s312 + $0x15c0] sm:$0xff]
        %v1080 = vld [vmem:[%s312 + $0x15c8] sm:$0xff]
        %v1081 = vld [vmem:[%s312 + $0x15d0] sm:$0xff]
        %v1082 = vld [vmem:[%s312 + $0x15d8] sm:$0xff]
        %v1083 = vld [vmem:[%s312 + $0x15e0] sm:$0xff]
        %v1084 = vld [vmem:[%s312 + $0x15e8] sm:$0xff]
        %v1085 = vld [vmem:[%s312 + $0x15f0] sm:$0xff]
        %v1086 = vld [vmem:[%s312 + $0x15f8] sm:$0xff]
        %v1087 = vld [vmem:[%s312 + $0x1600] sm:$0xff]
        %v1088 = vld [vmem:[%s312 + $0x1608] sm:$0xff]
        %v1089 = vld [vmem:[%s312 + $0x1610] sm:$0xff]
        %v1090 = vld [vmem:[%s312 + $0x1618] sm:$0xff]
        %v1091 = vld [vmem:[%s312 + $0x1620] sm:$0xff]
        %v1092 = vld [vmem:[%s312 + $0x1628] sm:$0xff]
        %v1093 = vld [vmem:[%s312 + $0x1630] sm:$0xff]
        %v1094 = vld [vmem:[%s312 + $0x1638] sm:$0xff]
        %v1095 = vld [vmem:[%s312 + $0x1640] sm:$0xff]
        %v1096 = vld [vmem:[%s312 + $0x1648] sm:$0xff]
        %v1097 = vld [vmem:[%s312 + $0x1650] sm:$0xff]
        %v1098 = vld [vmem:[%s312 + $0x1658] sm:$0xff]
        %v1099 = vld [vmem:[%s312 + $0x1660] sm:$0xff]
        %v1100 = vld [vmem:[%s312 + $0x1668] sm:$0xff]
        %v1101 = vld [vmem:[%s312 + $0x1670] sm:$0xff]
        %v1102 = vld [vmem:[%s312 + $0x1678] sm:$0xff]
        %v1103 = vld [vmem:[%s312 + $0x1680] sm:$0xff]
        %v1104 = vld [vmem:[%s312 + $0x1688] sm:$0xff]
        %v1105 = vld [vmem:[%s312 + $0x1690] sm:$0xff]
        %v1106 = vld [vmem:[%s312 + $0x1698] sm:$0xff]
        %v1107 = vld [vmem:[%s312 + $0x16a0] sm:$0xff]
        %v1108 = vld [vmem:[%s312 + $0x16a8] sm:$0xff]
        %v1109 = vld [vmem:[%s312 + $0x16b0] sm:$0xff]
        %v1110 = vld [vmem:[%s312 + $0x16b8] sm:$0xff]
        %v1111 = vld [vmem:[%s312 + $0x16c0] sm:$0xff]
        %v1112 = vld [vmem:[%s312 + $0x16c8] sm:$0xff]
        %v1113 = vld [vmem:[%s312 + $0x16d0] sm:$0xff]
        %v1114 = vld [vmem:[%s312 + $0x16d8] sm:$0xff]
        %v1115 = vld [vmem:[%s312 + $0x16e0] sm:$0xff]
        %v1116 = vld [vmem:[%s312 + $0x16e8] sm:$0xff]
        %v1117 = vld [vmem:[%s312 + $0x16f0] sm:$0xff]
        %v1118 = vld [vmem:[%s312 + $0x16f8] sm:$0xff]
        %v1119 = vld [vmem:[%s312 + $0x1700] sm:$0xff]
        %v1120 = vld [vmem:[%s312 + $0x1708] sm:$0xff]
        %v1121 = vld [vmem:[%s312 + $0x1710] sm:$0xff]
        %v1122 = vld [vmem:[%s312 + $0x1718] sm:$0xff]
        %v1123 = vld [vmem:[%s312 + $0x1720] sm:$0xff]
        %v1124 = vld [vmem:[%s312 + $0x1728] sm:$0xff]
        %v1125 = vld [vmem:[%s312 + $0x1730] sm:$0xff]
        %v1126 = vld [vmem:[%s312 + $0x1738] sm:$0xff]
        %v1127 = vld [vmem:[%s312 + $0x1740] sm:$0xff]
        %v1128 = vld [vmem:[%s312 + $0x1748] sm:$0xff]
        %v1129 = vld [vmem:[%s312 + $0x1750] sm:$0xff]
        %v1130 = vld [vmem:[%s312 + $0x1758] sm:$0xff]
        %v1131 = vld [vmem:[%s312 + $0x1760] sm:$0xff]
        %v1132 = vld [vmem:[%s312 + $0x1768] sm:$0xff]
        %v1133 = vld [vmem:[%s312 + $0x1770] sm:$0xff]
        %v1134 = vld [vmem:[%s312 + $0x1778] sm:$0xff]
        %v1135 = vld [vmem:[%s312 + $0x1780] sm:$0xff]
        %v1136 = vld [vmem:[%s312 + $0x1788] sm:$0xff]
        %v1137 = vld [vmem:[%s312 + $0x1790] sm:$0xff]
        %v1138 = vld [vmem:[%s312 + $0x1798] sm:$0xff]
        %v1139 = vld [vmem:[%s312 + $0x17a0] sm:$0xff]
        %v1140 = vld [vmem:[%s312 + $0x17a8] sm:$0xff]
        %v1141 = vld [vmem:[%s312 + $0x17b0] sm:$0xff]
        %v1142 = vld [vmem:[%s312 + $0x17b8] sm:$0xff]
        %v1143 = vld [vmem:[%s312 + $0x17c0] sm:$0xff]
        %v1144 = vld [vmem:[%s312 + $0x17c8] sm:$0xff]
        %v1145 = vld [vmem:[%s312 + $0x17d0] sm:$0xff]
        %v1146 = vld [vmem:[%s312 + $0x17d8] sm:$0xff]
        %v1147 = vld [vmem:[%s312 + $0x17e0] sm:$0xff]
        %v1148 = vld [vmem:[%s312 + $0x17e8] sm:$0xff]
        %v1149 = vld [vmem:[%s312 + $0x17f0] sm:$0xff]
        %v1150 = vld [vmem:[%s312 + $0x17f8] sm:$0xff]
        %v1151 = vld [vmem:[%s312 + $0x1800] sm:$0xff]
        %v1152 = vld [vmem:[%s312 + $0x1808] sm:$0xff]
        %v1153 = vld [vmem:[%s312 + $0x1810] sm:$0xff]
        %v1154 = vld [vmem:[%s312 + $0x1818] sm:$0xff]
        %v1155 = vld [vmem:[%s312 + $0x1820] sm:$0xff]
        %v1156 = vld [vmem:[%s312 + $0x1828] sm:$0xff]
        %v1157 = vld [vmem:[%s312 + $0x1830] sm:$0xff]
        %v1158 = vld [vmem:[%s312 + $0x1838] sm:$0xff]
        %v1159 = vld [vmem:[%s312 + $0x1840] sm:$0xff]
        %v1160 = vld [vmem:[%s312 + $0x1848] sm:$0xff]
        %v1161 = vld [vmem:[%s312 + $0x1850] sm:$0xff]
        %v1162 = vld [vmem:[%s312 + $0x1858] sm:$0xff]
        %v1163 = vld [vmem:[%s312 + $0x1860] sm:$0xff]
        %v1164 = vld [vmem:[%s312 + $0x1868] sm:$0xff]
        %v1165 = vld [vmem:[%s312 + $0x1870] sm:$0xff]
        %v1166 = vld [vmem:[%s312 + $0x1878] sm:$0xff]
        %v1167 = vld [vmem:[%s312 + $0x1880] sm:$0xff]
        %v1168 = vld [vmem:[%s312 + $0x1888] sm:$0xff]
        %v1169 = vld [vmem:[%s312 + $0x1890] sm:$0xff]
        %v1170 = vld [vmem:[%s312 + $0x1898] sm:$0xff]
        %v1171 = vld [vmem:[%s312 + $0x18a0] sm:$0xff]
        %v1172 = vld [vmem:[%s312 + $0x18a8] sm:$0xff]
        %v1173 = vld [vmem:[%s312 + $0x18b0] sm:$0xff]
        %v1174 = vld [vmem:[%s312 + $0x18b8] sm:$0xff]
        %v1175 = vld [vmem:[%s312 + $0x18c0] sm:$0xff]
        %v1176 = vld [vmem:[%s312 + $0x18c8] sm:$0xff]
        %v1177 = vld [vmem:[%s312 + $0x18d0] sm:$0xff]
        %v1178 = vld [vmem:[%s312 + $0x18d8] sm:$0xff]
        %v1179 = vld [vmem:[%s312 + $0x18e0] sm:$0xff]
        %v1180 = vld [vmem:[%s312 + $0x18e8] sm:$0xff]
        %v1181 = vld [vmem:[%s312 + $0x18f0] sm:$0xff]
        %v1182 = vld [vmem:[%s312 + $0x18f8] sm:$0xff]
        %v1183 = vld [vmem:[%s312 + $0x1900] sm:$0xff]
        %v1184 = vld [vmem:[%s312 + $0x1908] sm:$0xff]
        %v1185 = vld [vmem:[%s312 + $0x1910] sm:$0xff]
        %v1186 = vld [vmem:[%s312 + $0x1918] sm:$0xff]
        %v1187 = vld [vmem:[%s312 + $0x1920] sm:$0xff]
        %v1188 = vld [vmem:[%s312 + $0x1928] sm:$0xff]
        %v1189 = vld [vmem:[%s312 + $0x1930] sm:$0xff]
        %v1190 = vld [vmem:[%s312 + $0x1938] sm:$0xff]
        %v1191 = vld [vmem:[%s312 + $0x1940] sm:$0xff]
        %v1192 = vld [vmem:[%s312 + $0x1948] sm:$0xff]
        %v1193 = vld [vmem:[%s312 + $0x1950] sm:$0xff]
        %v1194 = vld [vmem:[%s312 + $0x1958] sm:$0xff]
        %v1195 = vld [vmem:[%s312 + $0x1960] sm:$0xff]
        %v1196 = vld [vmem:[%s312 + $0x1968] sm:$0xff]
        %v1197 = vld [vmem:[%s312 + $0x1970] sm:$0xff]
        %v1198 = vld [vmem:[%s312 + $0x1978] sm:$0xff]
        %v1199 = vld [vmem:[%s312 + $0x1980] sm:$0xff]
        %v1200 = vld [vmem:[%s312 + $0x1988] sm:$0xff]
        %v1201 = vld [vmem:[%s312 + $0x1990] sm:$0xff]
        %v1202 = vld [vmem:[%s312 + $0x1998] sm:$0xff]
        %v1203 = vld [vmem:[%s312 + $0x19a0] sm:$0xff]
        %v1204 = vld [vmem:[%s312 + $0x19a8] sm:$0xff]
        %v1205 = vld [vmem:[%s312 + $0x19b0] sm:$0xff]
        %v1206 = vld [vmem:[%s312 + $0x19b8] sm:$0xff]
        %v1207 = vld [vmem:[%s312 + $0x19c0] sm:$0xff]
        %v1208 = vld [vmem:[%s312 + $0x19c8] sm:$0xff]
        %v1209 = vld [vmem:[%s312 + $0x19d0] sm:$0xff]
        %v1210 = vld [vmem:[%s312 + $0x19d8] sm:$0xff]
        %v1211 = vld [vmem:[%s312 + $0x19e0] sm:$0xff]
        %v1212 = vld [vmem:[%s312 + $0x19e8] sm:$0xff]
        %v1213 = vld [vmem:[%s312 + $0x19f0] sm:$0xff]
        %v1214 = vld [vmem:[%s312 + $0x19f8] sm:$0xff]
        %v1215 = vld [vmem:[%s312 + $0x1a00] sm:$0xff]
        %v1216 = vld [vmem:[%s312 + $0x1a08] sm:$0xff]
        %v1217 = vld [vmem:[%s312 + $0x1a10] sm:$0xff]
        %v1218 = vld [vmem:[%s312 + $0x1a18] sm:$0xff]
        %v1219 = vld [vmem:[%s312 + $0x1a20] sm:$0xff]
        %v1220 = vld [vmem:[%s312 + $0x1a28] sm:$0xff]
        %v1221 = vld [vmem:[%s312 + $0x1a30] sm:$0xff]
        %v1222 = vld [vmem:[%s312 + $0x1a38] sm:$0xff]
        %v1223 = vld [vmem:[%s312 + $0x1a40] sm:$0xff]
        %v1224 = vld [vmem:[%s312 + $0x1a48] sm:$0xff]
        %v1225 = vld [vmem:[%s312 + $0x1a50] sm:$0xff]
        %v1226 = vld [vmem:[%s312 + $0x1a58] sm:$0xff]
        %v1227 = vld [vmem:[%s312 + $0x1a60] sm:$0xff]
        %v1228 = vld [vmem:[%s312 + $0x1a68] sm:$0xff]
        %v1229 = vld [vmem:[%s312 + $0x1a70] sm:$0xff]
        %v1230 = vld [vmem:[%s312 + $0x1a78] sm:$0xff]
        %v1231 = vld [vmem:[%s312 + $0x1a80] sm:$0xff]
        %v1232 = vld [vmem:[%s312 + $0x1a88] sm:$0xff]
        %v1233 = vld [vmem:[%s312 + $0x1a90] sm:$0xff]
        %v1234 = vld [vmem:[%s312 + $0x1a98] sm:$0xff]
        %v1235 = vld [vmem:[%s312 + $0x1aa0] sm:$0xff]
        %v1236 = vld [vmem:[%s312 + $0x1aa8] sm:$0xff]
        %v1237 = vld [vmem:[%s312 + $0x1ab0] sm:$0xff]
        %v1238 = vld [vmem:[%s312 + $0x1ab8] sm:$0xff]
        %v1239 = vld [vmem:[%s312 + $0x1ac0] sm:$0xff]
        %v1240 = vld [vmem:[%s312 + $0x1ac8] sm:$0xff]
        %v1241 = vld [vmem:[%s312 + $0x1ad0] sm:$0xff]
        %v1242 = vld [vmem:[%s312 + $0x1ad8] sm:$0xff]
        %v1243 = vld [vmem:[%s312 + $0x1ae0] sm:$0xff]
        %v1244 = vld [vmem:[%s312 + $0x1ae8] sm:$0xff]
        %v1245 = vld [vmem:[%s312 + $0x1af0] sm:$0xff]
        %v1246 = vld [vmem:[%s312 + $0x1af8] sm:$0xff]
        %v1247 = vld [vmem:[%s312 + $0x1b00] sm:$0xff]
        %v1248 = vld [vmem:[%s312 + $0x1b08] sm:$0xff]
        %v1249 = vld [vmem:[%s312 + $0x1b10] sm:$0xff]
        %v1250 = vld [vmem:[%s312 + $0x1b18] sm:$0xff]
        %v1251 = vld [vmem:[%s312 + $0x1b20] sm:$0xff]
        %v1252 = vld [vmem:[%s312 + $0x1b28] sm:$0xff]
        %v1253 = vld [vmem:[%s312 + $0x1b30] sm:$0xff]
        %v1254 = vld [vmem:[%s312 + $0x1b38] sm:$0xff]
        %v1255 = vld [vmem:[%s312 + $0x1b40] sm:$0xff]
        %v1256 = vld [vmem:[%s312 + $0x1b48] sm:$0xff]
        %v1257 = vld [vmem:[%s312 + $0x1b50] sm:$0xff]
        %v1258 = vld [vmem:[%s312 + $0x1b58] sm:$0xff]
        %v1259 = vld [vmem:[%s312 + $0x1b60] sm:$0xff]
        %v1260 = vld [vmem:[%s312 + $0x1b68] sm:$0xff]
        %v1261 = vld [vmem:[%s312 + $0x1b70] sm:$0xff]
        %v1262 = vld [vmem:[%s312 + $0x1b78] sm:$0xff]
        %v1263 = vld [vmem:[%s312 + $0x1b80] sm:$0xff]
        %v1264 = vld [vmem:[%s312 + $0x1b88] sm:$0xff]
        %v1265 = vld [vmem:[%s312 + $0x1b90] sm:$0xff]
        %v1266 = vld [vmem:[%s312 + $0x1b98] sm:$0xff]
        %v1267 = vld [vmem:[%s312 + $0x1ba0] sm:$0xff]
        %v1268 = vld [vmem:[%s312 + $0x1ba8] sm:$0xff]
        %v1269 = vld [vmem:[%s312 + $0x1bb0] sm:$0xff]
        %v1270 = vld [vmem:[%s312 + $0x1bb8] sm:$0xff]
        %v1271 = vld [vmem:[%s312 + $0x1bc0] sm:$0xff]
        %v1272 = vld [vmem:[%s312 + $0x1bc8] sm:$0xff]
        %v1273 = vld [vmem:[%s312 + $0x1bd0] sm:$0xff]
        %v1274 = vld [vmem:[%s312 + $0x1bd8] sm:$0xff]
        %v1275 = vld [vmem:[%s312 + $0x1be0] sm:$0xff]
        %v1276 = vld [vmem:[%s312 + $0x1be8] sm:$0xff]
        %v1277 = vld [vmem:[%s312 + $0x1bf0] sm:$0xff]
        %v1278 = vld [vmem:[%s312 + $0x1bf8] sm:$0xff]
        %v1279 = vld [vmem:[%s312 + $0x1c00] sm:$0xff]
        %v1280 = vld [vmem:[%s312 + $0x1c08] sm:$0xff]
        %v1281 = vld [vmem:[%s312 + $0x1c10] sm:$0xff]
        %v1282 = vld [vmem:[%s312 + $0x1c18] sm:$0xff]
        %v1283 = vld [vmem:[%s312 + $0x1c20] sm:$0xff]
        %v1284 = vld [vmem:[%s312 + $0x1c28] sm:$0xff]
        %v1285 = vld [vmem:[%s312 + $0x1c30] sm:$0xff]
        %v1286 = vld [vmem:[%s312 + $0x1c38] sm:$0xff]
        %v1287 = vld [vmem:[%s312 + $0x1c40] sm:$0xff]
        %v1288 = vld [vmem:[%s312 + $0x1c48] sm:$0xff]
        %v1289 = vld [vmem:[%s312 + $0x1c50] sm:$0xff]
        %v1290 = vld [vmem:[%s312 + $0x1c58] sm:$0xff]
        %v1291 = vld [vmem:[%s312 + $0x1c60] sm:$0xff]
        %v1292 = vld [vmem:[%s312 + $0x1c68] sm:$0xff]
        %v1293 = vld [vmem:[%s312 + $0x1c70] sm:$0xff]
        %v1294 = vld [vmem:[%s312 + $0x1c78] sm:$0xff]
        %v1295 = vld [vmem:[%s312 + $0x1c80] sm:$0xff]
        %v1296 = vld [vmem:[%s312 + $0x1c88] sm:$0xff]
        %v1297 = vld [vmem:[%s312 + $0x1c90] sm:$0xff]
        %v1298 = vld [vmem:[%s312 + $0x1c98] sm:$0xff]
        %v1299 = vld [vmem:[%s312 + $0x1ca0] sm:$0xff]
        %v1300 = vld [vmem:[%s312 + $0x1ca8] sm:$0xff]
        %v1301 = vld [vmem:[%s312 + $0x1cb0] sm:$0xff]
        %v1302 = vld [vmem:[%s312 + $0x1cb8] sm:$0xff]
        %v1303 = vld [vmem:[%s312 + $0x1cc0] sm:$0xff]
        %v1304 = vld [vmem:[%s312 + $0x1cc8] sm:$0xff]
        %v1305 = vld [vmem:[%s312 + $0x1cd0] sm:$0xff]
        %v1306 = vld [vmem:[%s312 + $0x1cd8] sm:$0xff]
        %v1307 = vld [vmem:[%s312 + $0x1ce0] sm:$0xff]
        %v1308 = vld [vmem:[%s312 + $0x1ce8] sm:$0xff]
        %v1309 = vld [vmem:[%s312 + $0x1cf0] sm:$0xff]
        %v1310 = vld [vmem:[%s312 + $0x1cf8] sm:$0xff]
        %v1311 = vld [vmem:[%s312 + $0x1d00] sm:$0xff]
        %v1312 = vld [vmem:[%s312 + $0x1d08] sm:$0xff]
        %v1313 = vld [vmem:[%s312 + $0x1d10] sm:$0xff]
        %v1314 = vld [vmem:[%s312 + $0x1d18] sm:$0xff]
        %v1315 = vld [vmem:[%s312 + $0x1d20] sm:$0xff]
        %v1316 = vld [vmem:[%s312 + $0x1d28] sm:$0xff]
        %v1317 = vld [vmem:[%s312 + $0x1d30] sm:$0xff]
        %v1318 = vld [vmem:[%s312 + $0x1d38] sm:$0xff]
        %v1319 = vld [vmem:[%s312 + $0x1d40] sm:$0xff]
        %v1320 = vld [vmem:[%s312 + $0x1d48] sm:$0xff]
        %v1321 = vld [vmem:[%s312 + $0x1d50] sm:$0xff]
        %v1322 = vld [vmem:[%s312 + $0x1d58] sm:$0xff]
        %v1323 = vld [vmem:[%s312 + $0x1d60] sm:$0xff]
        %v1324 = vld [vmem:[%s312 + $0x1d68] sm:$0xff]
        %v1325 = vld [vmem:[%s312 + $0x1d70] sm:$0xff]
        %v1326 = vld [vmem:[%s312 + $0x1d78] sm:$0xff]
        %v1327 = vld [vmem:[%s312 + $0x1d80] sm:$0xff]
        %v1328 = vld [vmem:[%s312 + $0x1d88] sm:$0xff]
        %v1329 = vld [vmem:[%s312 + $0x1d90] sm:$0xff]
        %v1330 = vld [vmem:[%s312 + $0x1d98] sm:$0xff]
        %v1331 = vld [vmem:[%s312 + $0x1da0] sm:$0xff]
        %v1332 = vld [vmem:[%s312 + $0x1da8] sm:$0xff]
        %v1333 = vld [vmem:[%s312 + $0x1db0] sm:$0xff]
        %v1334 = vld [vmem:[%s312 + $0x1db8] sm:$0xff]
        %v1335 = vld [vmem:[%s312 + $0x1dc0] sm:$0xff]
        %v1336 = vld [vmem:[%s312 + $0x1dc8] sm:$0xff]
        %v1337 = vld [vmem:[%s312 + $0x1dd0] sm:$0xff]
        %v1338 = vld [vmem:[%s312 + $0x1dd8] sm:$0xff]
        %v1339 = vld [vmem:[%s312 + $0x1de0] sm:$0xff]
        %v1340 = vld [vmem:[%s312 + $0x1de8] sm:$0xff]
        %v1341 = vld [vmem:[%s312 + $0x1df0] sm:$0xff]
        %v1342 = vld [vmem:[%s312 + $0x1df8] sm:$0xff]
        %v1343 = vld [vmem:[%s312 + $0x1e00] sm:$0xff]
        %v1344 = vld [vmem:[%s312 + $0x1e08] sm:$0xff]
        %v1345 = vld [vmem:[%s312 + $0x1e10] sm:$0xff]
        %v1346 = vld [vmem:[%s312 + $0x1e18] sm:$0xff]
        %v1347 = vld [vmem:[%s312 + $0x1e20] sm:$0xff]
        %v1348 = vld [vmem:[%s312 + $0x1e28] sm:$0xff]
        %v1349 = vld [vmem:[%s312 + $0x1e30] sm:$0xff]
        %v1350 = vld [vmem:[%s312 + $0x1e38] sm:$0xff]
        %v1351 = vld [vmem:[%s312 + $0x1e40] sm:$0xff]
        %v1352 = vld [vmem:[%s312 + $0x1e48] sm:$0xff]
        %v1353 = vld [vmem:[%s312 + $0x1e50] sm:$0xff]
        %v1354 = vld [vmem:[%s312 + $0x1e58] sm:$0xff]
        %v1355 = vld [vmem:[%s312 + $0x1e60] sm:$0xff]
        %v1356 = vld [vmem:[%s312 + $0x1e68] sm:$0xff]
        %v1357 = vld [vmem:[%s312 + $0x1e70] sm:$0xff]
        %v1358 = vld [vmem:[%s312 + $0x1e78] sm:$0xff]
        %v1359 = vld [vmem:[%s312 + $0x1e80] sm:$0xff]
        %v1360 = vld [vmem:[%s312 + $0x1e88] sm:$0xff]
        %v1361 = vld [vmem:[%s312 + $0x1e90] sm:$0xff]
        %v1362 = vld [vmem:[%s312 + $0x1e98] sm:$0xff]
        %v1363 = vld [vmem:[%s312 + $0x1ea0] sm:$0xff]
        %v1364 = vld [vmem:[%s312 + $0x1ea8] sm:$0xff]
        %v1365 = vld [vmem:[%s312 + $0x1eb0] sm:$0xff]
        %v1366 = vld [vmem:[%s312 + $0x1eb8] sm:$0xff]
        %v1367 = vld [vmem:[%s312 + $0x1ec0] sm:$0xff]
        %v1368 = vld [vmem:[%s312 + $0x1ec8] sm:$0xff]
        %v1369 = vld [vmem:[%s312 + $0x1ed0] sm:$0xff]
        %v1370 = vld [vmem:[%s312 + $0x1ed8] sm:$0xff]
        %v1371 = vld [vmem:[%s312 + $0x1ee0] sm:$0xff]
        %v1372 = vld [vmem:[%s312 + $0x1ee8] sm:$0xff]
        %v1373 = vld [vmem:[%s312 + $0x1ef0] sm:$0xff]
        %v1374 = vld [vmem:[%s312 + $0x1ef8] sm:$0xff]
        %v1375 = vld [vmem:[%s312 + $0x1f00] sm:$0xff]
        %v1376 = vld [vmem:[%s312 + $0x1f08] sm:$0xff]
        %v1377 = vld [vmem:[%s312 + $0x1f10] sm:$0xff]
        %v1378 = vld [vmem:[%s312 + $0x1f18] sm:$0xff]
        %v1379 = vld [vmem:[%s312 + $0x1f20] sm:$0xff]
        %v1380 = vld [vmem:[%s312 + $0x1f28] sm:$0xff]
        %v1381 = vld [vmem:[%s312 + $0x1f30] sm:$0xff]
        %v1382 = vld [vmem:[%s312 + $0x1f38] sm:$0xff]
        %v1383 = vld [vmem:[%s312 + $0x1f40] sm:$0xff]
        %v1384 = vld [vmem:[%s312 + $0x1f48] sm:$0xff]
        %v1385 = vld [vmem:[%s312 + $0x1f50] sm:$0xff]
        %v1386 = vld [vmem:[%s312 + $0x1f58] sm:$0xff]
        %v1387 = vld [vmem:[%s312 + $0x1f60] sm:$0xff]
        %v1388 = vld [vmem:[%s312 + $0x1f68] sm:$0xff]
        %v1389 = vld [vmem:[%s312 + $0x1f70] sm:$0xff]
        %v1390 = vld [vmem:[%s312 + $0x1f78] sm:$0xff]
        %v1391 = vld [vmem:[%s312 + $0x1f80] sm:$0xff]
        %v1392 = vld [vmem:[%s312 + $0x1f88] sm:$0xff]
        %v1393 = vld [vmem:[%s312 + $0x1f90] sm:$0xff]
        %v1394 = vld [vmem:[%s312 + $0x1f98] sm:$0xff]
        %v1395 = vld [vmem:[%s312 + $0x1fa0] sm:$0xff]
        %v1396 = vld [vmem:[%s312 + $0x1fa8] sm:$0xff]
        %v1397 = vld [vmem:[%s312 + $0x1fb0] sm:$0xff]
        %v1398 = vld [vmem:[%s312 + $0x1fb8] sm:$0xff]
        %v1399 = vld [vmem:[%s312 + $0x1fc0] sm:$0xff]
        %v1400 = vld [vmem:[%s312 + $0x1fc8] sm:$0xff]
        %v1401 = vld [vmem:[%s312 + $0x1fd0] sm:$0xff]
        %v1402 = vld [vmem:[%s312 + $0x1fd8] sm:$0xff]
        %v1403 = vld [vmem:[%s312 + $0x1fe0] sm:$0xff]
        %v1404 = vld [vmem:[%s312 + $0x1fe8] sm:$0xff]
        %v1405 = vld [vmem:[%s312 + $0x1ff0] sm:$0xff]
        %v1406 = vld [vmem:[%s312 + $0x1ff8] sm:$0xff]
        %v1407 = vld [vmem:[%s312 + $0x2000] sm:$0xff]
        %v1408 = vld [vmem:[%s312 + $0x2008] sm:$0xff]
        %v1409 = vld [vmem:[%s312 + $0x2010] sm:$0xff]
        %v1410 = vld [vmem:[%s312 + $0x2018] sm:$0xff]
        %v1411 = vld [vmem:[%s312 + $0x2020] sm:$0xff]
        %v1412 = vld [vmem:[%s312 + $0x2028] sm:$0xff]
        %v1413 = vld [vmem:[%s312 + $0x2030] sm:$0xff]
        %v1414 = vld [vmem:[%s312 + $0x2038] sm:$0xff]
        %v1415 = vld [vmem:[%s312 + $0x2040] sm:$0xff]
        %v1416 = vld [vmem:[%s312 + $0x2048] sm:$0xff]
        %v1417 = vld [vmem:[%s312 + $0x2050] sm:$0xff]
        %v1418 = vld [vmem:[%s312 + $0x2058] sm:$0xff]
        %v1419 = vld [vmem:[%s312 + $0x2060] sm:$0xff]
        %v1420 = vld [vmem:[%s312 + $0x2068] sm:$0xff]
        %v1421 = vld [vmem:[%s312 + $0x2070] sm:$0xff]
        %v1422 = vld [vmem:[%s312 + $0x2078] sm:$0xff]
        %v1423 = vld [vmem:[%s312 + $0x2080] sm:$0xff]
        %v1424 = vld [vmem:[%s312 + $0x2088] sm:$0xff]
        %v1425 = vld [vmem:[%s312 + $0x2090] sm:$0xff]
        %v1426 = vld [vmem:[%s312 + $0x2098] sm:$0xff]
        %v1427 = vld [vmem:[%s312 + $0x20a0] sm:$0xff]
        %v1428 = vld [vmem:[%s312 + $0x20a8] sm:$0xff]
        %v1429 = vld [vmem:[%s312 + $0x20b0] sm:$0xff]
        %v1430 = vld [vmem:[%s312 + $0x20b8] sm:$0xff]
        %v1431 = vld [vmem:[%s312 + $0x20c0] sm:$0xff]
        %v1432 = vld [vmem:[%s312 + $0x20c8] sm:$0xff]
        %v1433 = vld [vmem:[%s312 + $0x20d0] sm:$0xff]
        %v1434 = vld [vmem:[%s312 + $0x20d8] sm:$0xff]
        %v1435 = vld [vmem:[%s312 + $0x20e0] sm:$0xff]
        %v1436 = vld [vmem:[%s312 + $0x20e8] sm:$0xff]
        %v1437 = vld [vmem:[%s312 + $0x20f0] sm:$0xff]
        %v1438 = vld [vmem:[%s312 + $0x20f8] sm:$0xff]
        %v1439 = vld [vmem:[%s312 + $0x2100] sm:$0xff]
        %v1440 = vld [vmem:[%s312 + $0x2108] sm:$0xff]
        %v1441 = vld [vmem:[%s312 + $0x2110] sm:$0xff]
        %v1442 = vld [vmem:[%s312 + $0x2118] sm:$0xff]
        %v1443 = vld [vmem:[%s312 + $0x2120] sm:$0xff]
        %v1444 = vld [vmem:[%s312 + $0x2128] sm:$0xff]
        %v1445 = vld [vmem:[%s312 + $0x2130] sm:$0xff]
        %v1446 = vld [vmem:[%s312 + $0x2138] sm:$0xff]
        %v1447 = vld [vmem:[%s312 + $0x2140] sm:$0xff]
        %v1448 = vld [vmem:[%s312 + $0x2148] sm:$0xff]
        %v1449 = vld [vmem:[%s312 + $0x2150] sm:$0xff]
        %v1450 = vld [vmem:[%s312 + $0x2158] sm:$0xff]
        %v1451 = vld [vmem:[%s312 + $0x2160] sm:$0xff]
        %v1452 = vld [vmem:[%s312 + $0x2168] sm:$0xff]
        %v1453 = vld [vmem:[%s312 + $0x2170] sm:$0xff]
        %v1454 = vld [vmem:[%s312 + $0x2178] sm:$0xff]
        %v1455 = vld [vmem:[%s312 + $0x2180] sm:$0xff]
        %v1456 = vld [vmem:[%s312 + $0x2188] sm:$0xff]
        %v1457 = vld [vmem:[%s312 + $0x2190] sm:$0xff]
        %v1458 = vld [vmem:[%s312 + $0x2198] sm:$0xff]
        %v1459 = vld [vmem:[%s312 + $0x21a0] sm:$0xff]
        %v1460 = vld [vmem:[%s312 + $0x21a8] sm:$0xff]
        %v1461 = vld [vmem:[%s312 + $0x21b0] sm:$0xff]
        %v1462 = vld [vmem:[%s312 + $0x21b8] sm:$0xff]
        %v1463 = vld [vmem:[%s312 + $0x21c0] sm:$0xff]
        %v1464 = vld [vmem:[%s312 + $0x21c8] sm:$0xff]
        %v1465 = vld [vmem:[%s312 + $0x21d0] sm:$0xff]
        %v1466 = vld [vmem:[%s312 + $0x21d8] sm:$0xff]
        %v1467 = vld [vmem:[%s312 + $0x21e0] sm:$0xff]
        %v1468 = vld [vmem:[%s312 + $0x21e8] sm:$0xff]
        %v1469 = vld [vmem:[%s312 + $0x21f0] sm:$0xff]
        %v1470 = vld [vmem:[%s312 + $0x21f8] sm:$0xff]
        %v1471 = vld [vmem:[%s312 + $0x2200] sm:$0xff]
        %v1472 = vld [vmem:[%s312 + $0x2208] sm:$0xff]
        %v1473 = vld [vmem:[%s312 + $0x2210] sm:$0xff]
        %v1474 = vld [vmem:[%s312 + $0x2218] sm:$0xff]
        %v1475 = vld [vmem:[%s312 + $0x2220] sm:$0xff]
        %v1476 = vld [vmem:[%s312 + $0x2228] sm:$0xff]
        %v1477 = vld [vmem:[%s312 + $0x2230] sm:$0xff]
        %v1478 = vld [vmem:[%s312 + $0x2238] sm:$0xff]
        %v1479 = vld [vmem:[%s312 + $0x2240] sm:$0xff]
        %v1480 = vld [vmem:[%s312 + $0x2248] sm:$0xff]
        %v1481 = vld [vmem:[%s312 + $0x2250] sm:$0xff]
        %v1482 = vld [vmem:[%s312 + $0x2258] sm:$0xff]
        %v1483 = vld [vmem:[%s312 + $0x2260] sm:$0xff]
        %v1484 = vld [vmem:[%s312 + $0x2268] sm:$0xff]
        %v1485 = vld [vmem:[%s312 + $0x2270] sm:$0xff]
        %v1486 = vld [vmem:[%s312 + $0x2278] sm:$0xff]
        %v1487 = vld [vmem:[%s312 + $0x2280] sm:$0xff]
        %v1488 = vld [vmem:[%s312 + $0x2288] sm:$0xff]
        %v1489 = vld [vmem:[%s312 + $0x2290] sm:$0xff]
        %v1490 = vld [vmem:[%s312 + $0x2298] sm:$0xff]
        %v1491 = vld [vmem:[%s312 + $0x22a0] sm:$0xff]
        %v1492 = vld [vmem:[%s312 + $0x22a8] sm:$0xff]
        %v1493 = vld [vmem:[%s312 + $0x22b0] sm:$0xff]
        %v1494 = vld [vmem:[%s312 + $0x22b8] sm:$0xff]
        %v1495 = vld [vmem:[%s312 + $0x22c0] sm:$0xff]
        %v1496 = vld [vmem:[%s312 + $0x22c8] sm:$0xff]
        %v1497 = vld [vmem:[%s312 + $0x22d0] sm:$0xff]
        %v1498 = vld [vmem:[%s312 + $0x22d8] sm:$0xff]
        %v1499 = vld [vmem:[%s312 + $0x22e0] sm:$0xff]
        %v1500 = vld [vmem:[%s312 + $0x22e8] sm:$0xff]
        %v1501 = vld [vmem:[%s312 + $0x22f0] sm:$0xff]
        %v1502 = vld [vmem:[%s312 + $0x22f8] sm:$0xff]
        %v1503 = vld [vmem:[%s312 + $0x2300] sm:$0xff]
        %v1504 = vld [vmem:[%s312 + $0x2308] sm:$0xff]
        %v1505 = vld [vmem:[%s312 + $0x2310] sm:$0xff]
        %v1506 = vld [vmem:[%s312 + $0x2318] sm:$0xff]
        %v1507 = vld [vmem:[%s312 + $0x2320] sm:$0xff]
        %v1508 = vld [vmem:[%s312 + $0x2328] sm:$0xff]
        %v1509 = vld [vmem:[%s312 + $0x2330] sm:$0xff]
        %v1510 = vld [vmem:[%s312 + $0x2338] sm:$0xff]
        %v1511 = vld [vmem:[%s312 + $0x2340] sm:$0xff]
        %v1512 = vld [vmem:[%s312 + $0x2348] sm:$0xff]
        %v1513 = vld [vmem:[%s312 + $0x2350] sm:$0xff]
        %v1514 = vld [vmem:[%s312 + $0x2358] sm:$0xff]
        %v1515 = vld [vmem:[%s312 + $0x2360] sm:$0xff]
        %v1516 = vld [vmem:[%s312 + $0x2368] sm:$0xff]
        %v1517 = vld [vmem:[%s312 + $0x2370] sm:$0xff]
        %v1518 = vld [vmem:[%s312 + $0x2378] sm:$0xff]
        %v1519 = vld [vmem:[%s312 + $0x2380] sm:$0xff]
        %v1520 = vld [vmem:[%s312 + $0x2388] sm:$0xff]
        %v1521 = vld [vmem:[%s312 + $0x2390] sm:$0xff]
        %v1522 = vld [vmem:[%s312 + $0x2398] sm:$0xff]
        %v1523 = vld [vmem:[%s312 + $0x23a0] sm:$0xff]
        %v1524 = vld [vmem:[%s312 + $0x23a8] sm:$0xff]
        %v1525 = vld [vmem:[%s312 + $0x23b0] sm:$0xff]
        %v1526 = vld [vmem:[%s312 + $0x23b8] sm:$0xff]
        %v1527 = vld [vmem:[%s312 + $0x23c0] sm:$0xff]
        %v1528 = vld [vmem:[%s312 + $0x23c8] sm:$0xff]
        %v1529 = vld [vmem:[%s312 + $0x23d0] sm:$0xff]
        %v1530 = vld [vmem:[%s312 + $0x23d8] sm:$0xff]
        %v1531 = vld [vmem:[%s312 + $0x23e0] sm:$0xff]
        %v1532 = vld [vmem:[%s312 + $0x23e8] sm:$0xff]
        %v1533 = vld [vmem:[%s312 + $0x23f0] sm:$0xff]
        %v1534 = vld [vmem:[%s312 + $0x23f8] sm:$0xff]
        %v1535 = vld [vmem:[%s312 + $0x2400] sm:$0xff]
        %v1536 = vld [vmem:[%s312 + $0x2408] sm:$0xff]
        %v1537 = vld [vmem:[%s312 + $0x2410] sm:$0xff]
        %v1538 = vld [vmem:[%s312 + $0x2418] sm:$0xff]
        %v1539 = vld [vmem:[%s312 + $0x2420] sm:$0xff]
        %v1540 = vld [vmem:[%s312 + $0x2428] sm:$0xff]
        %v1541 = vld [vmem:[%s312 + $0x2430] sm:$0xff]
        %v1542 = vld [vmem:[%s312 + $0x2438] sm:$0xff]
        %v1543 = vld [vmem:[%s312 + $0x2440] sm:$0xff]
        %v1544 = vld [vmem:[%s312 + $0x2448] sm:$0xff]
        %v1545 = vld [vmem:[%s312 + $0x2450] sm:$0xff]
        %v1546 = vld [vmem:[%s312 + $0x2458] sm:$0xff]
        %v1547 = vld [vmem:[%s312 + $0x2460] sm:$0xff]
        %v1548 = vld [vmem:[%s312 + $0x2468] sm:$0xff]
        %v1549 = vld [vmem:[%s312 + $0x2470] sm:$0xff]
        %v1550 = vld [vmem:[%s312 + $0x2478] sm:$0xff]
        %v1551 = vld [vmem:[%s312 + $0x2480] sm:$0xff]
        %v1552 = vld [vmem:[%s312 + $0x2488] sm:$0xff]
        %v1553 = vld [vmem:[%s312 + $0x2490] sm:$0xff]
        %v1554 = vld [vmem:[%s312 + $0x2498] sm:$0xff]
        %v1555 = vld [vmem:[%s312 + $0x24a0] sm:$0xff]
        %v1556 = vld [vmem:[%s312 + $0x24a8] sm:$0xff]
        %v1557 = vld [vmem:[%s312 + $0x24b0] sm:$0xff]
        %v1558 = vld [vmem:[%s312 + $0x24b8] sm:$0xff]
        %v1559 = vld [vmem:[%s312 + $0x24c0] sm:$0xff]
        %v1560 = vld [vmem:[%s312 + $0x24c8] sm:$0xff]
        %v1561 = vld [vmem:[%s312 + $0x24d0] sm:$0xff]
        %v1562 = vld [vmem:[%s312 + $0x24d8] sm:$0xff]
        %v1563 = vld [vmem:[%s312 + $0x24e0] sm:$0xff]
        %v1564 = vld [vmem:[%s312 + $0x24e8] sm:$0xff]
        %v1565 = vld [vmem:[%s312 + $0x24f0] sm:$0xff]
        %v1566 = vld [vmem:[%s312 + $0x24f8] sm:$0xff]
        %v1567 = vld [vmem:[%s312 + $0x2500] sm:$0xff]
        %v1568 = vld [vmem:[%s312 + $0x2508] sm:$0xff]
        %v1569 = vld [vmem:[%s312 + $0x2510] sm:$0xff]
        %v1570 = vld [vmem:[%s312 + $0x2518] sm:$0xff]
        %v1571 = vld [vmem:[%s312 + $0x2520] sm:$0xff]
        %v1572 = vld [vmem:[%s312 + $0x2528] sm:$0xff]
        %v1573 = vld [vmem:[%s312 + $0x2530] sm:$0xff]
        %v1574 = vld [vmem:[%s312 + $0x2538] sm:$0xff]
        %v1575 = vld [vmem:[%s312 + $0x2540] sm:$0xff]
        %v1576 = vld [vmem:[%s312 + $0x2548] sm:$0xff]
        %v1577 = vld [vmem:[%s312 + $0x2550] sm:$0xff]
        %v1578 = vld [vmem:[%s312 + $0x2558] sm:$0xff]
        %v1579 = vld [vmem:[%s312 + $0x2560] sm:$0xff]
        %v1580 = vld [vmem:[%s312 + $0x2568] sm:$0xff]
        %v1581 = vld [vmem:[%s312 + $0x2570] sm:$0xff]
        %v1582 = vld [vmem:[%s312 + $0x2578] sm:$0xff]
        %v1583 = vld [vmem:[%s312 + $0x2580] sm:$0xff]
        %v1584 = vld [vmem:[%s312 + $0x2588] sm:$0xff]
        %v1585 = vld [vmem:[%s312 + $0x2590] sm:$0xff]
        %v1586 = vld [vmem:[%s312 + $0x2598] sm:$0xff]
        %v1587 = vld [vmem:[%s312 + $0x25a0] sm:$0xff]
        %v1588 = vld [vmem:[%s312 + $0x25a8] sm:$0xff]
        %v1589 = vld [vmem:[%s312 + $0x25b0] sm:$0xff]
        %v1590 = vld [vmem:[%s312 + $0x25b8] sm:$0xff]
        %v1591 = vld [vmem:[%s312 + $0x25c0] sm:$0xff]
        %v1592 = vld [vmem:[%s312 + $0x25c8] sm:$0xff]
        %v1593 = vld [vmem:[%s312 + $0x25d0] sm:$0xff]
        %v1594 = vld [vmem:[%s312 + $0x25d8] sm:$0xff]
        %v1595 = vld [vmem:[%s312 + $0x25e0] sm:$0xff]
        %v1596 = vld [vmem:[%s312 + $0x25e8] sm:$0xff]
        %v1597 = vld [vmem:[%s312 + $0x25f0] sm:$0xff]
        %v1598 = vld [vmem:[%s312 + $0x25f8] sm:$0xff]
        %v1599 = vld [vmem:[%s312 + $0x2600] sm:$0xff]
        %v1600 = vld [vmem:[%s312 + $0x2608] sm:$0xff]
        %v1601 = vld [vmem:[%s312 + $0x2610] sm:$0xff]
        %v1602 = vld [vmem:[%s312 + $0x2618] sm:$0xff]
        %v1603 = vld [vmem:[%s312 + $0x2620] sm:$0xff]
        %v1604 = vld [vmem:[%s312 + $0x2628] sm:$0xff]
        %v1605 = vld [vmem:[%s312 + $0x2630] sm:$0xff]
        %v1606 = vld [vmem:[%s312 + $0x2638] sm:$0xff]
        %v1607 = vld [vmem:[%s312 + $0x2640] sm:$0xff]
        %v1608 = vld [vmem:[%s312 + $0x2648] sm:$0xff]
        %v1609 = vld [vmem:[%s312 + $0x2650] sm:$0xff]
        %v1610 = vld [vmem:[%s312 + $0x2658] sm:$0xff]
        %v1611 = vld [vmem:[%s312 + $0x2660] sm:$0xff]
        %v1612 = vld [vmem:[%s312 + $0x2668] sm:$0xff]
        %v1613 = vld [vmem:[%s312 + $0x2670] sm:$0xff]
        %v1614 = vld [vmem:[%s312 + $0x2678] sm:$0xff]
        %v1615 = vld [vmem:[%s312 + $0x2680] sm:$0xff]
        %v1616 = vld [vmem:[%s312 + $0x2688] sm:$0xff]
        %v1617 = vld [vmem:[%s312 + $0x2690] sm:$0xff]
        %v1618 = vld [vmem:[%s312 + $0x2698] sm:$0xff]
        %v1619 = vld [vmem:[%s312 + $0x26a0] sm:$0xff]
        %v1620 = vld [vmem:[%s312 + $0x26a8] sm:$0xff]
        %v1621 = vld [vmem:[%s312 + $0x26b0] sm:$0xff]
        %v1622 = vld [vmem:[%s312 + $0x26b8] sm:$0xff]
        %v1623 = vld [vmem:[%s312 + $0x26c0] sm:$0xff]
        %v1624 = vld [vmem:[%s312 + $0x26c8] sm:$0xff]
        %v1625 = vld [vmem:[%s312 + $0x26d0] sm:$0xff]
        %v1626 = vld [vmem:[%s312 + $0x26d8] sm:$0xff]
        %v1627 = vld [vmem:[%s312 + $0x26e0] sm:$0xff]
        %v1628 = vld [vmem:[%s312 + $0x26e8] sm:$0xff]
        %v1629 = vld [vmem:[%s312 + $0x26f0] sm:$0xff]
        %v1630 = vld [vmem:[%s312 + $0x26f8] sm:$0xff]
        %v1631 = vld [vmem:[%s312 + $0x2700] sm:$0xff]
        %v1632 = vld [vmem:[%s312 + $0x2708] sm:$0xff]
        %v1633 = vld [vmem:[%s312 + $0x2710] sm:$0xff]
        %v1634 = vld [vmem:[%s312 + $0x2718] sm:$0xff]
        %v1635 = vld [vmem:[%s312 + $0x2720] sm:$0xff]
        %v1636 = vld [vmem:[%s312 + $0x2728] sm:$0xff]
        %v1637 = vld [vmem:[%s312 + $0x2730] sm:$0xff]
        %v1638 = vld [vmem:[%s312 + $0x2738] sm:$0xff]
        %v1639 = vld [vmem:[%s312 + $0x2740] sm:$0xff]
        %v1640 = vld [vmem:[%s312 + $0x2748] sm:$0xff]
        %v1641 = vld [vmem:[%s312 + $0x2750] sm:$0xff]
        %v1642 = vld [vmem:[%s312 + $0x2758] sm:$0xff]
        %v1643 = vld [vmem:[%s312 + $0x2760] sm:$0xff]
        %v1644 = vld [vmem:[%s312 + $0x2768] sm:$0xff]
        %v1645 = vld [vmem:[%s312 + $0x2770] sm:$0xff]
        %v1646 = vld [vmem:[%s312 + $0x2778] sm:$0xff]
        %v1647 = vld [vmem:[%s312 + $0x2780] sm:$0xff]
        %v1648 = vld [vmem:[%s312 + $0x2788] sm:$0xff]
        %v1649 = vld [vmem:[%s312 + $0x2790] sm:$0xff]
        %v1650 = vld [vmem:[%s312 + $0x2798] sm:$0xff]
        %v1651 = vld [vmem:[%s312 + $0x27a0] sm:$0xff]
        %v1652 = vld [vmem:[%s312 + $0x27a8] sm:$0xff]
        %v1653 = vld [vmem:[%s312 + $0x27b0] sm:$0xff]
        %v1654 = vld [vmem:[%s312 + $0x27b8] sm:$0xff]
        %v1655 = vld [vmem:[%s312 + $0x27c0] sm:$0xff]
        %v1656 = vld [vmem:[%s312 + $0x27c8] sm:$0xff]
        %v1657 = vld [vmem:[%s312 + $0x27d0] sm:$0xff]
        %v1658 = vld [vmem:[%s312 + $0x27d8] sm:$0xff]
        %v1659 = vld [vmem:[%s312 + $0x27e0] sm:$0xff]
        %v1660 = vld [vmem:[%s312 + $0x27e8] sm:$0xff]
        %v1661 = vld [vmem:[%s312 + $0x27f0] sm:$0xff]
        %v1662 = vld [vmem:[%s312 + $0x27f8] sm:$0xff]
        %v1663 = vld [vmem:[%s312 + $0x2800] sm:$0xff]
        %v1664 = vld [vmem:[%s312 + $0x2808] sm:$0xff]
        %v1665 = vld [vmem:[%s312 + $0x2810] sm:$0xff]
        %v1666 = vld [vmem:[%s312 + $0x2818] sm:$0xff]
        %v1667 = vld [vmem:[%s312 + $0x2820] sm:$0xff]
        %v1668 = vld [vmem:[%s312 + $0x2828] sm:$0xff]
        %v1669 = vld [vmem:[%s312 + $0x2830] sm:$0xff]
        %v1670 = vld [vmem:[%s312 + $0x2838] sm:$0xff]
        %v1671 = vld [vmem:[%s312 + $0x2840] sm:$0xff]
        %v1672 = vld [vmem:[%s312 + $0x2848] sm:$0xff]
        %v1673 = vld [vmem:[%s312 + $0x2850] sm:$0xff]
        %v1674 = vld [vmem:[%s312 + $0x2858] sm:$0xff]
        %v1675 = vld [vmem:[%s312 + $0x2860] sm:$0xff]
        %v1676 = vld [vmem:[%s312 + $0x2868] sm:$0xff]
        %v1677 = vld [vmem:[%s312 + $0x2870] sm:$0xff]
        %v1678 = vld [vmem:[%s312 + $0x2878] sm:$0xff]
        %v1679 = vld [vmem:[%s312 + $0x2880] sm:$0xff]
        %v1680 = vld [vmem:[%s312 + $0x2888] sm:$0xff]
        %v1681 = vld [vmem:[%s312 + $0x2890] sm:$0xff]
        %v1682 = vld [vmem:[%s312 + $0x2898] sm:$0xff]
        %v1683 = vld [vmem:[%s312 + $0x28a0] sm:$0xff]
        %v1684 = vld [vmem:[%s312 + $0x28a8] sm:$0xff]
        %v1685 = vld [vmem:[%s312 + $0x28b0] sm:$0xff]
        %v1686 = vld [vmem:[%s312 + $0x28b8] sm:$0xff]
        %v1687 = vld [vmem:[%s312 + $0x28c0] sm:$0xff]
        %v1688 = vld [vmem:[%s312 + $0x28c8] sm:$0xff]
        %v1689 = vld [vmem:[%s312 + $0x28d0] sm:$0xff]
        %v1690 = vld [vmem:[%s312 + $0x28d8] sm:$0xff]
        %v1691 = vld [vmem:[%s312 + $0x28e0] sm:$0xff]
        %v1692 = vld [vmem:[%s312 + $0x28e8] sm:$0xff]
        %v1693 = vld [vmem:[%s312 + $0x28f0] sm:$0xff]
        %v1694 = vld [vmem:[%s312 + $0x28f8] sm:$0xff]
        %v1695 = vld [vmem:[%s312 + $0x2900] sm:$0xff]
        %v1696 = vld [vmem:[%s312 + $0x2908] sm:$0xff]
        %v1697 = vld [vmem:[%s312 + $0x2910] sm:$0xff]
        %v1698 = vld [vmem:[%s312 + $0x2918] sm:$0xff]
        %v1699 = vld [vmem:[%s312 + $0x2920] sm:$0xff]
        %v1700 = vld [vmem:[%s312 + $0x2928] sm:$0xff]
        %v1701 = vld [vmem:[%s312 + $0x2930] sm:$0xff]
        %v1702 = vld [vmem:[%s312 + $0x2938] sm:$0xff]
        %v1703 = vld [vmem:[%s312 + $0x2940] sm:$0xff]
        %v1704 = vld [vmem:[%s312 + $0x2948] sm:$0xff]
        %v1705 = vld [vmem:[%s312 + $0x2950] sm:$0xff]
        %v1706 = vld [vmem:[%s312 + $0x2958] sm:$0xff]
        %v1707 = vld [vmem:[%s312 + $0x2960] sm:$0xff]
        %v1708 = vld [vmem:[%s312 + $0x2968] sm:$0xff]
        %v1709 = vld [vmem:[%s312 + $0x2970] sm:$0xff]
        %v1710 = vld [vmem:[%s312 + $0x2978] sm:$0xff]
        %v1711 = vld [vmem:[%s312 + $0x2980] sm:$0xff]
        %v1712 = vld [vmem:[%s312 + $0x2988] sm:$0xff]
        %v1713 = vld [vmem:[%s312 + $0x2990] sm:$0xff]
        %v1714 = vld [vmem:[%s312 + $0x2998] sm:$0xff]
        %v1715 = vld [vmem:[%s312 + $0x29a0] sm:$0xff]
        %v1716 = vld [vmem:[%s312 + $0x29a8] sm:$0xff]
        %v1717 = vld [vmem:[%s312 + $0x29b0] sm:$0xff]
        %v1718 = vld [vmem:[%s312 + $0x29b8] sm:$0xff]
        %v1719 = vld [vmem:[%s312 + $0x29c0] sm:$0xff]
        %v1720 = vld [vmem:[%s312 + $0x29c8] sm:$0xff]
        %v1721 = vld [vmem:[%s312 + $0x29d0] sm:$0xff]
        %v1722 = vld [vmem:[%s312 + $0x29d8] sm:$0xff]
        %v1723 = vld [vmem:[%s312 + $0x29e0] sm:$0xff]
        %v1724 = vld [vmem:[%s312 + $0x29e8] sm:$0xff]
        %v1725 = vld [vmem:[%s312 + $0x29f0] sm:$0xff]
        %v1726 = vld [vmem:[%s312 + $0x29f8] sm:$0xff]
        %v1727 = vld [vmem:[%s312 + $0x2a00] sm:$0xff]
        %v1728 = vld [vmem:[%s312 + $0x2a08] sm:$0xff]
        %v1729 = vld [vmem:[%s312 + $0x2a10] sm:$0xff]
        %v1730 = vld [vmem:[%s312 + $0x2a18] sm:$0xff]
        %v1731 = vld [vmem:[%s312 + $0x2a20] sm:$0xff]
        %v1732 = vld [vmem:[%s312 + $0x2a28] sm:$0xff]
        %v1733 = vld [vmem:[%s312 + $0x2a30] sm:$0xff]
        %v1734 = vld [vmem:[%s312 + $0x2a38] sm:$0xff]
        %v1735 = vld [vmem:[%s312 + $0x2a40] sm:$0xff]
        %v1736 = vld [vmem:[%s312 + $0x2a48] sm:$0xff]
        %v1737 = vld [vmem:[%s312 + $0x2a50] sm:$0xff]
        %v1738 = vld [vmem:[%s312 + $0x2a58] sm:$0xff]
        %v1739 = vld [vmem:[%s312 + $0x2a60] sm:$0xff]
        %v1740 = vld [vmem:[%s312 + $0x2a68] sm:$0xff]
        %v1741 = vld [vmem:[%s312 + $0x2a70] sm:$0xff]
        %v1742 = vld [vmem:[%s312 + $0x2a78] sm:$0xff]
        %v1743 = vld [vmem:[%s312 + $0x2a80] sm:$0xff]
        %v1744 = vld [vmem:[%s312 + $0x2a88] sm:$0xff]
        %v1745 = vld [vmem:[%s312 + $0x2a90] sm:$0xff]
        %v1746 = vld [vmem:[%s312 + $0x2a98] sm:$0xff]
        %v1747 = vld [vmem:[%s312 + $0x2aa0] sm:$0xff]
        %v1748 = vld [vmem:[%s312 + $0x2aa8] sm:$0xff]
        %v1749 = vld [vmem:[%s312 + $0x2ab0] sm:$0xff]
        %v1750 = vld [vmem:[%s312 + $0x2ab8] sm:$0xff]
        %v1751 = vld [vmem:[%s312 + $0x2ac0] sm:$0xff]
        %v1752 = vld [vmem:[%s312 + $0x2ac8] sm:$0xff]
        %v1753 = vld [vmem:[%s312 + $0x2ad0] sm:$0xff]
        %v1754 = vld [vmem:[%s312 + $0x2ad8] sm:$0xff]
        %v1755 = vld [vmem:[%s312 + $0x2ae0] sm:$0xff]
        %v1756 = vld [vmem:[%s312 + $0x2ae8] sm:$0xff]
        %v1757 = vld [vmem:[%s312 + $0x2af0] sm:$0xff]
        %v1758 = vld [vmem:[%s312 + $0x2af8] sm:$0xff]
        %v1759 = vld [vmem:[%s312 + $0x2b00] sm:$0xff]
        %v1760 = vld [vmem:[%s312 + $0x2b08] sm:$0xff]
        %v1761 = vld [vmem:[%s312 + $0x2b10] sm:$0xff]
        %v1762 = vld [vmem:[%s312 + $0x2b18] sm:$0xff]
        %v1763 = vld [vmem:[%s312 + $0x2b20] sm:$0xff]
        %v1764 = vld [vmem:[%s312 + $0x2b28] sm:$0xff]
        %v1765 = vld [vmem:[%s312 + $0x2b30] sm:$0xff]
        %v1766 = vld [vmem:[%s312 + $0x2b38] sm:$0xff]
        %v1767 = vld [vmem:[%s312 + $0x2b40] sm:$0xff]
        %v1768 = vld [vmem:[%s312 + $0x2b48] sm:$0xff]
        %v1769 = vld [vmem:[%s312 + $0x2b50] sm:$0xff]
        %v1770 = vld [vmem:[%s312 + $0x2b58] sm:$0xff]
        %v1771 = vld [vmem:[%s312 + $0x2b60] sm:$0xff]
        %v1772 = vld [vmem:[%s312 + $0x2b68] sm:$0xff]
        %v1773 = vld [vmem:[%s312 + $0x2b70] sm:$0xff]
        %v1774 = vld [vmem:[%s312 + $0x2b78] sm:$0xff]
        %v1775 = vld [vmem:[%s312 + $0x2b80] sm:$0xff]
        %v1776 = vld [vmem:[%s312 + $0x2b88] sm:$0xff]
        %v1777 = vld [vmem:[%s312 + $0x2b90] sm:$0xff]
        %v1778 = vld [vmem:[%s312 + $0x2b98] sm:$0xff]
        %v1779 = vld [vmem:[%s312 + $0x2ba0] sm:$0xff]
        %v1780 = vld [vmem:[%s312 + $0x2ba8] sm:$0xff]
        %v1781 = vld [vmem:[%s312 + $0x2bb0] sm:$0xff]
        %v1782 = vld [vmem:[%s312 + $0x2bb8] sm:$0xff]
        %v1783 = vld [vmem:[%s312 + $0x2bc0] sm:$0xff]
        %v1784 = vld [vmem:[%s312 + $0x2bc8] sm:$0xff]
        %v1785 = vld [vmem:[%s312 + $0x2bd0] sm:$0xff]
        %v1786 = vld [vmem:[%s312 + $0x2bd8] sm:$0xff]
        %v1787 = vld [vmem:[%s312 + $0x2be0] sm:$0xff]
        %v1788 = vld [vmem:[%s312 + $0x2be8] sm:$0xff]
        %v1789 = vld [vmem:[%s312 + $0x2bf0] sm:$0xff]
        %v1790 = vld [vmem:[%s312 + $0x2bf8] sm:$0xff]
        %v1791 = vld [vmem:[%s312 + $0x2c00] sm:$0xff]
        %v1792 = vld [vmem:[%s312 + $0x2c08] sm:$0xff]
        %v1793 = vld [vmem:[%s312 + $0x2c10] sm:$0xff]
        %v1794 = vld [vmem:[%s312 + $0x2c18] sm:$0xff]
        %v1795 = vld [vmem:[%s312 + $0x2c20] sm:$0xff]
        %v1796 = vld [vmem:[%s312 + $0x2c28] sm:$0xff]
        %v1797 = vld [vmem:[%s312 + $0x2c30] sm:$0xff]
        %v1798 = vld [vmem:[%s312 + $0x2c38] sm:$0xff]
        %v1799 = vld [vmem:[%s312 + $0x2c40] sm:$0xff]
        %v1800 = vld [vmem:[%s312 + $0x2c48] sm:$0xff]
        %v1801 = vld [vmem:[%s312 + $0x2c50] sm:$0xff]
        %v1802 = vld [vmem:[%s312 + $0x2c58] sm:$0xff]
        %v1803 = vld [vmem:[%s312 + $0x2c60] sm:$0xff]
        %v1804 = vld [vmem:[%s312 + $0x2c68] sm:$0xff]
        %v1805 = vld [vmem:[%s312 + $0x2c70] sm:$0xff]
        %v1806 = vld [vmem:[%s312 + $0x2c78] sm:$0xff]
        %v1807 = vld [vmem:[%s312 + $0x2c80] sm:$0xff]
        %v1808 = vld [vmem:[%s312 + $0x2c88] sm:$0xff]
        %v1809 = vld [vmem:[%s312 + $0x2c90] sm:$0xff]
        %v1810 = vld [vmem:[%s312 + $0x2c98] sm:$0xff]
        %v1811 = vld [vmem:[%s312 + $0x2ca0] sm:$0xff]
        %v1812 = vld [vmem:[%s312 + $0x2ca8] sm:$0xff]
        %v1813 = vld [vmem:[%s312 + $0x2cb0] sm:$0xff]
        %v1814 = vld [vmem:[%s312 + $0x2cb8] sm:$0xff]
        %v1815 = vld [vmem:[%s312 + $0x2cc0] sm:$0xff]
        %v1816 = vld [vmem:[%s312 + $0x2cc8] sm:$0xff]
        %v1817 = vld [vmem:[%s312 + $0x2cd0] sm:$0xff]
        %v1818 = vld [vmem:[%s312 + $0x2cd8] sm:$0xff]
        %v1819 = vld [vmem:[%s312 + $0x2ce0] sm:$0xff]
        %v1820 = vld [vmem:[%s312 + $0x2ce8] sm:$0xff]
        %v1821 = vld [vmem:[%s312 + $0x2cf0] sm:$0xff]
        %v1822 = vld [vmem:[%s312 + $0x2cf8] sm:$0xff]
        %v1823 = vld [vmem:[%s312 + $0x2d00] sm:$0xff]
        %v1824 = vld [vmem:[%s312 + $0x2d08] sm:$0xff]
        %v1825 = vld [vmem:[%s312 + $0x2d10] sm:$0xff]
        %v1826 = vld [vmem:[%s312 + $0x2d18] sm:$0xff]
        %v1827 = vld [vmem:[%s312 + $0x2d20] sm:$0xff]
        %v1828 = vld [vmem:[%s312 + $0x2d28] sm:$0xff]
        %v1829 = vld [vmem:[%s312 + $0x2d30] sm:$0xff]
        %v1830 = vld [vmem:[%s312 + $0x2d38] sm:$0xff]
        %v1831 = vld [vmem:[%s312 + $0x2d40] sm:$0xff]
        %v1832 = vld [vmem:[%s312 + $0x2d48] sm:$0xff]
        %v1833 = vld [vmem:[%s312 + $0x2d50] sm:$0xff]
        %v1834 = vld [vmem:[%s312 + $0x2d58] sm:$0xff]
        %v1835 = vld [vmem:[%s312 + $0x2d60] sm:$0xff]
        %v1836 = vld [vmem:[%s312 + $0x2d68] sm:$0xff]
        %v1837 = vld [vmem:[%s312 + $0x2d70] sm:$0xff]
        %v1838 = vld [vmem:[%s312 + $0x2d78] sm:$0xff]
        %v1839 = vld [vmem:[%s312 + $0x2d80] sm:$0xff]
        %v1840 = vld [vmem:[%s312 + $0x2d88] sm:$0xff]
        %v1841 = vld [vmem:[%s312 + $0x2d90] sm:$0xff]
        %v1842 = vld [vmem:[%s312 + $0x2d98] sm:$0xff]
        %v1843 = vld [vmem:[%s312 + $0x2da0] sm:$0xff]
        %v1844 = vld [vmem:[%s312 + $0x2da8] sm:$0xff]
        %v1845 = vld [vmem:[%s312 + $0x2db0] sm:$0xff]
        %v1846 = vld [vmem:[%s312 + $0x2db8] sm:$0xff]
        %v1847 = vld [vmem:[%s312 + $0x2dc0] sm:$0xff]
        %v1848 = vld [vmem:[%s312 + $0x2dc8] sm:$0xff]
        %v1849 = vld [vmem:[%s312 + $0x2dd0] sm:$0xff]
        %v1850 = vld [vmem:[%s312 + $0x2dd8] sm:$0xff]
        %v1851 = vld [vmem:[%s312 + $0x2de0] sm:$0xff]
        %v1852 = vld [vmem:[%s312 + $0x2de8] sm:$0xff]
        %v1853 = vld [vmem:[%s312 + $0x2df0] sm:$0xff]
        %v1854 = vld [vmem:[%s312 + $0x2df8] sm:$0xff]
        %v1855 = vld [vmem:[%s312 + $0x2e00] sm:$0xff]
        %v1856 = vld [vmem:[%s312 + $0x2e08] sm:$0xff]
        %v1857 = vld [vmem:[%s312 + $0x2e10] sm:$0xff]
        %v1858 = vld [vmem:[%s312 + $0x2e18] sm:$0xff]
        %v1859 = vld [vmem:[%s312 + $0x2e20] sm:$0xff]
        %v1860 = vld [vmem:[%s312 + $0x2e28] sm:$0xff]
        %v1861 = vld [vmem:[%s312 + $0x2e30] sm:$0xff]
        %v1862 = vld [vmem:[%s312 + $0x2e38] sm:$0xff]
        %v1863 = vld [vmem:[%s312 + $0x2e40] sm:$0xff]
        %v1864 = vld [vmem:[%s312 + $0x2e48] sm:$0xff]
        %v1865 = vld [vmem:[%s312 + $0x2e50] sm:$0xff]
        %v1866 = vld [vmem:[%s312 + $0x2e58] sm:$0xff]
        %v1867 = vld [vmem:[%s312 + $0x2e60] sm:$0xff]
        %v1868 = vld [vmem:[%s312 + $0x2e68] sm:$0xff]
        %v1869 = vld [vmem:[%s312 + $0x2e70] sm:$0xff]
        %v1870 = vld [vmem:[%s312 + $0x2e78] sm:$0xff]
        %v1871 = vld [vmem:[%s312 + $0x2e80] sm:$0xff]
        %v1872 = vld [vmem:[%s312 + $0x2e88] sm:$0xff]
        %v1873 = vld [vmem:[%s312 + $0x2e90] sm:$0xff]
        %v1874 = vld [vmem:[%s312 + $0x2e98] sm:$0xff]
        %v1875 = vld [vmem:[%s312 + $0x2ea0] sm:$0xff]
        %v1876 = vld [vmem:[%s312 + $0x2ea8] sm:$0xff]
        %v1877 = vld [vmem:[%s312 + $0x2eb0] sm:$0xff]
        %v1878 = vld [vmem:[%s312 + $0x2eb8] sm:$0xff]
        %v1879 = vld [vmem:[%s312 + $0x2ec0] sm:$0xff]
        %v1880 = vld [vmem:[%s312 + $0x2ec8] sm:$0xff]
        %v1881 = vld [vmem:[%s312 + $0x2ed0] sm:$0xff]
        %v1882 = vld [vmem:[%s312 + $0x2ed8] sm:$0xff]
        %v1883 = vld [vmem:[%s312 + $0x2ee0] sm:$0xff]
        %v1884 = vld [vmem:[%s312 + $0x2ee8] sm:$0xff]
        %v1885 = vld [vmem:[%s312 + $0x2ef0] sm:$0xff]
        %v1886 = vld [vmem:[%s312 + $0x2ef8] sm:$0xff]
        %v1887 = vld [vmem:[%s312 + $0x2f00] sm:$0xff]
        %v1888 = vld [vmem:[%s312 + $0x2f08] sm:$0xff]
        %v1889 = vld [vmem:[%s312 + $0x2f10] sm:$0xff]
        %v1890 = vld [vmem:[%s312 + $0x2f18] sm:$0xff]
        %v1891 = vld [vmem:[%s312 + $0x2f20] sm:$0xff]
        %v1892 = vld [vmem:[%s312 + $0x2f28] sm:$0xff]
        %v1893 = vld [vmem:[%s312 + $0x2f30] sm:$0xff]
        %v1894 = vld [vmem:[%s312 + $0x2f38] sm:$0xff]
        %v1895 = vld [vmem:[%s312 + $0x2f40] sm:$0xff]
        %v1896 = vld [vmem:[%s312 + $0x2f48] sm:$0xff]
        %v1897 = vld [vmem:[%s312 + $0x2f50] sm:$0xff]
        %v1898 = vld [vmem:[%s312 + $0x2f58] sm:$0xff]
        %v1899 = vld [vmem:[%s312 + $0x2f60] sm:$0xff]
        %v1900 = vld [vmem:[%s312 + $0x2f68] sm:$0xff]
        %v1901 = vld [vmem:[%s312 + $0x2f70] sm:$0xff]
        %v1902 = vld [vmem:[%s312 + $0x2f78] sm:$0xff]
        %v1903 = vld [vmem:[%s312 + $0x2f80] sm:$0xff]
        %v1904 = vld [vmem:[%s312 + $0x2f88] sm:$0xff]
        %v1905 = vld [vmem:[%s312 + $0x2f90] sm:$0xff]
        %v1906 = vld [vmem:[%s312 + $0x2f98] sm:$0xff]
        %v1907 = vld [vmem:[%s312 + $0x2fa0] sm:$0xff]
        %v1908 = vld [vmem:[%s312 + $0x2fa8] sm:$0xff]
        %v1909 = vld [vmem:[%s312 + $0x2fb0] sm:$0xff]
        %v1910 = vld [vmem:[%s312 + $0x2fb8] sm:$0xff]
        %v1911 = vld [vmem:[%s312 + $0x2fc0] sm:$0xff]
        %v1912 = vld [vmem:[%s312 + $0x2fc8] sm:$0xff]
        %v1913 = vld [vmem:[%s312 + $0x2fd0] sm:$0xff]
        %v1914 = vld [vmem:[%s312 + $0x2fd8] sm:$0xff]
        %v1915 = vld [vmem:[%s312 + $0x2fe0] sm:$0xff]
        %v1916 = vld [vmem:[%s312 + $0x2fe8] sm:$0xff]
        %v1917 = vld [vmem:[%s312 + $0x2ff0] sm:$0xff]
        %v1918 = vld [vmem:[%s312 + $0x2ff8] sm:$0xff]
        %v1919 = vld [vmem:[%s312 + $0x3000] sm:$0xff]
        %v1920 = vld [vmem:[%s312 + $0x3008] sm:$0xff]
        %v1921 = vld [vmem:[%s312 + $0x3010] sm:$0xff]
        %v1922 = vld [vmem:[%s312 + $0x3018] sm:$0xff]
        %v1923 = vld [vmem:[%s312 + $0x3020] sm:$0xff]
        %v1924 = vld [vmem:[%s312 + $0x3028] sm:$0xff]
        %v1925 = vld [vmem:[%s312 + $0x3030] sm:$0xff]
        %v1926 = vld [vmem:[%s312 + $0x3038] sm:$0xff]
        %v1927 = vld [vmem:[%s312 + $0x3040] sm:$0xff]
        %v1928 = vld [vmem:[%s312 + $0x3048] sm:$0xff]
        %v1929 = vld [vmem:[%s312 + $0x3050] sm:$0xff]
        %v1930 = vld [vmem:[%s312 + $0x3058] sm:$0xff]
        %v1931 = vld [vmem:[%s312 + $0x3060] sm:$0xff]
        %v1932 = vld [vmem:[%s312 + $0x3068] sm:$0xff]
        %v1933 = vld [vmem:[%s312 + $0x3070] sm:$0xff]
        %v1934 = vld [vmem:[%s312 + $0x3078] sm:$0xff]
        %v1935 = vld [vmem:[%s312 + $0x3080] sm:$0xff]
        %v1936 = vld [vmem:[%s312 + $0x3088] sm:$0xff]
        %v1937 = vld [vmem:[%s312 + $0x3090] sm:$0xff]
        %v1938 = vld [vmem:[%s312 + $0x3098] sm:$0xff]
        %v1939 = vld [vmem:[%s312 + $0x30a0] sm:$0xff]
        %v1940 = vld [vmem:[%s312 + $0x30a8] sm:$0xff]
        %v1941 = vld [vmem:[%s312 + $0x30b0] sm:$0xff]
        %v1942 = vld [vmem:[%s312 + $0x30b8] sm:$0xff]
        %v1943 = vld [vmem:[%s312 + $0x30c0] sm:$0xff]
        %v1944 = vld [vmem:[%s312 + $0x30c8] sm:$0xff]
        %v1945 = vld [vmem:[%s312 + $0x30d0] sm:$0xff]
        %v1946 = vld [vmem:[%s312 + $0x30d8] sm:$0xff]
        %v1947 = vld [vmem:[%s312 + $0x30e0] sm:$0xff]
        %v1948 = vld [vmem:[%s312 + $0x30e8] sm:$0xff]
        %v1949 = vld [vmem:[%s312 + $0x30f0] sm:$0xff]
        %v1950 = vld [vmem:[%s312 + $0x30f8] sm:$0xff]
        %v1951 = vld [vmem:[%s312 + $0x3100] sm:$0xff]
        %v1952 = vld [vmem:[%s312 + $0x3108] sm:$0xff]
        %v1953 = vld [vmem:[%s312 + $0x3110] sm:$0xff]
        %v1954 = vld [vmem:[%s312 + $0x3118] sm:$0xff]
        %v1955 = vld [vmem:[%s312 + $0x3120] sm:$0xff]
        %v1956 = vld [vmem:[%s312 + $0x3128] sm:$0xff]
        %v1957 = vld [vmem:[%s312 + $0x3130] sm:$0xff]
        %v1958 = vld [vmem:[%s312 + $0x3138] sm:$0xff]
        %v1959 = vld [vmem:[%s312 + $0x3140] sm:$0xff]
        %v1960 = vld [vmem:[%s312 + $0x3148] sm:$0xff]
        %v1961 = vld [vmem:[%s312 + $0x3150] sm:$0xff]
        %v1962 = vld [vmem:[%s312 + $0x3158] sm:$0xff]
        %v1963 = vld [vmem:[%s312 + $0x3160] sm:$0xff]
        %v1964 = vld [vmem:[%s312 + $0x3168] sm:$0xff]
        %v1965 = vld [vmem:[%s312 + $0x3170] sm:$0xff]
        %v1966 = vld [vmem:[%s312 + $0x3178] sm:$0xff]
        %v1967 = vld [vmem:[%s312 + $0x3180] sm:$0xff]
        %v1968 = vld [vmem:[%s312 + $0x3188] sm:$0xff]
        %v1969 = vld [vmem:[%s312 + $0x3190] sm:$0xff]
        %v1970 = vld [vmem:[%s312 + $0x3198] sm:$0xff]
        %v1971 = vld [vmem:[%s312 + $0x31a0] sm:$0xff]
        %v1972 = vld [vmem:[%s312 + $0x31a8] sm:$0xff]
        %v1973 = vld [vmem:[%s312 + $0x31b0] sm:$0xff]
        %v1974 = vld [vmem:[%s312 + $0x31b8] sm:$0xff]
        %v1975 = vld [vmem:[%s312 + $0x31c0] sm:$0xff]
        %v1976 = vld [vmem:[%s312 + $0x31c8] sm:$0xff]
        %v1977 = vld [vmem:[%s312 + $0x31d0] sm:$0xff]
        %v1978 = vld [vmem:[%s312 + $0x31d8] sm:$0xff]
        %v1979 = vld [vmem:[%s312 + $0x31e0] sm:$0xff]
        %v1980 = vld [vmem:[%s312 + $0x31e8] sm:$0xff]
        %v1981 = vld [vmem:[%s312 + $0x31f0] sm:$0xff]
        %v1982 = vld [vmem:[%s312 + $0x31f8] sm:$0xff]
        %v1983 = vld [vmem:[%s312 + $0x3200] sm:$0xff]
        %v1984 = vld [vmem:[%s312 + $0x3208] sm:$0xff]
        %v1985 = vld [vmem:[%s312 + $0x3210] sm:$0xff]
        %v1986 = vld [vmem:[%s312 + $0x3218] sm:$0xff]
        %v1987 = vld [vmem:[%s312 + $0x3220] sm:$0xff]
        %v1988 = vld [vmem:[%s312 + $0x3228] sm:$0xff]
        %v1989 = vld [vmem:[%s312 + $0x3230] sm:$0xff]
        %v1990 = vld [vmem:[%s312 + $0x3238] sm:$0xff]
        %v1991 = vld [vmem:[%s312 + $0x3240] sm:$0xff]
        %v1992 = vld [vmem:[%s312 + $0x3248] sm:$0xff]
        %v1993 = vld [vmem:[%s312 + $0x3250] sm:$0xff]
        %v1994 = vld [vmem:[%s312 + $0x3258] sm:$0xff]
        %v1995 = vld [vmem:[%s312 + $0x3260] sm:$0xff]
        %v1996 = vld [vmem:[%s312 + $0x3268] sm:$0xff]
        %v1997 = vld [vmem:[%s312 + $0x3270] sm:$0xff]
        %v1998 = vld [vmem:[%s312 + $0x3278] sm:$0xff]
        %v1999 = vld [vmem:[%s312 + $0x3280] sm:$0xff]
        %v2000 = vld [vmem:[%s312 + $0x3288] sm:$0xff]
        %v2001 = vld [vmem:[%s312 + $0x3290] sm:$0xff]
        %v2002 = vld [vmem:[%s312 + $0x3298] sm:$0xff]
        %v2003 = vld [vmem:[%s312 + $0x32a0] sm:$0xff]
        %v2004 = vld [vmem:[%s312 + $0x32a8] sm:$0xff]
        %v2005 = vld [vmem:[%s312 + $0x32b0] sm:$0xff]
        %v2006 = vld [vmem:[%s312 + $0x32b8] sm:$0xff]
        %v2007 = vld [vmem:[%s312 + $0x32c0] sm:$0xff]
        %v2008 = vld [vmem:[%s312 + $0x32c8] sm:$0xff]
        %v2009 = vld [vmem:[%s312 + $0x32d0] sm:$0xff]
        %v2010 = vld [vmem:[%s312 + $0x32d8] sm:$0xff]
        %v2011 = vld [vmem:[%s312 + $0x32e0] sm:$0xff]
        %v2012 = vld [vmem:[%s312 + $0x32e8] sm:$0xff]
        %v2013 = vld [vmem:[%s312 + $0x32f0] sm:$0xff]
        %v2014 = vld [vmem:[%s312 + $0x32f8] sm:$0xff]
        %v2015 = vld [vmem:[%s312 + $0x3300] sm:$0xff]
        %v2016 = vld [vmem:[%s312 + $0x3308] sm:$0xff]
        %v2017 = vld [vmem:[%s312 + $0x3310] sm:$0xff]
        %v2018 = vld [vmem:[%s312 + $0x3318] sm:$0xff]
        %v2019 = vld [vmem:[%s312 + $0x3320] sm:$0xff]
        %v2020 = vld [vmem:[%s312 + $0x3328] sm:$0xff]
        %v2021 = vld [vmem:[%s312 + $0x3330] sm:$0xff]
        %v2022 = vld [vmem:[%s312 + $0x3338] sm:$0xff]
        %v2023 = vld [vmem:[%s312 + $0x3340] sm:$0xff]
        %v2024 = vld [vmem:[%s312 + $0x3348] sm:$0xff]
        %v2025 = vld [vmem:[%s312 + $0x3350] sm:$0xff]
        %v2026 = vld [vmem:[%s312 + $0x3358] sm:$0xff]
        %v2027 = vld [vmem:[%s312 + $0x3360] sm:$0xff]
        %v2028 = vld [vmem:[%s312 + $0x3368] sm:$0xff]
        %v2029 = vld [vmem:[%s312 + $0x3370] sm:$0xff]
        %v2030 = vld [vmem:[%s312 + $0x3378] sm:$0xff]
        %v2031 = vld [vmem:[%s312 + $0x3380] sm:$0xff]
        %v2032 = vld [vmem:[%s312 + $0x3388] sm:$0xff]
        %v2033 = vld [vmem:[%s312 + $0x3390] sm:$0xff]
        %v2034 = vld [vmem:[%s312 + $0x3398] sm:$0xff]
        %v2035 = vld [vmem:[%s312 + $0x33a0] sm:$0xff]
        %v2036 = vld [vmem:[%s312 + $0x33a8] sm:$0xff]
        %v2037 = vld [vmem:[%s312 + $0x33b0] sm:$0xff]
        %v2038 = vld [vmem:[%s312 + $0x33b8] sm:$0xff]
        %v2039 = vld [vmem:[%s312 + $0x33c0] sm:$0xff]
        %v2040 = vld [vmem:[%s312 + $0x33c8] sm:$0xff]
        %v2041 = vld [vmem:[%s312 + $0x33d0] sm:$0xff]
        %v2042 = vld [vmem:[%s312 + $0x33d8] sm:$0xff]
        %v2043 = vld [vmem:[%s312 + $0x33e0] sm:$0xff]
        %v2044 = vld [vmem:[%s312 + $0x33e8] sm:$0xff]
        %v2045 = vld [vmem:[%s312 + $0x33f0] sm:$0xff]
        %v2046 = vld [vmem:[%s312 + $0x33f8] sm:$0xff]
        %v2047 = vld [vmem:[%s312 + $0x3400] sm:$0xff]
        %v2048 = vld [vmem:[%s312 + $0x3408] sm:$0xff]
        %v2049 = vld [vmem:[%s312 + $0x3410] sm:$0xff]
        %v2050 = vld [vmem:[%s312 + $0x3418] sm:$0xff]
        %v2051 = vld [vmem:[%s312 + $0x3420] sm:$0xff]
        %v2052 = vld [vmem:[%s312 + $0x3428] sm:$0xff]
        %v2053 = vld [vmem:[%s312 + $0x3430] sm:$0xff]
        %v2054 = vld [vmem:[%s312 + $0x3438] sm:$0xff]
        %v2055 = vld [vmem:[%s312 + $0x3440] sm:$0xff]
        %v2056 = vld [vmem:[%s312 + $0x3448] sm:$0xff]
        %v2057 = vld [vmem:[%s312 + $0x3450] sm:$0xff]
        %v2058 = vld [vmem:[%s312 + $0x3458] sm:$0xff]
        %v2059 = vld [vmem:[%s312 + $0x3460] sm:$0xff]
        %v2060 = vld [vmem:[%s312 + $0x3468] sm:$0xff]
        %v2061 = vld [vmem:[%s312 + $0x3470] sm:$0xff]
        %v2062 = vld [vmem:[%s312 + $0x3478] sm:$0xff]
        %v2063 = vld [vmem:[%s312 + $0x3480] sm:$0xff]
        %v2064 = vld [vmem:[%s312 + $0x3488] sm:$0xff]
        %v2065 = vld [vmem:[%s312 + $0x3490] sm:$0xff]
        %v2066 = vld [vmem:[%s312 + $0x3498] sm:$0xff]
        %v2067 = vld [vmem:[%s312 + $0x34a0] sm:$0xff]
        %v2068 = vld [vmem:[%s312 + $0x34a8] sm:$0xff]
        %v2069 = vld [vmem:[%s312 + $0x34b0] sm:$0xff]
        %v2070 = vld [vmem:[%s312 + $0x34b8] sm:$0xff]
        %v2071 = vld [vmem:[%s312 + $0x34c0] sm:$0xff]
        %v2072 = vld [vmem:[%s312 + $0x34c8] sm:$0xff]
        %v2073 = vld [vmem:[%s312 + $0x34d0] sm:$0xff]
        %v2074 = vld [vmem:[%s312 + $0x34d8] sm:$0xff]
        %v2075 = vld [vmem:[%s312 + $0x34e0] sm:$0xff]
        %v2076 = vld [vmem:[%s312 + $0x34e8] sm:$0xff]
        %v2077 = vld [vmem:[%s312 + $0x34f0] sm:$0xff]
        %v2078 = vld [vmem:[%s312 + $0x34f8] sm:$0xff]
        %v2079 = vld [vmem:[%s312 + $0x3500] sm:$0xff]
        %v2080 = vld [vmem:[%s312 + $0x3508] sm:$0xff]
        %v2081 = vld [vmem:[%s312 + $0x3510] sm:$0xff]
        %v2082 = vld [vmem:[%s312 + $0x3518] sm:$0xff]
        %v2083 = vld [vmem:[%s312 + $0x3520] sm:$0xff]
        %v2084 = vld [vmem:[%s312 + $0x3528] sm:$0xff]
        %v2085 = vld [vmem:[%s312 + $0x3530] sm:$0xff]
        %v2086 = vld [vmem:[%s312 + $0x3538] sm:$0xff]
        %v2087 = vld [vmem:[%s312 + $0x3540] sm:$0xff]
        %v2088 = vld [vmem:[%s312 + $0x3548] sm:$0xff]
        %v2089 = vld [vmem:[%s312 + $0x3550] sm:$0xff]
        %v2090 = vld [vmem:[%s312 + $0x3558] sm:$0xff]
        %v2091 = vld [vmem:[%s312 + $0x3560] sm:$0xff]
        %v2092 = vld [vmem:[%s312 + $0x3568] sm:$0xff]
        %v2093 = vld [vmem:[%s312 + $0x3570] sm:$0xff]
        %v2094 = vld [vmem:[%s312 + $0x3578] sm:$0xff]
        %v2095 = vld [vmem:[%s312 + $0x3580] sm:$0xff]
        %v2096 = vld [vmem:[%s312 + $0x3588] sm:$0xff]
        %v2097 = vld [vmem:[%s312 + $0x3590] sm:$0xff]
        %v2098 = vld [vmem:[%s312 + $0x3598] sm:$0xff]
        %v2099 = vld [vmem:[%s312 + $0x35a0] sm:$0xff]
        %v2100 = vld [vmem:[%s312 + $0x35a8] sm:$0xff]
        %v2101 = vld [vmem:[%s312 + $0x35b0] sm:$0xff]
        %v2102 = vld [vmem:[%s312 + $0x35b8] sm:$0xff]
        %v2103 = vld [vmem:[%s312 + $0x35c0] sm:$0xff]
        %v2104 = vld [vmem:[%s312 + $0x35c8] sm:$0xff]
        %v2105 = vld [vmem:[%s312 + $0x35d0] sm:$0xff]
        %v2106 = vld [vmem:[%s312 + $0x35d8] sm:$0xff]
        %v2107 = vld [vmem:[%s312 + $0x35e0] sm:$0xff]
        %v2108 = vld [vmem:[%s312 + $0x35e8] sm:$0xff]
        %v2109 = vld [vmem:[%s312 + $0x35f0] sm:$0xff]
        %v2110 = vld [vmem:[%s312 + $0x35f8] sm:$0xff]
        %v2111 = vld [vmem:[%s312 + $0x3600] sm:$0xff]
        %v2112 = vld [vmem:[%s312 + $0x3608] sm:$0xff]
        %v2113 = vld [vmem:[%s312 + $0x3610] sm:$0xff]
        %v2114 = vld [vmem:[%s312 + $0x3618] sm:$0xff]
        %v2115 = vld [vmem:[%s312 + $0x3620] sm:$0xff]
        %v2116 = vld [vmem:[%s312 + $0x3628] sm:$0xff]
        %v2117 = vld [vmem:[%s312 + $0x3630] sm:$0xff]
        %v2118 = vld [vmem:[%s312 + $0x3638] sm:$0xff]
        %v2119 = vld [vmem:[%s312 + $0x3640] sm:$0xff]
        %v2120 = vld [vmem:[%s312 + $0x3648] sm:$0xff]
        %v2121 = vld [vmem:[%s312 + $0x3650] sm:$0xff]
        %v2122 = vld [vmem:[%s312 + $0x3658] sm:$0xff]
        %v2123 = vld [vmem:[%s312 + $0x3660] sm:$0xff]
        %v2124 = vld [vmem:[%s312 + $0x3668] sm:$0xff]
        %v2125 = vld [vmem:[%s312 + $0x3670] sm:$0xff]
        %v2126 = vld [vmem:[%s312 + $0x3678] sm:$0xff]
        %v2127 = vld [vmem:[%s312 + $0x3680] sm:$0xff]
        %v2128 = vld [vmem:[%s312 + $0x3688] sm:$0xff]
        %v2129 = vld [vmem:[%s312 + $0x3690] sm:$0xff]
        %v2130 = vld [vmem:[%s312 + $0x3698] sm:$0xff]
        %v2131 = vld [vmem:[%s312 + $0x36a0] sm:$0xff]
        %v2132 = vld [vmem:[%s312 + $0x36a8] sm:$0xff]
        %v2133 = vld [vmem:[%s312 + $0x36b0] sm:$0xff]
        %v2134 = vld [vmem:[%s312 + $0x36b8] sm:$0xff]
        %v2135 = vld [vmem:[%s312 + $0x36c0] sm:$0xff]
        %v2136 = vld [vmem:[%s312 + $0x36c8] sm:$0xff]
        %v2137 = vld [vmem:[%s312 + $0x36d0] sm:$0xff]
        %v2138 = vld [vmem:[%s312 + $0x36d8] sm:$0xff]
        %v2139 = vld [vmem:[%s312 + $0x36e0] sm:$0xff]
        %v2140 = vld [vmem:[%s312 + $0x36e8] sm:$0xff]
        %v2141 = vld [vmem:[%s312 + $0x36f0] sm:$0xff]
        %v2142 = vld [vmem:[%s312 + $0x36f8] sm:$0xff]
        %v2143 = vld [vmem:[%s312 + $0x3700] sm:$0xff]
        %v2144 = vld [vmem:[%s312 + $0x3708] sm:$0xff]
        %v2145 = vld [vmem:[%s312 + $0x3710] sm:$0xff]
        %v2146 = vld [vmem:[%s312 + $0x3718] sm:$0xff]
        %v2147 = vld [vmem:[%s312 + $0x3720] sm:$0xff]
        %v2148 = vld [vmem:[%s312 + $0x3728] sm:$0xff]
        %v2149 = vld [vmem:[%s312 + $0x3730] sm:$0xff]
        %v2150 = vld [vmem:[%s312 + $0x3738] sm:$0xff]
        %v2151 = vld [vmem:[%s312 + $0x3740] sm:$0xff]
        %v2152 = vld [vmem:[%s312 + $0x3748] sm:$0xff]
        %v2153 = vld [vmem:[%s312 + $0x3750] sm:$0xff]
        %v2154 = vld [vmem:[%s312 + $0x3758] sm:$0xff]
        %v2155 = vld [vmem:[%s312 + $0x3760] sm:$0xff]
        %v2156 = vld [vmem:[%s312 + $0x3768] sm:$0xff]
        %v2157 = vld [vmem:[%s312 + $0x3770] sm:$0xff]
        %v2158 = vld [vmem:[%s312 + $0x3778] sm:$0xff]
        %v2159 = vld [vmem:[%s312 + $0x3780] sm:$0xff]
        %v2160 = vld [vmem:[%s312 + $0x3788] sm:$0xff]
        %v2161 = vld [vmem:[%s312 + $0x3790] sm:$0xff]
        %v2162 = vld [vmem:[%s312 + $0x3798] sm:$0xff]
        %v2163 = vld [vmem:[%s312 + $0x37a0] sm:$0xff]
        %v2164 = vld [vmem:[%s312 + $0x37a8] sm:$0xff]
        %v2165 = vld [vmem:[%s312 + $0x37b0] sm:$0xff]
        %v2166 = vld [vmem:[%s312 + $0x37b8] sm:$0xff]
        %v2167 = vld [vmem:[%s312 + $0x37c0] sm:$0xff]
        %v2168 = vld [vmem:[%s312 + $0x37c8] sm:$0xff]
        %v2169 = vld [vmem:[%s312 + $0x37d0] sm:$0xff]
        %v2170 = vld [vmem:[%s312 + $0x37d8] sm:$0xff]
        %v2171 = vld [vmem:[%s312 + $0x37e0] sm:$0xff]
        %v2172 = vld [vmem:[%s312 + $0x37e8] sm:$0xff]
        %v2173 = vld [vmem:[%s312 + $0x37f0] sm:$0xff]
        %v2174 = vld [vmem:[%s312 + $0x37f8] sm:$0xff]
        %v2175 = vld [vmem:[%s312 + $0x3800] sm:$0xff]
        %v2176 = vld [vmem:[%s312 + $0x3808] sm:$0xff]
        %v2177 = vld [vmem:[%s312 + $0x3810] sm:$0xff]
        %v2178 = vld [vmem:[%s312 + $0x3818] sm:$0xff]
        %v2179 = vld [vmem:[%s312 + $0x3820] sm:$0xff]
        %v2180 = vld [vmem:[%s312 + $0x3828] sm:$0xff]
        %v2181 = vld [vmem:[%s312 + $0x3830] sm:$0xff]
        %v2182 = vld [vmem:[%s312 + $0x3838] sm:$0xff]
        %v2183 = vld [vmem:[%s312 + $0x3840] sm:$0xff]
        %v2184 = vld [vmem:[%s312 + $0x3848] sm:$0xff]
        %v2185 = vld [vmem:[%s312 + $0x3850] sm:$0xff]
        %v2186 = vld [vmem:[%s312 + $0x3858] sm:$0xff]
        %v2187 = vld [vmem:[%s312 + $0x3860] sm:$0xff]
        %v2188 = vld [vmem:[%s312 + $0x3868] sm:$0xff]
        %v2189 = vld [vmem:[%s312 + $0x3870] sm:$0xff]
        %v2190 = vld [vmem:[%s312 + $0x3878] sm:$0xff]
        %v2191 = vld [vmem:[%s312 + $0x3880] sm:$0xff]
        %v2192 = vld [vmem:[%s312 + $0x3888] sm:$0xff]
        %v2193 = vld [vmem:[%s312 + $0x3890] sm:$0xff]
        %v2194 = vld [vmem:[%s312 + $0x3898] sm:$0xff]
        %v2195 = vld [vmem:[%s312 + $0x38a0] sm:$0xff]
        %v2196 = vld [vmem:[%s312 + $0x38a8] sm:$0xff]
        %v2197 = vld [vmem:[%s312 + $0x38b0] sm:$0xff]
        %v2198 = vld [vmem:[%s312 + $0x38b8] sm:$0xff]
        %v2199 = vld [vmem:[%s312 + $0x38c0] sm:$0xff]
        %v2200 = vld [vmem:[%s312 + $0x38c8] sm:$0xff]
        %v2201 = vld [vmem:[%s312 + $0x38d0] sm:$0xff]
        %v2202 = vld [vmem:[%s312 + $0x38d8] sm:$0xff]
        %v2203 = vld [vmem:[%s312 + $0x38e0] sm:$0xff]
        %v2204 = vld [vmem:[%s312 + $0x38e8] sm:$0xff]
        %v2205 = vld [vmem:[%s312 + $0x38f0] sm:$0xff]
        %v2206 = vld [vmem:[%s312 + $0x38f8] sm:$0xff]
        %v2207 = vld [vmem:[%s312 + $0x3900] sm:$0xff]
        %v2208 = vld [vmem:[%s312 + $0x3908] sm:$0xff]
        %v2209 = vld [vmem:[%s312 + $0x3910] sm:$0xff]
        %v2210 = vld [vmem:[%s312 + $0x3918] sm:$0xff]
        %v2211 = vld [vmem:[%s312 + $0x3920] sm:$0xff]
        %v2212 = vld [vmem:[%s312 + $0x3928] sm:$0xff]
        %v2213 = vld [vmem:[%s312 + $0x3930] sm:$0xff]
        %v2214 = vld [vmem:[%s312 + $0x3938] sm:$0xff]
        %v2215 = vld [vmem:[%s312 + $0x3940] sm:$0xff]
        %v2216 = vld [vmem:[%s312 + $0x3948] sm:$0xff]
        %v2217 = vld [vmem:[%s312 + $0x3950] sm:$0xff]
        %v2218 = vld [vmem:[%s312 + $0x3958] sm:$0xff]
        %v2219 = vld [vmem:[%s312 + $0x3960] sm:$0xff]
        %v2220 = vld [vmem:[%s312 + $0x3968] sm:$0xff]
        %v2221 = vld [vmem:[%s312 + $0x3970] sm:$0xff]
        %v2222 = vld [vmem:[%s312 + $0x3978] sm:$0xff]
        %v2223 = vld [vmem:[%s312 + $0x3980] sm:$0xff]
        %v2224 = vld [vmem:[%s312 + $0x3988] sm:$0xff]
        %v2225 = vld [vmem:[%s312 + $0x3990] sm:$0xff]
        %v2226 = vld [vmem:[%s312 + $0x3998] sm:$0xff]
        %v2227 = vld [vmem:[%s312 + $0x39a0] sm:$0xff]
        %v2228 = vld [vmem:[%s312 + $0x39a8] sm:$0xff]
        %v2229 = vld [vmem:[%s312 + $0x39b0] sm:$0xff]
        %v2230 = vld [vmem:[%s312 + $0x39b8] sm:$0xff]
        %v2231 = vld [vmem:[%s312 + $0x39c0] sm:$0xff]
        %v2232 = vld [vmem:[%s312 + $0x39c8] sm:$0xff]
        %v2233 = vld [vmem:[%s312 + $0x39d0] sm:$0xff]
        %v2234 = vld [vmem:[%s312 + $0x39d8] sm:$0xff]
        %v2235 = vld [vmem:[%s312 + $0x39e0] sm:$0xff]
        %v2236 = vld [vmem:[%s312 + $0x39e8] sm:$0xff]
        %v2237 = vld [vmem:[%s312 + $0x39f0] sm:$0xff]
        %v2238 = vld [vmem:[%s312 + $0x39f8] sm:$0xff]
        %v2239 = vld [vmem:[%s312 + $0x3a00] sm:$0xff]
        %v2240 = vld [vmem:[%s312 + $0x3a08] sm:$0xff]
        %v2241 = vld [vmem:[%s312 + $0x3a10] sm:$0xff]
        %v2242 = vld [vmem:[%s312 + $0x3a18] sm:$0xff]
        %v2243 = vld [vmem:[%s312 + $0x3a20] sm:$0xff]
        %v2244 = vld [vmem:[%s312 + $0x3a28] sm:$0xff]
        %v2245 = vld [vmem:[%s312 + $0x3a30] sm:$0xff]
        %v2246 = vld [vmem:[%s312 + $0x3a38] sm:$0xff]
        %v2247 = vld [vmem:[%s312 + $0x3a40] sm:$0xff]
        %v2248 = vld [vmem:[%s312 + $0x3a48] sm:$0xff]
        %v2249 = vld [vmem:[%s312 + $0x3a50] sm:$0xff]
        %v2250 = vld [vmem:[%s312 + $0x3a58] sm:$0xff]
        %v2251 = vld [vmem:[%s312 + $0x3a60] sm:$0xff]
        %v2252 = vld [vmem:[%s312 + $0x3a68] sm:$0xff]
        %v2253 = vld [vmem:[%s312 + $0x3a70] sm:$0xff]
        %v2254 = vld [vmem:[%s312 + $0x3a78] sm:$0xff]
        %v2255 = vld [vmem:[%s312 + $0x3a80] sm:$0xff]
        %v2256 = vld [vmem:[%s312 + $0x3a88] sm:$0xff]
        %v2257 = vld [vmem:[%s312 + $0x3a90] sm:$0xff]
        %v2258 = vld [vmem:[%s312 + $0x3a98] sm:$0xff]
        %v2259 = vld [vmem:[%s312 + $0x3aa0] sm:$0xff]
        %v2260 = vld [vmem:[%s312 + $0x3aa8] sm:$0xff]
        %v2261 = vld [vmem:[%s312 + $0x3ab0] sm:$0xff]
        %v2262 = vld [vmem:[%s312 + $0x3ab8] sm:$0xff]
        %v2263 = vld [vmem:[%s312 + $0x3ac0] sm:$0xff]
        %v2264 = vld [vmem:[%s312 + $0x3ac8] sm:$0xff]
        %v2265 = vld [vmem:[%s312 + $0x3ad0] sm:$0xff]
        %v2266 = vld [vmem:[%s312 + $0x3ad8] sm:$0xff]
        %v2267 = vld [vmem:[%s312 + $0x3ae0] sm:$0xff]
        %v2268 = vld [vmem:[%s312 + $0x3ae8] sm:$0xff]
        %v2269 = vld [vmem:[%s312 + $0x3af0] sm:$0xff]
        %v2270 = vld [vmem:[%s312 + $0x3af8] sm:$0xff]
        %v2271 = vld [vmem:[%s312 + $0x3b00] sm:$0xff]
        %v2272 = vld [vmem:[%s312 + $0x3b08] sm:$0xff]
        %v2273 = vld [vmem:[%s312 + $0x3b10] sm:$0xff]
        %v2274 = vld [vmem:[%s312 + $0x3b18] sm:$0xff]
        %v2275 = vld [vmem:[%s312 + $0x3b20] sm:$0xff]
        %v2276 = vld [vmem:[%s312 + $0x3b28] sm:$0xff]
        %v2277 = vld [vmem:[%s312 + $0x3b30] sm:$0xff]
        %v2278 = vld [vmem:[%s312 + $0x3b38] sm:$0xff]
        %v2279 = vld [vmem:[%s312 + $0x3b40] sm:$0xff]
        %v2280 = vld [vmem:[%s312 + $0x3b48] sm:$0xff]
        %v2281 = vld [vmem:[%s312 + $0x3b50] sm:$0xff]
        %v2282 = vld [vmem:[%s312 + $0x3b58] sm:$0xff]
        %v2283 = vld [vmem:[%s312 + $0x3b60] sm:$0xff]
        %v2284 = vld [vmem:[%s312 + $0x3b68] sm:$0xff]
        %v2285 = vld [vmem:[%s312 + $0x3b70] sm:$0xff]
        %v2286 = vld [vmem:[%s312 + $0x3b78] sm:$0xff]
        %v2287 = vld [vmem:[%s312 + $0x3b80] sm:$0xff]
        %v2288 = vld [vmem:[%s312 + $0x3b88] sm:$0xff]
        %v2289 = vld [vmem:[%s312 + $0x3b90] sm:$0xff]
        %v2290 = vld [vmem:[%s312 + $0x3b98] sm:$0xff]
        %v2291 = vld [vmem:[%s312 + $0x3ba0] sm:$0xff]
        %v2292 = vld [vmem:[%s312 + $0x3ba8] sm:$0xff]
        %v2293 = vld [vmem:[%s312 + $0x3bb0] sm:$0xff]
        %v2294 = vld [vmem:[%s312 + $0x3bb8] sm:$0xff]
        %v2295 = vld [vmem:[%s312 + $0x3bc0] sm:$0xff]
        %v2296 = vld [vmem:[%s312 + $0x3bc8] sm:$0xff]
        %v2297 = vld [vmem:[%s312 + $0x3bd0] sm:$0xff]
        %v2298 = vld [vmem:[%s312 + $0x3bd8] sm:$0xff]
        %v2299 = vld [vmem:[%s312 + $0x3be0] sm:$0xff]
        %v2300 = vld [vmem:[%s312 + $0x3be8] sm:$0xff]
        %v2301 = vld [vmem:[%s312 + $0x3bf0] sm:$0xff]
        %v2302 = vld [vmem:[%s312 + $0x3bf8] sm:$0xff]
        %v2303 = vld [vmem:[%s312 + $0x3c00] sm:$0xff]
        %v2304 = vld [vmem:[%s312 + $0x3c08] sm:$0xff]
        %v2305 = vld [vmem:[%s312 + $0x3c10] sm:$0xff]
        %v2306 = vld [vmem:[%s312 + $0x3c18] sm:$0xff]
        %v2307 = vld [vmem:[%s312 + $0x3c20] sm:$0xff]
        %v2308 = vld [vmem:[%s312 + $0x3c28] sm:$0xff]
        %v2309 = vld [vmem:[%s312 + $0x3c30] sm:$0xff]
        %v2310 = vld [vmem:[%s312 + $0x3c38] sm:$0xff]
        %v2311 = vld [vmem:[%s312 + $0x3c40] sm:$0xff]
        %v2312 = vld [vmem:[%s312 + $0x3c48] sm:$0xff]
        %v2313 = vld [vmem:[%s312 + $0x3c50] sm:$0xff]
        %v2314 = vld [vmem:[%s312 + $0x3c58] sm:$0xff]
        %v2315 = vld [vmem:[%s312 + $0x3c60] sm:$0xff]
        %v2316 = vld [vmem:[%s312 + $0x3c68] sm:$0xff]
        %v2317 = vld [vmem:[%s312 + $0x3c70] sm:$0xff]
        %v2318 = vld [vmem:[%s312 + $0x3c78] sm:$0xff]
        %v2319 = vld [vmem:[%s312 + $0x3c80] sm:$0xff]
        %v2320 = vld [vmem:[%s312 + $0x3c88] sm:$0xff]
        %v2321 = vld [vmem:[%s312 + $0x3c90] sm:$0xff]
        %v2322 = vld [vmem:[%s312 + $0x3c98] sm:$0xff]
        %v2323 = vld [vmem:[%s312 + $0x3ca0] sm:$0xff]
        %v2324 = vld [vmem:[%s312 + $0x3ca8] sm:$0xff]
        %v2325 = vld [vmem:[%s312 + $0x3cb0] sm:$0xff]
        %v2326 = vld [vmem:[%s312 + $0x3cb8] sm:$0xff]
        %v2327 = vld [vmem:[%s312 + $0x3cc0] sm:$0xff]
        %v2328 = vld [vmem:[%s312 + $0x3cc8] sm:$0xff]
        %v2329 = vld [vmem:[%s312 + $0x3cd0] sm:$0xff]
        %v2330 = vld [vmem:[%s312 + $0x3cd8] sm:$0xff]
        %v2331 = vld [vmem:[%s312 + $0x3ce0] sm:$0xff]
        %v2332 = vld [vmem:[%s312 + $0x3ce8] sm:$0xff]
        %v2333 = vld [vmem:[%s312 + $0x3cf0] sm:$0xff]
        %v2334 = vld [vmem:[%s312 + $0x3cf8] sm:$0xff]
        %v2335 = vld [vmem:[%s312 + $0x3d00] sm:$0xff]
        %v2336 = vld [vmem:[%s312 + $0x3d08] sm:$0xff]
        %v2337 = vld [vmem:[%s312 + $0x3d10] sm:$0xff]
        %v2338 = vld [vmem:[%s312 + $0x3d18] sm:$0xff]
        %v2339 = vld [vmem:[%s312 + $0x3d20] sm:$0xff]
        %v2340 = vld [vmem:[%s312 + $0x3d28] sm:$0xff]
        %v2341 = vld [vmem:[%s312 + $0x3d30] sm:$0xff]
        %v2342 = vld [vmem:[%s312 + $0x3d38] sm:$0xff]
        %v2343 = vld [vmem:[%s312 + $0x3d40] sm:$0xff]
        %v2344 = vld [vmem:[%s312 + $0x3d48] sm:$0xff]
        %v2345 = vld [vmem:[%s312 + $0x3d50] sm:$0xff]
        %v2346 = vld [vmem:[%s312 + $0x3d58] sm:$0xff]
        %v2347 = vld [vmem:[%s312 + $0x3d60] sm:$0xff]
        %v2348 = vld [vmem:[%s312 + $0x3d68] sm:$0xff]
        %v2349 = vld [vmem:[%s312 + $0x3d70] sm:$0xff]
        %v2350 = vld [vmem:[%s312 + $0x3d78] sm:$0xff]
        %v2351 = vld [vmem:[%s312 + $0x3d80] sm:$0xff]
        %v2352 = vld [vmem:[%s312 + $0x3d88] sm:$0xff]
        %v2353 = vld [vmem:[%s312 + $0x3d90] sm:$0xff]
        %v2354 = vld [vmem:[%s312 + $0x3d98] sm:$0xff]
        %v2355 = vld [vmem:[%s312 + $0x3da0] sm:$0xff]
        %v2356 = vld [vmem:[%s312 + $0x3da8] sm:$0xff]
        %v2357 = vld [vmem:[%s312 + $0x3db0] sm:$0xff]
        %v2358 = vld [vmem:[%s312 + $0x3db8] sm:$0xff]
        %v2359 = vld [vmem:[%s312 + $0x3dc0] sm:$0xff]
        %v2360 = vld [vmem:[%s312 + $0x3dc8] sm:$0xff]
        %v2361 = vld [vmem:[%s312 + $0x3dd0] sm:$0xff]
        %v2362 = vld [vmem:[%s312 + $0x3dd8] sm:$0xff]
        %v2363 = vld [vmem:[%s312 + $0x3de0] sm:$0xff]
        %v2364 = vld [vmem:[%s312 + $0x3de8] sm:$0xff]
        %v2365 = vld [vmem:[%s312 + $0x3df0] sm:$0xff]
        %v2366 = vld [vmem:[%s312 + $0x3df8] sm:$0xff]
        %v2367 = vld [vmem:[%s312 + $0x3e00] sm:$0xff]
        %v2368 = vld [vmem:[%s312 + $0x3e08] sm:$0xff]
        %v2369 = vld [vmem:[%s312 + $0x3e10] sm:$0xff]
        %v2370 = vld [vmem:[%s312 + $0x3e18] sm:$0xff]
        %v2371 = vld [vmem:[%s312 + $0x3e20] sm:$0xff]
        %v2372 = vld [vmem:[%s312 + $0x3e28] sm:$0xff]
        %v2373 = vld [vmem:[%s312 + $0x3e30] sm:$0xff]
        %v2374 = vld [vmem:[%s312 + $0x3e38] sm:$0xff]
        %v2375 = vld [vmem:[%s312 + $0x3e40] sm:$0xff]
        %v2376 = vld [vmem:[%s312 + $0x3e48] sm:$0xff]
        %v2377 = vld [vmem:[%s312 + $0x3e50] sm:$0xff]
        %v2378 = vld [vmem:[%s312 + $0x3e58] sm:$0xff]
        %v2379 = vld [vmem:[%s312 + $0x3e60] sm:$0xff]
        %v2380 = vld [vmem:[%s312 + $0x3e68] sm:$0xff]
        %v2381 = vld [vmem:[%s312 + $0x3e70] sm:$0xff]
        %v2382 = vld [vmem:[%s312 + $0x3e78] sm:$0xff]
        %v2383 = vld [vmem:[%s312 + $0x3e80] sm:$0xff]
        %v2384 = vld [vmem:[%s312 + $0x3e88] sm:$0xff]
        %v2385 = vld [vmem:[%s312 + $0x3e90] sm:$0xff]
        %v2386 = vld [vmem:[%s312 + $0x3e98] sm:$0xff]
        %v2387 = vld [vmem:[%s312 + $0x3ea0] sm:$0xff]
        %v2388 = vld [vmem:[%s312 + $0x3ea8] sm:$0xff]
        %v2389 = vld [vmem:[%s312 + $0x3eb0] sm:$0xff]
        %v2390 = vld [vmem:[%s312 + $0x3eb8] sm:$0xff]
        %v2391 = vld [vmem:[%s312 + $0x3ec0] sm:$0xff]
        %v2392 = vld [vmem:[%s312 + $0x3ec8] sm:$0xff]
        %v2393 = vld [vmem:[%s312 + $0x3ed0] sm:$0xff]
        %v2394 = vld [vmem:[%s312 + $0x3ed8] sm:$0xff]
        %v2395 = vld [vmem:[%s312 + $0x3ee0] sm:$0xff]
        %v2396 = vld [vmem:[%s312 + $0x3ee8] sm:$0xff]
        %v2397 = vld [vmem:[%s312 + $0x3ef0] sm:$0xff]
        %v2398 = vld [vmem:[%s312 + $0x3ef8] sm:$0xff]
        %v2399 = vld [vmem:[%s312 + $0x3f00] sm:$0xff]
        %v2400 = vld [vmem:[%s312 + $0x3f08] sm:$0xff]
        %v2401 = vld [vmem:[%s312 + $0x3f10] sm:$0xff]
        %v2402 = vld [vmem:[%s312 + $0x3f18] sm:$0xff]
        %v2403 = vld [vmem:[%s312 + $0x3f20] sm:$0xff]
        %v2404 = vld [vmem:[%s312 + $0x3f28] sm:$0xff]
        %v2405 = vld [vmem:[%s312 + $0x3f30] sm:$0xff]
        %v2406 = vld [vmem:[%s312 + $0x3f38] sm:$0xff]
        %v2407 = vld [vmem:[%s312 + $0x3f40] sm:$0xff]
        %v2408 = vld [vmem:[%s312 + $0x3f48] sm:$0xff]
        %v2409 = vld [vmem:[%s312 + $0x3f50] sm:$0xff]
        %v2410 = vld [vmem:[%s312 + $0x3f58] sm:$0xff]
        %v2411 = vld [vmem:[%s312 + $0x3f60] sm:$0xff]
        %v2412 = vld [vmem:[%s312 + $0x3f68] sm:$0xff]
        %v2413 = vld [vmem:[%s312 + $0x3f70] sm:$0xff]
        %v2414 = vld [vmem:[%s312 + $0x3f78] sm:$0xff]
        %v2415 = vld [vmem:[%s312 + $0x3f80] sm:$0xff]
        %v2416 = vld [vmem:[%s312 + $0x3f88] sm:$0xff]
        %v2417 = vld [vmem:[%s312 + $0x3f90] sm:$0xff]
        %v2418 = vld [vmem:[%s312 + $0x3f98] sm:$0xff]
        %v2419 = vld [vmem:[%s312 + $0x3fa0] sm:$0xff]
        %v2420 = vld [vmem:[%s312 + $0x3fa8] sm:$0xff]
        %v2421 = vld [vmem:[%s312 + $0x3fb0] sm:$0xff]
        %v2422 = vld [vmem:[%s312 + $0x3fb8] sm:$0xff]
        %v2423 = vld [vmem:[%s312 + $0x3fc0] sm:$0xff]
        %v2424 = vld [vmem:[%s312 + $0x3fc8] sm:$0xff]
        %v2425 = vld [vmem:[%s312 + $0x3fd0] sm:$0xff]
        %v2426 = vld [vmem:[%s312 + $0x3fd8] sm:$0xff]
        %v2427 = vld [vmem:[%s312 + $0x3fe0] sm:$0xff]
        %v2428 = vld [vmem:[%s312 + $0x3fe8] sm:$0xff]
        %v2429 = vld [vmem:[%s312 + $0x3ff0] sm:$0xff]
        %v2430 = vld [vmem:[%s312 + $0x3ff8] sm:$0xff]
        %v2431 = vld [vmem:[%s312 + $0x4000] sm:$0xff]
        %v2432 = vld [vmem:[%s312 + $0x4008] sm:$0xff]
        %v2433 = vld [vmem:[%s312 + $0x4010] sm:$0xff]
        %v2434 = vld [vmem:[%s312 + $0x4018] sm:$0xff]
        %v2435 = vld [vmem:[%s312 + $0x4020] sm:$0xff]
        %v2436 = vld [vmem:[%s312 + $0x4028] sm:$0xff]
        %v2437 = vld [vmem:[%s312 + $0x4030] sm:$0xff]
        %v2438 = vld [vmem:[%s312 + $0x4038] sm:$0xff]
        %v2439 = vld [vmem:[%s312 + $0x4040] sm:$0xff]
        %v2440 = vld [vmem:[%s312 + $0x4048] sm:$0xff]
        %v2441 = vld [vmem:[%s312 + $0x4050] sm:$0xff]
        %v2442 = vld [vmem:[%s312 + $0x4058] sm:$0xff]
        %v2443 = vld [vmem:[%s312 + $0x4060] sm:$0xff]
        %v2444 = vld [vmem:[%s312 + $0x4068] sm:$0xff]
        %v2445 = vld [vmem:[%s312 + $0x4070] sm:$0xff]
        %v2446 = vld [vmem:[%s312 + $0x4078] sm:$0xff]
        %v2447 = vld [vmem:[%s312 + $0x4080] sm:$0xff]
        %v2448 = vld [vmem:[%s312 + $0x4088] sm:$0xff]
        %v2449 = vld [vmem:[%s312 + $0x4090] sm:$0xff]
        %v2450 = vld [vmem:[%s312 + $0x4098] sm:$0xff]
        %v2451 = vld [vmem:[%s312 + $0x40a0] sm:$0xff]
        %v2452 = vld [vmem:[%s312 + $0x40a8] sm:$0xff]
        %v2453 = vld [vmem:[%s312 + $0x40b0] sm:$0xff]
        %v2454 = vld [vmem:[%s312 + $0x40b8] sm:$0xff]
        %v2455 = vld [vmem:[%s312 + $0x40c0] sm:$0xff]
        %v2456 = vld [vmem:[%s312 + $0x40c8] sm:$0xff]
        %v2457 = vld [vmem:[%s312 + $0x40d0] sm:$0xff]
        %v2458 = vld [vmem:[%s312 + $0x40d8] sm:$0xff]
        %v2459 = vld [vmem:[%s312 + $0x40e0] sm:$0xff]
        %v2460 = vld [vmem:[%s312 + $0x40e8] sm:$0xff]
        %v2461 = vld [vmem:[%s312 + $0x40f0] sm:$0xff]
        %v2462 = vld [vmem:[%s312 + $0x40f8] sm:$0xff]
        %v2463 = vld [vmem:[%s312 + $0x4100] sm:$0xff]
        %v2464 = vld [vmem:[%s312 + $0x4108] sm:$0xff]
        %v2465 = vld [vmem:[%s312 + $0x4110] sm:$0xff]
        %v2466 = vld [vmem:[%s312 + $0x4118] sm:$0xff]
        %v2467 = vld [vmem:[%s312 + $0x4120] sm:$0xff]
        %v2468 = vld [vmem:[%s312 + $0x4128] sm:$0xff]
        %v2469 = vld [vmem:[%s312 + $0x4130] sm:$0xff]
        %v2470 = vld [vmem:[%s312 + $0x4138] sm:$0xff]
        %v2471 = vld [vmem:[%s312 + $0x4140] sm:$0xff]
        %v2472 = vld [vmem:[%s312 + $0x4148] sm:$0xff]
        %v2473 = vld [vmem:[%s312 + $0x4150] sm:$0xff]
        %v2474 = vld [vmem:[%s312 + $0x4158] sm:$0xff]
        %v2475 = vld [vmem:[%s312 + $0x4160] sm:$0xff]
        %v2476 = vld [vmem:[%s312 + $0x4168] sm:$0xff]
        %v2477 = vld [vmem:[%s312 + $0x4170] sm:$0xff]
        %v2478 = vld [vmem:[%s312 + $0x4178] sm:$0xff]
        %v2479 = vld [vmem:[%s312 + $0x4180] sm:$0xff]
        %v2480 = vld [vmem:[%s312 + $0x4188] sm:$0xff]
        %v2481 = vld [vmem:[%s312 + $0x4190] sm:$0xff]
        %v2482 = vld [vmem:[%s312 + $0x4198] sm:$0xff]
        %v2483 = vld [vmem:[%s312 + $0x41a0] sm:$0xff]
        %v2484 = vld [vmem:[%s312 + $0x41a8] sm:$0xff]
        %v2485 = vld [vmem:[%s312 + $0x41b0] sm:$0xff]
        %v2486 = vld [vmem:[%s312 + $0x41b8] sm:$0xff]
        %v2487 = vld [vmem:[%s312 + $0x41c0] sm:$0xff]
        %v2488 = vld [vmem:[%s312 + $0x41c8] sm:$0xff]
        %v2489 = vld [vmem:[%s312 + $0x41d0] sm:$0xff]
        %v2490 = vld [vmem:[%s312 + $0x41d8] sm:$0xff]
        %v2491 = vld [vmem:[%s312 + $0x41e0] sm:$0xff]
        %v2492 = vld [vmem:[%s312 + $0x41e8] sm:$0xff]
        %v2493 = vld [vmem:[%s312 + $0x41f0] sm:$0xff]
        %v2494 = vld [vmem:[%s312 + $0x41f8] sm:$0xff]
        %v2495 = vld [vmem:[%s312 + $0x4200] sm:$0xff]
        %v2496 = vld [vmem:[%s312 + $0x4208] sm:$0xff]
        %v2497 = vld [vmem:[%s312 + $0x4210] sm:$0xff]
        %v2498 = vld [vmem:[%s312 + $0x4218] sm:$0xff]
        %v2499 = vld [vmem:[%s312 + $0x4220] sm:$0xff]
        %v2500 = vld [vmem:[%s312 + $0x4228] sm:$0xff]
        %v2501 = vld [vmem:[%s312 + $0x4230] sm:$0xff]
        %v2502 = vld [vmem:[%s312 + $0x4238] sm:$0xff]
        %v2503 = vld [vmem:[%s312 + $0x4240] sm:$0xff]
        %v2504 = vld [vmem:[%s312 + $0x4248] sm:$0xff]
        %v2505 = vld [vmem:[%s312 + $0x4250] sm:$0xff]
        %v2506 = vld [vmem:[%s312 + $0x4258] sm:$0xff]
        %v2507 = vld [vmem:[%s312 + $0x4260] sm:$0xff]
        %v2508 = vld [vmem:[%s312 + $0x4268] sm:$0xff]
        %v2509 = vld [vmem:[%s312 + $0x4270] sm:$0xff]
        %v2510 = vld [vmem:[%s312 + $0x4278] sm:$0xff]
        %v2511 = vld [vmem:[%s312 + $0x4280] sm:$0xff]
        %v2512 = vld [vmem:[%s312 + $0x4288] sm:$0xff]
        %v2513 = vld [vmem:[%s312 + $0x4290] sm:$0xff]
        %v2514 = vld [vmem:[%s312 + $0x4298] sm:$0xff]
        %v2515 = vld [vmem:[%s312 + $0x42a0] sm:$0xff]
        %v2516 = vld [vmem:[%s312 + $0x42a8] sm:$0xff]
        %v2517 = vld [vmem:[%s312 + $0x42b0] sm:$0xff]
        %v2518 = vld [vmem:[%s312 + $0x42b8] sm:$0xff]
        %v2519 = vld [vmem:[%s312 + $0x42c0] sm:$0xff]
        %v2520 = vld [vmem:[%s312 + $0x42c8] sm:$0xff]
        %v2521 = vld [vmem:[%s312 + $0x42d0] sm:$0xff]
        %v2522 = vld [vmem:[%s312 + $0x42d8] sm:$0xff]
        %v2523 = vld [vmem:[%s312 + $0x42e0] sm:$0xff]
        %v2524 = vld [vmem:[%s312 + $0x42e8] sm:$0xff]
        %v2525 = vld [vmem:[%s312 + $0x42f0] sm:$0xff]
        %v2526 = vld [vmem:[%s312 + $0x42f8] sm:$0xff]
        %v2527 = vld [vmem:[%s312 + $0x4300] sm:$0xff]
        %v2528 = vld [vmem:[%s312 + $0x4308] sm:$0xff]
        %v2529 = vld [vmem:[%s312 + $0x4310] sm:$0xff]
        %v2530 = vld [vmem:[%s312 + $0x4318] sm:$0xff]
        %v2531 = vld [vmem:[%s312 + $0x4320] sm:$0xff]
        %v2532 = vld [vmem:[%s312 + $0x4328] sm:$0xff]
        %v2533 = vld [vmem:[%s312 + $0x4330] sm:$0xff]
        %v2534 = vld [vmem:[%s312 + $0x4338] sm:$0xff]
        %v2535 = vld [vmem:[%s312 + $0x4340] sm:$0xff]
        %v2536 = vld [vmem:[%s312 + $0x4348] sm:$0xff]
        %v2537 = vld [vmem:[%s312 + $0x4350] sm:$0xff]
        %v2538 = vld [vmem:[%s312 + $0x4358] sm:$0xff]
        %v2539 = vld [vmem:[%s312 + $0x4360] sm:$0xff]
        %v2540 = vld [vmem:[%s312 + $0x4368] sm:$0xff]
        %v2541 = vld [vmem:[%s312 + $0x4370] sm:$0xff]
        %v2542 = vld [vmem:[%s312 + $0x4378] sm:$0xff]
        %v2543 = vld [vmem:[%s312 + $0x4380] sm:$0xff]
        %v2544 = vld [vmem:[%s312 + $0x4388] sm:$0xff]
        %v2545 = vld [vmem:[%s312 + $0x4390] sm:$0xff]
        %v2546 = vld [vmem:[%s312 + $0x4398] sm:$0xff]
        %v2547 = vld [vmem:[%s312 + $0x43a0] sm:$0xff]
        %v2548 = vld [vmem:[%s312 + $0x43a8] sm:$0xff]
        %v2549 = vld [vmem:[%s312 + $0x43b0] sm:$0xff]
        %v2550 = vld [vmem:[%s312 + $0x43b8] sm:$0xff]
        %v2551 = vld [vmem:[%s312 + $0x43c0] sm:$0xff]
        %v2552 = vld [vmem:[%s312 + $0x43c8] sm:$0xff]
        %v2553 = vld [vmem:[%s312 + $0x43d0] sm:$0xff]
        %v2554 = vld [vmem:[%s312 + $0x43d8] sm:$0xff]
        %v2555 = vld [vmem:[%s312 + $0x43e0] sm:$0xff]
        %v2556 = vld [vmem:[%s312 + $0x43e8] sm:$0xff]
        %v2557 = vld [vmem:[%s312 + $0x43f0] sm:$0xff]
        %v2558 = vld [vmem:[%s312 + $0x43f8] sm:$0xff]
        %v2559 = vld [vmem:[%s312 + $0x4400] sm:$0xff]
        %v2560 = vld [vmem:[%s312 + $0x4408] sm:$0xff]
        %v2561 = vld [vmem:[%s312 + $0x4410] sm:$0xff]
        %v2562 = vld [vmem:[%s312 + $0x4418] sm:$0xff]
        %v2563 = vld [vmem:[%s312 + $0x4420] sm:$0xff]
        %v2564 = vld [vmem:[%s312 + $0x4428] sm:$0xff]
        %v2565 = vld [vmem:[%s312 + $0x4430] sm:$0xff]
        %v2566 = vld [vmem:[%s312 + $0x4438] sm:$0xff]
        %v2567 = vld [vmem:[%s312 + $0x4440] sm:$0xff]
        %v2568 = vld [vmem:[%s312 + $0x4448] sm:$0xff]
        %v2569 = vld [vmem:[%s312 + $0x4450] sm:$0xff]
        %v2570 = vld [vmem:[%s312 + $0x4458] sm:$0xff]
        %v2571 = vld [vmem:[%s312 + $0x4460] sm:$0xff]
        %v2572 = vld [vmem:[%s312 + $0x4468] sm:$0xff]
        %v2573 = vld [vmem:[%s312 + $0x4470] sm:$0xff]
        %v2574 = vld [vmem:[%s312 + $0x4478] sm:$0xff]
        %v2575 = vld [vmem:[%s312 + $0x4480] sm:$0xff]
        %v2576 = vld [vmem:[%s312 + $0x4488] sm:$0xff]
        %v2577 = vld [vmem:[%s312 + $0x4490] sm:$0xff]
        %v2578 = vld [vmem:[%s312 + $0x4498] sm:$0xff]
        %v2579 = vld [vmem:[%s312 + $0x44a0] sm:$0xff]
        %v2580 = vld [vmem:[%s312 + $0x44a8] sm:$0xff]
        %v2581 = vld [vmem:[%s312 + $0x44b0] sm:$0xff]
        %v2582 = vld [vmem:[%s312 + $0x44b8] sm:$0xff]
        %v2583 = vld [vmem:[%s312 + $0x44c0] sm:$0xff]
        %v2584 = vld [vmem:[%s312 + $0x44c8] sm:$0xff]
        %v2585 = vld [vmem:[%s312 + $0x44d0] sm:$0xff]
        %v2586 = vld [vmem:[%s312 + $0x44d8] sm:$0xff]
        %v2587 = vld [vmem:[%s312 + $0x44e0] sm:$0xff]
        %v2588 = vld [vmem:[%s312 + $0x44e8] sm:$0xff]
        %v2589 = vld [vmem:[%s312 + $0x44f0] sm:$0xff]
        %v2590 = vld [vmem:[%s312 + $0x44f8] sm:$0xff]
        %v2591 = vld [vmem:[%s312 + $0x4500] sm:$0xff]
        %v2592 = vld [vmem:[%s312 + $0x4508] sm:$0xff]
        %v2593 = vld [vmem:[%s312 + $0x4510] sm:$0xff]
        %v2594 = vld [vmem:[%s312 + $0x4518] sm:$0xff]
        %v2595 = vld [vmem:[%s312 + $0x4520] sm:$0xff]
        %v2596 = vld [vmem:[%s312 + $0x4528] sm:$0xff]
        %v2597 = vld [vmem:[%s312 + $0x4530] sm:$0xff]
        %v2598 = vld [vmem:[%s312 + $0x4538] sm:$0xff]
        %v2599 = vld [vmem:[%s312 + $0x4540] sm:$0xff]
        %v2600 = vld [vmem:[%s312 + $0x4548] sm:$0xff]
        %v2601 = vld [vmem:[%s312 + $0x4550] sm:$0xff]
        %v2602 = vld [vmem:[%s312 + $0x4558] sm:$0xff]
        %v2603 = vld [vmem:[%s312 + $0x4560] sm:$0xff]
        %v2604 = vld [vmem:[%s312 + $0x4568] sm:$0xff]
        %v2605 = vld [vmem:[%s312 + $0x4570] sm:$0xff]
        %v2606 = vld [vmem:[%s312 + $0x4578] sm:$0xff]
        %v2607 = vld [vmem:[%s312 + $0x4580] sm:$0xff]
        %v2608 = vld [vmem:[%s312 + $0x4588] sm:$0xff]
        %v2609 = vld [vmem:[%s312 + $0x4590] sm:$0xff]
        %v2610 = vld [vmem:[%s312 + $0x4598] sm:$0xff]
        %v2611 = vld [vmem:[%s312 + $0x45a0] sm:$0xff]
        %v2612 = vld [vmem:[%s312 + $0x45a8] sm:$0xff]
        %v2613 = vld [vmem:[%s312 + $0x45b0] sm:$0xff]
        %v2614 = vld [vmem:[%s312 + $0x45b8] sm:$0xff]
        %v2615 = vld [vmem:[%s312 + $0x45c0] sm:$0xff]
        %v2616 = vld [vmem:[%s312 + $0x45c8] sm:$0xff]
        %v2617 = vld [vmem:[%s312 + $0x45d0] sm:$0xff]
        %v2618 = vld [vmem:[%s312 + $0x45d8] sm:$0xff]
        %v2619 = vld [vmem:[%s312 + $0x45e0] sm:$0xff]
        %v2620 = vld [vmem:[%s312 + $0x45e8] sm:$0xff]
        %v2621 = vld [vmem:[%s312 + $0x45f0] sm:$0xff]
        %v2622 = vld [vmem:[%s312 + $0x45f8] sm:$0xff]
        %v2623 = vld [vmem:[%s312 + $0x4600] sm:$0xff]
        %v2624 = vld [vmem:[%s312 + $0x4608] sm:$0xff]
        %v2625 = vld [vmem:[%s312 + $0x4610] sm:$0xff]
        %v2626 = vld [vmem:[%s312 + $0x4618] sm:$0xff]
        %v2627 = vld [vmem:[%s312 + $0x4620] sm:$0xff]
        %v2628 = vld [vmem:[%s312 + $0x4628] sm:$0xff]
        %v2629 = vld [vmem:[%s312 + $0x4630] sm:$0xff]
        %v2630 = vld [vmem:[%s312 + $0x4638] sm:$0xff]
        %v2631 = vld [vmem:[%s312 + $0x4640] sm:$0xff]
        %v2632 = vld [vmem:[%s312 + $0x4648] sm:$0xff]
        %v2633 = vld [vmem:[%s312 + $0x4650] sm:$0xff]
        %v2634 = vld [vmem:[%s312 + $0x4658] sm:$0xff]
        %v2635 = vld [vmem:[%s312 + $0x4660] sm:$0xff]
        %v2636 = vld [vmem:[%s312 + $0x4668] sm:$0xff]
        %v2637 = vld [vmem:[%s312 + $0x4670] sm:$0xff]
        %v2638 = vld [vmem:[%s312 + $0x4678] sm:$0xff]
        %v2639 = vld [vmem:[%s312 + $0x4680] sm:$0xff]
        %v2640 = vld [vmem:[%s312 + $0x4688] sm:$0xff]
        %v2641 = vld [vmem:[%s312 + $0x4690] sm:$0xff]
        %v2642 = vld [vmem:[%s312 + $0x4698] sm:$0xff]
        %v2643 = vld [vmem:[%s312 + $0x46a0] sm:$0xff]
        %v2644 = vld [vmem:[%s312 + $0x46a8] sm:$0xff]
        %v2645 = vld [vmem:[%s312 + $0x46b0] sm:$0xff]
        %v2646 = vld [vmem:[%s312 + $0x46b8] sm:$0xff]
        %v2647 = vld [vmem:[%s312 + $0x46c0] sm:$0xff]
        %v2648 = vld [vmem:[%s312 + $0x46c8] sm:$0xff]
        %v2649 = vld [vmem:[%s312 + $0x46d0] sm:$0xff]
        %v2650 = vld [vmem:[%s312 + $0x46d8] sm:$0xff]
        %v2651 = vld [vmem:[%s312 + $0x46e0] sm:$0xff]
        %v2652 = vld [vmem:[%s312 + $0x46e8] sm:$0xff]
        %v2653 = vld [vmem:[%s312 + $0x46f0] sm:$0xff]
        %v2654 = vld [vmem:[%s312 + $0x46f8] sm:$0xff]
        %v2655 = vld [vmem:[%s312 + $0x4700] sm:$0xff]
        %v2656 = vld [vmem:[%s312 + $0x4708] sm:$0xff]
        %v2657 = vld [vmem:[%s312 + $0x4710] sm:$0xff]
        %v2658 = vld [vmem:[%s312 + $0x4718] sm:$0xff]
        %v2659 = vld [vmem:[%s312 + $0x4720] sm:$0xff]
        %v2660 = vld [vmem:[%s312 + $0x4728] sm:$0xff]
        %v2661 = vld [vmem:[%s312 + $0x4730] sm:$0xff]
        %v2662 = vld [vmem:[%s312 + $0x4738] sm:$0xff]
        %v2663 = vld [vmem:[%s312 + $0x4740] sm:$0xff]
        %v2664 = vld [vmem:[%s312 + $0x4748] sm:$0xff]
        %v2665 = vld [vmem:[%s312 + $0x4750] sm:$0xff]
        %v2666 = vld [vmem:[%s312 + $0x4758] sm:$0xff]
        %v2667 = vld [vmem:[%s312 + $0x4760] sm:$0xff]
        %v2668 = vld [vmem:[%s312 + $0x4768] sm:$0xff]
        %v2669 = vld [vmem:[%s312 + $0x4770] sm:$0xff]
        %v2670 = vld [vmem:[%s312 + $0x4778] sm:$0xff]
        %v2671 = vld [vmem:[%s312 + $0x4780] sm:$0xff]
        %v2672 = vld [vmem:[%s312 + $0x4788] sm:$0xff]
        %v2673 = vld [vmem:[%s312 + $0x4790] sm:$0xff]
        %v2674 = vld [vmem:[%s312 + $0x4798] sm:$0xff]
        %v2675 = vld [vmem:[%s312 + $0x47a0] sm:$0xff]
        %v2676 = vld [vmem:[%s312 + $0x47a8] sm:$0xff]
        %v2677 = vld [vmem:[%s312 + $0x47b0] sm:$0xff]
        %v2678 = vld [vmem:[%s312 + $0x47b8] sm:$0xff]
        %v2679 = vld [vmem:[%s312 + $0x47c0] sm:$0xff]
        %v2680 = vld [vmem:[%s312 + $0x47c8] sm:$0xff]
        %v2681 = vld [vmem:[%s312 + $0x47d0] sm:$0xff]
        %v2682 = vld [vmem:[%s312 + $0x47d8] sm:$0xff]
        %v2683 = vld [vmem:[%s312 + $0x47e0] sm:$0xff]
        %v2684 = vld [vmem:[%s312 + $0x47e8] sm:$0xff]
        %v2685 = vld [vmem:[%s312 + $0x47f0] sm:$0xff]
        %v2686 = vld [vmem:[%s312 + $0x47f8] sm:$0xff]
        %v2687 = vld [vmem:[%s312 + $0x4800] sm:$0xff]
        %v2688 = vld [vmem:[%s312 + $0x4808] sm:$0xff]
        %v2689 = vld [vmem:[%s312 + $0x4810] sm:$0xff]
        %v2690 = vld [vmem:[%s312 + $0x4818] sm:$0xff]
        %v2691 = vld [vmem:[%s312 + $0x4820] sm:$0xff]
        %v2692 = vld [vmem:[%s312 + $0x4828] sm:$0xff]
        %v2693 = vld [vmem:[%s312 + $0x4830] sm:$0xff]
        %v2694 = vld [vmem:[%s312 + $0x4838] sm:$0xff]
        %v2695 = vld [vmem:[%s312 + $0x4840] sm:$0xff]
        %v2696 = vld [vmem:[%s312 + $0x4848] sm:$0xff]
        %v2697 = vld [vmem:[%s312 + $0x4850] sm:$0xff]
        %v2698 = vld [vmem:[%s312 + $0x4858] sm:$0xff]
        %v2699 = vld [vmem:[%s312 + $0x4860] sm:$0xff]
        %v2700 = vld [vmem:[%s312 + $0x4868] sm:$0xff]
        %v2701 = vld [vmem:[%s312 + $0x4870] sm:$0xff]
        %v2702 = vld [vmem:[%s312 + $0x4878] sm:$0xff]
        %v2703 = vld [vmem:[%s312 + $0x4880] sm:$0xff]
        %v2704 = vld [vmem:[%s312 + $0x4888] sm:$0xff]
        %v2705 = vld [vmem:[%s312 + $0x4890] sm:$0xff]
        %v2706 = vld [vmem:[%s312 + $0x4898] sm:$0xff]
        %v2707 = vld [vmem:[%s312 + $0x48a0] sm:$0xff]
        %v2708 = vld [vmem:[%s312 + $0x48a8] sm:$0xff]
        %v2709 = vld [vmem:[%s312 + $0x48b0] sm:$0xff]
        %v2710 = vld [vmem:[%s312 + $0x48b8] sm:$0xff]
        %v2711 = vld [vmem:[%s312 + $0x48c0] sm:$0xff]
        %v2712 = vld [vmem:[%s312 + $0x48c8] sm:$0xff]
        %v2713 = vld [vmem:[%s312 + $0x48d0] sm:$0xff]
        %v2714 = vld [vmem:[%s312 + $0x48d8] sm:$0xff]
        %v2715 = vld [vmem:[%s312 + $0x48e0] sm:$0xff]
        %v2716 = vld [vmem:[%s312 + $0x48e8] sm:$0xff]
        %v2717 = vld [vmem:[%s312 + $0x48f0] sm:$0xff]
        %v2718 = vld [vmem:[%s312 + $0x48f8] sm:$0xff]
        %v2719 = vld [vmem:[%s312 + $0x4900] sm:$0xff]
        %v2720 = vld [vmem:[%s312 + $0x4908] sm:$0xff]
        %v2721 = vld [vmem:[%s312 + $0x4910] sm:$0xff]
        %v2722 = vld [vmem:[%s312 + $0x4918] sm:$0xff]
        %v2723 = vld [vmem:[%s312 + $0x4920] sm:$0xff]
        %v2724 = vld [vmem:[%s312 + $0x4928] sm:$0xff]
        %v2725 = vld [vmem:[%s312 + $0x4930] sm:$0xff]
        %v2726 = vld [vmem:[%s312 + $0x4938] sm:$0xff]
        %v2727 = vld [vmem:[%s312 + $0x4940] sm:$0xff]
        %v2728 = vld [vmem:[%s312 + $0x4948] sm:$0xff]
        %v2729 = vld [vmem:[%s312 + $0x4950] sm:$0xff]
        %v2730 = vld [vmem:[%s312 + $0x4958] sm:$0xff]
        %v2731 = vld [vmem:[%s312 + $0x4960] sm:$0xff]
        %v2732 = vld [vmem:[%s312 + $0x4968] sm:$0xff]
        %v2733 = vld [vmem:[%s312 + $0x4970] sm:$0xff]
        %v2734 = vld [vmem:[%s312 + $0x4978] sm:$0xff]
        %v2735 = vld [vmem:[%s312 + $0x4980] sm:$0xff]
        %v2736 = vld [vmem:[%s312 + $0x4988] sm:$0xff]
        %v2737 = vld [vmem:[%s312 + $0x4990] sm:$0xff]
        %v2738 = vld [vmem:[%s312 + $0x4998] sm:$0xff]
        %v2739 = vld [vmem:[%s312 + $0x49a0] sm:$0xff]
        %v2740 = vld [vmem:[%s312 + $0x49a8] sm:$0xff]
        %v2741 = vld [vmem:[%s312 + $0x49b0] sm:$0xff]
        %v2742 = vld [vmem:[%s312 + $0x49b8] sm:$0xff]
        %v2743 = vld [vmem:[%s312 + $0x49c0] sm:$0xff]
        %v2744 = vld [vmem:[%s312 + $0x49c8] sm:$0xff]
        %v2745 = vld [vmem:[%s312 + $0x49d0] sm:$0xff]
        %v2746 = vld [vmem:[%s312 + $0x49d8] sm:$0xff]
        %v2747 = vld [vmem:[%s312 + $0x49e0] sm:$0xff]
        %v2748 = vld [vmem:[%s312 + $0x49e8] sm:$0xff]
        %v2749 = vld [vmem:[%s312 + $0x49f0] sm:$0xff]
        %v2750 = vld [vmem:[%s312 + $0x49f8] sm:$0xff]
        %v2751 = vld [vmem:[%s312 + $0x4a00] sm:$0xff]
        %v2752 = vld [vmem:[%s312 + $0x4a08] sm:$0xff]
        %v2753 = vld [vmem:[%s312 + $0x4a10] sm:$0xff]
        %v2754 = vld [vmem:[%s312 + $0x4a18] sm:$0xff]
        %v2755 = vld [vmem:[%s312 + $0x4a20] sm:$0xff]
        %v2756 = vld [vmem:[%s312 + $0x4a28] sm:$0xff]
        %v2757 = vld [vmem:[%s312 + $0x4a30] sm:$0xff]
        %v2758 = vld [vmem:[%s312 + $0x4a38] sm:$0xff]
        %v2759 = vld [vmem:[%s312 + $0x4a40] sm:$0xff]
        %v2760 = vld [vmem:[%s312 + $0x4a48] sm:$0xff]
        %v2761 = vld [vmem:[%s312 + $0x4a50] sm:$0xff]
        %v2762 = vld [vmem:[%s312 + $0x4a58] sm:$0xff]
        %v2763 = vld [vmem:[%s312 + $0x4a60] sm:$0xff]
        %v2764 = vld [vmem:[%s312 + $0x4a68] sm:$0xff]
        %v2765 = vld [vmem:[%s312 + $0x4a70] sm:$0xff]
        %v2766 = vld [vmem:[%s312 + $0x4a78] sm:$0xff]
        %v2767 = vld [vmem:[%s312 + $0x4a80] sm:$0xff]
        %v2768 = vld [vmem:[%s312 + $0x4a88] sm:$0xff]
        %v2769 = vld [vmem:[%s312 + $0x4a90] sm:$0xff]
        %v2770 = vld [vmem:[%s312 + $0x4a98] sm:$0xff]
        %v2771 = vld [vmem:[%s312 + $0x4aa0] sm:$0xff]
        %v2772 = vld [vmem:[%s312 + $0x4aa8] sm:$0xff]
        %v2773 = vld [vmem:[%s312 + $0x4ab0] sm:$0xff]
        %v2774 = vld [vmem:[%s312 + $0x4ab8] sm:$0xff]
        %v2775 = vld [vmem:[%s312 + $0x4ac0] sm:$0xff]
        %v2776 = vld [vmem:[%s312 + $0x4ac8] sm:$0xff]
        %v2777 = vld [vmem:[%s312 + $0x4ad0] sm:$0xff]
        %v2778 = vld [vmem:[%s312 + $0x4ad8] sm:$0xff]
        %v2779 = vld [vmem:[%s312 + $0x4ae0] sm:$0xff]
        %v2780 = vld [vmem:[%s312 + $0x4ae8] sm:$0xff]
        %v2781 = vld [vmem:[%s312 + $0x4af0] sm:$0xff]
        %v2782 = vld [vmem:[%s312 + $0x4af8] sm:$0xff]
        %v2783 = vld [vmem:[%s312 + $0x4b00] sm:$0xff]
        %v2784 = vld [vmem:[%s312 + $0x4b08] sm:$0xff]
        %v2785 = vld [vmem:[%s312 + $0x4b10] sm:$0xff]
        %v2786 = vld [vmem:[%s312 + $0x4b18] sm:$0xff]
        %v2787 = vld [vmem:[%s312 + $0x4b20] sm:$0xff]
        %v2788 = vld [vmem:[%s312 + $0x4b28] sm:$0xff]
        %v2789 = vld [vmem:[%s312 + $0x4b30] sm:$0xff]
        %v2790 = vld [vmem:[%s312 + $0x4b38] sm:$0xff]
        %v2791 = vld [vmem:[%s312 + $0x4b40] sm:$0xff]
        %v2792 = vld [vmem:[%s312 + $0x4b48] sm:$0xff]
        %v2793 = vld [vmem:[%s312 + $0x4b50] sm:$0xff]
        %v2794 = vld [vmem:[%s312 + $0x4b58] sm:$0xff]
        %v2795 = vld [vmem:[%s312 + $0x4b60] sm:$0xff]
        %v2796 = vld [vmem:[%s312 + $0x4b68] sm:$0xff]
        %v2797 = vld [vmem:[%s312 + $0x4b70] sm:$0xff]
        %v2798 = vld [vmem:[%s312 + $0x4b78] sm:$0xff]
        %v2799 = vld [vmem:[%s312 + $0x4b80] sm:$0xff]
        %v2800 = vld [vmem:[%s312 + $0x4b88] sm:$0xff]
        %v2801 = vld [vmem:[%s312 + $0x4b90] sm:$0xff]
        %v2802 = vld [vmem:[%s312 + $0x4b98] sm:$0xff]
        %v2803 = vld [vmem:[%s312 + $0x4ba0] sm:$0xff]
        %v2804 = vld [vmem:[%s312 + $0x4ba8] sm:$0xff]
        %v2805 = vld [vmem:[%s312 + $0x4bb0] sm:$0xff]
        %v2806 = vld [vmem:[%s312 + $0x4bb8] sm:$0xff]
        %v2807 = vld [vmem:[%s312 + $0x4bc0] sm:$0xff]
        %v2808 = vld [vmem:[%s312 + $0x4bc8] sm:$0xff]
        %v2809 = vld [vmem:[%s312 + $0x4bd0] sm:$0xff]
        %v2810 = vld [vmem:[%s312 + $0x4bd8] sm:$0xff]
        %v2811 = vld [vmem:[%s312 + $0x4be0] sm:$0xff]
        %v2812 = vld [vmem:[%s312 + $0x4be8] sm:$0xff]
        %v2813 = vld [vmem:[%s312 + $0x4bf0] sm:$0xff]
        %v2814 = vld [vmem:[%s312 + $0x4bf8] sm:$0xff]
        %v2815 = vld [vmem:[%s312 + $0x4c00] sm:$0xff]
        %v2816 = vld [vmem:[%s312 + $0x4c08] sm:$0xff]
        %v2817 = vld [vmem:[%s312 + $0x4c10] sm:$0xff]
        %v2818 = vld [vmem:[%s312 + $0x4c18] sm:$0xff]
        %v2819 = vld [vmem:[%s312 + $0x4c20] sm:$0xff]
        %v2820 = vld [vmem:[%s312 + $0x4c28] sm:$0xff]
        %v2821 = vld [vmem:[%s312 + $0x4c30] sm:$0xff]
        %v2822 = vld [vmem:[%s312 + $0x4c38] sm:$0xff]
        %v2823 = vld [vmem:[%s312 + $0x4c40] sm:$0xff]
        %v2824 = vld [vmem:[%s312 + $0x4c48] sm:$0xff]
        %v2825 = vld [vmem:[%s312 + $0x4c50] sm:$0xff]
        %v2826 = vld [vmem:[%s312 + $0x4c58] sm:$0xff]
        %v2827 = vld [vmem:[%s312 + $0x4c60] sm:$0xff]
        %v2828 = vld [vmem:[%s312 + $0x4c68] sm:$0xff]
        %v2829 = vld [vmem:[%s312 + $0x4c70] sm:$0xff]
        %v2830 = vld [vmem:[%s312 + $0x4c78] sm:$0xff]
        %v2831 = vld [vmem:[%s312 + $0x4c80] sm:$0xff]
        %v2832 = vld [vmem:[%s312 + $0x4c88] sm:$0xff]
        %v2833 = vld [vmem:[%s312 + $0x4c90] sm:$0xff]
        %v2834 = vld [vmem:[%s312 + $0x4c98] sm:$0xff]
        %v2835 = vld [vmem:[%s312 + $0x4ca0] sm:$0xff]
        %v2836 = vld [vmem:[%s312 + $0x4ca8] sm:$0xff]
        %v2837 = vld [vmem:[%s312 + $0x4cb0] sm:$0xff]
        %v2838 = vld [vmem:[%s312 + $0x4cb8] sm:$0xff]
        %v2839 = vld [vmem:[%s312 + $0x4cc0] sm:$0xff]
        %v2840 = vld [vmem:[%s312 + $0x4cc8] sm:$0xff]
        %v2841 = vld [vmem:[%s312 + $0x4cd0] sm:$0xff]
        %v2842 = vld [vmem:[%s312 + $0x4cd8] sm:$0xff]
        %v2843 = vld [vmem:[%s312 + $0x4ce0] sm:$0xff]
        %v2844 = vld [vmem:[%s312 + $0x4ce8] sm:$0xff]
        %v2845 = vld [vmem:[%s312 + $0x4cf0] sm:$0xff]
        %v2846 = vld [vmem:[%s312 + $0x4cf8] sm:$0xff]
        %v2847 = vld [vmem:[%s312 + $0x4d00] sm:$0xff]
        %v2848 = vld [vmem:[%s312 + $0x4d08] sm:$0xff]
        %v2849 = vld [vmem:[%s312 + $0x4d10] sm:$0xff]
        %v2850 = vld [vmem:[%s312 + $0x4d18] sm:$0xff]
        %v2851 = vld [vmem:[%s312 + $0x4d20] sm:$0xff]
        %v2852 = vld [vmem:[%s312 + $0x4d28] sm:$0xff]
        %v2853 = vld [vmem:[%s312 + $0x4d30] sm:$0xff]
        %v2854 = vld [vmem:[%s312 + $0x4d38] sm:$0xff]
        %v2855 = vld [vmem:[%s312 + $0x4d40] sm:$0xff]
        %v2856 = vld [vmem:[%s312 + $0x4d48] sm:$0xff]
        %v2857 = vld [vmem:[%s312 + $0x4d50] sm:$0xff]
        %v2858 = vld [vmem:[%s312 + $0x4d58] sm:$0xff]
        %v2859 = vld [vmem:[%s312 + $0x4d60] sm:$0xff]
        %v2860 = vld [vmem:[%s312 + $0x4d68] sm:$0xff]
        %v2861 = vld [vmem:[%s312 + $0x4d70] sm:$0xff]
        %v2862 = vld [vmem:[%s312 + $0x4d78] sm:$0xff]
        %v2863 = vld [vmem:[%s312 + $0x4d80] sm:$0xff]
        %v2864 = vld [vmem:[%s312 + $0x4d88] sm:$0xff]
        %v2865 = vld [vmem:[%s312 + $0x4d90] sm:$0xff]
        %v2866 = vld [vmem:[%s312 + $0x4d98] sm:$0xff]
        %v2867 = vld [vmem:[%s312 + $0x4da0] sm:$0xff]
        %v2868 = vld [vmem:[%s312 + $0x4da8] sm:$0xff]
        %v2869 = vld [vmem:[%s312 + $0x4db0] sm:$0xff]
        %v2870 = vld [vmem:[%s312 + $0x4db8] sm:$0xff]
        %v2871 = vld [vmem:[%s312 + $0x4dc0] sm:$0xff]
        %v2872 = vld [vmem:[%s312 + $0x4dc8] sm:$0xff]
        %v2873 = vld [vmem:[%s312 + $0x4dd0] sm:$0xff]
        %v2874 = vld [vmem:[%s312 + $0x4dd8] sm:$0xff]
        %v2875 = vld [vmem:[%s312 + $0x4de0] sm:$0xff]
        %v2876 = vld [vmem:[%s312 + $0x4de8] sm:$0xff]
        %v2877 = vld [vmem:[%s312 + $0x4df0] sm:$0xff]
        %v2878 = vld [vmem:[%s312 + $0x4df8] sm:$0xff]
        %v2879 = vld [vmem:[%s312 + $0x4e00] sm:$0xff]
        %v2880 = vld [vmem:[%s312 + $0x4e08] sm:$0xff]
        %v2881 = vld [vmem:[%s312 + $0x4e10] sm:$0xff]
        %v2882 = vld [vmem:[%s312 + $0x4e18] sm:$0xff]
        %v2883 = vld [vmem:[%s312 + $0x4e20] sm:$0xff]
        %v2884 = vld [vmem:[%s312 + $0x4e28] sm:$0xff]
        %v2885 = vld [vmem:[%s312 + $0x4e30] sm:$0xff]
        %v2886 = vld [vmem:[%s312 + $0x4e38] sm:$0xff]
        %v2887 = vld [vmem:[%s312 + $0x4e40] sm:$0xff]
        %v2888 = vld [vmem:[%s312 + $0x4e48] sm:$0xff]
        %v2889 = vld [vmem:[%s312 + $0x4e50] sm:$0xff]
        %v2890 = vld [vmem:[%s312 + $0x4e58] sm:$0xff]
        %v2891 = vld [vmem:[%s312 + $0x4e60] sm:$0xff]
        %v2892 = vld [vmem:[%s312 + $0x4e68] sm:$0xff]
        %v2893 = vld [vmem:[%s312 + $0x4e70] sm:$0xff]
        %v2894 = vld [vmem:[%s312 + $0x4e78] sm:$0xff]
        %v2895 = vld [vmem:[%s312 + $0x4e80] sm:$0xff]
        %v2896 = vld [vmem:[%s312 + $0x4e88] sm:$0xff]
        %v2897 = vld [vmem:[%s312 + $0x4e90] sm:$0xff]
        %v2898 = vld [vmem:[%s312 + $0x4e98] sm:$0xff]
        %v2899 = vld [vmem:[%s312 + $0x4ea0] sm:$0xff]
        %v2900 = vld [vmem:[%s312 + $0x4ea8] sm:$0xff]
        %v2901 = vld [vmem:[%s312 + $0x4eb0] sm:$0xff]
        %v2902 = vld [vmem:[%s312 + $0x4eb8] sm:$0xff]
        %v2903 = vld [vmem:[%s312 + $0x4ec0] sm:$0xff]
        %v2904 = vld [vmem:[%s312 + $0x4ec8] sm:$0xff]
        %v2905 = vld [vmem:[%s312 + $0x4ed0] sm:$0xff]
        %v2906 = vld [vmem:[%s312 + $0x4ed8] sm:$0xff]
        %v2907 = vld [vmem:[%s312 + $0x4ee0] sm:$0xff]
        %v2908 = vld [vmem:[%s312 + $0x4ee8] sm:$0xff]
        %v2909 = vld [vmem:[%s312 + $0x4ef0] sm:$0xff]
        %v2910 = vld [vmem:[%s312 + $0x4ef8] sm:$0xff]
        %v2911 = vld [vmem:[%s312 + $0x4f00] sm:$0xff]
        %v2912 = vld [vmem:[%s312 + $0x4f08] sm:$0xff]
        %v2913 = vld [vmem:[%s312 + $0x4f10] sm:$0xff]
        %v2914 = vld [vmem:[%s312 + $0x4f18] sm:$0xff]
        %v2915 = vld [vmem:[%s312 + $0x4f20] sm:$0xff]
        %v2916 = vld [vmem:[%s312 + $0x4f28] sm:$0xff]
        %v2917 = vld [vmem:[%s312 + $0x4f30] sm:$0xff]
        %v2918 = vld [vmem:[%s312 + $0x4f38] sm:$0xff]
        %v2919 = vld [vmem:[%s312 + $0x4f40] sm:$0xff]
        %v2920 = vld [vmem:[%s312 + $0x4f48] sm:$0xff]
        %v2921 = vld [vmem:[%s312 + $0x4f50] sm:$0xff]
        %v2922 = vld [vmem:[%s312 + $0x4f58] sm:$0xff]
        %v2923 = vld [vmem:[%s312 + $0x4f60] sm:$0xff]
        %v2924 = vld [vmem:[%s312 + $0x4f68] sm:$0xff]
        %v2925 = vld [vmem:[%s312 + $0x4f70] sm:$0xff]
        %v2926 = vld [vmem:[%s312 + $0x4f78] sm:$0xff]
        %v2927 = vld [vmem:[%s312 + $0x4f80] sm:$0xff]
        %v2928 = vld [vmem:[%s312 + $0x4f88] sm:$0xff]
        %v2929 = vld [vmem:[%s312 + $0x4f90] sm:$0xff]
        %v2930 = vld [vmem:[%s312 + $0x4f98] sm:$0xff]
        %v2931 = vld [vmem:[%s312 + $0x4fa0] sm:$0xff]
        %v2932 = vld [vmem:[%s312 + $0x4fa8] sm:$0xff]
        %v2933 = vld [vmem:[%s312 + $0x4fb0] sm:$0xff]
        %v2934 = vld [vmem:[%s312 + $0x4fb8] sm:$0xff]
        %v2935 = vld [vmem:[%s312 + $0x4fc0] sm:$0xff]
        %v2936 = vld [vmem:[%s312 + $0x4fc8] sm:$0xff]
        %v2937 = vld [vmem:[%s312 + $0x4fd0] sm:$0xff]
        %v2938 = vld [vmem:[%s312 + $0x4fd8] sm:$0xff]
        %v2939 = vld [vmem:[%s312 + $0x4fe0] sm:$0xff]
        %v2940 = vld [vmem:[%s312 + $0x4fe8] sm:$0xff]
        %v2941 = vld [vmem:[%s312 + $0x4ff0] sm:$0xff]
        %v2942 = vld [vmem:[%s312 + $0x4ff8] sm:$0xff]
        %v2943 = vld [vmem:[%s312 + $0x5000] sm:$0xff]
        %v2944 = vld [vmem:[%s312 + $0x5008] sm:$0xff]
        %v2945 = vld [vmem:[%s312 + $0x5010] sm:$0xff]
        %v2946 = vld [vmem:[%s312 + $0x5018] sm:$0xff]
        %v2947 = vld [vmem:[%s312 + $0x5020] sm:$0xff]
        %v2948 = vld [vmem:[%s312 + $0x5028] sm:$0xff]
        %v2949 = vld [vmem:[%s312 + $0x5030] sm:$0xff]
        %v2950 = vld [vmem:[%s312 + $0x5038] sm:$0xff]
        %v2951 = vld [vmem:[%s312 + $0x5040] sm:$0xff]
        %v2952 = vld [vmem:[%s312 + $0x5048] sm:$0xff]
        %v2953 = vld [vmem:[%s312 + $0x5050] sm:$0xff]
        %v2954 = vld [vmem:[%s312 + $0x5058] sm:$0xff]
        %v2955 = vld [vmem:[%s312 + $0x5060] sm:$0xff]
        %v2956 = vld [vmem:[%s312 + $0x5068] sm:$0xff]
        %v2957 = vld [vmem:[%s312 + $0x5070] sm:$0xff]
        %v2958 = vld [vmem:[%s312 + $0x5078] sm:$0xff]
        %v2959 = vld [vmem:[%s312 + $0x5080] sm:$0xff]
        %v2960 = vld [vmem:[%s312 + $0x5088] sm:$0xff]
        %v2961 = vld [vmem:[%s312 + $0x5090] sm:$0xff]
        %v2962 = vld [vmem:[%s312 + $0x5098] sm:$0xff]
        %v2963 = vld [vmem:[%s312 + $0x50a0] sm:$0xff]
        %v2964 = vld [vmem:[%s312 + $0x50a8] sm:$0xff]
        %v2965 = vld [vmem:[%s312 + $0x50b0] sm:$0xff]
        %v2966 = vld [vmem:[%s312 + $0x50b8] sm:$0xff]
        %v2967 = vld [vmem:[%s312 + $0x50c0] sm:$0xff]
        %v2968 = vld [vmem:[%s312 + $0x50c8] sm:$0xff]
        %v2969 = vld [vmem:[%s312 + $0x50d0] sm:$0xff]
        %v2970 = vld [vmem:[%s312 + $0x50d8] sm:$0xff]
        %v2971 = vld [vmem:[%s312 + $0x50e0] sm:$0xff]
        %v2972 = vld [vmem:[%s312 + $0x50e8] sm:$0xff]
        %v2973 = vld [vmem:[%s312 + $0x50f0] sm:$0xff]
        %v2974 = vld [vmem:[%s312 + $0x50f8] sm:$0xff]
        %v2975 = vld [vmem:[%s312 + $0x5100] sm:$0xff]
        %v2976 = vld [vmem:[%s312 + $0x5108] sm:$0xff]
        %v2977 = vld [vmem:[%s312 + $0x5110] sm:$0xff]
        %v2978 = vld [vmem:[%s312 + $0x5118] sm:$0xff]
        %v2979 = vld [vmem:[%s312 + $0x5120] sm:$0xff]
        %v2980 = vld [vmem:[%s312 + $0x5128] sm:$0xff]
        %v2981 = vld [vmem:[%s312 + $0x5130] sm:$0xff]
        %v2982 = vld [vmem:[%s312 + $0x5138] sm:$0xff]
        %v2983 = vld [vmem:[%s312 + $0x5140] sm:$0xff]
        %v2984 = vld [vmem:[%s312 + $0x5148] sm:$0xff]
        %v2985 = vld [vmem:[%s312 + $0x5150] sm:$0xff]
        %v2986 = vld [vmem:[%s312 + $0x5158] sm:$0xff]
        %v2987 = vld [vmem:[%s312 + $0x5160] sm:$0xff]
        %v2988 = vld [vmem:[%s312 + $0x5168] sm:$0xff]
        %v2989 = vld [vmem:[%s312 + $0x5170] sm:$0xff]
        %v2990 = vld [vmem:[%s312 + $0x5178] sm:$0xff]
        %v2991 = vld [vmem:[%s312 + $0x5180] sm:$0xff]
        %v2992 = vld [vmem:[%s312 + $0x5188] sm:$0xff]
        %v2993 = vld [vmem:[%s312 + $0x5190] sm:$0xff]
        %v2994 = vld [vmem:[%s312 + $0x5198] sm:$0xff]
        %v2995 = vld [vmem:[%s312 + $0x51a0] sm:$0xff]
        %v2996 = vld [vmem:[%s312 + $0x51a8] sm:$0xff]
        %v2997 = vld [vmem:[%s312 + $0x51b0] sm:$0xff]
        %v2998 = vld [vmem:[%s312 + $0x51b8] sm:$0xff]
        %v2999 = vld [vmem:[%s312 + $0x51c0] sm:$0xff]
        %v3000 = vld [vmem:[%s312 + $0x51c8] sm:$0xff]
        %v3001 = vld [vmem:[%s312 + $0x51d0] sm:$0xff]
        %v3002 = vld [vmem:[%s312 + $0x51d8] sm:$0xff]
        %v3003 = vld [vmem:[%s312 + $0x51e0] sm:$0xff]
        %v3004 = vld [vmem:[%s312 + $0x51e8] sm:$0xff]
        %v3005 = vld [vmem:[%s312 + $0x51f0] sm:$0xff]
        %v3006 = vld [vmem:[%s312 + $0x51f8] sm:$0xff]
        %v3007 = vld [vmem:[%s312 + $0x5200] sm:$0xff]
        %v3008 = vld [vmem:[%s312 + $0x5208] sm:$0xff]
        %v3009 = vld [vmem:[%s312 + $0x5210] sm:$0xff]
        %v3010 = vld [vmem:[%s312 + $0x5218] sm:$0xff]
        %v3011 = vld [vmem:[%s312 + $0x5220] sm:$0xff]
        %v3012 = vld [vmem:[%s312 + $0x5228] sm:$0xff]
        %v3013 = vld [vmem:[%s312 + $0x5230] sm:$0xff]
        %v3014 = vld [vmem:[%s312 + $0x5238] sm:$0xff]
        %v3015 = vld [vmem:[%s312 + $0x5240] sm:$0xff]
        %v3016 = vld [vmem:[%s312 + $0x5248] sm:$0xff]
        %v3017 = vld [vmem:[%s312 + $0x5250] sm:$0xff]
        %v3018 = vld [vmem:[%s312 + $0x5258] sm:$0xff]
        %v3019 = vld [vmem:[%s312 + $0x5260] sm:$0xff]
        %v3020 = vld [vmem:[%s312 + $0x5268] sm:$0xff]
        %v3021 = vld [vmem:[%s312 + $0x5270] sm:$0xff]
        %v3022 = vld [vmem:[%s312 + $0x5278] sm:$0xff]
        %v3023 = vld [vmem:[%s312 + $0x5280] sm:$0xff]
        %v3024 = vld [vmem:[%s312 + $0x5288] sm:$0xff]
        %v3025 = vld [vmem:[%s312 + $0x5290] sm:$0xff]
        %v3026 = vld [vmem:[%s312 + $0x5298] sm:$0xff]
        %v3027 = vld [vmem:[%s312 + $0x52a0] sm:$0xff]
        %v3028 = vld [vmem:[%s312 + $0x52a8] sm:$0xff]
        %v3029 = vld [vmem:[%s312 + $0x52b0] sm:$0xff]
        %v3030 = vld [vmem:[%s312 + $0x52b8] sm:$0xff]
        %v3031 = vld [vmem:[%s312 + $0x52c0] sm:$0xff]
        %v3032 = vld [vmem:[%s312 + $0x52c8] sm:$0xff]
        %v3033 = vld [vmem:[%s312 + $0x52d0] sm:$0xff]
        %v3034 = vld [vmem:[%s312 + $0x52d8] sm:$0xff]
        %v3035 = vld [vmem:[%s312 + $0x52e0] sm:$0xff]
        %v3036 = vld [vmem:[%s312 + $0x52e8] sm:$0xff]
        %v3037 = vld [vmem:[%s312 + $0x52f0] sm:$0xff]
        %v3038 = vld [vmem:[%s312 + $0x52f8] sm:$0xff]
        %v3039 = vld [vmem:[%s312 + $0x5300] sm:$0xff]
        %v3040 = vld [vmem:[%s312 + $0x5308] sm:$0xff]
        %v3041 = vld [vmem:[%s312 + $0x5310] sm:$0xff]
        %v3042 = vld [vmem:[%s312 + $0x5318] sm:$0xff]
        %v3043 = vld [vmem:[%s312 + $0x5320] sm:$0xff]
        %v3044 = vld [vmem:[%s312 + $0x5328] sm:$0xff]
        %v3045 = vld [vmem:[%s312 + $0x5330] sm:$0xff]
        %v3046 = vld [vmem:[%s312 + $0x5338] sm:$0xff]
        %v3047 = vld [vmem:[%s312 + $0x5340] sm:$0xff]
        %v3048 = vld [vmem:[%s312 + $0x5348] sm:$0xff]
        %v3049 = vld [vmem:[%s312 + $0x5350] sm:$0xff]
        %v3050 = vld [vmem:[%s312 + $0x5358] sm:$0xff]
        %v3051 = vld [vmem:[%s312 + $0x5360] sm:$0xff]
        %v3052 = vld [vmem:[%s312 + $0x5368] sm:$0xff]
        %v3053 = vld [vmem:[%s312 + $0x5370] sm:$0xff]
        %v3054 = vld [vmem:[%s312 + $0x5378] sm:$0xff]
        %v3055 = vld [vmem:[%s312 + $0x5380] sm:$0xff]
        %v3056 = vld [vmem:[%s312 + $0x5388] sm:$0xff]
        %v3057 = vld [vmem:[%s312 + $0x5390] sm:$0xff]
        %v3058 = vld [vmem:[%s312 + $0x5398] sm:$0xff]
        %v3059 = vld [vmem:[%s312 + $0x53a0] sm:$0xff]
        %v3060 = vld [vmem:[%s312 + $0x53a8] sm:$0xff]
        %v3061 = vld [vmem:[%s312 + $0x53b0] sm:$0xff]
        %v3062 = vld [vmem:[%s312 + $0x53b8] sm:$0xff]
        %v3063 = vld [vmem:[%s312 + $0x53c0] sm:$0xff]
        %v3064 = vld [vmem:[%s312 + $0x53c8] sm:$0xff]
        %v3065 = vld [vmem:[%s312 + $0x53d0] sm:$0xff]
        %v3066 = vld [vmem:[%s312 + $0x53d8] sm:$0xff]
        %v3067 = vld [vmem:[%s312 + $0x53e0] sm:$0xff]
        %v3068 = vld [vmem:[%s312 + $0x53e8] sm:$0xff]
        %v3069 = vld [vmem:[%s312 + $0x53f0] sm:$0xff]
        %v3070 = vld [vmem:[%s312 + $0x53f8] sm:$0xff]
        %v3071 = vld [vmem:[%s312 + $0x5400] sm:$0xff]
        %v3072 = vld [vmem:[%s312 + $0x5408] sm:$0xff]
        %v3073 = vld [vmem:[%s312 + $0x5410] sm:$0xff]
        %v3074 = vld [vmem:[%s312 + $0x5418] sm:$0xff]
        %v3075 = vld [vmem:[%s312 + $0x5420] sm:$0xff]
        %v3076 = vld [vmem:[%s312 + $0x5428] sm:$0xff]
        %v3077 = vld [vmem:[%s312 + $0x5430] sm:$0xff]
        %v3078 = vld [vmem:[%s312 + $0x5438] sm:$0xff]
        %v3079 = vld [vmem:[%s312 + $0x5440] sm:$0xff]
        %v3080 = vld [vmem:[%s312 + $0x5448] sm:$0xff]
        %v3081 = vld [vmem:[%s312 + $0x5450] sm:$0xff]
        %v3082 = vld [vmem:[%s312 + $0x5458] sm:$0xff]
        %v3083 = vld [vmem:[%s312 + $0x5460] sm:$0xff]
        %v3084 = vld [vmem:[%s312 + $0x5468] sm:$0xff]
        %v3085 = vld [vmem:[%s312 + $0x5470] sm:$0xff]
        %v3086 = vld [vmem:[%s312 + $0x5478] sm:$0xff]
        %v3087 = vld [vmem:[%s312 + $0x5480] sm:$0xff]
        %v3088 = vld [vmem:[%s312 + $0x5488] sm:$0xff]
        %v3089 = vld [vmem:[%s312 + $0x5490] sm:$0xff]
        %v3090 = vld [vmem:[%s312 + $0x5498] sm:$0xff]
        %v3091 = vld [vmem:[%s312 + $0x54a0] sm:$0xff]
        %v3092 = vld [vmem:[%s312 + $0x54a8] sm:$0xff]
        %v3093 = vld [vmem:[%s312 + $0x54b0] sm:$0xff]
        %v3094 = vld [vmem:[%s312 + $0x54b8] sm:$0xff]
        %v3095 = vld [vmem:[%s312 + $0x54c0] sm:$0xff]
        %v3096 = vld [vmem:[%s312 + $0x54c8] sm:$0xff]
        %v3097 = vld [vmem:[%s312 + $0x54d0] sm:$0xff]
        %v3098 = vld [vmem:[%s312 + $0x54d8] sm:$0xff]
        %v3099 = vld [vmem:[%s312 + $0x54e0] sm:$0xff]
        %v3100 = vld [vmem:[%s312 + $0x54e8] sm:$0xff]
        %v3101 = vld [vmem:[%s312 + $0x54f0] sm:$0xff]
        %v3102 = vld [vmem:[%s312 + $0x54f8] sm:$0xff]
        %v3103 = vld [vmem:[%s312 + $0x5500] sm:$0xff]
        %v3104 = vld [vmem:[%s312 + $0x5508] sm:$0xff]
        %v3105 = vld [vmem:[%s312 + $0x5510] sm:$0xff]
        %v3106 = vld [vmem:[%s312 + $0x5518] sm:$0xff]
        %v3107 = vld [vmem:[%s312 + $0x5520] sm:$0xff]
        %v3108 = vld [vmem:[%s312 + $0x5528] sm:$0xff]
        %v3109 = vld [vmem:[%s312 + $0x5530] sm:$0xff]
        %v3110 = vld [vmem:[%s312 + $0x5538] sm:$0xff]
        %v3111 = vld [vmem:[%s312 + $0x5540] sm:$0xff]
        %v3112 = vld [vmem:[%s312 + $0x5548] sm:$0xff]
        %v3113 = vld [vmem:[%s312 + $0x5550] sm:$0xff]
        %v3114 = vld [vmem:[%s312 + $0x5558] sm:$0xff]
        %v3115 = vld [vmem:[%s312 + $0x5560] sm:$0xff]
        %v3116 = vld [vmem:[%s312 + $0x5568] sm:$0xff]
        %v3117 = vld [vmem:[%s312 + $0x5570] sm:$0xff]
        %v3118 = vld [vmem:[%s312 + $0x5578] sm:$0xff]
        %v3119 = vld [vmem:[%s312 + $0x5580] sm:$0xff]
        %v3120 = vld [vmem:[%s312 + $0x5588] sm:$0xff]
        %v3121 = vld [vmem:[%s312 + $0x5590] sm:$0xff]
        %v3122 = vld [vmem:[%s312 + $0x5598] sm:$0xff]
        %v3123 = vld [vmem:[%s312 + $0x55a0] sm:$0xff]
        %v3124 = vld [vmem:[%s312 + $0x55a8] sm:$0xff]
        %v3125 = vld [vmem:[%s312 + $0x55b0] sm:$0xff]
        %v3126 = vld [vmem:[%s312 + $0x55b8] sm:$0xff]
        %v3127 = vld [vmem:[%s312 + $0x55c0] sm:$0xff]
        %v3128 = vld [vmem:[%s312 + $0x55c8] sm:$0xff]
        %v3129 = vld [vmem:[%s312 + $0x55d0] sm:$0xff]
        %v3130 = vld [vmem:[%s312 + $0x55d8] sm:$0xff]
        %v3131 = vld [vmem:[%s312 + $0x55e0] sm:$0xff]
        %v3132 = vld [vmem:[%s312 + $0x55e8] sm:$0xff]
        %v3133 = vld [vmem:[%s312 + $0x55f0] sm:$0xff]
        %v3134 = vld [vmem:[%s312 + $0x55f8] sm:$0xff]
        %v3135 = vld [vmem:[%s312 + $0x5600] sm:$0xff]
        %v3136 = vld [vmem:[%s312 + $0x5608] sm:$0xff]
        %v3137 = vld [vmem:[%s312 + $0x5610] sm:$0xff]
        %v3138 = vld [vmem:[%s312 + $0x5618] sm:$0xff]
        %v3139 = vld [vmem:[%s312 + $0x5620] sm:$0xff]
        %v3140 = vld [vmem:[%s312 + $0x5628] sm:$0xff]
        %v3141 = vld [vmem:[%s312 + $0x5630] sm:$0xff]
        %v3142 = vld [vmem:[%s312 + $0x5638] sm:$0xff]
        %v3143 = vld [vmem:[%s312 + $0x5640] sm:$0xff]
        %v3144 = vld [vmem:[%s312 + $0x5648] sm:$0xff]
        %v3145 = vld [vmem:[%s312 + $0x5650] sm:$0xff]
        %v3146 = vld [vmem:[%s312 + $0x5658] sm:$0xff]
        %v3147 = vld [vmem:[%s312 + $0x5660] sm:$0xff]
        %v3148 = vld [vmem:[%s312 + $0x5668] sm:$0xff]
        %v3149 = vld [vmem:[%s312 + $0x5670] sm:$0xff]
        %v3150 = vld [vmem:[%s312 + $0x5678] sm:$0xff]
        %v3151 = vld [vmem:[%s312 + $0x5680] sm:$0xff]
        %v3152 = vld [vmem:[%s312 + $0x5688] sm:$0xff]
        %v3153 = vld [vmem:[%s312 + $0x5690] sm:$0xff]
        %v3154 = vld [vmem:[%s312 + $0x5698] sm:$0xff]
        %v3155 = vld [vmem:[%s312 + $0x56a0] sm:$0xff]
        %v3156 = vld [vmem:[%s312 + $0x56a8] sm:$0xff]
        %v3157 = vld [vmem:[%s312 + $0x56b0] sm:$0xff]
        %v3158 = vld [vmem:[%s312 + $0x56b8] sm:$0xff]
        %v3159 = vld [vmem:[%s312 + $0x56c0] sm:$0xff]
        %v3160 = vld [vmem:[%s312 + $0x56c8] sm:$0xff]
        %v3161 = vld [vmem:[%s312 + $0x56d0] sm:$0xff]
        %v3162 = vld [vmem:[%s312 + $0x56d8] sm:$0xff]
        %v3163 = vld [vmem:[%s312 + $0x56e0] sm:$0xff]
        %v3164 = vld [vmem:[%s312 + $0x56e8] sm:$0xff]
        %v3165 = vld [vmem:[%s312 + $0x56f0] sm:$0xff]
        %v3166 = vld [vmem:[%s312 + $0x56f8] sm:$0xff]
        %v3167 = vld [vmem:[%s312 + $0x5700] sm:$0xff]
        %v3168 = vld [vmem:[%s312 + $0x5708] sm:$0xff]
        %v3169 = vld [vmem:[%s312 + $0x5710] sm:$0xff]
        %v3170 = vld [vmem:[%s312 + $0x5718] sm:$0xff]
        %v3171 = vld [vmem:[%s312 + $0x5720] sm:$0xff]
        %v3172 = vld [vmem:[%s312 + $0x5728] sm:$0xff]
        %v3173 = vld [vmem:[%s312 + $0x5730] sm:$0xff]
        %v3174 = vld [vmem:[%s312 + $0x5738] sm:$0xff]
        %v3175 = vld [vmem:[%s312 + $0x5740] sm:$0xff]
        %v3176 = vld [vmem:[%s312 + $0x5748] sm:$0xff]
        %v3177 = vld [vmem:[%s312 + $0x5750] sm:$0xff]
        %v3178 = vld [vmem:[%s312 + $0x5758] sm:$0xff]
        %v3179 = vld [vmem:[%s312 + $0x5760] sm:$0xff]
        %v3180 = vld [vmem:[%s312 + $0x5768] sm:$0xff]
        %v3181 = vld [vmem:[%s312 + $0x5770] sm:$0xff]
        %v3182 = vld [vmem:[%s312 + $0x5778] sm:$0xff]
        %v3183 = vld [vmem:[%s312 + $0x5780] sm:$0xff]
        %v3184 = vld [vmem:[%s312 + $0x5788] sm:$0xff]
        %v3185 = vld [vmem:[%s312 + $0x5790] sm:$0xff]
        %v3186 = vld [vmem:[%s312 + $0x5798] sm:$0xff]
        %v3187 = vld [vmem:[%s312 + $0x57a0] sm:$0xff]
        %v3188 = vld [vmem:[%s312 + $0x57a8] sm:$0xff]
        %v3189 = vld [vmem:[%s312 + $0x57b0] sm:$0xff]
        %v3190 = vld [vmem:[%s312 + $0x57b8] sm:$0xff]
        %v3191 = vld [vmem:[%s312 + $0x57c0] sm:$0xff]
        %v3192 = vld [vmem:[%s312 + $0x57c8] sm:$0xff]
        %v3193 = vld [vmem:[%s312 + $0x57d0] sm:$0xff]
        %v3194 = vld [vmem:[%s312 + $0x57d8] sm:$0xff]
        %v3195 = vld [vmem:[%s312 + $0x57e0] sm:$0xff]
        %v3196 = vld [vmem:[%s312 + $0x57e8] sm:$0xff]
        %v3197 = vld [vmem:[%s312 + $0x57f0] sm:$0xff]
        %v3198 = vld [vmem:[%s312 + $0x57f8] sm:$0xff]
        %v3199 = vld [vmem:[%s312 + $0x5800] sm:$0xff]
        %v3200 = vld [vmem:[%s312 + $0x5808] sm:$0xff]
        %v3201 = vld [vmem:[%s312 + $0x5810] sm:$0xff]
        %v3202 = vld [vmem:[%s312 + $0x5818] sm:$0xff]
        %v3203 = vld [vmem:[%s312 + $0x5820] sm:$0xff]
        %v3204 = vld [vmem:[%s312 + $0x5828] sm:$0xff]
        %v3205 = vld [vmem:[%s312 + $0x5830] sm:$0xff]
        %v3206 = vld [vmem:[%s312 + $0x5838] sm:$0xff]
        %v3207 = vld [vmem:[%s312 + $0x5840] sm:$0xff]
        %v3208 = vld [vmem:[%s312 + $0x5848] sm:$0xff]
        %v3209 = vld [vmem:[%s312 + $0x5850] sm:$0xff]
        %v3210 = vld [vmem:[%s312 + $0x5858] sm:$0xff]
        %v3211 = vld [vmem:[%s312 + $0x5860] sm:$0xff]
        %v3212 = vld [vmem:[%s312 + $0x5868] sm:$0xff]
        %v3213 = vld [vmem:[%s312 + $0x5870] sm:$0xff]
        %v3214 = vld [vmem:[%s312 + $0x5878] sm:$0xff]
        %v3215 = vld [vmem:[%s312 + $0x5880] sm:$0xff]
        %v3216 = vld [vmem:[%s312 + $0x5888] sm:$0xff]
        %v3217 = vld [vmem:[%s312 + $0x5890] sm:$0xff]
        %v3218 = vld [vmem:[%s312 + $0x5898] sm:$0xff]
        %v3219 = vld [vmem:[%s312 + $0x58a0] sm:$0xff]
        %v3220 = vld [vmem:[%s312 + $0x58a8] sm:$0xff]
        %v3221 = vld [vmem:[%s312 + $0x58b0] sm:$0xff]
        %v3222 = vld [vmem:[%s312 + $0x58b8] sm:$0xff]
        %v3223 = vld [vmem:[%s312 + $0x58c0] sm:$0xff]
        %v3224 = vld [vmem:[%s312 + $0x58c8] sm:$0xff]
        %v3225 = vld [vmem:[%s312 + $0x58d0] sm:$0xff]
        %v3226 = vld [vmem:[%s312 + $0x58d8] sm:$0xff]
        %v3227 = vld [vmem:[%s312 + $0x58e0] sm:$0xff]
        %v3228 = vld [vmem:[%s312 + $0x58e8] sm:$0xff]
        %v3229 = vld [vmem:[%s312 + $0x58f0] sm:$0xff]
        %v3230 = vld [vmem:[%s312 + $0x58f8] sm:$0xff]
        %v3231 = vld [vmem:[%s312 + $0x5900] sm:$0xff]
        %v3232 = vld [vmem:[%s312 + $0x5908] sm:$0xff]
        %v3233 = vld [vmem:[%s312 + $0x5910] sm:$0xff]
        %v3234 = vld [vmem:[%s312 + $0x5918] sm:$0xff]
        %v3235 = vld [vmem:[%s312 + $0x5920] sm:$0xff]
        %v3236 = vld [vmem:[%s312 + $0x5928] sm:$0xff]
        %v3237 = vld [vmem:[%s312 + $0x5930] sm:$0xff]
        %v3238 = vld [vmem:[%s312 + $0x5938] sm:$0xff]
        %v3239 = vld [vmem:[%s312 + $0x5940] sm:$0xff]
        %v3240 = vld [vmem:[%s312 + $0x5948] sm:$0xff]
        %v3241 = vld [vmem:[%s312 + $0x5950] sm:$0xff]
        %v3242 = vld [vmem:[%s312 + $0x5958] sm:$0xff]
        %v3243 = vld [vmem:[%s312 + $0x5960] sm:$0xff]
        %v3244 = vld [vmem:[%s312 + $0x5968] sm:$0xff]
        %v3245 = vld [vmem:[%s312 + $0x5970] sm:$0xff]
        %v3246 = vld [vmem:[%s312 + $0x5978] sm:$0xff]
        %v3247 = vld [vmem:[%s312 + $0x5980] sm:$0xff]
        %v3248 = vld [vmem:[%s312 + $0x5988] sm:$0xff]
        %v3249 = vld [vmem:[%s312 + $0x5990] sm:$0xff]
        %v3250 = vld [vmem:[%s312 + $0x5998] sm:$0xff]
        %v3251 = vld [vmem:[%s312 + $0x59a0] sm:$0xff]
        %v3252 = vld [vmem:[%s312 + $0x59a8] sm:$0xff]
        %v3253 = vld [vmem:[%s312 + $0x59b0] sm:$0xff]
        %v3254 = vld [vmem:[%s312 + $0x59b8] sm:$0xff]
        %v3255 = vld [vmem:[%s312 + $0x59c0] sm:$0xff]
        %v3256 = vld [vmem:[%s312 + $0x59c8] sm:$0xff]
        %v3257 = vld [vmem:[%s312 + $0x59d0] sm:$0xff]
        %v3258 = vld [vmem:[%s312 + $0x59d8] sm:$0xff]
        %v3259 = vld [vmem:[%s312 + $0x59e0] sm:$0xff]
        %v3260 = vld [vmem:[%s312 + $0x59e8] sm:$0xff]
        %v3261 = vld [vmem:[%s312 + $0x59f0] sm:$0xff]
        %v3262 = vld [vmem:[%s312 + $0x59f8] sm:$0xff]
        %v3263 = vld [vmem:[%s312 + $0x5a00] sm:$0xff]
        %v3264 = vld [vmem:[%s312 + $0x5a08] sm:$0xff]
        %v3265 = vld [vmem:[%s312 + $0x5a10] sm:$0xff]
        %v3266 = vld [vmem:[%s312 + $0x5a18] sm:$0xff]
        %v3267 = vld [vmem:[%s312 + $0x5a20] sm:$0xff]
        %v3268 = vld [vmem:[%s312 + $0x5a28] sm:$0xff]
        %v3269 = vld [vmem:[%s312 + $0x5a30] sm:$0xff]
        %v3270 = vld [vmem:[%s312 + $0x5a38] sm:$0xff]
        %v3271 = vld [vmem:[%s312 + $0x5a40] sm:$0xff]
        %v3272 = vld [vmem:[%s312 + $0x5a48] sm:$0xff]
        %v3273 = vld [vmem:[%s312 + $0x5a50] sm:$0xff]
        %v3274 = vld [vmem:[%s312 + $0x5a58] sm:$0xff]
        %v3275 = vld [vmem:[%s312 + $0x5a60] sm:$0xff]
        %v3276 = vld [vmem:[%s312 + $0x5a68] sm:$0xff]
        %v3277 = vld [vmem:[%s312 + $0x5a70] sm:$0xff]
        %v3278 = vld [vmem:[%s312 + $0x5a78] sm:$0xff]
        %v3279 = vld [vmem:[%s312 + $0x5a80] sm:$0xff]
        %v3280 = vld [vmem:[%s312 + $0x5a88] sm:$0xff]
        %v3281 = vld [vmem:[%s312 + $0x5a90] sm:$0xff]
        %v3282 = vld [vmem:[%s312 + $0x5a98] sm:$0xff]
        %v3283 = vld [vmem:[%s312 + $0x5aa0] sm:$0xff]
        %v3284 = vld [vmem:[%s312 + $0x5aa8] sm:$0xff]
        %v3285 = vld [vmem:[%s312 + $0x5ab0] sm:$0xff]
        %v3286 = vld [vmem:[%s312 + $0x5ab8] sm:$0xff]
        %v3287 = vld [vmem:[%s312 + $0x5ac0] sm:$0xff]
        %v3288 = vld [vmem:[%s312 + $0x5ac8] sm:$0xff]
        %v3289 = vld [vmem:[%s312 + $0x5ad0] sm:$0xff]
        %v3290 = vld [vmem:[%s312 + $0x5ad8] sm:$0xff]
        %v3291 = vld [vmem:[%s312 + $0x5ae0] sm:$0xff]
        %v3292 = vld [vmem:[%s312 + $0x5ae8] sm:$0xff]
        %v3293 = vld [vmem:[%s312 + $0x5af0] sm:$0xff]
        %v3294 = vld [vmem:[%s312 + $0x5af8] sm:$0xff]
        %v3295 = vld [vmem:[%s312 + $0x5b00] sm:$0xff]
        %v3296 = vld [vmem:[%s312 + $0x5b08] sm:$0xff]
        %v3297 = vld [vmem:[%s312 + $0x5b10] sm:$0xff]
        %v3298 = vld [vmem:[%s312 + $0x5b18] sm:$0xff]
        %v3299 = vld [vmem:[%s312 + $0x5b20] sm:$0xff]
        %v3300 = vld [vmem:[%s312 + $0x5b28] sm:$0xff]
        %v3301 = vld [vmem:[%s312 + $0x5b30] sm:$0xff]
        %v3302 = vld [vmem:[%s312 + $0x5b38] sm:$0xff]
        %v3303 = vld [vmem:[%s312 + $0x5b40] sm:$0xff]
        %v3304 = vld [vmem:[%s312 + $0x5b48] sm:$0xff]
        %v3305 = vld [vmem:[%s312 + $0x5b50] sm:$0xff]
        %v3306 = vld [vmem:[%s312 + $0x5b58] sm:$0xff]
        %v3307 = vld [vmem:[%s312 + $0x5b60] sm:$0xff]
        %v3308 = vld [vmem:[%s312 + $0x5b68] sm:$0xff]
        %v3309 = vld [vmem:[%s312 + $0x5b70] sm:$0xff]
        %v3310 = vld [vmem:[%s312 + $0x5b78] sm:$0xff]
        %v3311 = vld [vmem:[%s312 + $0x5b80] sm:$0xff]
        %v3312 = vld [vmem:[%s312 + $0x5b88] sm:$0xff]
        %v3313 = vld [vmem:[%s312 + $0x5b90] sm:$0xff]
        %v3314 = vld [vmem:[%s312 + $0x5b98] sm:$0xff]
        %v3315 = vld [vmem:[%s312 + $0x5ba0] sm:$0xff]
        %v3316 = vld [vmem:[%s312 + $0x5ba8] sm:$0xff]
        %v3317 = vld [vmem:[%s312 + $0x5bb0] sm:$0xff]
        %v3318 = vld [vmem:[%s312 + $0x5bb8] sm:$0xff]
        %v3319 = vld [vmem:[%s312 + $0x5bc0] sm:$0xff]
        %v3320 = vld [vmem:[%s312 + $0x5bc8] sm:$0xff]
        %v3321 = vld [vmem:[%s312 + $0x5bd0] sm:$0xff]
        %v3322 = vld [vmem:[%s312 + $0x5bd8] sm:$0xff]
        %v3323 = vld [vmem:[%s312 + $0x5be0] sm:$0xff]
        %v3324 = vld [vmem:[%s312 + $0x5be8] sm:$0xff]
        %v3325 = vld [vmem:[%s312 + $0x5bf0] sm:$0xff]
        %v3326 = vld [vmem:[%s312 + $0x5bf8] sm:$0xff]
        %v3327 = vld [vmem:[%s312 + $0x5c00] sm:$0xff]
        %v3328 = vld [vmem:[%s312 + $0x5c08] sm:$0xff]
        %v3329 = vld [vmem:[%s312 + $0x5c10] sm:$0xff]
        %v3330 = vld [vmem:[%s312 + $0x5c18] sm:$0xff]
        %v3331 = vld [vmem:[%s312 + $0x5c20] sm:$0xff]
        %v3332 = vld [vmem:[%s312 + $0x5c28] sm:$0xff]
        %v3333 = vld [vmem:[%s312 + $0x5c30] sm:$0xff]
        %v3334 = vld [vmem:[%s312 + $0x5c38] sm:$0xff]
        %v3335 = vld [vmem:[%s312 + $0x5c40] sm:$0xff]
        %v3336 = vld [vmem:[%s312 + $0x5c48] sm:$0xff]
        %v3337 = vld [vmem:[%s312 + $0x5c50] sm:$0xff]
        %v3338 = vld [vmem:[%s312 + $0x5c58] sm:$0xff]
        %v3339 = vld [vmem:[%s312 + $0x5c60] sm:$0xff]
        %v3340 = vld [vmem:[%s312 + $0x5c68] sm:$0xff]
        %v3341 = vld [vmem:[%s312 + $0x5c70] sm:$0xff]
        %v3342 = vld [vmem:[%s312 + $0x5c78] sm:$0xff]
        %v3343 = vld [vmem:[%s312 + $0x5c80] sm:$0xff]
        %v3344 = vld [vmem:[%s312 + $0x5c88] sm:$0xff]
        %v3345 = vld [vmem:[%s312 + $0x5c90] sm:$0xff]
        %v3346 = vld [vmem:[%s312 + $0x5c98] sm:$0xff]
        %v3347 = vld [vmem:[%s312 + $0x5ca0] sm:$0xff]
        %v3348 = vld [vmem:[%s312 + $0x5ca8] sm:$0xff]
        %v3349 = vld [vmem:[%s312 + $0x5cb0] sm:$0xff]
        %v3350 = vld [vmem:[%s312 + $0x5cb8] sm:$0xff]
        %v3351 = vld [vmem:[%s312 + $0x5cc0] sm:$0xff]
        %v3352 = vld [vmem:[%s312 + $0x5cc8] sm:$0xff]
        %v3353 = vld [vmem:[%s312 + $0x5cd0] sm:$0xff]
        %v3354 = vld [vmem:[%s312 + $0x5cd8] sm:$0xff]
        %v3355 = vld [vmem:[%s312 + $0x5ce0] sm:$0xff]
        %v3356 = vld [vmem:[%s312 + $0x5ce8] sm:$0xff]
        %v3357 = vld [vmem:[%s312 + $0x5cf0] sm:$0xff]
        %v3358 = vld [vmem:[%s312 + $0x5cf8] sm:$0xff]
        %v3359 = vld [vmem:[%s312 + $0x5d00] sm:$0xff]
        %v3360 = vld [vmem:[%s312 + $0x5d08] sm:$0xff]
        %v3361 = vld [vmem:[%s312 + $0x5d10] sm:$0xff]
        %v3362 = vld [vmem:[%s312 + $0x5d18] sm:$0xff]
        %v3363 = vld [vmem:[%s312 + $0x5d20] sm:$0xff]
        %v3364 = vld [vmem:[%s312 + $0x5d28] sm:$0xff]
        %v3365 = vld [vmem:[%s312 + $0x5d30] sm:$0xff]
        %v3366 = vld [vmem:[%s312 + $0x5d38] sm:$0xff]
        %v3367 = vld [vmem:[%s312 + $0x5d40] sm:$0xff]
        %v3368 = vld [vmem:[%s312 + $0x5d48] sm:$0xff]
        %v3369 = vld [vmem:[%s312 + $0x5d50] sm:$0xff]
        %v3370 = vld [vmem:[%s312 + $0x5d58] sm:$0xff]
        %v3371 = vld [vmem:[%s312 + $0x5d60] sm:$0xff]
        %v3372 = vld [vmem:[%s312 + $0x5d68] sm:$0xff]
        %v3373 = vld [vmem:[%s312 + $0x5d70] sm:$0xff]
        %v3374 = vld [vmem:[%s312 + $0x5d78] sm:$0xff]
        %v3375 = vld [vmem:[%s312 + $0x5d80] sm:$0xff]
        %v3376 = vld [vmem:[%s312 + $0x5d88] sm:$0xff]
        %v3377 = vld [vmem:[%s312 + $0x5d90] sm:$0xff]
        %v3378 = vld [vmem:[%s312 + $0x5d98] sm:$0xff]
        %v3379 = vld [vmem:[%s312 + $0x5da0] sm:$0xff]
        %v3380 = vld [vmem:[%s312 + $0x5da8] sm:$0xff]
        %v3381 = vld [vmem:[%s312 + $0x5db0] sm:$0xff]
        %v3382 = vld [vmem:[%s312 + $0x5db8] sm:$0xff]
        %v3383 = vld [vmem:[%s312 + $0x5dc0] sm:$0xff]
        %v3384 = vld [vmem:[%s312 + $0x5dc8] sm:$0xff]
        %v3385 = vld [vmem:[%s312 + $0x5dd0] sm:$0xff]
        %v3386 = vld [vmem:[%s312 + $0x5dd8] sm:$0xff]
        %v3387 = vld [vmem:[%s312 + $0x5de0] sm:$0xff]
        %v3388 = vld [vmem:[%s312 + $0x5de8] sm:$0xff]
        %v3389 = vld [vmem:[%s312 + $0x5df0] sm:$0xff]
        %v3390 = vld [vmem:[%s312 + $0x5df8] sm:$0xff]
        %v3391 = vld [vmem:[%s312 + $0x5e00] sm:$0xff]
        %v3392 = vld [vmem:[%s312 + $0x5e08] sm:$0xff]
        %v3393 = vld [vmem:[%s312 + $0x5e10] sm:$0xff]
        %v3394 = vld [vmem:[%s312 + $0x5e18] sm:$0xff]
        %v3395 = vld [vmem:[%s312 + $0x5e20] sm:$0xff]
        %v3396 = vld [vmem:[%s312 + $0x5e28] sm:$0xff]
        %v3397 = vld [vmem:[%s312 + $0x5e30] sm:$0xff]
        %v3398 = vld [vmem:[%s312 + $0x5e38] sm:$0xff]
        %v3399 = vld [vmem:[%s312 + $0x5e40] sm:$0xff]
        %v3400 = vld [vmem:[%s312 + $0x5e48] sm:$0xff]
        %v3401 = vld [vmem:[%s312 + $0x5e50] sm:$0xff]
        %v3402 = vld [vmem:[%s312 + $0x5e58] sm:$0xff]
        %v3403 = vld [vmem:[%s312 + $0x5e60] sm:$0xff]
        %v3404 = vld [vmem:[%s312 + $0x5e68] sm:$0xff]
        %v3405 = vld [vmem:[%s312 + $0x5e70] sm:$0xff]
        %v3406 = vld [vmem:[%s312 + $0x5e78] sm:$0xff]
        %v3407 = vld [vmem:[%s312 + $0x5e80] sm:$0xff]
        %v3408 = vld [vmem:[%s312 + $0x5e88] sm:$0xff]
        %v3409 = vld [vmem:[%s312 + $0x5e90] sm:$0xff]
        %v3410 = vld [vmem:[%s312 + $0x5e98] sm:$0xff]
        %v3411 = vld [vmem:[%s312 + $0x5ea0] sm:$0xff]
        %v3412 = vld [vmem:[%s312 + $0x5ea8] sm:$0xff]
        %v3413 = vld [vmem:[%s312 + $0x5eb0] sm:$0xff]
        %v3414 = vld [vmem:[%s312 + $0x5eb8] sm:$0xff]
        %v3415 = vld [vmem:[%s312 + $0x5ec0] sm:$0xff]
        %v3416 = vld [vmem:[%s312 + $0x5ec8] sm:$0xff]
        %v3417 = vld [vmem:[%s312 + $0x5ed0] sm:$0xff]
        %v3418 = vld [vmem:[%s312 + $0x5ed8] sm:$0xff]
        %v3419 = vld [vmem:[%s312 + $0x5ee0] sm:$0xff]
        %v3420 = vld [vmem:[%s312 + $0x5ee8] sm:$0xff]
        %v3421 = vld [vmem:[%s312 + $0x5ef0] sm:$0xff]
        %v3422 = vld [vmem:[%s312 + $0x5ef8] sm:$0xff]
        %v3423 = vld [vmem:[%s312 + $0x5f00] sm:$0xff]
        %v3424 = vld [vmem:[%s312 + $0x5f08] sm:$0xff]
        %v3425 = vld [vmem:[%s312 + $0x5f10] sm:$0xff]
        %v3426 = vld [vmem:[%s312 + $0x5f18] sm:$0xff]
        %v3427 = vld [vmem:[%s312 + $0x5f20] sm:$0xff]
        %v3428 = vld [vmem:[%s312 + $0x5f28] sm:$0xff]
        %v3429 = vld [vmem:[%s312 + $0x5f30] sm:$0xff]
        %v3430 = vld [vmem:[%s312 + $0x5f38] sm:$0xff]
        %v3431 = vld [vmem:[%s312 + $0x5f40] sm:$0xff]
        %v3432 = vld [vmem:[%s312 + $0x5f48] sm:$0xff]
        %v3433 = vld [vmem:[%s312 + $0x5f50] sm:$0xff]
        %v3434 = vld [vmem:[%s312 + $0x5f58] sm:$0xff]
        %v3435 = vld [vmem:[%s312 + $0x5f60] sm:$0xff]
        %v3436 = vld [vmem:[%s312 + $0x5f68] sm:$0xff]
        %v3437 = vld [vmem:[%s312 + $0x5f70] sm:$0xff]
        %v3438 = vld [vmem:[%s312 + $0x5f78] sm:$0xff]
        %v3439 = vld [vmem:[%s312 + $0x5f80] sm:$0xff]
        %v3440 = vld [vmem:[%s312 + $0x5f88] sm:$0xff]
        %v3441 = vld [vmem:[%s312 + $0x5f90] sm:$0xff]
        %v3442 = vld [vmem:[%s312 + $0x5f98] sm:$0xff]
        %v3443 = vld [vmem:[%s312 + $0x5fa0] sm:$0xff]
        %v3444 = vld [vmem:[%s312 + $0x5fa8] sm:$0xff]
        %v3445 = vld [vmem:[%s312 + $0x5fb0] sm:$0xff]
        %v3446 = vld [vmem:[%s312 + $0x5fb8] sm:$0xff]
        %v3447 = vld [vmem:[%s312 + $0x5fc0] sm:$0xff]
        %v3448 = vld [vmem:[%s312 + $0x5fc8] sm:$0xff]
        %v3449 = vld [vmem:[%s312 + $0x5fd0] sm:$0xff]
        %v3450 = vld [vmem:[%s312 + $0x5fd8] sm:$0xff]
        %v3451 = vld [vmem:[%s312 + $0x5fe0] sm:$0xff]
        %v3452 = vld [vmem:[%s312 + $0x5fe8] sm:$0xff]
        %v3453 = vld [vmem:[%s312 + $0x5ff0] sm:$0xff]
        %v3454 = vld [vmem:[%s312 + $0x5ff8] sm:$0xff]
        %v3455 = vld [vmem:[%s312 + $0x6000] sm:$0xff]
        %v3456 = vld [vmem:[%s312 + $0x6008] sm:$0xff]
        %v3457 = vld [vmem:[%s312 + $0x6010] sm:$0xff]
        %v3458 = vld [vmem:[%s312 + $0x6018] sm:$0xff]
        %v3459 = vld [vmem:[%s312 + $0x6020] sm:$0xff]
        %v3460 = vld [vmem:[%s312 + $0x6028] sm:$0xff]
        %v3461 = vld [vmem:[%s312 + $0x6030] sm:$0xff]
        %v3462 = vld [vmem:[%s312 + $0x6038] sm:$0xff]
        %v3463 = vld [vmem:[%s312 + $0x6040] sm:$0xff]
        %v3464 = vld [vmem:[%s312 + $0x6048] sm:$0xff]
        %v3465 = vld [vmem:[%s312 + $0x6050] sm:$0xff]
        %v3466 = vld [vmem:[%s312 + $0x6058] sm:$0xff]
        %v3467 = vld [vmem:[%s312 + $0x6060] sm:$0xff]
        %v3468 = vld [vmem:[%s312 + $0x6068] sm:$0xff]
        %v3469 = vld [vmem:[%s312 + $0x6070] sm:$0xff]
        %v3470 = vld [vmem:[%s312 + $0x6078] sm:$0xff]
        %v3471 = vld [vmem:[%s312 + $0x6080] sm:$0xff]
        %v3472 = vld [vmem:[%s312 + $0x6088] sm:$0xff]
        %v3473 = vld [vmem:[%s312 + $0x6090] sm:$0xff]
        %v3474 = vld [vmem:[%s312 + $0x6098] sm:$0xff]
        %v3475 = vld [vmem:[%s312 + $0x60a0] sm:$0xff]
        %v3476 = vld [vmem:[%s312 + $0x60a8] sm:$0xff]
        %v3477 = vld [vmem:[%s312 + $0x60b0] sm:$0xff]
        %v3478 = vld [vmem:[%s312 + $0x60b8] sm:$0xff]
        %v3479 = vld [vmem:[%s312 + $0x60c0] sm:$0xff]
        %v3480 = vld [vmem:[%s312 + $0x60c8] sm:$0xff]
        %v3481 = vld [vmem:[%s312 + $0x60d0] sm:$0xff]
        %v3482 = vld [vmem:[%s312 + $0x60d8] sm:$0xff]
        %v3483 = vld [vmem:[%s312 + $0x60e0] sm:$0xff]
        %v3484 = vld [vmem:[%s312 + $0x60e8] sm:$0xff]
        %v3485 = vld [vmem:[%s312 + $0x60f0] sm:$0xff]
        %v3486 = vld [vmem:[%s312 + $0x60f8] sm:$0xff]
        %v3487 = vld [vmem:[%s312 + $0x6100] sm:$0xff]
        %v3488 = vld [vmem:[%s312 + $0x6108] sm:$0xff]
        %v3489 = vld [vmem:[%s312 + $0x6110] sm:$0xff]
        %v3490 = vld [vmem:[%s312 + $0x6118] sm:$0xff]
        %v3491 = vld [vmem:[%s312 + $0x6120] sm:$0xff]
        %v3492 = vld [vmem:[%s312 + $0x6128] sm:$0xff]
        %v3493 = vld [vmem:[%s312 + $0x6130] sm:$0xff]
        %v3494 = vld [vmem:[%s312 + $0x6138] sm:$0xff]
        %v3495 = vld [vmem:[%s312 + $0x6140] sm:$0xff]
        %v3496 = vld [vmem:[%s312 + $0x6148] sm:$0xff]
        %v3497 = vld [vmem:[%s312 + $0x6150] sm:$0xff]
        %v3498 = vld [vmem:[%s312 + $0x6158] sm:$0xff]
        %v3499 = vld [vmem:[%s312 + $0x6160] sm:$0xff]
        %v3500 = vld [vmem:[%s312 + $0x6168] sm:$0xff]
        %v3501 = vld [vmem:[%s312 + $0x6170] sm:$0xff]
        %v3502 = vld [vmem:[%s312 + $0x6178] sm:$0xff]
        %v3503 = vld [vmem:[%s312 + $0x6180] sm:$0xff]
        %v3504 = vld [vmem:[%s312 + $0x6188] sm:$0xff]
        %v3505 = vld [vmem:[%s312 + $0x6190] sm:$0xff]
        %v3506 = vld [vmem:[%s312 + $0x6198] sm:$0xff]
        %v3507 = vld [vmem:[%s312 + $0x61a0] sm:$0xff]
        %v3508 = vld [vmem:[%s312 + $0x61a8] sm:$0xff]
        %v3509 = vld [vmem:[%s312 + $0x61b0] sm:$0xff]
        %v3510 = vld [vmem:[%s312 + $0x61b8] sm:$0xff]
        %v3511 = vld [vmem:[%s312 + $0x61c0] sm:$0xff]
        %v3512 = vld [vmem:[%s312 + $0x61c8] sm:$0xff]
        %v3513 = vld [vmem:[%s312 + $0x61d0] sm:$0xff]
        %v3514 = vld [vmem:[%s312 + $0x61d8] sm:$0xff]
        %v3515 = vld [vmem:[%s312 + $0x61e0] sm:$0xff]
        %v3516 = vld [vmem:[%s312 + $0x61e8] sm:$0xff]
        %v3517 = vld [vmem:[%s312 + $0x61f0] sm:$0xff]
        %v3518 = vld [vmem:[%s312 + $0x61f8] sm:$0xff]
        %v3519 = vld [vmem:[#allocation2] sm:$0xff]
        %v3533 = vcombine.high %v370, %v370
        %v3535 = vunpack.c.l.s4 1983009808
        %v3536 = vunpack.c.0.s8 %v3535
        %v3537 = vlaneseq
        %v3538 = vshrl.u32 %v3537, 7
        %v3539 = vsub.s32 %v3536, %v3538
        %v3540 = vrot.slane %v370, %v3539
        %v3542 = vunpack.c.l.s4 1983009808
        %v3543 = vunpack.c.0.s8 %v3542
        %v3544 = vlaneseq
        %v3545 = vshrl.u32 %v3544, 7
        %v3546 = vsub.s32 %v3543, %v3545
        %v3547 = vrot.slane %v3533, %v3546
        %v3548 = vcombine.high %v3540, %v3540
        %v3549 = vcombine.high %v3547, %v3547
        %v3550 = vcombine.high %v371, %v371
        %v3552 = vunpack.c.l.s4 1983009808
        %v3553 = vunpack.c.0.s8 %v3552
        %v3554 = vlaneseq
        %v3555 = vshrl.u32 %v3554, 7
        %v3556 = vsub.s32 %v3553, %v3555
        %v3557 = vrot.slane %v371, %v3556
        %v3559 = vunpack.c.l.s4 1983009808
        %v3560 = vunpack.c.0.s8 %v3559
        %v3561 = vlaneseq
        %v3562 = vshrl.u32 %v3561, 7
        %v3563 = vsub.s32 %v3560, %v3562
        %v3564 = vrot.slane %v3550, %v3563
        %v3565 = vcombine.high %v3557, %v3557
        %v3566 = vcombine.high %v3564, %v3564
        %v3567 = vcombine.high %v372, %v372
        %v3569 = vunpack.c.l.s4 1983009808
        %v3570 = vunpack.c.0.s8 %v3569
        %v3571 = vlaneseq
        %v3572 = vshrl.u32 %v3571, 7
        %v3573 = vsub.s32 %v3570, %v3572
        %v3574 = vrot.slane %v372, %v3573
        %v3576 = vunpack.c.l.s4 1983009808
        %v3577 = vunpack.c.0.s8 %v3576
        %v3578 = vlaneseq
        %v3579 = vshrl.u32 %v3578, 7
        %v3580 = vsub.s32 %v3577, %v3579
        %v3581 = vrot.slane %v3567, %v3580
        %v3582 = vcombine.high %v3574, %v3574
        %v3583 = vcombine.high %v3581, %v3581
        %v3584 = vcombine.high %v373, %v373
        %v3586 = vunpack.c.l.s4 1983009808
        %v3587 = vunpack.c.0.s8 %v3586
        %v3588 = vlaneseq
        %v3589 = vshrl.u32 %v3588, 7
        %v3590 = vsub.s32 %v3587, %v3589
        %v3591 = vrot.slane %v373, %v3590
        %v3593 = vunpack.c.l.s4 1983009808
        %v3594 = vunpack.c.0.s8 %v3593
        %v3595 = vlaneseq
        %v3596 = vshrl.u32 %v3595, 7
        %v3597 = vsub.s32 %v3594, %v3596
        %v3598 = vrot.slane %v3584, %v3597
        %v3599 = vcombine.high %v3591, %v3591
        %v3600 = vcombine.high %v3598, %v3598
        %v3601 = vcombine.high %v374, %v374
        %v3603 = vunpack.c.l.s4 1983009808
        %v3604 = vunpack.c.0.s8 %v3603
        %v3605 = vlaneseq
        %v3606 = vshrl.u32 %v3605, 7
        %v3607 = vsub.s32 %v3604, %v3606
        %v3608 = vrot.slane %v374, %v3607
        %v3610 = vunpack.c.l.s4 1983009808
        %v3611 = vunpack.c.0.s8 %v3610
        %v3612 = vlaneseq
        %v3613 = vshrl.u32 %v3612, 7
        %v3614 = vsub.s32 %v3611, %v3613
        %v3615 = vrot.slane %v3601, %v3614
        %v3616 = vcombine.high %v3608, %v3608
        %v3617 = vcombine.high %v3615, %v3615
        %v3618 = vcombine.high %v375, %v375
        %v3620 = vunpack.c.l.s4 1983009808
        %v3621 = vunpack.c.0.s8 %v3620
        %v3622 = vlaneseq
        %v3623 = vshrl.u32 %v3622, 7
        %v3624 = vsub.s32 %v3621, %v3623
        %v3625 = vrot.slane %v375, %v3624
        %v3627 = vunpack.c.l.s4 1983009808
        %v3628 = vunpack.c.0.s8 %v3627
        %v3629 = vlaneseq
        %v3630 = vshrl.u32 %v3629, 7
        %v3631 = vsub.s32 %v3628, %v3630
        %v3632 = vrot.slane %v3618, %v3631
        %v3633 = vcombine.high %v3625, %v3625
        %v3634 = vcombine.high %v3632, %v3632
        %v3635 = vcombine.high %v376, %v376
        %v3637 = vunpack.c.l.s4 1983009808
        %v3638 = vunpack.c.0.s8 %v3637
        %v3639 = vlaneseq
        %v3640 = vshrl.u32 %v3639, 7
        %v3641 = vsub.s32 %v3638, %v3640
        %v3642 = vrot.slane %v376, %v3641
        %v3644 = vunpack.c.l.s4 1983009808
        %v3645 = vunpack.c.0.s8 %v3644
        %v3646 = vlaneseq
        %v3647 = vshrl.u32 %v3646, 7
        %v3648 = vsub.s32 %v3645, %v3647
        %v3649 = vrot.slane %v3635, %v3648
        %v3650 = vcombine.high %v3642, %v3642
        %v3651 = vcombine.high %v3649, %v3649
        %v3652 = vcombine.high %v377, %v377
        %v3654 = vunpack.c.l.s4 1983009808
        %v3655 = vunpack.c.0.s8 %v3654
        %v3656 = vlaneseq
        %v3657 = vshrl.u32 %v3656, 7
        %v3658 = vsub.s32 %v3655, %v3657
        %v3659 = vrot.slane %v377, %v3658
        %v3661 = vunpack.c.l.s4 1983009808
        %v3662 = vunpack.c.0.s8 %v3661
        %v3663 = vlaneseq
        %v3664 = vshrl.u32 %v3663, 7
        %v3665 = vsub.s32 %v3662, %v3664
        %v3666 = vrot.slane %v3652, %v3665
        %v3667 = vcombine.high %v3659, %v3659
        %v3668 = vcombine.high %v3666, %v3666
        %v3669 = vcombine.high %v378, %v378
        %v3671 = vunpack.c.l.s4 1983009808
        %v3672 = vunpack.c.0.s8 %v3671
        %v3673 = vlaneseq
        %v3674 = vshrl.u32 %v3673, 7
        %v3675 = vsub.s32 %v3672, %v3674
        %v3676 = vrot.slane %v378, %v3675
        %v3678 = vunpack.c.l.s4 1983009808
        %v3679 = vunpack.c.0.s8 %v3678
        %v3680 = vlaneseq
        %v3681 = vshrl.u32 %v3680, 7
        %v3682 = vsub.s32 %v3679, %v3681
        %v3683 = vrot.slane %v3669, %v3682
        %v3684 = vcombine.high %v3676, %v3676
        %v3685 = vcombine.high %v3683, %v3683
        %v3686 = vcombine.high %v379, %v379
        %v3688 = vunpack.c.l.s4 1983009808
        %v3689 = vunpack.c.0.s8 %v3688
        %v3690 = vlaneseq
        %v3691 = vshrl.u32 %v3690, 7
        %v3692 = vsub.s32 %v3689, %v3691
        %v3693 = vrot.slane %v379, %v3692
        %v3695 = vunpack.c.l.s4 1983009808
        %v3696 = vunpack.c.0.s8 %v3695
        %v3697 = vlaneseq
        %v3698 = vshrl.u32 %v3697, 7
        %v3699 = vsub.s32 %v3696, %v3698
        %v3700 = vrot.slane %v3686, %v3699
        %v3701 = vcombine.high %v3693, %v3693
        %v3702 = vcombine.high %v3700, %v3700
        %v3703 = vcombine.high %v380, %v380
        %v3705 = vunpack.c.l.s4 1983009808
        %v3706 = vunpack.c.0.s8 %v3705
        %v3707 = vlaneseq
        %v3708 = vshrl.u32 %v3707, 7
        %v3709 = vsub.s32 %v3706, %v3708
        %v3710 = vrot.slane %v380, %v3709
        %v3712 = vunpack.c.l.s4 1983009808
        %v3713 = vunpack.c.0.s8 %v3712
        %v3714 = vlaneseq
        %v3715 = vshrl.u32 %v3714, 7
        %v3716 = vsub.s32 %v3713, %v3715
        %v3717 = vrot.slane %v3703, %v3716
        %v3718 = vcombine.high %v3710, %v3710
        %v3719 = vcombine.high %v3717, %v3717
        %v3720 = vcombine.high %v381, %v381
        %v3722 = vunpack.c.l.s4 1983009808
        %v3723 = vunpack.c.0.s8 %v3722
        %v3724 = vlaneseq
        %v3725 = vshrl.u32 %v3724, 7
        %v3726 = vsub.s32 %v3723, %v3725
        %v3727 = vrot.slane %v381, %v3726
        %v3729 = vunpack.c.l.s4 1983009808
        %v3730 = vunpack.c.0.s8 %v3729
        %v3731 = vlaneseq
        %v3732 = vshrl.u32 %v3731, 7
        %v3733 = vsub.s32 %v3730, %v3732
        %v3734 = vrot.slane %v3720, %v3733
        %v3735 = vcombine.high %v3727, %v3727
        %v3736 = vcombine.high %v3734, %v3734
        %v3738 = vunpack.c.l.s4 1983009808
        %v3739 = vunpack.c.0.s8 %v3738
        %v3740 = vlaneseq
        %v3741 = vshrl.u32 %v3740, 7
        %v3742 = vsub.s32 %v3739, %v3741
        %v3743 = vrot.slane %v382, %v3742
        %3793 = vmatprep.subr.mxu0 %v444
        %3794 = vmatpush1.msra.mxu0 %v443
        %3795 = vmatprep.subr.mxu0 %v440
        %3796 = vmatpush1.msra.mxu0 %v439
        %3797 = vmatprep.subr.mxu0 %v436
        %3798 = vmatpush1.msra.mxu0 %v435
        %3799 = vmatprep.subr.mxu0 %v432
        %3800 = vmatpush1.msra.mxu0 %v431
        %3801 = vmatprep.subr.mxu0 %v428
        %3802 = vmatpush1.msra.mxu0 %v427
        %3803 = vmatprep.subr.mxu0 %v424
        %3804 = vmatpush1.msra.mxu0 %v423
        %3805 = vmatprep.subr.mxu0 %v420
        %3806 = vmatpush1.msra.mxu0 %v419
        %3807 = vmatprep.subr.mxu0 %v416
        %3808 = vmatpush1.msra.mxu0 %v415
        %3809 = vmatprep.subr.mxu0 %v412
        %3810 = vmatpush1.msra.mxu0 %v411
        %3811 = vmatprep.subr.mxu0 %v408
        %3812 = vmatpush1.msra.mxu0 %v407
        %3813 = vmatprep.subr.mxu0 %v404
        %3814 = vmatpush1.msra.mxu0 %v403
        %3815 = vmatprep.subr.mxu0 %v400
        %3816 = vmatpush1.msra.mxu0 %v399
        %3817 = vmatprep.subr.mxu0 %v396
        %3818 = vmatpush1.msra.mxu0 %v395
        %3819 = vmatprep.subr.mxu0 %v392
        %3820 = vmatpush1.msra.mxu0 %v391
        %3821 = vmatprep.subr.mxu0 %v388
        %3822 = vmatpush1.msra.mxu0 %v387
        %3823 = vmatprep.subr.mxu0 %v384
        %3824 = vmatpush1.msra.mxu0 %v383
        %3825 = vmatprep.subr.mxu0 %v508
        %3826 = vmatpush2.msra.mxu0 %v507
        %3827 = vmatprep.subr.mxu0 %v504
        %3828 = vmatpush2.msra.mxu0 %v503
        %3829 = vmatprep.subr.mxu0 %v500
        %3830 = vmatpush2.msra.mxu0 %v499
        %3831 = vmatprep.subr.mxu0 %v496
        %3832 = vmatpush2.msra.mxu0 %v495
        %3833 = vmatprep.subr.mxu0 %v492
        %3834 = vmatpush2.msra.mxu0 %v491
        %3835 = vmatprep.subr.mxu0 %v488
        %3836 = vmatpush2.msra.mxu0 %v487
        %3837 = vmatprep.subr.mxu0 %v484
        %3838 = vmatpush2.msra.mxu0 %v483
        %3839 = vmatprep.subr.mxu0 %v480
        %3840 = vmatpush2.msra.mxu0 %v479
        %3841 = vmatprep.subr.mxu0 %v476
        %3842 = vmatpush2.msra.mxu0 %v475
        %3843 = vmatprep.subr.mxu0 %v472
        %3844 = vmatpush2.msra.mxu0 %v471
        %3845 = vmatprep.subr.mxu0 %v468
        %3846 = vmatpush2.msra.mxu0 %v467
        %3847 = vmatprep.subr.mxu0 %v464
        %3848 = vmatpush2.msra.mxu0 %v463
        %3849 = vmatprep.subr.mxu0 %v460
        %3850 = vmatpush2.msra.mxu0 %v459
        %3851 = vmatprep.subr.mxu0 %v456
        %3852 = vmatpush2.msra.mxu0 %v455
        %3853 = vmatprep.subr.mxu0 %v452
        %3854 = vmatpush2.msra.mxu0 %v451
        %3855 = vmatprep.subr.mxu0 %v448
        %3856 = vmatpush2.msra.mxu0 %v447
        %3857 = vmatprep.mubr.f32.mxu0 %v3548
        %3858 = vmatmul.mubr.f32.gmra.mxu0 %v3540
        %v3859 = vpop.f32.mrf.mxu0
        %v3860 = vadd.f32 0.0, %v3859
        %v3861 = vpop.f32.mrf.mxu0
        %v3862 = vadd.f32 0.0, %v3861
        %3863 = vdwg.mxu0
        %3864 = vmatprep.subr.mxu0 %v572
        %3865 = vmatpush1.msra.mxu0 %v571
        %3866 = vmatprep.subr.mxu0 %v568
        %3867 = vmatpush1.msra.mxu0 %v567
        %3868 = vmatprep.subr.mxu0 %v564
        %3869 = vmatpush1.msra.mxu0 %v563
        %3870 = vmatprep.subr.mxu0 %v560
        %3871 = vmatpush1.msra.mxu0 %v559
        %3872 = vmatprep.subr.mxu0 %v556
        %3873 = vmatpush1.msra.mxu0 %v555
        %3874 = vmatprep.subr.mxu0 %v552
        %3875 = vmatpush1.msra.mxu0 %v551
        %3876 = vmatprep.subr.mxu0 %v548
        %3877 = vmatpush1.msra.mxu0 %v547
        %3878 = vmatprep.subr.mxu0 %v544
        %3879 = vmatpush1.msra.mxu0 %v543
        %3880 = vmatprep.subr.mxu0 %v540
        %3881 = vmatpush1.msra.mxu0 %v539
        %3882 = vmatprep.subr.mxu0 %v536
        %3883 = vmatpush1.msra.mxu0 %v535
        %3884 = vmatprep.subr.mxu0 %v532
        %3885 = vmatpush1.msra.mxu0 %v531
        %3886 = vmatprep.subr.mxu0 %v528
        %3887 = vmatpush1.msra.mxu0 %v527
        %3888 = vmatprep.subr.mxu0 %v524
        %3889 = vmatpush1.msra.mxu0 %v523
        %3890 = vmatprep.subr.mxu0 %v520
        %3891 = vmatpush1.msra.mxu0 %v519
        %3892 = vmatprep.subr.mxu0 %v516
        %3893 = vmatpush1.msra.mxu0 %v515
        %3894 = vmatprep.subr.mxu0 %v512
        %3895 = vmatpush1.msra.mxu0 %v511
        %3896 = vmatprep.subr.mxu0 %v636
        %3897 = vmatpush2.msra.mxu0 %v635
        %3898 = vmatprep.subr.mxu0 %v632
        %3899 = vmatpush2.msra.mxu0 %v631
        %3900 = vmatprep.subr.mxu0 %v628
        %3901 = vmatpush2.msra.mxu0 %v627
        %3902 = vmatprep.subr.mxu0 %v624
        %3903 = vmatpush2.msra.mxu0 %v623
        %3904 = vmatprep.subr.mxu0 %v620
        %3905 = vmatpush2.msra.mxu0 %v619
        %3906 = vmatprep.subr.mxu0 %v616
        %3907 = vmatpush2.msra.mxu0 %v615
        %3908 = vmatprep.subr.mxu0 %v612
        %3909 = vmatpush2.msra.mxu0 %v611
        %3910 = vmatprep.subr.mxu0 %v608
        %3911 = vmatpush2.msra.mxu0 %v607
        %3912 = vmatprep.subr.mxu0 %v604
        %3913 = vmatpush2.msra.mxu0 %v603
        %3914 = vmatprep.subr.mxu0 %v600
        %3915 = vmatpush2.msra.mxu0 %v599
        %3916 = vmatprep.subr.mxu0 %v596
        %3917 = vmatpush2.msra.mxu0 %v595
        %3918 = vmatprep.subr.mxu0 %v592
        %3919 = vmatpush2.msra.mxu0 %v591
        %3920 = vmatprep.subr.mxu0 %v588
        %3921 = vmatpush2.msra.mxu0 %v587
        %3922 = vmatprep.subr.mxu0 %v584
        %3923 = vmatpush2.msra.mxu0 %v583
        %3924 = vmatprep.subr.mxu0 %v580
        %3925 = vmatpush2.msra.mxu0 %v579
        %3926 = vmatprep.subr.mxu0 %v576
        %3927 = vmatpush2.msra.mxu0 %v575
        %3928 = vmatprep.mubr.f32.mxu0 %v3549
        %3929 = vmatmul.mubr.f32.gmra.mxu0 %v3547
        %v3930 = vpop.f32.mrf.mxu0
        %v3931 = vadd.f32 %v3860, %v3930
        %v3932 = vpop.f32.mrf.mxu0
        %v3933 = vadd.f32 %v3862, %v3932
        %3934 = vdwg.mxu0
        %3935 = vmatprep.subr.mxu0 %v700
        %3936 = vmatpush1.msra.mxu0 %v699
        %3937 = vmatprep.subr.mxu0 %v696
        %3938 = vmatpush1.msra.mxu0 %v695
        %3939 = vmatprep.subr.mxu0 %v692
        %3940 = vmatpush1.msra.mxu0 %v691
        %3941 = vmatprep.subr.mxu0 %v688
        %3942 = vmatpush1.msra.mxu0 %v687
        %3943 = vmatprep.subr.mxu0 %v684
        %3944 = vmatpush1.msra.mxu0 %v683
        %3945 = vmatprep.subr.mxu0 %v680
        %3946 = vmatpush1.msra.mxu0 %v679
        %3947 = vmatprep.subr.mxu0 %v676
        %3948 = vmatpush1.msra.mxu0 %v675
        %3949 = vmatprep.subr.mxu0 %v672
        %3950 = vmatpush1.msra.mxu0 %v671
        %3951 = vmatprep.subr.mxu0 %v668
        %3952 = vmatpush1.msra.mxu0 %v667
        %3953 = vmatprep.subr.mxu0 %v664
        %3954 = vmatpush1.msra.mxu0 %v663
        %3955 = vmatprep.subr.mxu0 %v660
        %3956 = vmatpush1.msra.mxu0 %v659
        %3957 = vmatprep.subr.mxu0 %v656
        %3958 = vmatpush1.msra.mxu0 %v655
        %3959 = vmatprep.subr.mxu0 %v652
        %3960 = vmatpush1.msra.mxu0 %v651
        %3961 = vmatprep.subr.mxu0 %v648
        %3962 = vmatpush1.msra.mxu0 %v647
        %3963 = vmatprep.subr.mxu0 %v644
        %3964 = vmatpush1.msra.mxu0 %v643
        %3965 = vmatprep.subr.mxu0 %v640
        %3966 = vmatpush1.msra.mxu0 %v639
        %3967 = vmatprep.subr.mxu0 %v764
        %3968 = vmatpush2.msra.mxu0 %v763
        %3969 = vmatprep.subr.mxu0 %v760
        %3970 = vmatpush2.msra.mxu0 %v759
        %3971 = vmatprep.subr.mxu0 %v756
        %3972 = vmatpush2.msra.mxu0 %v755
        %3973 = vmatprep.subr.mxu0 %v752
        %3974 = vmatpush2.msra.mxu0 %v751
        %3975 = vmatprep.subr.mxu0 %v748
        %3976 = vmatpush2.msra.mxu0 %v747
        %3977 = vmatprep.subr.mxu0 %v744
        %3978 = vmatpush2.msra.mxu0 %v743
        %3979 = vmatprep.subr.mxu0 %v740
        %3980 = vmatpush2.msra.mxu0 %v739
        %3981 = vmatprep.subr.mxu0 %v736
        %3982 = vmatpush2.msra.mxu0 %v735
        %3983 = vmatprep.subr.mxu0 %v732
        %3984 = vmatpush2.msra.mxu0 %v731
        %3985 = vmatprep.subr.mxu0 %v728
        %3986 = vmatpush2.msra.mxu0 %v727
        %3987 = vmatprep.subr.mxu0 %v724
        %3988 = vmatpush2.msra.mxu0 %v723
        %3989 = vmatprep.subr.mxu0 %v720
        %3990 = vmatpush2.msra.mxu0 %v719
        %3991 = vmatprep.subr.mxu0 %v716
        %3992 = vmatpush2.msra.mxu0 %v715
        %3993 = vmatprep.subr.mxu0 %v712
        %3994 = vmatpush2.msra.mxu0 %v711
        %3995 = vmatprep.subr.mxu0 %v708
        %3996 = vmatpush2.msra.mxu0 %v707
        %3997 = vmatprep.subr.mxu0 %v704
        %3998 = vmatpush2.msra.mxu0 %v703
        %3999 = vmatprep.mubr.f32.mxu0 %v3565
        %4000 = vmatmul.mubr.f32.gmra.mxu0 %v3557
        %v4001 = vpop.f32.mrf.mxu0
        %v4002 = vadd.f32 %v3931, %v4001
        %v4003 = vpop.f32.mrf.mxu0
        %v4004 = vadd.f32 %v3933, %v4003
        %4005 = vdwg.mxu0
        %4006 = vmatprep.subr.mxu0 %v828
        %4007 = vmatpush1.msra.mxu0 %v827
        %4008 = vmatprep.subr.mxu0 %v824
        %4009 = vmatpush1.msra.mxu0 %v823
        %4010 = vmatprep.subr.mxu0 %v820
        %4011 = vmatpush1.msra.mxu0 %v819
        %4012 = vmatprep.subr.mxu0 %v816
        %4013 = vmatpush1.msra.mxu0 %v815
        %4014 = vmatprep.subr.mxu0 %v812
        %4015 = vmatpush1.msra.mxu0 %v811
        %4016 = vmatprep.subr.mxu0 %v808
        %4017 = vmatpush1.msra.mxu0 %v807
        %4018 = vmatprep.subr.mxu0 %v804
        %4019 = vmatpush1.msra.mxu0 %v803
        %4020 = vmatprep.subr.mxu0 %v800
        %4021 = vmatpush1.msra.mxu0 %v799
        %4022 = vmatprep.subr.mxu0 %v796
        %4023 = vmatpush1.msra.mxu0 %v795
        %4024 = vmatprep.subr.mxu0 %v792
        %4025 = vmatpush1.msra.mxu0 %v791
        %4026 = vmatprep.subr.mxu0 %v788
        %4027 = vmatpush1.msra.mxu0 %v787
        %4028 = vmatprep.subr.mxu0 %v784
        %4029 = vmatpush1.msra.mxu0 %v783
        %4030 = vmatprep.subr.mxu0 %v780
        %4031 = vmatpush1.msra.mxu0 %v779
        %4032 = vmatprep.subr.mxu0 %v776
        %4033 = vmatpush1.msra.mxu0 %v775
        %4034 = vmatprep.subr.mxu0 %v772
        %4035 = vmatpush1.msra.mxu0 %v771
        %4036 = vmatprep.subr.mxu0 %v768
        %4037 = vmatpush1.msra.mxu0 %v767
        %4038 = vmatprep.subr.mxu0 %v892
        %4039 = vmatpush2.msra.mxu0 %v891
        %4040 = vmatprep.subr.mxu0 %v888
        %4041 = vmatpush2.msra.mxu0 %v887
        %4042 = vmatprep.subr.mxu0 %v884
        %4043 = vmatpush2.msra.mxu0 %v883
        %4044 = vmatprep.subr.mxu0 %v880
        %4045 = vmatpush2.msra.mxu0 %v879
        %4046 = vmatprep.subr.mxu0 %v876
        %4047 = vmatpush2.msra.mxu0 %v875
        %4048 = vmatprep.subr.mxu0 %v872
        %4049 = vmatpush2.msra.mxu0 %v871
        %4050 = vmatprep.subr.mxu0 %v868
        %4051 = vmatpush2.msra.mxu0 %v867
        %4052 = vmatprep.subr.mxu0 %v864
        %4053 = vmatpush2.msra.mxu0 %v863
        %4054 = vmatprep.subr.mxu0 %v860
        %4055 = vmatpush2.msra.mxu0 %v859
        %4056 = vmatprep.subr.mxu0 %v856
        %4057 = vmatpush2.msra.mxu0 %v855
        %4058 = vmatprep.subr.mxu0 %v852
        %4059 = vmatpush2.msra.mxu0 %v851
        %4060 = vmatprep.subr.mxu0 %v848
        %4061 = vmatpush2.msra.mxu0 %v847
        %4062 = vmatprep.subr.mxu0 %v844
        %4063 = vmatpush2.msra.mxu0 %v843
        %4064 = vmatprep.subr.mxu0 %v840
        %4065 = vmatpush2.msra.mxu0 %v839
        %4066 = vmatprep.subr.mxu0 %v836
        %4067 = vmatpush2.msra.mxu0 %v835
        %4068 = vmatprep.subr.mxu0 %v832
        %4069 = vmatpush2.msra.mxu0 %v831
        %4070 = vmatprep.mubr.f32.mxu0 %v3566
        %4071 = vmatmul.mubr.f32.gmra.mxu0 %v3564
        %v4072 = vpop.f32.mrf.mxu0
        %v4073 = vadd.f32 %v4002, %v4072
        %v4074 = vpop.f32.mrf.mxu0
        %v4075 = vadd.f32 %v4004, %v4074
        %4076 = vdwg.mxu0
        %4077 = vmatprep.subr.mxu0 %v956
        %4078 = vmatpush1.msra.mxu0 %v955
        %4079 = vmatprep.subr.mxu0 %v952
        %4080 = vmatpush1.msra.mxu0 %v951
        %4081 = vmatprep.subr.mxu0 %v948
        %4082 = vmatpush1.msra.mxu0 %v947
        %4083 = vmatprep.subr.mxu0 %v944
        %4084 = vmatpush1.msra.mxu0 %v943
        %4085 = vmatprep.subr.mxu0 %v940
        %4086 = vmatpush1.msra.mxu0 %v939
        %4087 = vmatprep.subr.mxu0 %v936
        %4088 = vmatpush1.msra.mxu0 %v935
        %4089 = vmatprep.subr.mxu0 %v932
        %4090 = vmatpush1.msra.mxu0 %v931
        %4091 = vmatprep.subr.mxu0 %v928
        %4092 = vmatpush1.msra.mxu0 %v927
        %4093 = vmatprep.subr.mxu0 %v924
        %4094 = vmatpush1.msra.mxu0 %v923
        %4095 = vmatprep.subr.mxu0 %v920
        %4096 = vmatpush1.msra.mxu0 %v919
        %4097 = vmatprep.subr.mxu0 %v916
        %4098 = vmatpush1.msra.mxu0 %v915
        %4099 = vmatprep.subr.mxu0 %v912
        %4100 = vmatpush1.msra.mxu0 %v911
        %4101 = vmatprep.subr.mxu0 %v908
        %4102 = vmatpush1.msra.mxu0 %v907
        %4103 = vmatprep.subr.mxu0 %v904
        %4104 = vmatpush1.msra.mxu0 %v903
        %4105 = vmatprep.subr.mxu0 %v900
        %4106 = vmatpush1.msra.mxu0 %v899
        %4107 = vmatprep.subr.mxu0 %v896
        %4108 = vmatpush1.msra.mxu0 %v895
        %4109 = vmatprep.subr.mxu0 %v1020
        %4110 = vmatpush2.msra.mxu0 %v1019
        %4111 = vmatprep.subr.mxu0 %v1016
        %4112 = vmatpush2.msra.mxu0 %v1015
        %4113 = vmatprep.subr.mxu0 %v1012
        %4114 = vmatpush2.msra.mxu0 %v1011
        %4115 = vmatprep.subr.mxu0 %v1008
        %4116 = vmatpush2.msra.mxu0 %v1007
        %4117 = vmatprep.subr.mxu0 %v1004
        %4118 = vmatpush2.msra.mxu0 %v1003
        %4119 = vmatprep.subr.mxu0 %v1000
        %4120 = vmatpush2.msra.mxu0 %v999
        %4121 = vmatprep.subr.mxu0 %v996
        %4122 = vmatpush2.msra.mxu0 %v995
        %4123 = vmatprep.subr.mxu0 %v992
        %4124 = vmatpush2.msra.mxu0 %v991
        %4125 = vmatprep.subr.mxu0 %v988
        %4126 = vmatpush2.msra.mxu0 %v987
        %4127 = vmatprep.subr.mxu0 %v984
        %4128 = vmatpush2.msra.mxu0 %v983
        %4129 = vmatprep.subr.mxu0 %v980
        %4130 = vmatpush2.msra.mxu0 %v979
        %4131 = vmatprep.subr.mxu0 %v976
        %4132 = vmatpush2.msra.mxu0 %v975
        %4133 = vmatprep.subr.mxu0 %v972
        %4134 = vmatpush2.msra.mxu0 %v971
        %4135 = vmatprep.subr.mxu0 %v968
        %4136 = vmatpush2.msra.mxu0 %v967
        %4137 = vmatprep.subr.mxu0 %v964
        %4138 = vmatpush2.msra.mxu0 %v963
        %4139 = vmatprep.subr.mxu0 %v960
        %4140 = vmatpush2.msra.mxu0 %v959
        %4141 = vmatprep.mubr.f32.mxu0 %v3582
        %4142 = vmatmul.mubr.f32.gmra.mxu0 %v3574
        %v4143 = vpop.f32.mrf.mxu0
        %v4144 = vadd.f32 %v4073, %v4143
        %v4145 = vpop.f32.mrf.mxu0
        %v4146 = vadd.f32 %v4075, %v4145
        %4147 = vdwg.mxu0
        %4148 = vmatprep.subr.mxu0 %v1084
        %4149 = vmatpush1.msra.mxu0 %v1083
        %4150 = vmatprep.subr.mxu0 %v1080
        %4151 = vmatpush1.msra.mxu0 %v1079
        %4152 = vmatprep.subr.mxu0 %v1076
        %4153 = vmatpush1.msra.mxu0 %v1075
        %4154 = vmatprep.subr.mxu0 %v1072
        %4155 = vmatpush1.msra.mxu0 %v1071
        %4156 = vmatprep.subr.mxu0 %v1068
        %4157 = vmatpush1.msra.mxu0 %v1067
        %4158 = vmatprep.subr.mxu0 %v1064
        %4159 = vmatpush1.msra.mxu0 %v1063
        %4160 = vmatprep.subr.mxu0 %v1060
        %4161 = vmatpush1.msra.mxu0 %v1059
        %4162 = vmatprep.subr.mxu0 %v1056
        %4163 = vmatpush1.msra.mxu0 %v1055
        %4164 = vmatprep.subr.mxu0 %v1052
        %4165 = vmatpush1.msra.mxu0 %v1051
        %4166 = vmatprep.subr.mxu0 %v1048
        %4167 = vmatpush1.msra.mxu0 %v1047
        %4168 = vmatprep.subr.mxu0 %v1044
        %4169 = vmatpush1.msra.mxu0 %v1043
        %4170 = vmatprep.subr.mxu0 %v1040
        %4171 = vmatpush1.msra.mxu0 %v1039
        %4172 = vmatprep.subr.mxu0 %v1036
        %4173 = vmatpush1.msra.mxu0 %v1035
        %4174 = vmatprep.subr.mxu0 %v1032
        %4175 = vmatpush1.msra.mxu0 %v1031
        %4176 = vmatprep.subr.mxu0 %v1028
        %4177 = vmatpush1.msra.mxu0 %v1027
        %4178 = vmatprep.subr.mxu0 %v1024
        %4179 = vmatpush1.msra.mxu0 %v1023
        %4180 = vmatprep.subr.mxu0 %v1148
        %4181 = vmatpush2.msra.mxu0 %v1147
        %4182 = vmatprep.subr.mxu0 %v1144
        %4183 = vmatpush2.msra.mxu0 %v1143
        %4184 = vmatprep.subr.mxu0 %v1140
        %4185 = vmatpush2.msra.mxu0 %v1139
        %4186 = vmatprep.subr.mxu0 %v1136
        %4187 = vmatpush2.msra.mxu0 %v1135
        %4188 = vmatprep.subr.mxu0 %v1132
        %4189 = vmatpush2.msra.mxu0 %v1131
        %4190 = vmatprep.subr.mxu0 %v1128
        %4191 = vmatpush2.msra.mxu0 %v1127
        %4192 = vmatprep.subr.mxu0 %v1124
        %4193 = vmatpush2.msra.mxu0 %v1123
        %4194 = vmatprep.subr.mxu0 %v1120
        %4195 = vmatpush2.msra.mxu0 %v1119
        %4196 = vmatprep.subr.mxu0 %v1116
        %4197 = vmatpush2.msra.mxu0 %v1115
        %4198 = vmatprep.subr.mxu0 %v1112
        %4199 = vmatpush2.msra.mxu0 %v1111
        %4200 = vmatprep.subr.mxu0 %v1108
        %4201 = vmatpush2.msra.mxu0 %v1107
        %4202 = vmatprep.subr.mxu0 %v1104
        %4203 = vmatpush2.msra.mxu0 %v1103
        %4204 = vmatprep.subr.mxu0 %v1100
        %4205 = vmatpush2.msra.mxu0 %v1099
        %4206 = vmatprep.subr.mxu0 %v1096
        %4207 = vmatpush2.msra.mxu0 %v1095
        %4208 = vmatprep.subr.mxu0 %v1092
        %4209 = vmatpush2.msra.mxu0 %v1091
        %4210 = vmatprep.subr.mxu0 %v1088
        %4211 = vmatpush2.msra.mxu0 %v1087
        %4212 = vmatprep.mubr.f32.mxu0 %v3583
        %4213 = vmatmul.mubr.f32.gmra.mxu0 %v3581
        %v4214 = vpop.f32.mrf.mxu0
        %v4215 = vadd.f32 %v4144, %v4214
        %v4216 = vpop.f32.mrf.mxu0
        %v4217 = vadd.f32 %v4146, %v4216
        %4218 = vdwg.mxu0
        %4219 = vmatprep.subr.mxu0 %v1212
        %4220 = vmatpush1.msra.mxu0 %v1211
        %4221 = vmatprep.subr.mxu0 %v1208
        %4222 = vmatpush1.msra.mxu0 %v1207
        %4223 = vmatprep.subr.mxu0 %v1204
        %4224 = vmatpush1.msra.mxu0 %v1203
        %4225 = vmatprep.subr.mxu0 %v1200
        %4226 = vmatpush1.msra.mxu0 %v1199
        %4227 = vmatprep.subr.mxu0 %v1196
        %4228 = vmatpush1.msra.mxu0 %v1195
        %4229 = vmatprep.subr.mxu0 %v1192
        %4230 = vmatpush1.msra.mxu0 %v1191
        %4231 = vmatprep.subr.mxu0 %v1188
        %4232 = vmatpush1.msra.mxu0 %v1187
        %4233 = vmatprep.subr.mxu0 %v1184
        %4234 = vmatpush1.msra.mxu0 %v1183
        %4235 = vmatprep.subr.mxu0 %v1180
        %4236 = vmatpush1.msra.mxu0 %v1179
        %4237 = vmatprep.subr.mxu0 %v1176
        %4238 = vmatpush1.msra.mxu0 %v1175
        %4239 = vmatprep.subr.mxu0 %v1172
        %4240 = vmatpush1.msra.mxu0 %v1171
        %4241 = vmatprep.subr.mxu0 %v1168
        %4242 = vmatpush1.msra.mxu0 %v1167
        %4243 = vmatprep.subr.mxu0 %v1164
        %4244 = vmatpush1.msra.mxu0 %v1163
        %4245 = vmatprep.subr.mxu0 %v1160
        %4246 = vmatpush1.msra.mxu0 %v1159
        %4247 = vmatprep.subr.mxu0 %v1156
        %4248 = vmatpush1.msra.mxu0 %v1155
        %4249 = vmatprep.subr.mxu0 %v1152
        %4250 = vmatpush1.msra.mxu0 %v1151
        %4251 = vmatprep.subr.mxu0 %v1276
        %4252 = vmatpush2.msra.mxu0 %v1275
        %4253 = vmatprep.subr.mxu0 %v1272
        %4254 = vmatpush2.msra.mxu0 %v1271
        %4255 = vmatprep.subr.mxu0 %v1268
        %4256 = vmatpush2.msra.mxu0 %v1267
        %4257 = vmatprep.subr.mxu0 %v1264
        %4258 = vmatpush2.msra.mxu0 %v1263
        %4259 = vmatprep.subr.mxu0 %v1260
        %4260 = vmatpush2.msra.mxu0 %v1259
        %4261 = vmatprep.subr.mxu0 %v1256
        %4262 = vmatpush2.msra.mxu0 %v1255
        %4263 = vmatprep.subr.mxu0 %v1252
        %4264 = vmatpush2.msra.mxu0 %v1251
        %4265 = vmatprep.subr.mxu0 %v1248
        %4266 = vmatpush2.msra.mxu0 %v1247
        %4267 = vmatprep.subr.mxu0 %v1244
        %4268 = vmatpush2.msra.mxu0 %v1243
        %4269 = vmatprep.subr.mxu0 %v1240
        %4270 = vmatpush2.msra.mxu0 %v1239
        %4271 = vmatprep.subr.mxu0 %v1236
        %4272 = vmatpush2.msra.mxu0 %v1235
        %4273 = vmatprep.subr.mxu0 %v1232
        %4274 = vmatpush2.msra.mxu0 %v1231
        %4275 = vmatprep.subr.mxu0 %v1228
        %4276 = vmatpush2.msra.mxu0 %v1227
        %4277 = vmatprep.subr.mxu0 %v1224
        %4278 = vmatpush2.msra.mxu0 %v1223
        %4279 = vmatprep.subr.mxu0 %v1220
        %4280 = vmatpush2.msra.mxu0 %v1219
        %4281 = vmatprep.subr.mxu0 %v1216
        %4282 = vmatpush2.msra.mxu0 %v1215
        %4283 = vmatprep.mubr.f32.mxu0 %v3599
        %4284 = vmatmul.mubr.f32.gmra.mxu0 %v3591
        %v4285 = vpop.f32.mrf.mxu0
        %v4286 = vadd.f32 %v4215, %v4285
        %v4287 = vpop.f32.mrf.mxu0
        %v4288 = vadd.f32 %v4217, %v4287
        %4289 = vdwg.mxu0
        %4290 = vmatprep.subr.mxu0 %v1340
        %4291 = vmatpush1.msra.mxu0 %v1339
        %4292 = vmatprep.subr.mxu0 %v1336
        %4293 = vmatpush1.msra.mxu0 %v1335
        %4294 = vmatprep.subr.mxu0 %v1332
        %4295 = vmatpush1.msra.mxu0 %v1331
        %4296 = vmatprep.subr.mxu0 %v1328
        %4297 = vmatpush1.msra.mxu0 %v1327
        %4298 = vmatprep.subr.mxu0 %v1324
        %4299 = vmatpush1.msra.mxu0 %v1323
        %4300 = vmatprep.subr.mxu0 %v1320
        %4301 = vmatpush1.msra.mxu0 %v1319
        %4302 = vmatprep.subr.mxu0 %v1316
        %4303 = vmatpush1.msra.mxu0 %v1315
        %4304 = vmatprep.subr.mxu0 %v1312
        %4305 = vmatpush1.msra.mxu0 %v1311
        %4306 = vmatprep.subr.mxu0 %v1308
        %4307 = vmatpush1.msra.mxu0 %v1307
        %4308 = vmatprep.subr.mxu0 %v1304
        %4309 = vmatpush1.msra.mxu0 %v1303
        %4310 = vmatprep.subr.mxu0 %v1300
        %4311 = vmatpush1.msra.mxu0 %v1299
        %4312 = vmatprep.subr.mxu0 %v1296
        %4313 = vmatpush1.msra.mxu0 %v1295
        %4314 = vmatprep.subr.mxu0 %v1292
        %4315 = vmatpush1.msra.mxu0 %v1291
        %4316 = vmatprep.subr.mxu0 %v1288
        %4317 = vmatpush1.msra.mxu0 %v1287
        %4318 = vmatprep.subr.mxu0 %v1284
        %4319 = vmatpush1.msra.mxu0 %v1283
        %4320 = vmatprep.subr.mxu0 %v1280
        %4321 = vmatpush1.msra.mxu0 %v1279
        %4322 = vmatprep.subr.mxu0 %v1404
        %4323 = vmatpush2.msra.mxu0 %v1403
        %4324 = vmatprep.subr.mxu0 %v1400
        %4325 = vmatpush2.msra.mxu0 %v1399
        %4326 = vmatprep.subr.mxu0 %v1396
        %4327 = vmatpush2.msra.mxu0 %v1395
        %4328 = vmatprep.subr.mxu0 %v1392
        %4329 = vmatpush2.msra.mxu0 %v1391
        %4330 = vmatprep.subr.mxu0 %v1388
        %4331 = vmatpush2.msra.mxu0 %v1387
        %4332 = vmatprep.subr.mxu0 %v1384
        %4333 = vmatpush2.msra.mxu0 %v1383
        %4334 = vmatprep.subr.mxu0 %v1380
        %4335 = vmatpush2.msra.mxu0 %v1379
        %4336 = vmatprep.subr.mxu0 %v1376
        %4337 = vmatpush2.msra.mxu0 %v1375
        %4338 = vmatprep.subr.mxu0 %v1372
        %4339 = vmatpush2.msra.mxu0 %v1371
        %4340 = vmatprep.subr.mxu0 %v1368
        %4341 = vmatpush2.msra.mxu0 %v1367
        %4342 = vmatprep.subr.mxu0 %v1364
        %4343 = vmatpush2.msra.mxu0 %v1363
        %4344 = vmatprep.subr.mxu0 %v1360
        %4345 = vmatpush2.msra.mxu0 %v1359
        %4346 = vmatprep.subr.mxu0 %v1356
        %4347 = vmatpush2.msra.mxu0 %v1355
        %4348 = vmatprep.subr.mxu0 %v1352
        %4349 = vmatpush2.msra.mxu0 %v1351
        %4350 = vmatprep.subr.mxu0 %v1348
        %4351 = vmatpush2.msra.mxu0 %v1347
        %4352 = vmatprep.subr.mxu0 %v1344
        %4353 = vmatpush2.msra.mxu0 %v1343
        %4354 = vmatprep.mubr.f32.mxu0 %v3600
        %4355 = vmatmul.mubr.f32.gmra.mxu0 %v3598
        %v4356 = vpop.f32.mrf.mxu0
        %v4357 = vadd.f32 %v4286, %v4356
        %v4358 = vpop.f32.mrf.mxu0
        %v4359 = vadd.f32 %v4288, %v4358
        %4360 = vdwg.mxu0
        %4361 = vmatprep.subr.mxu0 %v1468
        %4362 = vmatpush1.msra.mxu0 %v1467
        %4363 = vmatprep.subr.mxu0 %v1464
        %4364 = vmatpush1.msra.mxu0 %v1463
        %4365 = vmatprep.subr.mxu0 %v1460
        %4366 = vmatpush1.msra.mxu0 %v1459
        %4367 = vmatprep.subr.mxu0 %v1456
        %4368 = vmatpush1.msra.mxu0 %v1455
        %4369 = vmatprep.subr.mxu0 %v1452
        %4370 = vmatpush1.msra.mxu0 %v1451
        %4371 = vmatprep.subr.mxu0 %v1448
        %4372 = vmatpush1.msra.mxu0 %v1447
        %4373 = vmatprep.subr.mxu0 %v1444
        %4374 = vmatpush1.msra.mxu0 %v1443
        %4375 = vmatprep.subr.mxu0 %v1440
        %4376 = vmatpush1.msra.mxu0 %v1439
        %4377 = vmatprep.subr.mxu0 %v1436
        %4378 = vmatpush1.msra.mxu0 %v1435
        %4379 = vmatprep.subr.mxu0 %v1432
        %4380 = vmatpush1.msra.mxu0 %v1431
        %4381 = vmatprep.subr.mxu0 %v1428
        %4382 = vmatpush1.msra.mxu0 %v1427
        %4383 = vmatprep.subr.mxu0 %v1424
        %4384 = vmatpush1.msra.mxu0 %v1423
        %4385 = vmatprep.subr.mxu0 %v1420
        %4386 = vmatpush1.msra.mxu0 %v1419
        %4387 = vmatprep.subr.mxu0 %v1416
        %4388 = vmatpush1.msra.mxu0 %v1415
        %4389 = vmatprep.subr.mxu0 %v1412
        %4390 = vmatpush1.msra.mxu0 %v1411
        %4391 = vmatprep.subr.mxu0 %v1408
        %4392 = vmatpush1.msra.mxu0 %v1407
        %4393 = vmatprep.subr.mxu0 %v1532
        %4394 = vmatpush2.msra.mxu0 %v1531
        %4395 = vmatprep.subr.mxu0 %v1528
        %4396 = vmatpush2.msra.mxu0 %v1527
        %4397 = vmatprep.subr.mxu0 %v1524
        %4398 = vmatpush2.msra.mxu0 %v1523
        %4399 = vmatprep.subr.mxu0 %v1520
        %4400 = vmatpush2.msra.mxu0 %v1519
        %4401 = vmatprep.subr.mxu0 %v1516
        %4402 = vmatpush2.msra.mxu0 %v1515
        %4403 = vmatprep.subr.mxu0 %v1512
        %4404 = vmatpush2.msra.mxu0 %v1511
        %4405 = vmatprep.subr.mxu0 %v1508
        %4406 = vmatpush2.msra.mxu0 %v1507
        %4407 = vmatprep.subr.mxu0 %v1504
        %4408 = vmatpush2.msra.mxu0 %v1503
        %4409 = vmatprep.subr.mxu0 %v1500
        %4410 = vmatpush2.msra.mxu0 %v1499
        %4411 = vmatprep.subr.mxu0 %v1496
        %4412 = vmatpush2.msra.mxu0 %v1495
        %4413 = vmatprep.subr.mxu0 %v1492
        %4414 = vmatpush2.msra.mxu0 %v1491
        %4415 = vmatprep.subr.mxu0 %v1488
        %4416 = vmatpush2.msra.mxu0 %v1487
        %4417 = vmatprep.subr.mxu0 %v1484
        %4418 = vmatpush2.msra.mxu0 %v1483
        %4419 = vmatprep.subr.mxu0 %v1480
        %4420 = vmatpush2.msra.mxu0 %v1479
        %4421 = vmatprep.subr.mxu0 %v1476
        %4422 = vmatpush2.msra.mxu0 %v1475
        %4423 = vmatprep.subr.mxu0 %v1472
        %4424 = vmatpush2.msra.mxu0 %v1471
        %4425 = vmatprep.mubr.f32.mxu0 %v3616
        %4426 = vmatmul.mubr.f32.gmra.mxu0 %v3608
        %v4427 = vpop.f32.mrf.mxu0
        %v4428 = vadd.f32 %v4357, %v4427
        %v4429 = vpop.f32.mrf.mxu0
        %v4430 = vadd.f32 %v4359, %v4429
        %4431 = vdwg.mxu0
        %4432 = vmatprep.subr.mxu0 %v1596
        %4433 = vmatpush1.msra.mxu0 %v1595
        %4434 = vmatprep.subr.mxu0 %v1592
        %4435 = vmatpush1.msra.mxu0 %v1591
        %4436 = vmatprep.subr.mxu0 %v1588
        %4437 = vmatpush1.msra.mxu0 %v1587
        %4438 = vmatprep.subr.mxu0 %v1584
        %4439 = vmatpush1.msra.mxu0 %v1583
        %4440 = vmatprep.subr.mxu0 %v1580
        %4441 = vmatpush1.msra.mxu0 %v1579
        %4442 = vmatprep.subr.mxu0 %v1576
        %4443 = vmatpush1.msra.mxu0 %v1575
        %4444 = vmatprep.subr.mxu0 %v1572
        %4445 = vmatpush1.msra.mxu0 %v1571
        %4446 = vmatprep.subr.mxu0 %v1568
        %4447 = vmatpush1.msra.mxu0 %v1567
        %4448 = vmatprep.subr.mxu0 %v1564
        %4449 = vmatpush1.msra.mxu0 %v1563
        %4450 = vmatprep.subr.mxu0 %v1560
        %4451 = vmatpush1.msra.mxu0 %v1559
        %4452 = vmatprep.subr.mxu0 %v1556
        %4453 = vmatpush1.msra.mxu0 %v1555
        %4454 = vmatprep.subr.mxu0 %v1552
        %4455 = vmatpush1.msra.mxu0 %v1551
        %4456 = vmatprep.subr.mxu0 %v1548
        %4457 = vmatpush1.msra.mxu0 %v1547
        %4458 = vmatprep.subr.mxu0 %v1544
        %4459 = vmatpush1.msra.mxu0 %v1543
        %4460 = vmatprep.subr.mxu0 %v1540
        %4461 = vmatpush1.msra.mxu0 %v1539
        %4462 = vmatprep.subr.mxu0 %v1536
        %4463 = vmatpush1.msra.mxu0 %v1535
        %4464 = vmatprep.subr.mxu0 %v1660
        %4465 = vmatpush2.msra.mxu0 %v1659
        %4466 = vmatprep.subr.mxu0 %v1656
        %4467 = vmatpush2.msra.mxu0 %v1655
        %4468 = vmatprep.subr.mxu0 %v1652
        %4469 = vmatpush2.msra.mxu0 %v1651
        %4470 = vmatprep.subr.mxu0 %v1648
        %4471 = vmatpush2.msra.mxu0 %v1647
        %4472 = vmatprep.subr.mxu0 %v1644
        %4473 = vmatpush2.msra.mxu0 %v1643
        %4474 = vmatprep.subr.mxu0 %v1640
        %4475 = vmatpush2.msra.mxu0 %v1639
        %4476 = vmatprep.subr.mxu0 %v1636
        %4477 = vmatpush2.msra.mxu0 %v1635
        %4478 = vmatprep.subr.mxu0 %v1632
        %4479 = vmatpush2.msra.mxu0 %v1631
        %4480 = vmatprep.subr.mxu0 %v1628
        %4481 = vmatpush2.msra.mxu0 %v1627
        %4482 = vmatprep.subr.mxu0 %v1624
        %4483 = vmatpush2.msra.mxu0 %v1623
        %4484 = vmatprep.subr.mxu0 %v1620
        %4485 = vmatpush2.msra.mxu0 %v1619
        %4486 = vmatprep.subr.mxu0 %v1616
        %4487 = vmatpush2.msra.mxu0 %v1615
        %4488 = vmatprep.subr.mxu0 %v1612
        %4489 = vmatpush2.msra.mxu0 %v1611
        %4490 = vmatprep.subr.mxu0 %v1608
        %4491 = vmatpush2.msra.mxu0 %v1607
        %4492 = vmatprep.subr.mxu0 %v1604
        %4493 = vmatpush2.msra.mxu0 %v1603
        %4494 = vmatprep.subr.mxu0 %v1600
        %4495 = vmatpush2.msra.mxu0 %v1599
        %4496 = vmatprep.mubr.f32.mxu0 %v3617
        %4497 = vmatmul.mubr.f32.gmra.mxu0 %v3615
        %v4498 = vpop.f32.mrf.mxu0
        %v4499 = vadd.f32 %v4428, %v4498
        %v4500 = vpop.f32.mrf.mxu0
        %v4501 = vadd.f32 %v4430, %v4500
        %4502 = vdwg.mxu0
        %4503 = vmatprep.subr.mxu0 %v1724
        %4504 = vmatpush1.msra.mxu0 %v1723
        %4505 = vmatprep.subr.mxu0 %v1720
        %4506 = vmatpush1.msra.mxu0 %v1719
        %4507 = vmatprep.subr.mxu0 %v1716
        %4508 = vmatpush1.msra.mxu0 %v1715
        %4509 = vmatprep.subr.mxu0 %v1712
        %4510 = vmatpush1.msra.mxu0 %v1711
        %4511 = vmatprep.subr.mxu0 %v1708
        %4512 = vmatpush1.msra.mxu0 %v1707
        %4513 = vmatprep.subr.mxu0 %v1704
        %4514 = vmatpush1.msra.mxu0 %v1703
        %4515 = vmatprep.subr.mxu0 %v1700
        %4516 = vmatpush1.msra.mxu0 %v1699
        %4517 = vmatprep.subr.mxu0 %v1696
        %4518 = vmatpush1.msra.mxu0 %v1695
        %4519 = vmatprep.subr.mxu0 %v1692
        %4520 = vmatpush1.msra.mxu0 %v1691
        %4521 = vmatprep.subr.mxu0 %v1688
        %4522 = vmatpush1.msra.mxu0 %v1687
        %4523 = vmatprep.subr.mxu0 %v1684
        %4524 = vmatpush1.msra.mxu0 %v1683
        %4525 = vmatprep.subr.mxu0 %v1680
        %4526 = vmatpush1.msra.mxu0 %v1679
        %4527 = vmatprep.subr.mxu0 %v1676
        %4528 = vmatpush1.msra.mxu0 %v1675
        %4529 = vmatprep.subr.mxu0 %v1672
        %4530 = vmatpush1.msra.mxu0 %v1671
        %4531 = vmatprep.subr.mxu0 %v1668
        %4532 = vmatpush1.msra.mxu0 %v1667
        %4533 = vmatprep.subr.mxu0 %v1664
        %4534 = vmatpush1.msra.mxu0 %v1663
        %4535 = vmatprep.subr.mxu0 %v1788
        %4536 = vmatpush2.msra.mxu0 %v1787
        %4537 = vmatprep.subr.mxu0 %v1784
        %4538 = vmatpush2.msra.mxu0 %v1783
        %4539 = vmatprep.subr.mxu0 %v1780
        %4540 = vmatpush2.msra.mxu0 %v1779
        %4541 = vmatprep.subr.mxu0 %v1776
        %4542 = vmatpush2.msra.mxu0 %v1775
        %4543 = vmatprep.subr.mxu0 %v1772
        %4544 = vmatpush2.msra.mxu0 %v1771
        %4545 = vmatprep.subr.mxu0 %v1768
        %4546 = vmatpush2.msra.mxu0 %v1767
        %4547 = vmatprep.subr.mxu0 %v1764
        %4548 = vmatpush2.msra.mxu0 %v1763
        %4549 = vmatprep.subr.mxu0 %v1760
        %4550 = vmatpush2.msra.mxu0 %v1759
        %4551 = vmatprep.subr.mxu0 %v1756
        %4552 = vmatpush2.msra.mxu0 %v1755
        %4553 = vmatprep.subr.mxu0 %v1752
        %4554 = vmatpush2.msra.mxu0 %v1751
        %4555 = vmatprep.subr.mxu0 %v1748
        %4556 = vmatpush2.msra.mxu0 %v1747
        %4557 = vmatprep.subr.mxu0 %v1744
        %4558 = vmatpush2.msra.mxu0 %v1743
        %4559 = vmatprep.subr.mxu0 %v1740
        %4560 = vmatpush2.msra.mxu0 %v1739
        %4561 = vmatprep.subr.mxu0 %v1736
        %4562 = vmatpush2.msra.mxu0 %v1735
        %4563 = vmatprep.subr.mxu0 %v1732
        %4564 = vmatpush2.msra.mxu0 %v1731
        %4565 = vmatprep.subr.mxu0 %v1728
        %4566 = vmatpush2.msra.mxu0 %v1727
        %4567 = vmatprep.mubr.f32.mxu0 %v3633
        %4568 = vmatmul.mubr.f32.gmra.mxu0 %v3625
        %v4569 = vpop.f32.mrf.mxu0
        %v4570 = vadd.f32 %v4499, %v4569
        %v4571 = vpop.f32.mrf.mxu0
        %v4572 = vadd.f32 %v4501, %v4571
        %4573 = vdwg.mxu0
        %4574 = vmatprep.subr.mxu0 %v1852
        %4575 = vmatpush1.msra.mxu0 %v1851
        %4576 = vmatprep.subr.mxu0 %v1848
        %4577 = vmatpush1.msra.mxu0 %v1847
        %4578 = vmatprep.subr.mxu0 %v1844
        %4579 = vmatpush1.msra.mxu0 %v1843
        %4580 = vmatprep.subr.mxu0 %v1840
        %4581 = vmatpush1.msra.mxu0 %v1839
        %4582 = vmatprep.subr.mxu0 %v1836
        %4583 = vmatpush1.msra.mxu0 %v1835
        %4584 = vmatprep.subr.mxu0 %v1832
        %4585 = vmatpush1.msra.mxu0 %v1831
        %4586 = vmatprep.subr.mxu0 %v1828
        %4587 = vmatpush1.msra.mxu0 %v1827
        %4588 = vmatprep.subr.mxu0 %v1824
        %4589 = vmatpush1.msra.mxu0 %v1823
        %4590 = vmatprep.subr.mxu0 %v1820
        %4591 = vmatpush1.msra.mxu0 %v1819
        %4592 = vmatprep.subr.mxu0 %v1816
        %4593 = vmatpush1.msra.mxu0 %v1815
        %4594 = vmatprep.subr.mxu0 %v1812
        %4595 = vmatpush1.msra.mxu0 %v1811
        %4596 = vmatprep.subr.mxu0 %v1808
        %4597 = vmatpush1.msra.mxu0 %v1807
        %4598 = vmatprep.subr.mxu0 %v1804
        %4599 = vmatpush1.msra.mxu0 %v1803
        %4600 = vmatprep.subr.mxu0 %v1800
        %4601 = vmatpush1.msra.mxu0 %v1799
        %4602 = vmatprep.subr.mxu0 %v1796
        %4603 = vmatpush1.msra.mxu0 %v1795
        %4604 = vmatprep.subr.mxu0 %v1792
        %4605 = vmatpush1.msra.mxu0 %v1791
        %4606 = vmatprep.subr.mxu0 %v1916
        %4607 = vmatpush2.msra.mxu0 %v1915
        %4608 = vmatprep.subr.mxu0 %v1912
        %4609 = vmatpush2.msra.mxu0 %v1911
        %4610 = vmatprep.subr.mxu0 %v1908
        %4611 = vmatpush2.msra.mxu0 %v1907
        %4612 = vmatprep.subr.mxu0 %v1904
        %4613 = vmatpush2.msra.mxu0 %v1903
        %4614 = vmatprep.subr.mxu0 %v1900
        %4615 = vmatpush2.msra.mxu0 %v1899
        %4616 = vmatprep.subr.mxu0 %v1896
        %4617 = vmatpush2.msra.mxu0 %v1895
        %4618 = vmatprep.subr.mxu0 %v1892
        %4619 = vmatpush2.msra.mxu0 %v1891
        %4620 = vmatprep.subr.mxu0 %v1888
        %4621 = vmatpush2.msra.mxu0 %v1887
        %4622 = vmatprep.subr.mxu0 %v1884
        %4623 = vmatpush2.msra.mxu0 %v1883
        %4624 = vmatprep.subr.mxu0 %v1880
        %4625 = vmatpush2.msra.mxu0 %v1879
        %4626 = vmatprep.subr.mxu0 %v1876
        %4627 = vmatpush2.msra.mxu0 %v1875
        %4628 = vmatprep.subr.mxu0 %v1872
        %4629 = vmatpush2.msra.mxu0 %v1871
        %4630 = vmatprep.subr.mxu0 %v1868
        %4631 = vmatpush2.msra.mxu0 %v1867
        %4632 = vmatprep.subr.mxu0 %v1864
        %4633 = vmatpush2.msra.mxu0 %v1863
        %4634 = vmatprep.subr.mxu0 %v1860
        %4635 = vmatpush2.msra.mxu0 %v1859
        %4636 = vmatprep.subr.mxu0 %v1856
        %4637 = vmatpush2.msra.mxu0 %v1855
        %4638 = vmatprep.mubr.f32.mxu0 %v3634
        %4639 = vmatmul.mubr.f32.gmra.mxu0 %v3632
        %v4640 = vpop.f32.mrf.mxu0
        %v4641 = vadd.f32 %v4570, %v4640
        %v4642 = vpop.f32.mrf.mxu0
        %v4643 = vadd.f32 %v4572, %v4642
        %4644 = vdwg.mxu0
        %4645 = vmatprep.subr.mxu0 %v1980
        %4646 = vmatpush1.msra.mxu0 %v1979
        %4647 = vmatprep.subr.mxu0 %v1976
        %4648 = vmatpush1.msra.mxu0 %v1975
        %4649 = vmatprep.subr.mxu0 %v1972
        %4650 = vmatpush1.msra.mxu0 %v1971
        %4651 = vmatprep.subr.mxu0 %v1968
        %4652 = vmatpush1.msra.mxu0 %v1967
        %4653 = vmatprep.subr.mxu0 %v1964
        %4654 = vmatpush1.msra.mxu0 %v1963
        %4655 = vmatprep.subr.mxu0 %v1960
        %4656 = vmatpush1.msra.mxu0 %v1959
        %4657 = vmatprep.subr.mxu0 %v1956
        %4658 = vmatpush1.msra.mxu0 %v1955
        %4659 = vmatprep.subr.mxu0 %v1952
        %4660 = vmatpush1.msra.mxu0 %v1951
        %4661 = vmatprep.subr.mxu0 %v1948
        %4662 = vmatpush1.msra.mxu0 %v1947
        %4663 = vmatprep.subr.mxu0 %v1944
        %4664 = vmatpush1.msra.mxu0 %v1943
        %4665 = vmatprep.subr.mxu0 %v1940
        %4666 = vmatpush1.msra.mxu0 %v1939
        %4667 = vmatprep.subr.mxu0 %v1936
        %4668 = vmatpush1.msra.mxu0 %v1935
        %4669 = vmatprep.subr.mxu0 %v1932
        %4670 = vmatpush1.msra.mxu0 %v1931
        %4671 = vmatprep.subr.mxu0 %v1928
        %4672 = vmatpush1.msra.mxu0 %v1927
        %4673 = vmatprep.subr.mxu0 %v1924
        %4674 = vmatpush1.msra.mxu0 %v1923
        %4675 = vmatprep.subr.mxu0 %v1920
        %4676 = vmatpush1.msra.mxu0 %v1919
        %4677 = vmatprep.subr.mxu0 %v2044
        %4678 = vmatpush2.msra.mxu0 %v2043
        %4679 = vmatprep.subr.mxu0 %v2040
        %4680 = vmatpush2.msra.mxu0 %v2039
        %4681 = vmatprep.subr.mxu0 %v2036
        %4682 = vmatpush2.msra.mxu0 %v2035
        %4683 = vmatprep.subr.mxu0 %v2032
        %4684 = vmatpush2.msra.mxu0 %v2031
        %4685 = vmatprep.subr.mxu0 %v2028
        %4686 = vmatpush2.msra.mxu0 %v2027
        %4687 = vmatprep.subr.mxu0 %v2024
        %4688 = vmatpush2.msra.mxu0 %v2023
        %4689 = vmatprep.subr.mxu0 %v2020
        %4690 = vmatpush2.msra.mxu0 %v2019
        %4691 = vmatprep.subr.mxu0 %v2016
        %4692 = vmatpush2.msra.mxu0 %v2015
        %4693 = vmatprep.subr.mxu0 %v2012
        %4694 = vmatpush2.msra.mxu0 %v2011
        %4695 = vmatprep.subr.mxu0 %v2008
        %4696 = vmatpush2.msra.mxu0 %v2007
        %4697 = vmatprep.subr.mxu0 %v2004
        %4698 = vmatpush2.msra.mxu0 %v2003
        %4699 = vmatprep.subr.mxu0 %v2000
        %4700 = vmatpush2.msra.mxu0 %v1999
        %4701 = vmatprep.subr.mxu0 %v1996
        %4702 = vmatpush2.msra.mxu0 %v1995
        %4703 = vmatprep.subr.mxu0 %v1992
        %4704 = vmatpush2.msra.mxu0 %v1991
        %4705 = vmatprep.subr.mxu0 %v1988
        %4706 = vmatpush2.msra.mxu0 %v1987
        %4707 = vmatprep.subr.mxu0 %v1984
        %4708 = vmatpush2.msra.mxu0 %v1983
        %4709 = vmatprep.mubr.f32.mxu0 %v3650
        %4710 = vmatmul.mubr.f32.gmra.mxu0 %v3642
        %v4711 = vpop.f32.mrf.mxu0
        %v4712 = vadd.f32 %v4641, %v4711
        %v4713 = vpop.f32.mrf.mxu0
        %v4714 = vadd.f32 %v4643, %v4713
        %4715 = vdwg.mxu0
        %4716 = vmatprep.subr.mxu0 %v2108
        %4717 = vmatpush1.msra.mxu0 %v2107
        %4718 = vmatprep.subr.mxu0 %v2104
        %4719 = vmatpush1.msra.mxu0 %v2103
        %4720 = vmatprep.subr.mxu0 %v2100
        %4721 = vmatpush1.msra.mxu0 %v2099
        %4722 = vmatprep.subr.mxu0 %v2096
        %4723 = vmatpush1.msra.mxu0 %v2095
        %4724 = vmatprep.subr.mxu0 %v2092
        %4725 = vmatpush1.msra.mxu0 %v2091
        %4726 = vmatprep.subr.mxu0 %v2088
        %4727 = vmatpush1.msra.mxu0 %v2087
        %4728 = vmatprep.subr.mxu0 %v2084
        %4729 = vmatpush1.msra.mxu0 %v2083
        %4730 = vmatprep.subr.mxu0 %v2080
        %4731 = vmatpush1.msra.mxu0 %v2079
        %4732 = vmatprep.subr.mxu0 %v2076
        %4733 = vmatpush1.msra.mxu0 %v2075
        %4734 = vmatprep.subr.mxu0 %v2072
        %4735 = vmatpush1.msra.mxu0 %v2071
        %4736 = vmatprep.subr.mxu0 %v2068
        %4737 = vmatpush1.msra.mxu0 %v2067
        %4738 = vmatprep.subr.mxu0 %v2064
        %4739 = vmatpush1.msra.mxu0 %v2063
        %4740 = vmatprep.subr.mxu0 %v2060
        %4741 = vmatpush1.msra.mxu0 %v2059
        %4742 = vmatprep.subr.mxu0 %v2056
        %4743 = vmatpush1.msra.mxu0 %v2055
        %4744 = vmatprep.subr.mxu0 %v2052
        %4745 = vmatpush1.msra.mxu0 %v2051
        %4746 = vmatprep.subr.mxu0 %v2048
        %4747 = vmatpush1.msra.mxu0 %v2047
        %4748 = vmatprep.subr.mxu0 %v2172
        %4749 = vmatpush2.msra.mxu0 %v2171
        %4750 = vmatprep.subr.mxu0 %v2168
        %4751 = vmatpush2.msra.mxu0 %v2167
        %4752 = vmatprep.subr.mxu0 %v2164
        %4753 = vmatpush2.msra.mxu0 %v2163
        %4754 = vmatprep.subr.mxu0 %v2160
        %4755 = vmatpush2.msra.mxu0 %v2159
        %4756 = vmatprep.subr.mxu0 %v2156
        %4757 = vmatpush2.msra.mxu0 %v2155
        %4758 = vmatprep.subr.mxu0 %v2152
        %4759 = vmatpush2.msra.mxu0 %v2151
        %4760 = vmatprep.subr.mxu0 %v2148
        %4761 = vmatpush2.msra.mxu0 %v2147
        %4762 = vmatprep.subr.mxu0 %v2144
        %4763 = vmatpush2.msra.mxu0 %v2143
        %4764 = vmatprep.subr.mxu0 %v2140
        %4765 = vmatpush2.msra.mxu0 %v2139
        %4766 = vmatprep.subr.mxu0 %v2136
        %4767 = vmatpush2.msra.mxu0 %v2135
        %4768 = vmatprep.subr.mxu0 %v2132
        %4769 = vmatpush2.msra.mxu0 %v2131
        %4770 = vmatprep.subr.mxu0 %v2128
        %4771 = vmatpush2.msra.mxu0 %v2127
        %4772 = vmatprep.subr.mxu0 %v2124
        %4773 = vmatpush2.msra.mxu0 %v2123
        %4774 = vmatprep.subr.mxu0 %v2120
        %4775 = vmatpush2.msra.mxu0 %v2119
        %4776 = vmatprep.subr.mxu0 %v2116
        %4777 = vmatpush2.msra.mxu0 %v2115
        %4778 = vmatprep.subr.mxu0 %v2112
        %4779 = vmatpush2.msra.mxu0 %v2111
        %4780 = vmatprep.mubr.f32.mxu0 %v3651
        %4781 = vmatmul.mubr.f32.gmra.mxu0 %v3649
        %v4782 = vpop.f32.mrf.mxu0
        %v4783 = vadd.f32 %v4712, %v4782
        %v4784 = vpop.f32.mrf.mxu0
        %v4785 = vadd.f32 %v4714, %v4784
        %4786 = vdwg.mxu0
        %4787 = vmatprep.subr.mxu0 %v2236
        %4788 = vmatpush1.msra.mxu0 %v2235
        %4789 = vmatprep.subr.mxu0 %v2232
        %4790 = vmatpush1.msra.mxu0 %v2231
        %4791 = vmatprep.subr.mxu0 %v2228
        %4792 = vmatpush1.msra.mxu0 %v2227
        %4793 = vmatprep.subr.mxu0 %v2224
        %4794 = vmatpush1.msra.mxu0 %v2223
        %4795 = vmatprep.subr.mxu0 %v2220
        %4796 = vmatpush1.msra.mxu0 %v2219
        %4797 = vmatprep.subr.mxu0 %v2216
        %4798 = vmatpush1.msra.mxu0 %v2215
        %4799 = vmatprep.subr.mxu0 %v2212
        %4800 = vmatpush1.msra.mxu0 %v2211
        %4801 = vmatprep.subr.mxu0 %v2208
        %4802 = vmatpush1.msra.mxu0 %v2207
        %4803 = vmatprep.subr.mxu0 %v2204
        %4804 = vmatpush1.msra.mxu0 %v2203
        %4805 = vmatprep.subr.mxu0 %v2200
        %4806 = vmatpush1.msra.mxu0 %v2199
        %4807 = vmatprep.subr.mxu0 %v2196
        %4808 = vmatpush1.msra.mxu0 %v2195
        %4809 = vmatprep.subr.mxu0 %v2192
        %4810 = vmatpush1.msra.mxu0 %v2191
        %4811 = vmatprep.subr.mxu0 %v2188
        %4812 = vmatpush1.msra.mxu0 %v2187
        %4813 = vmatprep.subr.mxu0 %v2184
        %4814 = vmatpush1.msra.mxu0 %v2183
        %4815 = vmatprep.subr.mxu0 %v2180
        %4816 = vmatpush1.msra.mxu0 %v2179
        %4817 = vmatprep.subr.mxu0 %v2176
        %4818 = vmatpush1.msra.mxu0 %v2175
        %4819 = vmatprep.subr.mxu0 %v2300
        %4820 = vmatpush2.msra.mxu0 %v2299
        %4821 = vmatprep.subr.mxu0 %v2296
        %4822 = vmatpush2.msra.mxu0 %v2295
        %4823 = vmatprep.subr.mxu0 %v2292
        %4824 = vmatpush2.msra.mxu0 %v2291
        %4825 = vmatprep.subr.mxu0 %v2288
        %4826 = vmatpush2.msra.mxu0 %v2287
        %4827 = vmatprep.subr.mxu0 %v2284
        %4828 = vmatpush2.msra.mxu0 %v2283
        %4829 = vmatprep.subr.mxu0 %v2280
        %4830 = vmatpush2.msra.mxu0 %v2279
        %4831 = vmatprep.subr.mxu0 %v2276
        %4832 = vmatpush2.msra.mxu0 %v2275
        %4833 = vmatprep.subr.mxu0 %v2272
        %4834 = vmatpush2.msra.mxu0 %v2271
        %4835 = vmatprep.subr.mxu0 %v2268
        %4836 = vmatpush2.msra.mxu0 %v2267
        %4837 = vmatprep.subr.mxu0 %v2264
        %4838 = vmatpush2.msra.mxu0 %v2263
        %4839 = vmatprep.subr.mxu0 %v2260
        %4840 = vmatpush2.msra.mxu0 %v2259
        %4841 = vmatprep.subr.mxu0 %v2256
        %4842 = vmatpush2.msra.mxu0 %v2255
        %4843 = vmatprep.subr.mxu0 %v2252
        %4844 = vmatpush2.msra.mxu0 %v2251
        %4845 = vmatprep.subr.mxu0 %v2248
        %4846 = vmatpush2.msra.mxu0 %v2247
        %4847 = vmatprep.subr.mxu0 %v2244
        %4848 = vmatpush2.msra.mxu0 %v2243
        %4849 = vmatprep.subr.mxu0 %v2240
        %4850 = vmatpush2.msra.mxu0 %v2239
        %4851 = vmatprep.mubr.f32.mxu0 %v3667
        %4852 = vmatmul.mubr.f32.gmra.mxu0 %v3659
        %v4853 = vpop.f32.mrf.mxu0
        %v4854 = vadd.f32 %v4783, %v4853
        %v4855 = vpop.f32.mrf.mxu0
        %v4856 = vadd.f32 %v4785, %v4855
        %4857 = vdwg.mxu0
        %4858 = vmatprep.subr.mxu0 %v2364
        %4859 = vmatpush1.msra.mxu0 %v2363
        %4860 = vmatprep.subr.mxu0 %v2360
        %4861 = vmatpush1.msra.mxu0 %v2359
        %4862 = vmatprep.subr.mxu0 %v2356
        %4863 = vmatpush1.msra.mxu0 %v2355
        %4864 = vmatprep.subr.mxu0 %v2352
        %4865 = vmatpush1.msra.mxu0 %v2351
        %4866 = vmatprep.subr.mxu0 %v2348
        %4867 = vmatpush1.msra.mxu0 %v2347
        %4868 = vmatprep.subr.mxu0 %v2344
        %4869 = vmatpush1.msra.mxu0 %v2343
        %4870 = vmatprep.subr.mxu0 %v2340
        %4871 = vmatpush1.msra.mxu0 %v2339
        %4872 = vmatprep.subr.mxu0 %v2336
        %4873 = vmatpush1.msra.mxu0 %v2335
        %4874 = vmatprep.subr.mxu0 %v2332
        %4875 = vmatpush1.msra.mxu0 %v2331
        %4876 = vmatprep.subr.mxu0 %v2328
        %4877 = vmatpush1.msra.mxu0 %v2327
        %4878 = vmatprep.subr.mxu0 %v2324
        %4879 = vmatpush1.msra.mxu0 %v2323
        %4880 = vmatprep.subr.mxu0 %v2320
        %4881 = vmatpush1.msra.mxu0 %v2319
        %4882 = vmatprep.subr.mxu0 %v2316
        %4883 = vmatpush1.msra.mxu0 %v2315
        %4884 = vmatprep.subr.mxu0 %v2312
        %4885 = vmatpush1.msra.mxu0 %v2311
        %4886 = vmatprep.subr.mxu0 %v2308
        %4887 = vmatpush1.msra.mxu0 %v2307
        %4888 = vmatprep.subr.mxu0 %v2304
        %4889 = vmatpush1.msra.mxu0 %v2303
        %4890 = vmatprep.subr.mxu0 %v2428
        %4891 = vmatpush2.msra.mxu0 %v2427
        %4892 = vmatprep.subr.mxu0 %v2424
        %4893 = vmatpush2.msra.mxu0 %v2423
        %4894 = vmatprep.subr.mxu0 %v2420
        %4895 = vmatpush2.msra.mxu0 %v2419
        %4896 = vmatprep.subr.mxu0 %v2416
        %4897 = vmatpush2.msra.mxu0 %v2415
        %4898 = vmatprep.subr.mxu0 %v2412
        %4899 = vmatpush2.msra.mxu0 %v2411
        %4900 = vmatprep.subr.mxu0 %v2408
        %4901 = vmatpush2.msra.mxu0 %v2407
        %4902 = vmatprep.subr.mxu0 %v2404
        %4903 = vmatpush2.msra.mxu0 %v2403
        %4904 = vmatprep.subr.mxu0 %v2400
        %4905 = vmatpush2.msra.mxu0 %v2399
        %4906 = vmatprep.subr.mxu0 %v2396
        %4907 = vmatpush2.msra.mxu0 %v2395
        %4908 = vmatprep.subr.mxu0 %v2392
        %4909 = vmatpush2.msra.mxu0 %v2391
        %4910 = vmatprep.subr.mxu0 %v2388
        %4911 = vmatpush2.msra.mxu0 %v2387
        %4912 = vmatprep.subr.mxu0 %v2384
        %4913 = vmatpush2.msra.mxu0 %v2383
        %4914 = vmatprep.subr.mxu0 %v2380
        %4915 = vmatpush2.msra.mxu0 %v2379
        %4916 = vmatprep.subr.mxu0 %v2376
        %4917 = vmatpush2.msra.mxu0 %v2375
        %4918 = vmatprep.subr.mxu0 %v2372
        %4919 = vmatpush2.msra.mxu0 %v2371
        %4920 = vmatprep.subr.mxu0 %v2368
        %4921 = vmatpush2.msra.mxu0 %v2367
        %4922 = vmatprep.mubr.f32.mxu0 %v3668
        %4923 = vmatmul.mubr.f32.gmra.mxu0 %v3666
        %v4924 = vpop.f32.mrf.mxu0
        %v4925 = vadd.f32 %v4854, %v4924
        %v4926 = vpop.f32.mrf.mxu0
        %v4927 = vadd.f32 %v4856, %v4926
        %4928 = vdwg.mxu0
        %4929 = vmatprep.subr.mxu0 %v2492
        %4930 = vmatpush1.msra.mxu0 %v2491
        %4931 = vmatprep.subr.mxu0 %v2488
        %4932 = vmatpush1.msra.mxu0 %v2487
        %4933 = vmatprep.subr.mxu0 %v2484
        %4934 = vmatpush1.msra.mxu0 %v2483
        %4935 = vmatprep.subr.mxu0 %v2480
        %4936 = vmatpush1.msra.mxu0 %v2479
        %4937 = vmatprep.subr.mxu0 %v2476
        %4938 = vmatpush1.msra.mxu0 %v2475
        %4939 = vmatprep.subr.mxu0 %v2472
        %4940 = vmatpush1.msra.mxu0 %v2471
        %4941 = vmatprep.subr.mxu0 %v2468
        %4942 = vmatpush1.msra.mxu0 %v2467
        %4943 = vmatprep.subr.mxu0 %v2464
        %4944 = vmatpush1.msra.mxu0 %v2463
        %4945 = vmatprep.subr.mxu0 %v2460
        %4946 = vmatpush1.msra.mxu0 %v2459
        %4947 = vmatprep.subr.mxu0 %v2456
        %4948 = vmatpush1.msra.mxu0 %v2455
        %4949 = vmatprep.subr.mxu0 %v2452
        %4950 = vmatpush1.msra.mxu0 %v2451
        %4951 = vmatprep.subr.mxu0 %v2448
        %4952 = vmatpush1.msra.mxu0 %v2447
        %4953 = vmatprep.subr.mxu0 %v2444
        %4954 = vmatpush1.msra.mxu0 %v2443
        %4955 = vmatprep.subr.mxu0 %v2440
        %4956 = vmatpush1.msra.mxu0 %v2439
        %4957 = vmatprep.subr.mxu0 %v2436
        %4958 = vmatpush1.msra.mxu0 %v2435
        %4959 = vmatprep.subr.mxu0 %v2432
        %4960 = vmatpush1.msra.mxu0 %v2431
        %4961 = vmatprep.subr.mxu0 %v2556
        %4962 = vmatpush2.msra.mxu0 %v2555
        %4963 = vmatprep.subr.mxu0 %v2552
        %4964 = vmatpush2.msra.mxu0 %v2551
        %4965 = vmatprep.subr.mxu0 %v2548
        %4966 = vmatpush2.msra.mxu0 %v2547
        %4967 = vmatprep.subr.mxu0 %v2544
        %4968 = vmatpush2.msra.mxu0 %v2543
        %4969 = vmatprep.subr.mxu0 %v2540
        %4970 = vmatpush2.msra.mxu0 %v2539
        %4971 = vmatprep.subr.mxu0 %v2536
        %4972 = vmatpush2.msra.mxu0 %v2535
        %4973 = vmatprep.subr.mxu0 %v2532
        %4974 = vmatpush2.msra.mxu0 %v2531
        %4975 = vmatprep.subr.mxu0 %v2528
        %4976 = vmatpush2.msra.mxu0 %v2527
        %4977 = vmatprep.subr.mxu0 %v2524
        %4978 = vmatpush2.msra.mxu0 %v2523
        %4979 = vmatprep.subr.mxu0 %v2520
        %4980 = vmatpush2.msra.mxu0 %v2519
        %4981 = vmatprep.subr.mxu0 %v2516
        %4982 = vmatpush2.msra.mxu0 %v2515
        %4983 = vmatprep.subr.mxu0 %v2512
        %4984 = vmatpush2.msra.mxu0 %v2511
        %4985 = vmatprep.subr.mxu0 %v2508
        %4986 = vmatpush2.msra.mxu0 %v2507
        %4987 = vmatprep.subr.mxu0 %v2504
        %4988 = vmatpush2.msra.mxu0 %v2503
        %4989 = vmatprep.subr.mxu0 %v2500
        %4990 = vmatpush2.msra.mxu0 %v2499
        %4991 = vmatprep.subr.mxu0 %v2496
        %4992 = vmatpush2.msra.mxu0 %v2495
        %4993 = vmatprep.mubr.f32.mxu0 %v3684
        %4994 = vmatmul.mubr.f32.gmra.mxu0 %v3676
        %v4995 = vpop.f32.mrf.mxu0
        %v4996 = vadd.f32 %v4925, %v4995
        %v4997 = vpop.f32.mrf.mxu0
        %v4998 = vadd.f32 %v4927, %v4997
        %4999 = vdwg.mxu0
        %5000 = vmatprep.subr.mxu0 %v2620
        %5001 = vmatpush1.msra.mxu0 %v2619
        %5002 = vmatprep.subr.mxu0 %v2616
        %5003 = vmatpush1.msra.mxu0 %v2615
        %5004 = vmatprep.subr.mxu0 %v2612
        %5005 = vmatpush1.msra.mxu0 %v2611
        %5006 = vmatprep.subr.mxu0 %v2608
        %5007 = vmatpush1.msra.mxu0 %v2607
        %5008 = vmatprep.subr.mxu0 %v2604
        %5009 = vmatpush1.msra.mxu0 %v2603
        %5010 = vmatprep.subr.mxu0 %v2600
        %5011 = vmatpush1.msra.mxu0 %v2599
        %5012 = vmatprep.subr.mxu0 %v2596
        %5013 = vmatpush1.msra.mxu0 %v2595
        %5014 = vmatprep.subr.mxu0 %v2592
        %5015 = vmatpush1.msra.mxu0 %v2591
        %5016 = vmatprep.subr.mxu0 %v2588
        %5017 = vmatpush1.msra.mxu0 %v2587
        %5018 = vmatprep.subr.mxu0 %v2584
        %5019 = vmatpush1.msra.mxu0 %v2583
        %5020 = vmatprep.subr.mxu0 %v2580
        %5021 = vmatpush1.msra.mxu0 %v2579
        %5022 = vmatprep.subr.mxu0 %v2576
        %5023 = vmatpush1.msra.mxu0 %v2575
        %5024 = vmatprep.subr.mxu0 %v2572
        %5025 = vmatpush1.msra.mxu0 %v2571
        %5026 = vmatprep.subr.mxu0 %v2568
        %5027 = vmatpush1.msra.mxu0 %v2567
        %5028 = vmatprep.subr.mxu0 %v2564
        %5029 = vmatpush1.msra.mxu0 %v2563
        %5030 = vmatprep.subr.mxu0 %v2560
        %5031 = vmatpush1.msra.mxu0 %v2559
        %5032 = vmatprep.subr.mxu0 %v2684
        %5033 = vmatpush2.msra.mxu0 %v2683
        %5034 = vmatprep.subr.mxu0 %v2680
        %5035 = vmatpush2.msra.mxu0 %v2679
        %5036 = vmatprep.subr.mxu0 %v2676
        %5037 = vmatpush2.msra.mxu0 %v2675
        %5038 = vmatprep.subr.mxu0 %v2672
        %5039 = vmatpush2.msra.mxu0 %v2671
        %5040 = vmatprep.subr.mxu0 %v2668
        %5041 = vmatpush2.msra.mxu0 %v2667
        %5042 = vmatprep.subr.mxu0 %v2664
        %5043 = vmatpush2.msra.mxu0 %v2663
        %5044 = vmatprep.subr.mxu0 %v2660
        %5045 = vmatpush2.msra.mxu0 %v2659
        %5046 = vmatprep.subr.mxu0 %v2656
        %5047 = vmatpush2.msra.mxu0 %v2655
        %5048 = vmatprep.subr.mxu0 %v2652
        %5049 = vmatpush2.msra.mxu0 %v2651
        %5050 = vmatprep.subr.mxu0 %v2648
        %5051 = vmatpush2.msra.mxu0 %v2647
        %5052 = vmatprep.subr.mxu0 %v2644
        %5053 = vmatpush2.msra.mxu0 %v2643
        %5054 = vmatprep.subr.mxu0 %v2640
        %5055 = vmatpush2.msra.mxu0 %v2639
        %5056 = vmatprep.subr.mxu0 %v2636
        %5057 = vmatpush2.msra.mxu0 %v2635
        %5058 = vmatprep.subr.mxu0 %v2632
        %5059 = vmatpush2.msra.mxu0 %v2631
        %5060 = vmatprep.subr.mxu0 %v2628
        %5061 = vmatpush2.msra.mxu0 %v2627
        %5062 = vmatprep.subr.mxu0 %v2624
        %5063 = vmatpush2.msra.mxu0 %v2623
        %5064 = vmatprep.mubr.f32.mxu0 %v3685
        %5065 = vmatmul.mubr.f32.gmra.mxu0 %v3683
        %v5066 = vpop.f32.mrf.mxu0
        %v5067 = vadd.f32 %v4996, %v5066
        %v5068 = vpop.f32.mrf.mxu0
        %v5069 = vadd.f32 %v4998, %v5068
        %5070 = vdwg.mxu0
        %5071 = vmatprep.subr.mxu0 %v2748
        %5072 = vmatpush1.msra.mxu0 %v2747
        %5073 = vmatprep.subr.mxu0 %v2744
        %5074 = vmatpush1.msra.mxu0 %v2743
        %5075 = vmatprep.subr.mxu0 %v2740
        %5076 = vmatpush1.msra.mxu0 %v2739
        %5077 = vmatprep.subr.mxu0 %v2736
        %5078 = vmatpush1.msra.mxu0 %v2735
        %5079 = vmatprep.subr.mxu0 %v2732
        %5080 = vmatpush1.msra.mxu0 %v2731
        %5081 = vmatprep.subr.mxu0 %v2728
        %5082 = vmatpush1.msra.mxu0 %v2727
        %5083 = vmatprep.subr.mxu0 %v2724
        %5084 = vmatpush1.msra.mxu0 %v2723
        %5085 = vmatprep.subr.mxu0 %v2720
        %5086 = vmatpush1.msra.mxu0 %v2719
        %5087 = vmatprep.subr.mxu0 %v2716
        %5088 = vmatpush1.msra.mxu0 %v2715
        %5089 = vmatprep.subr.mxu0 %v2712
        %5090 = vmatpush1.msra.mxu0 %v2711
        %5091 = vmatprep.subr.mxu0 %v2708
        %5092 = vmatpush1.msra.mxu0 %v2707
        %5093 = vmatprep.subr.mxu0 %v2704
        %5094 = vmatpush1.msra.mxu0 %v2703
        %5095 = vmatprep.subr.mxu0 %v2700
        %5096 = vmatpush1.msra.mxu0 %v2699
        %5097 = vmatprep.subr.mxu0 %v2696
        %5098 = vmatpush1.msra.mxu0 %v2695
        %5099 = vmatprep.subr.mxu0 %v2692
        %5100 = vmatpush1.msra.mxu0 %v2691
        %5101 = vmatprep.subr.mxu0 %v2688
        %5102 = vmatpush1.msra.mxu0 %v2687
        %5103 = vmatprep.subr.mxu0 %v2812
        %5104 = vmatpush2.msra.mxu0 %v2811
        %5105 = vmatprep.subr.mxu0 %v2808
        %5106 = vmatpush2.msra.mxu0 %v2807
        %5107 = vmatprep.subr.mxu0 %v2804
        %5108 = vmatpush2.msra.mxu0 %v2803
        %5109 = vmatprep.subr.mxu0 %v2800
        %5110 = vmatpush2.msra.mxu0 %v2799
        %5111 = vmatprep.subr.mxu0 %v2796
        %5112 = vmatpush2.msra.mxu0 %v2795
        %5113 = vmatprep.subr.mxu0 %v2792
        %5114 = vmatpush2.msra.mxu0 %v2791
        %5115 = vmatprep.subr.mxu0 %v2788
        %5116 = vmatpush2.msra.mxu0 %v2787
        %5117 = vmatprep.subr.mxu0 %v2784
        %5118 = vmatpush2.msra.mxu0 %v2783
        %5119 = vmatprep.subr.mxu0 %v2780
        %5120 = vmatpush2.msra.mxu0 %v2779
        %5121 = vmatprep.subr.mxu0 %v2776
        %5122 = vmatpush2.msra.mxu0 %v2775
        %5123 = vmatprep.subr.mxu0 %v2772
        %5124 = vmatpush2.msra.mxu0 %v2771
        %5125 = vmatprep.subr.mxu0 %v2768
        %5126 = vmatpush2.msra.mxu0 %v2767
        %5127 = vmatprep.subr.mxu0 %v2764
        %5128 = vmatpush2.msra.mxu0 %v2763
        %5129 = vmatprep.subr.mxu0 %v2760
        %5130 = vmatpush2.msra.mxu0 %v2759
        %5131 = vmatprep.subr.mxu0 %v2756
        %5132 = vmatpush2.msra.mxu0 %v2755
        %5133 = vmatprep.subr.mxu0 %v2752
        %5134 = vmatpush2.msra.mxu0 %v2751
        %5135 = vmatprep.mubr.f32.mxu0 %v3701
        %5136 = vmatmul.mubr.f32.gmra.mxu0 %v3693
        %v5137 = vpop.f32.mrf.mxu0
        %v5138 = vadd.f32 %v5067, %v5137
        %v5139 = vpop.f32.mrf.mxu0
        %v5140 = vadd.f32 %v5069, %v5139
        %5141 = vdwg.mxu0
        %5142 = vmatprep.subr.mxu0 %v2876
        %5143 = vmatpush1.msra.mxu0 %v2875
        %5144 = vmatprep.subr.mxu0 %v2872
        %5145 = vmatpush1.msra.mxu0 %v2871
        %5146 = vmatprep.subr.mxu0 %v2868
        %5147 = vmatpush1.msra.mxu0 %v2867
        %5148 = vmatprep.subr.mxu0 %v2864
        %5149 = vmatpush1.msra.mxu0 %v2863
        %5150 = vmatprep.subr.mxu0 %v2860
        %5151 = vmatpush1.msra.mxu0 %v2859
        %5152 = vmatprep.subr.mxu0 %v2856
        %5153 = vmatpush1.msra.mxu0 %v2855
        %5154 = vmatprep.subr.mxu0 %v2852
        %5155 = vmatpush1.msra.mxu0 %v2851
        %5156 = vmatprep.subr.mxu0 %v2848
        %5157 = vmatpush1.msra.mxu0 %v2847
        %5158 = vmatprep.subr.mxu0 %v2844
        %5159 = vmatpush1.msra.mxu0 %v2843
        %5160 = vmatprep.subr.mxu0 %v2840
        %5161 = vmatpush1.msra.mxu0 %v2839
        %5162 = vmatprep.subr.mxu0 %v2836
        %5163 = vmatpush1.msra.mxu0 %v2835
        %5164 = vmatprep.subr.mxu0 %v2832
        %5165 = vmatpush1.msra.mxu0 %v2831
        %5166 = vmatprep.subr.mxu0 %v2828
        %5167 = vmatpush1.msra.mxu0 %v2827
        %5168 = vmatprep.subr.mxu0 %v2824
        %5169 = vmatpush1.msra.mxu0 %v2823
        %5170 = vmatprep.subr.mxu0 %v2820
        %5171 = vmatpush1.msra.mxu0 %v2819
        %5172 = vmatprep.subr.mxu0 %v2816
        %5173 = vmatpush1.msra.mxu0 %v2815
        %5174 = vmatprep.subr.mxu0 %v2940
        %5175 = vmatpush2.msra.mxu0 %v2939
        %5176 = vmatprep.subr.mxu0 %v2936
        %5177 = vmatpush2.msra.mxu0 %v2935
        %5178 = vmatprep.subr.mxu0 %v2932
        %5179 = vmatpush2.msra.mxu0 %v2931
        %5180 = vmatprep.subr.mxu0 %v2928
        %5181 = vmatpush2.msra.mxu0 %v2927
        %5182 = vmatprep.subr.mxu0 %v2924
        %5183 = vmatpush2.msra.mxu0 %v2923
        %5184 = vmatprep.subr.mxu0 %v2920
        %5185 = vmatpush2.msra.mxu0 %v2919
        %5186 = vmatprep.subr.mxu0 %v2916
        %5187 = vmatpush2.msra.mxu0 %v2915
        %5188 = vmatprep.subr.mxu0 %v2912
        %5189 = vmatpush2.msra.mxu0 %v2911
        %5190 = vmatprep.subr.mxu0 %v2908
        %5191 = vmatpush2.msra.mxu0 %v2907
        %5192 = vmatprep.subr.mxu0 %v2904
        %5193 = vmatpush2.msra.mxu0 %v2903
        %5194 = vmatprep.subr.mxu0 %v2900
        %5195 = vmatpush2.msra.mxu0 %v2899
        %5196 = vmatprep.subr.mxu0 %v2896
        %5197 = vmatpush2.msra.mxu0 %v2895
        %5198 = vmatprep.subr.mxu0 %v2892
        %5199 = vmatpush2.msra.mxu0 %v2891
        %5200 = vmatprep.subr.mxu0 %v2888
        %5201 = vmatpush2.msra.mxu0 %v2887
        %5202 = vmatprep.subr.mxu0 %v2884
        %5203 = vmatpush2.msra.mxu0 %v2883
        %5204 = vmatprep.subr.mxu0 %v2880
        %5205 = vmatpush2.msra.mxu0 %v2879
        %5206 = vmatprep.mubr.f32.mxu0 %v3702
        %5207 = vmatmul.mubr.f32.gmra.mxu0 %v3700
        %v5208 = vpop.f32.mrf.mxu0
        %v5209 = vadd.f32 %v5138, %v5208
        %v5210 = vpop.f32.mrf.mxu0
        %v5211 = vadd.f32 %v5140, %v5210
        %5212 = vdwg.mxu0
        %5213 = vmatprep.subr.mxu0 %v3004
        %5214 = vmatpush1.msra.mxu0 %v3003
        %5215 = vmatprep.subr.mxu0 %v3000
        %5216 = vmatpush1.msra.mxu0 %v2999
        %5217 = vmatprep.subr.mxu0 %v2996
        %5218 = vmatpush1.msra.mxu0 %v2995
        %5219 = vmatprep.subr.mxu0 %v2992
        %5220 = vmatpush1.msra.mxu0 %v2991
        %5221 = vmatprep.subr.mxu0 %v2988
        %5222 = vmatpush1.msra.mxu0 %v2987
        %5223 = vmatprep.subr.mxu0 %v2984
        %5224 = vmatpush1.msra.mxu0 %v2983
        %5225 = vmatprep.subr.mxu0 %v2980
        %5226 = vmatpush1.msra.mxu0 %v2979
        %5227 = vmatprep.subr.mxu0 %v2976
        %5228 = vmatpush1.msra.mxu0 %v2975
        %5229 = vmatprep.subr.mxu0 %v2972
        %5230 = vmatpush1.msra.mxu0 %v2971
        %5231 = vmatprep.subr.mxu0 %v2968
        %5232 = vmatpush1.msra.mxu0 %v2967
        %5233 = vmatprep.subr.mxu0 %v2964
        %5234 = vmatpush1.msra.mxu0 %v2963
        %5235 = vmatprep.subr.mxu0 %v2960
        %5236 = vmatpush1.msra.mxu0 %v2959
        %5237 = vmatprep.subr.mxu0 %v2956
        %5238 = vmatpush1.msra.mxu0 %v2955
        %5239 = vmatprep.subr.mxu0 %v2952
        %5240 = vmatpush1.msra.mxu0 %v2951
        %5241 = vmatprep.subr.mxu0 %v2948
        %5242 = vmatpush1.msra.mxu0 %v2947
        %5243 = vmatprep.subr.mxu0 %v2944
        %5244 = vmatpush1.msra.mxu0 %v2943
        %5245 = vmatprep.subr.mxu0 %v3068
        %5246 = vmatpush2.msra.mxu0 %v3067
        %5247 = vmatprep.subr.mxu0 %v3064
        %5248 = vmatpush2.msra.mxu0 %v3063
        %5249 = vmatprep.subr.mxu0 %v3060
        %5250 = vmatpush2.msra.mxu0 %v3059
        %5251 = vmatprep.subr.mxu0 %v3056
        %5252 = vmatpush2.msra.mxu0 %v3055
        %5253 = vmatprep.subr.mxu0 %v3052
        %5254 = vmatpush2.msra.mxu0 %v3051
        %5255 = vmatprep.subr.mxu0 %v3048
        %5256 = vmatpush2.msra.mxu0 %v3047
        %5257 = vmatprep.subr.mxu0 %v3044
        %5258 = vmatpush2.msra.mxu0 %v3043
        %5259 = vmatprep.subr.mxu0 %v3040
        %5260 = vmatpush2.msra.mxu0 %v3039
        %5261 = vmatprep.subr.mxu0 %v3036
        %5262 = vmatpush2.msra.mxu0 %v3035
        %5263 = vmatprep.subr.mxu0 %v3032
        %5264 = vmatpush2.msra.mxu0 %v3031
        %5265 = vmatprep.subr.mxu0 %v3028
        %5266 = vmatpush2.msra.mxu0 %v3027
        %5267 = vmatprep.subr.mxu0 %v3024
        %5268 = vmatpush2.msra.mxu0 %v3023
        %5269 = vmatprep.subr.mxu0 %v3020
        %5270 = vmatpush2.msra.mxu0 %v3019
        %5271 = vmatprep.subr.mxu0 %v3016
        %5272 = vmatpush2.msra.mxu0 %v3015
        %5273 = vmatprep.subr.mxu0 %v3012
        %5274 = vmatpush2.msra.mxu0 %v3011
        %5275 = vmatprep.subr.mxu0 %v3008
        %5276 = vmatpush2.msra.mxu0 %v3007
        %5277 = vmatprep.mubr.f32.mxu0 %v3718
        %5278 = vmatmul.mubr.f32.gmra.mxu0 %v3710
        %v5279 = vpop.f32.mrf.mxu0
        %v5280 = vadd.f32 %v5209, %v5279
        %v5281 = vpop.f32.mrf.mxu0
        %v5282 = vadd.f32 %v5211, %v5281
        %5283 = vdwg.mxu0
        %5284 = vmatprep.subr.mxu0 %v3132
        %5285 = vmatpush1.msra.mxu0 %v3131
        %5286 = vmatprep.subr.mxu0 %v3128
        %5287 = vmatpush1.msra.mxu0 %v3127
        %5288 = vmatprep.subr.mxu0 %v3124
        %5289 = vmatpush1.msra.mxu0 %v3123
        %5290 = vmatprep.subr.mxu0 %v3120
        %5291 = vmatpush1.msra.mxu0 %v3119
        %5292 = vmatprep.subr.mxu0 %v3116
        %5293 = vmatpush1.msra.mxu0 %v3115
        %5294 = vmatprep.subr.mxu0 %v3112
        %5295 = vmatpush1.msra.mxu0 %v3111
        %5296 = vmatprep.subr.mxu0 %v3108
        %5297 = vmatpush1.msra.mxu0 %v3107
        %5298 = vmatprep.subr.mxu0 %v3104
        %5299 = vmatpush1.msra.mxu0 %v3103
        %5300 = vmatprep.subr.mxu0 %v3100
        %5301 = vmatpush1.msra.mxu0 %v3099
        %5302 = vmatprep.subr.mxu0 %v3096
        %5303 = vmatpush1.msra.mxu0 %v3095
        %5304 = vmatprep.subr.mxu0 %v3092
        %5305 = vmatpush1.msra.mxu0 %v3091
        %5306 = vmatprep.subr.mxu0 %v3088
        %5307 = vmatpush1.msra.mxu0 %v3087
        %5308 = vmatprep.subr.mxu0 %v3084
        %5309 = vmatpush1.msra.mxu0 %v3083
        %5310 = vmatprep.subr.mxu0 %v3080
        %5311 = vmatpush1.msra.mxu0 %v3079
        %5312 = vmatprep.subr.mxu0 %v3076
        %5313 = vmatpush1.msra.mxu0 %v3075
        %5314 = vmatprep.subr.mxu0 %v3072
        %5315 = vmatpush1.msra.mxu0 %v3071
        %5316 = vmatprep.subr.mxu0 %v3196
        %5317 = vmatpush2.msra.mxu0 %v3195
        %5318 = vmatprep.subr.mxu0 %v3192
        %5319 = vmatpush2.msra.mxu0 %v3191
        %5320 = vmatprep.subr.mxu0 %v3188
        %5321 = vmatpush2.msra.mxu0 %v3187
        %5322 = vmatprep.subr.mxu0 %v3184
        %5323 = vmatpush2.msra.mxu0 %v3183
        %5324 = vmatprep.subr.mxu0 %v3180
        %5325 = vmatpush2.msra.mxu0 %v3179
        %5326 = vmatprep.subr.mxu0 %v3176
        %5327 = vmatpush2.msra.mxu0 %v3175
        %5328 = vmatprep.subr.mxu0 %v3172
        %5329 = vmatpush2.msra.mxu0 %v3171
        %5330 = vmatprep.subr.mxu0 %v3168
        %5331 = vmatpush2.msra.mxu0 %v3167
        %5332 = vmatprep.subr.mxu0 %v3164
        %5333 = vmatpush2.msra.mxu0 %v3163
        %5334 = vmatprep.subr.mxu0 %v3160
        %5335 = vmatpush2.msra.mxu0 %v3159
        %5336 = vmatprep.subr.mxu0 %v3156
        %5337 = vmatpush2.msra.mxu0 %v3155
        %5338 = vmatprep.subr.mxu0 %v3152
        %5339 = vmatpush2.msra.mxu0 %v3151
        %5340 = vmatprep.subr.mxu0 %v3148
        %5341 = vmatpush2.msra.mxu0 %v3147
        %5342 = vmatprep.subr.mxu0 %v3144
        %5343 = vmatpush2.msra.mxu0 %v3143
        %5344 = vmatprep.subr.mxu0 %v3140
        %5345 = vmatpush2.msra.mxu0 %v3139
        %5346 = vmatprep.subr.mxu0 %v3136
        %5347 = vmatpush2.msra.mxu0 %v3135
        %5348 = vmatprep.mubr.f32.mxu0 %v3719
        %5349 = vmatmul.mubr.f32.gmra.mxu0 %v3717
        %v5350 = vpop.f32.mrf.mxu0
        %v5351 = vadd.f32 %v5280, %v5350
        %v5352 = vpop.f32.mrf.mxu0
        %v5353 = vadd.f32 %v5282, %v5352
        %5354 = vdwg.mxu0
        %5355 = vmatprep.subr.mxu0 %v3260
        %5356 = vmatpush1.msra.mxu0 %v3259
        %5357 = vmatprep.subr.mxu0 %v3256
        %5358 = vmatpush1.msra.mxu0 %v3255
        %5359 = vmatprep.subr.mxu0 %v3252
        %5360 = vmatpush1.msra.mxu0 %v3251
        %5361 = vmatprep.subr.mxu0 %v3248
        %5362 = vmatpush1.msra.mxu0 %v3247
        %5363 = vmatprep.subr.mxu0 %v3244
        %5364 = vmatpush1.msra.mxu0 %v3243
        %5365 = vmatprep.subr.mxu0 %v3240
        %5366 = vmatpush1.msra.mxu0 %v3239
        %5367 = vmatprep.subr.mxu0 %v3236
        %5368 = vmatpush1.msra.mxu0 %v3235
        %5369 = vmatprep.subr.mxu0 %v3232
        %5370 = vmatpush1.msra.mxu0 %v3231
        %5371 = vmatprep.subr.mxu0 %v3228
        %5372 = vmatpush1.msra.mxu0 %v3227
        %5373 = vmatprep.subr.mxu0 %v3224
        %5374 = vmatpush1.msra.mxu0 %v3223
        %5375 = vmatprep.subr.mxu0 %v3220
        %5376 = vmatpush1.msra.mxu0 %v3219
        %5377 = vmatprep.subr.mxu0 %v3216
        %5378 = vmatpush1.msra.mxu0 %v3215
        %5379 = vmatprep.subr.mxu0 %v3212
        %5380 = vmatpush1.msra.mxu0 %v3211
        %5381 = vmatprep.subr.mxu0 %v3208
        %5382 = vmatpush1.msra.mxu0 %v3207
        %5383 = vmatprep.subr.mxu0 %v3204
        %5384 = vmatpush1.msra.mxu0 %v3203
        %5385 = vmatprep.subr.mxu0 %v3200
        %5386 = vmatpush1.msra.mxu0 %v3199
        %5387 = vmatprep.subr.mxu0 %v3324
        %5388 = vmatpush2.msra.mxu0 %v3323
        %5389 = vmatprep.subr.mxu0 %v3320
        %5390 = vmatpush2.msra.mxu0 %v3319
        %5391 = vmatprep.subr.mxu0 %v3316
        %5392 = vmatpush2.msra.mxu0 %v3315
        %5393 = vmatprep.subr.mxu0 %v3312
        %5394 = vmatpush2.msra.mxu0 %v3311
        %5395 = vmatprep.subr.mxu0 %v3308
        %5396 = vmatpush2.msra.mxu0 %v3307
        %5397 = vmatprep.subr.mxu0 %v3304
        %5398 = vmatpush2.msra.mxu0 %v3303
        %5399 = vmatprep.subr.mxu0 %v3300
        %5400 = vmatpush2.msra.mxu0 %v3299
        %5401 = vmatprep.subr.mxu0 %v3296
        %5402 = vmatpush2.msra.mxu0 %v3295
        %5403 = vmatprep.subr.mxu0 %v3292
        %5404 = vmatpush2.msra.mxu0 %v3291
        %5405 = vmatprep.subr.mxu0 %v3288
        %5406 = vmatpush2.msra.mxu0 %v3287
        %5407 = vmatprep.subr.mxu0 %v3284
        %5408 = vmatpush2.msra.mxu0 %v3283
        %5409 = vmatprep.subr.mxu0 %v3280
        %5410 = vmatpush2.msra.mxu0 %v3279
        %5411 = vmatprep.subr.mxu0 %v3276
        %5412 = vmatpush2.msra.mxu0 %v3275
        %5413 = vmatprep.subr.mxu0 %v3272
        %5414 = vmatpush2.msra.mxu0 %v3271
        %5415 = vmatprep.subr.mxu0 %v3268
        %5416 = vmatpush2.msra.mxu0 %v3267
        %5417 = vmatprep.subr.mxu0 %v3264
        %5418 = vmatpush2.msra.mxu0 %v3263
        %5419 = vmatprep.mubr.f32.mxu0 %v3735
        %5420 = vmatmul.mubr.f32.gmra.mxu0 %v3727
        %v5421 = vpop.f32.mrf.mxu0
        %v5422 = vadd.f32 %v5351, %v5421
        %v5423 = vpop.f32.mrf.mxu0
        %v5424 = vadd.f32 %v5353, %v5423
        %5425 = vdwg.mxu0
        %5426 = vmatprep.subr.mxu0 %v3388
        %5427 = vmatpush1.msra.mxu0 %v3387
        %5428 = vmatprep.subr.mxu0 %v3384
        %5429 = vmatpush1.msra.mxu0 %v3383
        %5430 = vmatprep.subr.mxu0 %v3380
        %5431 = vmatpush1.msra.mxu0 %v3379
        %5432 = vmatprep.subr.mxu0 %v3376
        %5433 = vmatpush1.msra.mxu0 %v3375
        %5434 = vmatprep.subr.mxu0 %v3372
        %5435 = vmatpush1.msra.mxu0 %v3371
        %5436 = vmatprep.subr.mxu0 %v3368
        %5437 = vmatpush1.msra.mxu0 %v3367
        %5438 = vmatprep.subr.mxu0 %v3364
        %5439 = vmatpush1.msra.mxu0 %v3363
        %5440 = vmatprep.subr.mxu0 %v3360
        %5441 = vmatpush1.msra.mxu0 %v3359
        %5442 = vmatprep.subr.mxu0 %v3356
        %5443 = vmatpush1.msra.mxu0 %v3355
        %5444 = vmatprep.subr.mxu0 %v3352
        %5445 = vmatpush1.msra.mxu0 %v3351
        %5446 = vmatprep.subr.mxu0 %v3348
        %5447 = vmatpush1.msra.mxu0 %v3347
        %5448 = vmatprep.subr.mxu0 %v3344
        %5449 = vmatpush1.msra.mxu0 %v3343
        %5450 = vmatprep.subr.mxu0 %v3340
        %5451 = vmatpush1.msra.mxu0 %v3339
        %5452 = vmatprep.subr.mxu0 %v3336
        %5453 = vmatpush1.msra.mxu0 %v3335
        %5454 = vmatprep.subr.mxu0 %v3332
        %5455 = vmatpush1.msra.mxu0 %v3331
        %5456 = vmatprep.subr.mxu0 %v3328
        %5457 = vmatpush1.msra.mxu0 %v3327
        %5458 = vmatprep.subr.mxu0 %v3452
        %5459 = vmatpush2.msra.mxu0 %v3451
        %5460 = vmatprep.subr.mxu0 %v3448
        %5461 = vmatpush2.msra.mxu0 %v3447
        %5462 = vmatprep.subr.mxu0 %v3444
        %5463 = vmatpush2.msra.mxu0 %v3443
        %5464 = vmatprep.subr.mxu0 %v3440
        %5465 = vmatpush2.msra.mxu0 %v3439
        %5466 = vmatprep.subr.mxu0 %v3436
        %5467 = vmatpush2.msra.mxu0 %v3435
        %5468 = vmatprep.subr.mxu0 %v3432
        %5469 = vmatpush2.msra.mxu0 %v3431
        %5470 = vmatprep.subr.mxu0 %v3428
        %5471 = vmatpush2.msra.mxu0 %v3427
        %5472 = vmatprep.subr.mxu0 %v3424
        %5473 = vmatpush2.msra.mxu0 %v3423
        %5474 = vmatprep.subr.mxu0 %v3420
        %5475 = vmatpush2.msra.mxu0 %v3419
        %5476 = vmatprep.subr.mxu0 %v3416
        %5477 = vmatpush2.msra.mxu0 %v3415
        %5478 = vmatprep.subr.mxu0 %v3412
        %5479 = vmatpush2.msra.mxu0 %v3411
        %5480 = vmatprep.subr.mxu0 %v3408
        %5481 = vmatpush2.msra.mxu0 %v3407
        %5482 = vmatprep.subr.mxu0 %v3404
        %5483 = vmatpush2.msra.mxu0 %v3403
        %5484 = vmatprep.subr.mxu0 %v3400
        %5485 = vmatpush2.msra.mxu0 %v3399
        %5486 = vmatprep.subr.mxu0 %v3396
        %5487 = vmatpush2.msra.mxu0 %v3395
        %5488 = vmatprep.subr.mxu0 %v3392
        %5489 = vmatpush2.msra.mxu0 %v3391
        %5490 = vmatprep.mubr.f32.mxu0 %v3736
        %5491 = vmatmul.mubr.f32.gmra.mxu0 %v3734
        %v5492 = vpop.f32.mrf.mxu0
        %v5493 = vadd.f32 %v5422, %v5492
        %v5494 = vpop.f32.mrf.mxu0
        %v5495 = vadd.f32 %v5424, %v5494
        %5496 = vdwg.mxu0
        %5497 = vmatprep.subr.mxu0 %v3516
        %5498 = vmatpush1.msra.mxu0 %v3515
        %5499 = vmatprep.subr.mxu0 %v3512
        %5500 = vmatpush1.msra.mxu0 %v3511
        %5501 = vmatprep.subr.mxu0 %v3508
        %5502 = vmatpush1.msra.mxu0 %v3507
        %5503 = vmatprep.subr.mxu0 %v3504
        %5504 = vmatpush1.msra.mxu0 %v3503
        %5505 = vmatprep.subr.mxu0 %v3500
        %5506 = vmatpush1.msra.mxu0 %v3499
        %5507 = vmatprep.subr.mxu0 %v3496
        %5508 = vmatpush1.msra.mxu0 %v3495
        %5509 = vmatprep.subr.mxu0 %v3492
        %5510 = vmatpush1.msra.mxu0 %v3491
        %5511 = vmatprep.subr.mxu0 %v3488
        %5512 = vmatpush1.msra.mxu0 %v3487
        %5513 = vmatprep.subr.mxu0 %v3484
        %5514 = vmatpush1.msra.mxu0 %v3483
        %5515 = vmatprep.subr.mxu0 %v3480
        %5516 = vmatpush1.msra.mxu0 %v3479
        %5517 = vmatprep.subr.mxu0 %v3476
        %5518 = vmatpush1.msra.mxu0 %v3475
        %5519 = vmatprep.subr.mxu0 %v3472
        %5520 = vmatpush1.msra.mxu0 %v3471
        %5521 = vmatprep.subr.mxu0 %v3468
        %5522 = vmatpush1.msra.mxu0 %v3467
        %5523 = vmatprep.subr.mxu0 %v3464
        %5524 = vmatpush1.msra.mxu0 %v3463
        %5525 = vmatprep.subr.mxu0 %v3460
        %5526 = vmatpush1.msra.mxu0 %v3459
        %5527 = vmatprep.subr.mxu0 %v3456
        %5528 = vmatpush1.msra.mxu0 %v3455
        %5529 = vmatprep.subr.mxu0 0.0
        %5530 = vmatpush2.msra.mxu0 0.0
        %5531 = vmatprep.subr.mxu0 0.0
        %5532 = vmatpush2.msra.mxu0 0.0
        %5533 = vmatprep.subr.mxu0 0.0
        %5534 = vmatpush2.msra.mxu0 0.0
        %5535 = vmatprep.subr.mxu0 0.0
        %5536 = vmatpush2.msra.mxu0 0.0
        %5537 = vmatprep.subr.mxu0 0.0
        %5538 = vmatpush2.msra.mxu0 0.0
        %5539 = vmatprep.subr.mxu0 0.0
        %5540 = vmatpush2.msra.mxu0 0.0
        %5541 = vmatprep.subr.mxu0 0.0
        %5542 = vmatpush2.msra.mxu0 0.0
        %5543 = vmatprep.subr.mxu0 0.0
        %5544 = vmatpush2.msra.mxu0 0.0
        %5545 = vmatprep.subr.mxu0 0.0
        %5546 = vmatpush2.msra.mxu0 0.0
        %5547 = vmatprep.subr.mxu0 0.0
        %5548 = vmatpush2.msra.mxu0 0.0
        %5549 = vmatprep.subr.mxu0 0.0
        %5550 = vmatpush2.msra.mxu0 0.0
        %5551 = vmatprep.subr.mxu0 0.0
        %5552 = vmatpush2.msra.mxu0 0.0
        %5553 = vmatprep.subr.mxu0 0.0
        %5554 = vmatpush2.msra.mxu0 0.0
        %5555 = vmatprep.subr.mxu0 0.0
        %5556 = vmatpush2.msra.mxu0 0.0
        %5557 = vmatprep.subr.mxu0 0.0
        %5558 = vmatpush2.msra.mxu0 0.0
        %5559 = vmatprep.subr.mxu0 0.0
        %5560 = vmatpush2.msra.mxu0 0.0
        %5561 = vmatprep.mubr.f32.mxu0 0.0
        %5562 = vmatmul.mubr.f32.gmra.mxu0 %v3743
        %v5563 = vpop.f32.mrf.mxu0
        %v5564 = vadd.f32 %v5493, %v5563
        %v5565 = vpop.f32.mrf.mxu0
        %v5566 = vadd.f32 %v5495, %v5565
        %5567 = vdwg.mxu0
        %5568 = vmatprep.subr.mxu0 %v446
        %5569 = vmatpush1.msra.mxu0 %v445
        %5570 = vmatprep.subr.mxu0 %v442
        %5571 = vmatpush1.msra.mxu0 %v441
        %5572 = vmatprep.subr.mxu0 %v438
        %5573 = vmatpush1.msra.mxu0 %v437
        %5574 = vmatprep.subr.mxu0 %v434
        %5575 = vmatpush1.msra.mxu0 %v433
        %5576 = vmatprep.subr.mxu0 %v430
        %5577 = vmatpush1.msra.mxu0 %v429
        %5578 = vmatprep.subr.mxu0 %v426
        %5579 = vmatpush1.msra.mxu0 %v425
        %5580 = vmatprep.subr.mxu0 %v422
        %5581 = vmatpush1.msra.mxu0 %v421
        %5582 = vmatprep.subr.mxu0 %v418
        %5583 = vmatpush1.msra.mxu0 %v417
        %5584 = vmatprep.subr.mxu0 %v414
        %5585 = vmatpush1.msra.mxu0 %v413
        %5586 = vmatprep.subr.mxu0 %v410
        %5587 = vmatpush1.msra.mxu0 %v409
        %5588 = vmatprep.subr.mxu0 %v406
        %5589 = vmatpush1.msra.mxu0 %v405
        %5590 = vmatprep.subr.mxu0 %v402
        %5591 = vmatpush1.msra.mxu0 %v401
        %5592 = vmatprep.subr.mxu0 %v398
        %5593 = vmatpush1.msra.mxu0 %v397
        %5594 = vmatprep.subr.mxu0 %v394
        %5595 = vmatpush1.msra.mxu0 %v393
        %5596 = vmatprep.subr.mxu0 %v390
        %5597 = vmatpush1.msra.mxu0 %v389
        %5598 = vmatprep.subr.mxu0 %v386
        %5599 = vmatpush1.msra.mxu0 %v385
        %5600 = vmatprep.subr.mxu0 %v510
        %5601 = vmatpush2.msra.mxu0 %v509
        %5602 = vmatprep.subr.mxu0 %v506
        %5603 = vmatpush2.msra.mxu0 %v505
        %5604 = vmatprep.subr.mxu0 %v502
        %5605 = vmatpush2.msra.mxu0 %v501
        %5606 = vmatprep.subr.mxu0 %v498
        %5607 = vmatpush2.msra.mxu0 %v497
        %5608 = vmatprep.subr.mxu0 %v494
        %5609 = vmatpush2.msra.mxu0 %v493
        %5610 = vmatprep.subr.mxu0 %v490
        %5611 = vmatpush2.msra.mxu0 %v489
        %5612 = vmatprep.subr.mxu0 %v486
        %5613 = vmatpush2.msra.mxu0 %v485
        %5614 = vmatprep.subr.mxu0 %v482
        %5615 = vmatpush2.msra.mxu0 %v481
        %5616 = vmatprep.subr.mxu0 %v478
        %5617 = vmatpush2.msra.mxu0 %v477
        %5618 = vmatprep.subr.mxu0 %v474
        %5619 = vmatpush2.msra.mxu0 %v473
        %5620 = vmatprep.subr.mxu0 %v470
        %5621 = vmatpush2.msra.mxu0 %v469
        %5622 = vmatprep.subr.mxu0 %v466
        %5623 = vmatpush2.msra.mxu0 %v465
        %5624 = vmatprep.subr.mxu0 %v462
        %5625 = vmatpush2.msra.mxu0 %v461
        %5626 = vmatprep.subr.mxu0 %v458
        %5627 = vmatpush2.msra.mxu0 %v457
        %5628 = vmatprep.subr.mxu0 %v454
        %5629 = vmatpush2.msra.mxu0 %v453
        %5630 = vmatprep.subr.mxu0 %v450
        %5631 = vmatpush2.msra.mxu0 %v449
        %5632 = vmatprep.mubr.f32.mxu0 %v3548
        %5633 = vmatmul.mubr.f32.gmra.mxu0 %v3540
        %v5634 = vpop.f32.mrf.mxu0
        %v5635 = vadd.f32 0.0, %v5634
        %v5636 = vpop.f32.mrf.mxu0
        %v5637 = vadd.f32 0.0, %v5636
        %5638 = vdwg.mxu0
        %5639 = vmatprep.subr.mxu0 %v574
        %5640 = vmatpush1.msra.mxu0 %v573
        %5641 = vmatprep.subr.mxu0 %v570
        %5642 = vmatpush1.msra.mxu0 %v569
        %5643 = vmatprep.subr.mxu0 %v566
        %5644 = vmatpush1.msra.mxu0 %v565
        %5645 = vmatprep.subr.mxu0 %v562
        %5646 = vmatpush1.msra.mxu0 %v561
        %5647 = vmatprep.subr.mxu0 %v558
        %5648 = vmatpush1.msra.mxu0 %v557
        %5649 = vmatprep.subr.mxu0 %v554
        %5650 = vmatpush1.msra.mxu0 %v553
        %5651 = vmatprep.subr.mxu0 %v550
        %5652 = vmatpush1.msra.mxu0 %v549
        %5653 = vmatprep.subr.mxu0 %v546
        %5654 = vmatpush1.msra.mxu0 %v545
        %5655 = vmatprep.subr.mxu0 %v542
        %5656 = vmatpush1.msra.mxu0 %v541
        %5657 = vmatprep.subr.mxu0 %v538
        %5658 = vmatpush1.msra.mxu0 %v537
        %5659 = vmatprep.subr.mxu0 %v534
        %5660 = vmatpush1.msra.mxu0 %v533
        %5661 = vmatprep.subr.mxu0 %v530
        %5662 = vmatpush1.msra.mxu0 %v529
        %5663 = vmatprep.subr.mxu0 %v526
        %5664 = vmatpush1.msra.mxu0 %v525
        %5665 = vmatprep.subr.mxu0 %v522
        %5666 = vmatpush1.msra.mxu0 %v521
        %5667 = vmatprep.subr.mxu0 %v518
        %5668 = vmatpush1.msra.mxu0 %v517
        %5669 = vmatprep.subr.mxu0 %v514
        %5670 = vmatpush1.msra.mxu0 %v513
        %5671 = vmatprep.subr.mxu0 %v638
        %5672 = vmatpush2.msra.mxu0 %v637
        %5673 = vmatprep.subr.mxu0 %v634
        %5674 = vmatpush2.msra.mxu0 %v633
        %5675 = vmatprep.subr.mxu0 %v630
        %5676 = vmatpush2.msra.mxu0 %v629
        %5677 = vmatprep.subr.mxu0 %v626
        %5678 = vmatpush2.msra.mxu0 %v625
        %5679 = vmatprep.subr.mxu0 %v622
        %5680 = vmatpush2.msra.mxu0 %v621
        %5681 = vmatprep.subr.mxu0 %v618
        %5682 = vmatpush2.msra.mxu0 %v617
        %5683 = vmatprep.subr.mxu0 %v614
        %5684 = vmatpush2.msra.mxu0 %v613
        %5685 = vmatprep.subr.mxu0 %v610
        %5686 = vmatpush2.msra.mxu0 %v609
        %5687 = vmatprep.subr.mxu0 %v606
        %5688 = vmatpush2.msra.mxu0 %v605
        %5689 = vmatprep.subr.mxu0 %v602
        %5690 = vmatpush2.msra.mxu0 %v601
        %5691 = vmatprep.subr.mxu0 %v598
        %5692 = vmatpush2.msra.mxu0 %v597
        %5693 = vmatprep.subr.mxu0 %v594
        %5694 = vmatpush2.msra.mxu0 %v593
        %5695 = vmatprep.subr.mxu0 %v590
        %5696 = vmatpush2.msra.mxu0 %v589
        %5697 = vmatprep.subr.mxu0 %v586
        %5698 = vmatpush2.msra.mxu0 %v585
        %5699 = vmatprep.subr.mxu0 %v582
        %5700 = vmatpush2.msra.mxu0 %v581
        %5701 = vmatprep.subr.mxu0 %v578
        %5702 = vmatpush2.msra.mxu0 %v577
        %5703 = vmatprep.mubr.f32.mxu0 %v3549
        %5704 = vmatmul.mubr.f32.gmra.mxu0 %v3547
        %v5705 = vpop.f32.mrf.mxu0
        %v5706 = vadd.f32 %v5635, %v5705
        %v5707 = vpop.f32.mrf.mxu0
        %v5708 = vadd.f32 %v5637, %v5707
        %5709 = vdwg.mxu0
        %5710 = vmatprep.subr.mxu0 %v702
        %5711 = vmatpush1.msra.mxu0 %v701
        %5712 = vmatprep.subr.mxu0 %v698
        %5713 = vmatpush1.msra.mxu0 %v697
        %5714 = vmatprep.subr.mxu0 %v694
        %5715 = vmatpush1.msra.mxu0 %v693
        %5716 = vmatprep.subr.mxu0 %v690
        %5717 = vmatpush1.msra.mxu0 %v689
        %5718 = vmatprep.subr.mxu0 %v686
        %5719 = vmatpush1.msra.mxu0 %v685
        %5720 = vmatprep.subr.mxu0 %v682
        %5721 = vmatpush1.msra.mxu0 %v681
        %5722 = vmatprep.subr.mxu0 %v678
        %5723 = vmatpush1.msra.mxu0 %v677
        %5724 = vmatprep.subr.mxu0 %v674
        %5725 = vmatpush1.msra.mxu0 %v673
        %5726 = vmatprep.subr.mxu0 %v670
        %5727 = vmatpush1.msra.mxu0 %v669
        %5728 = vmatprep.subr.mxu0 %v666
        %5729 = vmatpush1.msra.mxu0 %v665
        %5730 = vmatprep.subr.mxu0 %v662
        %5731 = vmatpush1.msra.mxu0 %v661
        %5732 = vmatprep.subr.mxu0 %v658
        %5733 = vmatpush1.msra.mxu0 %v657
        %5734 = vmatprep.subr.mxu0 %v654
        %5735 = vmatpush1.msra.mxu0 %v653
        %5736 = vmatprep.subr.mxu0 %v650
        %5737 = vmatpush1.msra.mxu0 %v649
        %5738 = vmatprep.subr.mxu0 %v646
        %5739 = vmatpush1.msra.mxu0 %v645
        %5740 = vmatprep.subr.mxu0 %v642
        %5741 = vmatpush1.msra.mxu0 %v641
        %5742 = vmatprep.subr.mxu0 %v766
        %5743 = vmatpush2.msra.mxu0 %v765
        %5744 = vmatprep.subr.mxu0 %v762
        %5745 = vmatpush2.msra.mxu0 %v761
        %5746 = vmatprep.subr.mxu0 %v758
        %5747 = vmatpush2.msra.mxu0 %v757
        %5748 = vmatprep.subr.mxu0 %v754
        %5749 = vmatpush2.msra.mxu0 %v753
        %5750 = vmatprep.subr.mxu0 %v750
        %5751 = vmatpush2.msra.mxu0 %v749
        %5752 = vmatprep.subr.mxu0 %v746
        %5753 = vmatpush2.msra.mxu0 %v745
        %5754 = vmatprep.subr.mxu0 %v742
        %5755 = vmatpush2.msra.mxu0 %v741
        %5756 = vmatprep.subr.mxu0 %v738
        %5757 = vmatpush2.msra.mxu0 %v737
        %5758 = vmatprep.subr.mxu0 %v734
        %5759 = vmatpush2.msra.mxu0 %v733
        %5760 = vmatprep.subr.mxu0 %v730
        %5761 = vmatpush2.msra.mxu0 %v729
        %5762 = vmatprep.subr.mxu0 %v726
        %5763 = vmatpush2.msra.mxu0 %v725
        %5764 = vmatprep.subr.mxu0 %v722
        %5765 = vmatpush2.msra.mxu0 %v721
        %5766 = vmatprep.subr.mxu0 %v718
        %5767 = vmatpush2.msra.mxu0 %v717
        %5768 = vmatprep.subr.mxu0 %v714
        %5769 = vmatpush2.msra.mxu0 %v713
        %5770 = vmatprep.subr.mxu0 %v710
        %5771 = vmatpush2.msra.mxu0 %v709
        %5772 = vmatprep.subr.mxu0 %v706
        %5773 = vmatpush2.msra.mxu0 %v705
        %5774 = vmatprep.mubr.f32.mxu0 %v3565
        %5775 = vmatmul.mubr.f32.gmra.mxu0 %v3557
        %v5776 = vpop.f32.mrf.mxu0
        %v5777 = vadd.f32 %v5706, %v5776
        %v5778 = vpop.f32.mrf.mxu0
        %v5779 = vadd.f32 %v5708, %v5778
        %5780 = vdwg.mxu0
        %5781 = vmatprep.subr.mxu0 %v830
        %5782 = vmatpush1.msra.mxu0 %v829
        %5783 = vmatprep.subr.mxu0 %v826
        %5784 = vmatpush1.msra.mxu0 %v825
        %5785 = vmatprep.subr.mxu0 %v822
        %5786 = vmatpush1.msra.mxu0 %v821
        %5787 = vmatprep.subr.mxu0 %v818
        %5788 = vmatpush1.msra.mxu0 %v817
        %5789 = vmatprep.subr.mxu0 %v814
        %5790 = vmatpush1.msra.mxu0 %v813
        %5791 = vmatprep.subr.mxu0 %v810
        %5792 = vmatpush1.msra.mxu0 %v809
        %5793 = vmatprep.subr.mxu0 %v806
        %5794 = vmatpush1.msra.mxu0 %v805
        %5795 = vmatprep.subr.mxu0 %v802
        %5796 = vmatpush1.msra.mxu0 %v801
        %5797 = vmatprep.subr.mxu0 %v798
        %5798 = vmatpush1.msra.mxu0 %v797
        %5799 = vmatprep.subr.mxu0 %v794
        %5800 = vmatpush1.msra.mxu0 %v793
        %5801 = vmatprep.subr.mxu0 %v790
        %5802 = vmatpush1.msra.mxu0 %v789
        %5803 = vmatprep.subr.mxu0 %v786
        %5804 = vmatpush1.msra.mxu0 %v785
        %5805 = vmatprep.subr.mxu0 %v782
        %5806 = vmatpush1.msra.mxu0 %v781
        %5807 = vmatprep.subr.mxu0 %v778
        %5808 = vmatpush1.msra.mxu0 %v777
        %5809 = vmatprep.subr.mxu0 %v774
        %5810 = vmatpush1.msra.mxu0 %v773
        %5811 = vmatprep.subr.mxu0 %v770
        %5812 = vmatpush1.msra.mxu0 %v769
        %5813 = vmatprep.subr.mxu0 %v894
        %5814 = vmatpush2.msra.mxu0 %v893
        %5815 = vmatprep.subr.mxu0 %v890
        %5816 = vmatpush2.msra.mxu0 %v889
        %5817 = vmatprep.subr.mxu0 %v886
        %5818 = vmatpush2.msra.mxu0 %v885
        %5819 = vmatprep.subr.mxu0 %v882
        %5820 = vmatpush2.msra.mxu0 %v881
        %5821 = vmatprep.subr.mxu0 %v878
        %5822 = vmatpush2.msra.mxu0 %v877
        %5823 = vmatprep.subr.mxu0 %v874
        %5824 = vmatpush2.msra.mxu0 %v873
        %5825 = vmatprep.subr.mxu0 %v870
        %5826 = vmatpush2.msra.mxu0 %v869
        %5827 = vmatprep.subr.mxu0 %v866
        %5828 = vmatpush2.msra.mxu0 %v865
        %5829 = vmatprep.subr.mxu0 %v862
        %5830 = vmatpush2.msra.mxu0 %v861
        %5831 = vmatprep.subr.mxu0 %v858
        %5832 = vmatpush2.msra.mxu0 %v857
        %5833 = vmatprep.subr.mxu0 %v854
        %5834 = vmatpush2.msra.mxu0 %v853
        %5835 = vmatprep.subr.mxu0 %v850
        %5836 = vmatpush2.msra.mxu0 %v849
        %5837 = vmatprep.subr.mxu0 %v846
        %5838 = vmatpush2.msra.mxu0 %v845
        %5839 = vmatprep.subr.mxu0 %v842
        %5840 = vmatpush2.msra.mxu0 %v841
        %5841 = vmatprep.subr.mxu0 %v838
        %5842 = vmatpush2.msra.mxu0 %v837
        %5843 = vmatprep.subr.mxu0 %v834
        %5844 = vmatpush2.msra.mxu0 %v833
        %5845 = vmatprep.mubr.f32.mxu0 %v3566
        %5846 = vmatmul.mubr.f32.gmra.mxu0 %v3564
        %v5847 = vpop.f32.mrf.mxu0
        %v5848 = vadd.f32 %v5777, %v5847
        %v5849 = vpop.f32.mrf.mxu0
        %v5850 = vadd.f32 %v5779, %v5849
        %5851 = vdwg.mxu0
        %5852 = vmatprep.subr.mxu0 %v958
        %5853 = vmatpush1.msra.mxu0 %v957
        %5854 = vmatprep.subr.mxu0 %v954
        %5855 = vmatpush1.msra.mxu0 %v953
        %5856 = vmatprep.subr.mxu0 %v950
        %5857 = vmatpush1.msra.mxu0 %v949
        %5858 = vmatprep.subr.mxu0 %v946
        %5859 = vmatpush1.msra.mxu0 %v945
        %5860 = vmatprep.subr.mxu0 %v942
        %5861 = vmatpush1.msra.mxu0 %v941
        %5862 = vmatprep.subr.mxu0 %v938
        %5863 = vmatpush1.msra.mxu0 %v937
        %5864 = vmatprep.subr.mxu0 %v934
        %5865 = vmatpush1.msra.mxu0 %v933
        %5866 = vmatprep.subr.mxu0 %v930
        %5867 = vmatpush1.msra.mxu0 %v929
        %5868 = vmatprep.subr.mxu0 %v926
        %5869 = vmatpush1.msra.mxu0 %v925
        %5870 = vmatprep.subr.mxu0 %v922
        %5871 = vmatpush1.msra.mxu0 %v921
        %5872 = vmatprep.subr.mxu0 %v918
        %5873 = vmatpush1.msra.mxu0 %v917
        %5874 = vmatprep.subr.mxu0 %v914
        %5875 = vmatpush1.msra.mxu0 %v913
        %5876 = vmatprep.subr.mxu0 %v910
        %5877 = vmatpush1.msra.mxu0 %v909
        %5878 = vmatprep.subr.mxu0 %v906
        %5879 = vmatpush1.msra.mxu0 %v905
        %5880 = vmatprep.subr.mxu0 %v902
        %5881 = vmatpush1.msra.mxu0 %v901
        %5882 = vmatprep.subr.mxu0 %v898
        %5883 = vmatpush1.msra.mxu0 %v897
        %5884 = vmatprep.subr.mxu0 %v1022
        %5885 = vmatpush2.msra.mxu0 %v1021
        %5886 = vmatprep.subr.mxu0 %v1018
        %5887 = vmatpush2.msra.mxu0 %v1017
        %5888 = vmatprep.subr.mxu0 %v1014
        %5889 = vmatpush2.msra.mxu0 %v1013
        %5890 = vmatprep.subr.mxu0 %v1010
        %5891 = vmatpush2.msra.mxu0 %v1009
        %5892 = vmatprep.subr.mxu0 %v1006
        %5893 = vmatpush2.msra.mxu0 %v1005
        %5894 = vmatprep.subr.mxu0 %v1002
        %5895 = vmatpush2.msra.mxu0 %v1001
        %5896 = vmatprep.subr.mxu0 %v998
        %5897 = vmatpush2.msra.mxu0 %v997
        %5898 = vmatprep.subr.mxu0 %v994
        %5899 = vmatpush2.msra.mxu0 %v993
        %5900 = vmatprep.subr.mxu0 %v990
        %5901 = vmatpush2.msra.mxu0 %v989
        %5902 = vmatprep.subr.mxu0 %v986
        %5903 = vmatpush2.msra.mxu0 %v985
        %5904 = vmatprep.subr.mxu0 %v982
        %5905 = vmatpush2.msra.mxu0 %v981
        %5906 = vmatprep.subr.mxu0 %v978
        %5907 = vmatpush2.msra.mxu0 %v977
        %5908 = vmatprep.subr.mxu0 %v974
        %5909 = vmatpush2.msra.mxu0 %v973
        %5910 = vmatprep.subr.mxu0 %v970
        %5911 = vmatpush2.msra.mxu0 %v969
        %5912 = vmatprep.subr.mxu0 %v966
        %5913 = vmatpush2.msra.mxu0 %v965
        %5914 = vmatprep.subr.mxu0 %v962
        %5915 = vmatpush2.msra.mxu0 %v961
        %5916 = vmatprep.mubr.f32.mxu0 %v3582
        %5917 = vmatmul.mubr.f32.gmra.mxu0 %v3574
        %v5918 = vpop.f32.mrf.mxu0
        %v5919 = vadd.f32 %v5848, %v5918
        %v5920 = vpop.f32.mrf.mxu0
        %v5921 = vadd.f32 %v5850, %v5920
        %5922 = vdwg.mxu0
        %5923 = vmatprep.subr.mxu0 %v1086
        %5924 = vmatpush1.msra.mxu0 %v1085
        %5925 = vmatprep.subr.mxu0 %v1082
        %5926 = vmatpush1.msra.mxu0 %v1081
        %5927 = vmatprep.subr.mxu0 %v1078
        %5928 = vmatpush1.msra.mxu0 %v1077
        %5929 = vmatprep.subr.mxu0 %v1074
        %5930 = vmatpush1.msra.mxu0 %v1073
        %5931 = vmatprep.subr.mxu0 %v1070
        %5932 = vmatpush1.msra.mxu0 %v1069
        %5933 = vmatprep.subr.mxu0 %v1066
        %5934 = vmatpush1.msra.mxu0 %v1065
        %5935 = vmatprep.subr.mxu0 %v1062
        %5936 = vmatpush1.msra.mxu0 %v1061
        %5937 = vmatprep.subr.mxu0 %v1058
        %5938 = vmatpush1.msra.mxu0 %v1057
        %5939 = vmatprep.subr.mxu0 %v1054
        %5940 = vmatpush1.msra.mxu0 %v1053
        %5941 = vmatprep.subr.mxu0 %v1050
        %5942 = vmatpush1.msra.mxu0 %v1049
        %5943 = vmatprep.subr.mxu0 %v1046
        %5944 = vmatpush1.msra.mxu0 %v1045
        %5945 = vmatprep.subr.mxu0 %v1042
        %5946 = vmatpush1.msra.mxu0 %v1041
        %5947 = vmatprep.subr.mxu0 %v1038
        %5948 = vmatpush1.msra.mxu0 %v1037
        %5949 = vmatprep.subr.mxu0 %v1034
        %5950 = vmatpush1.msra.mxu0 %v1033
        %5951 = vmatprep.subr.mxu0 %v1030
        %5952 = vmatpush1.msra.mxu0 %v1029
        %5953 = vmatprep.subr.mxu0 %v1026
        %5954 = vmatpush1.msra.mxu0 %v1025
        %5955 = vmatprep.subr.mxu0 %v1150
        %5956 = vmatpush2.msra.mxu0 %v1149
        %5957 = vmatprep.subr.mxu0 %v1146
        %5958 = vmatpush2.msra.mxu0 %v1145
        %5959 = vmatprep.subr.mxu0 %v1142
        %5960 = vmatpush2.msra.mxu0 %v1141
        %5961 = vmatprep.subr.mxu0 %v1138
        %5962 = vmatpush2.msra.mxu0 %v1137
        %5963 = vmatprep.subr.mxu0 %v1134
        %5964 = vmatpush2.msra.mxu0 %v1133
        %5965 = vmatprep.subr.mxu0 %v1130
        %5966 = vmatpush2.msra.mxu0 %v1129
        %5967 = vmatprep.subr.mxu0 %v1126
        %5968 = vmatpush2.msra.mxu0 %v1125
        %5969 = vmatprep.subr.mxu0 %v1122
        %5970 = vmatpush2.msra.mxu0 %v1121
        %5971 = vmatprep.subr.mxu0 %v1118
        %5972 = vmatpush2.msra.mxu0 %v1117
        %5973 = vmatprep.subr.mxu0 %v1114
        %5974 = vmatpush2.msra.mxu0 %v1113
        %5975 = vmatprep.subr.mxu0 %v1110
        %5976 = vmatpush2.msra.mxu0 %v1109
        %5977 = vmatprep.subr.mxu0 %v1106
        %5978 = vmatpush2.msra.mxu0 %v1105
        %5979 = vmatprep.subr.mxu0 %v1102
        %5980 = vmatpush2.msra.mxu0 %v1101
        %5981 = vmatprep.subr.mxu0 %v1098
        %5982 = vmatpush2.msra.mxu0 %v1097
        %5983 = vmatprep.subr.mxu0 %v1094
        %5984 = vmatpush2.msra.mxu0 %v1093
        %5985 = vmatprep.subr.mxu0 %v1090
        %5986 = vmatpush2.msra.mxu0 %v1089
        %5987 = vmatprep.mubr.f32.mxu0 %v3583
        %5988 = vmatmul.mubr.f32.gmra.mxu0 %v3581
        %v5989 = vpop.f32.mrf.mxu0
        %v5990 = vadd.f32 %v5919, %v5989
        %v5991 = vpop.f32.mrf.mxu0
        %v5992 = vadd.f32 %v5921, %v5991
        %5993 = vdwg.mxu0
        %5994 = vmatprep.subr.mxu0 %v1214
        %5995 = vmatpush1.msra.mxu0 %v1213
        %5996 = vmatprep.subr.mxu0 %v1210
        %5997 = vmatpush1.msra.mxu0 %v1209
        %5998 = vmatprep.subr.mxu0 %v1206
        %5999 = vmatpush1.msra.mxu0 %v1205
        %6000 = vmatprep.subr.mxu0 %v1202
        %6001 = vmatpush1.msra.mxu0 %v1201
        %6002 = vmatprep.subr.mxu0 %v1198
        %6003 = vmatpush1.msra.mxu0 %v1197
        %6004 = vmatprep.subr.mxu0 %v1194
        %6005 = vmatpush1.msra.mxu0 %v1193
        %6006 = vmatprep.subr.mxu0 %v1190
        %6007 = vmatpush1.msra.mxu0 %v1189
        %6008 = vmatprep.subr.mxu0 %v1186
        %6009 = vmatpush1.msra.mxu0 %v1185
        %6010 = vmatprep.subr.mxu0 %v1182
        %6011 = vmatpush1.msra.mxu0 %v1181
        %6012 = vmatprep.subr.mxu0 %v1178
        %6013 = vmatpush1.msra.mxu0 %v1177
        %6014 = vmatprep.subr.mxu0 %v1174
        %6015 = vmatpush1.msra.mxu0 %v1173
        %6016 = vmatprep.subr.mxu0 %v1170
        %6017 = vmatpush1.msra.mxu0 %v1169
        %6018 = vmatprep.subr.mxu0 %v1166
        %6019 = vmatpush1.msra.mxu0 %v1165
        %6020 = vmatprep.subr.mxu0 %v1162
        %6021 = vmatpush1.msra.mxu0 %v1161
        %6022 = vmatprep.subr.mxu0 %v1158
        %6023 = vmatpush1.msra.mxu0 %v1157
        %6024 = vmatprep.subr.mxu0 %v1154
        %6025 = vmatpush1.msra.mxu0 %v1153
        %6026 = vmatprep.subr.mxu0 %v1278
        %6027 = vmatpush2.msra.mxu0 %v1277
        %6028 = vmatprep.subr.mxu0 %v1274
        %6029 = vmatpush2.msra.mxu0 %v1273
        %6030 = vmatprep.subr.mxu0 %v1270
        %6031 = vmatpush2.msra.mxu0 %v1269
        %6032 = vmatprep.subr.mxu0 %v1266
        %6033 = vmatpush2.msra.mxu0 %v1265
        %6034 = vmatprep.subr.mxu0 %v1262
        %6035 = vmatpush2.msra.mxu0 %v1261
        %6036 = vmatprep.subr.mxu0 %v1258
        %6037 = vmatpush2.msra.mxu0 %v1257
        %6038 = vmatprep.subr.mxu0 %v1254
        %6039 = vmatpush2.msra.mxu0 %v1253
        %6040 = vmatprep.subr.mxu0 %v1250
        %6041 = vmatpush2.msra.mxu0 %v1249
        %6042 = vmatprep.subr.mxu0 %v1246
        %6043 = vmatpush2.msra.mxu0 %v1245
        %6044 = vmatprep.subr.mxu0 %v1242
        %6045 = vmatpush2.msra.mxu0 %v1241
        %6046 = vmatprep.subr.mxu0 %v1238
        %6047 = vmatpush2.msra.mxu0 %v1237
        %6048 = vmatprep.subr.mxu0 %v1234
        %6049 = vmatpush2.msra.mxu0 %v1233
        %6050 = vmatprep.subr.mxu0 %v1230
        %6051 = vmatpush2.msra.mxu0 %v1229
        %6052 = vmatprep.subr.mxu0 %v1226
        %6053 = vmatpush2.msra.mxu0 %v1225
        %6054 = vmatprep.subr.mxu0 %v1222
        %6055 = vmatpush2.msra.mxu0 %v1221
        %6056 = vmatprep.subr.mxu0 %v1218
        %6057 = vmatpush2.msra.mxu0 %v1217
        %6058 = vmatprep.mubr.f32.mxu0 %v3599
        %6059 = vmatmul.mubr.f32.gmra.mxu0 %v3591
        %v6060 = vpop.f32.mrf.mxu0
        %v6061 = vadd.f32 %v5990, %v6060
        %v6062 = vpop.f32.mrf.mxu0
        %v6063 = vadd.f32 %v5992, %v6062
        %6064 = vdwg.mxu0
        %6065 = vmatprep.subr.mxu0 %v1342
        %6066 = vmatpush1.msra.mxu0 %v1341
        %6067 = vmatprep.subr.mxu0 %v1338
        %6068 = vmatpush1.msra.mxu0 %v1337
        %6069 = vmatprep.subr.mxu0 %v1334
        %6070 = vmatpush1.msra.mxu0 %v1333
        %6071 = vmatprep.subr.mxu0 %v1330
        %6072 = vmatpush1.msra.mxu0 %v1329
        %6073 = vmatprep.subr.mxu0 %v1326
        %6074 = vmatpush1.msra.mxu0 %v1325
        %6075 = vmatprep.subr.mxu0 %v1322
        %6076 = vmatpush1.msra.mxu0 %v1321
        %6077 = vmatprep.subr.mxu0 %v1318
        %6078 = vmatpush1.msra.mxu0 %v1317
        %6079 = vmatprep.subr.mxu0 %v1314
        %6080 = vmatpush1.msra.mxu0 %v1313
        %6081 = vmatprep.subr.mxu0 %v1310
        %6082 = vmatpush1.msra.mxu0 %v1309
        %6083 = vmatprep.subr.mxu0 %v1306
        %6084 = vmatpush1.msra.mxu0 %v1305
        %6085 = vmatprep.subr.mxu0 %v1302
        %6086 = vmatpush1.msra.mxu0 %v1301
        %6087 = vmatprep.subr.mxu0 %v1298
        %6088 = vmatpush1.msra.mxu0 %v1297
        %6089 = vmatprep.subr.mxu0 %v1294
        %6090 = vmatpush1.msra.mxu0 %v1293
        %6091 = vmatprep.subr.mxu0 %v1290
        %6092 = vmatpush1.msra.mxu0 %v1289
        %6093 = vmatprep.subr.mxu0 %v1286
        %6094 = vmatpush1.msra.mxu0 %v1285
        %6095 = vmatprep.subr.mxu0 %v1282
        %6096 = vmatpush1.msra.mxu0 %v1281
        %6097 = vmatprep.subr.mxu0 %v1406
        %6098 = vmatpush2.msra.mxu0 %v1405
        %6099 = vmatprep.subr.mxu0 %v1402
        %6100 = vmatpush2.msra.mxu0 %v1401
        %6101 = vmatprep.subr.mxu0 %v1398
        %6102 = vmatpush2.msra.mxu0 %v1397
        %6103 = vmatprep.subr.mxu0 %v1394
        %6104 = vmatpush2.msra.mxu0 %v1393
        %6105 = vmatprep.subr.mxu0 %v1390
        %6106 = vmatpush2.msra.mxu0 %v1389
        %6107 = vmatprep.subr.mxu0 %v1386
        %6108 = vmatpush2.msra.mxu0 %v1385
        %6109 = vmatprep.subr.mxu0 %v1382
        %6110 = vmatpush2.msra.mxu0 %v1381
        %6111 = vmatprep.subr.mxu0 %v1378
        %6112 = vmatpush2.msra.mxu0 %v1377
        %6113 = vmatprep.subr.mxu0 %v1374
        %6114 = vmatpush2.msra.mxu0 %v1373
        %6115 = vmatprep.subr.mxu0 %v1370
        %6116 = vmatpush2.msra.mxu0 %v1369
        %6117 = vmatprep.subr.mxu0 %v1366
        %6118 = vmatpush2.msra.mxu0 %v1365
        %6119 = vmatprep.subr.mxu0 %v1362
        %6120 = vmatpush2.msra.mxu0 %v1361
        %6121 = vmatprep.subr.mxu0 %v1358
        %6122 = vmatpush2.msra.mxu0 %v1357
        %6123 = vmatprep.subr.mxu0 %v1354
        %6124 = vmatpush2.msra.mxu0 %v1353
        %6125 = vmatprep.subr.mxu0 %v1350
        %6126 = vmatpush2.msra.mxu0 %v1349
        %6127 = vmatprep.subr.mxu0 %v1346
        %6128 = vmatpush2.msra.mxu0 %v1345
        %6129 = vmatprep.mubr.f32.mxu0 %v3600
        %6130 = vmatmul.mubr.f32.gmra.mxu0 %v3598
        %v6131 = vpop.f32.mrf.mxu0
        %v6132 = vadd.f32 %v6061, %v6131
        %v6133 = vpop.f32.mrf.mxu0
        %v6134 = vadd.f32 %v6063, %v6133
        %6135 = vdwg.mxu0
        %6136 = vmatprep.subr.mxu0 %v1470
        %6137 = vmatpush1.msra.mxu0 %v1469
        %6138 = vmatprep.subr.mxu0 %v1466
        %6139 = vmatpush1.msra.mxu0 %v1465
        %6140 = vmatprep.subr.mxu0 %v1462
        %6141 = vmatpush1.msra.mxu0 %v1461
        %6142 = vmatprep.subr.mxu0 %v1458
        %6143 = vmatpush1.msra.mxu0 %v1457
        %6144 = vmatprep.subr.mxu0 %v1454
        %6145 = vmatpush1.msra.mxu0 %v1453
        %6146 = vmatprep.subr.mxu0 %v1450
        %6147 = vmatpush1.msra.mxu0 %v1449
        %6148 = vmatprep.subr.mxu0 %v1446
        %6149 = vmatpush1.msra.mxu0 %v1445
        %6150 = vmatprep.subr.mxu0 %v1442
        %6151 = vmatpush1.msra.mxu0 %v1441
        %6152 = vmatprep.subr.mxu0 %v1438
        %6153 = vmatpush1.msra.mxu0 %v1437
        %6154 = vmatprep.subr.mxu0 %v1434
        %6155 = vmatpush1.msra.mxu0 %v1433
        %6156 = vmatprep.subr.mxu0 %v1430
        %6157 = vmatpush1.msra.mxu0 %v1429
        %6158 = vmatprep.subr.mxu0 %v1426
        %6159 = vmatpush1.msra.mxu0 %v1425
        %6160 = vmatprep.subr.mxu0 %v1422
        %6161 = vmatpush1.msra.mxu0 %v1421
        %6162 = vmatprep.subr.mxu0 %v1418
        %6163 = vmatpush1.msra.mxu0 %v1417
        %6164 = vmatprep.subr.mxu0 %v1414
        %6165 = vmatpush1.msra.mxu0 %v1413
        %6166 = vmatprep.subr.mxu0 %v1410
        %6167 = vmatpush1.msra.mxu0 %v1409
        %6168 = vmatprep.subr.mxu0 %v1534
        %6169 = vmatpush2.msra.mxu0 %v1533
        %6170 = vmatprep.subr.mxu0 %v1530
        %6171 = vmatpush2.msra.mxu0 %v1529
        %6172 = vmatprep.subr.mxu0 %v1526
        %6173 = vmatpush2.msra.mxu0 %v1525
        %6174 = vmatprep.subr.mxu0 %v1522
        %6175 = vmatpush2.msra.mxu0 %v1521
        %6176 = vmatprep.subr.mxu0 %v1518
        %6177 = vmatpush2.msra.mxu0 %v1517
        %6178 = vmatprep.subr.mxu0 %v1514
        %6179 = vmatpush2.msra.mxu0 %v1513
        %6180 = vmatprep.subr.mxu0 %v1510
        %6181 = vmatpush2.msra.mxu0 %v1509
        %6182 = vmatprep.subr.mxu0 %v1506
        %6183 = vmatpush2.msra.mxu0 %v1505
        %6184 = vmatprep.subr.mxu0 %v1502
        %6185 = vmatpush2.msra.mxu0 %v1501
        %6186 = vmatprep.subr.mxu0 %v1498
        %6187 = vmatpush2.msra.mxu0 %v1497
        %6188 = vmatprep.subr.mxu0 %v1494
        %6189 = vmatpush2.msra.mxu0 %v1493
        %6190 = vmatprep.subr.mxu0 %v1490
        %6191 = vmatpush2.msra.mxu0 %v1489
        %6192 = vmatprep.subr.mxu0 %v1486
        %6193 = vmatpush2.msra.mxu0 %v1485
        %6194 = vmatprep.subr.mxu0 %v1482
        %6195 = vmatpush2.msra.mxu0 %v1481
        %6196 = vmatprep.subr.mxu0 %v1478
        %6197 = vmatpush2.msra.mxu0 %v1477
        %6198 = vmatprep.subr.mxu0 %v1474
        %6199 = vmatpush2.msra.mxu0 %v1473
        %6200 = vmatprep.mubr.f32.mxu0 %v3616
        %6201 = vmatmul.mubr.f32.gmra.mxu0 %v3608
        %v6202 = vpop.f32.mrf.mxu0
        %v6203 = vadd.f32 %v6132, %v6202
        %v6204 = vpop.f32.mrf.mxu0
        %v6205 = vadd.f32 %v6134, %v6204
        %6206 = vdwg.mxu0
        %6207 = vmatprep.subr.mxu0 %v1598
        %6208 = vmatpush1.msra.mxu0 %v1597
        %6209 = vmatprep.subr.mxu0 %v1594
        %6210 = vmatpush1.msra.mxu0 %v1593
        %6211 = vmatprep.subr.mxu0 %v1590
        %6212 = vmatpush1.msra.mxu0 %v1589
        %6213 = vmatprep.subr.mxu0 %v1586
        %6214 = vmatpush1.msra.mxu0 %v1585
        %6215 = vmatprep.subr.mxu0 %v1582
        %6216 = vmatpush1.msra.mxu0 %v1581
        %6217 = vmatprep.subr.mxu0 %v1578
        %6218 = vmatpush1.msra.mxu0 %v1577
        %6219 = vmatprep.subr.mxu0 %v1574
        %6220 = vmatpush1.msra.mxu0 %v1573
        %6221 = vmatprep.subr.mxu0 %v1570
        %6222 = vmatpush1.msra.mxu0 %v1569
        %6223 = vmatprep.subr.mxu0 %v1566
        %6224 = vmatpush1.msra.mxu0 %v1565
        %6225 = vmatprep.subr.mxu0 %v1562
        %6226 = vmatpush1.msra.mxu0 %v1561
        %6227 = vmatprep.subr.mxu0 %v1558
        %6228 = vmatpush1.msra.mxu0 %v1557
        %6229 = vmatprep.subr.mxu0 %v1554
        %6230 = vmatpush1.msra.mxu0 %v1553
        %6231 = vmatprep.subr.mxu0 %v1550
        %6232 = vmatpush1.msra.mxu0 %v1549
        %6233 = vmatprep.subr.mxu0 %v1546
        %6234 = vmatpush1.msra.mxu0 %v1545
        %6235 = vmatprep.subr.mxu0 %v1542
        %6236 = vmatpush1.msra.mxu0 %v1541
        %6237 = vmatprep.subr.mxu0 %v1538
        %6238 = vmatpush1.msra.mxu0 %v1537
        %6239 = vmatprep.subr.mxu0 %v1662
        %6240 = vmatpush2.msra.mxu0 %v1661
        %6241 = vmatprep.subr.mxu0 %v1658
        %6242 = vmatpush2.msra.mxu0 %v1657
        %6243 = vmatprep.subr.mxu0 %v1654
        %6244 = vmatpush2.msra.mxu0 %v1653
        %6245 = vmatprep.subr.mxu0 %v1650
        %6246 = vmatpush2.msra.mxu0 %v1649
        %6247 = vmatprep.subr.mxu0 %v1646
        %6248 = vmatpush2.msra.mxu0 %v1645
        %6249 = vmatprep.subr.mxu0 %v1642
        %6250 = vmatpush2.msra.mxu0 %v1641
        %6251 = vmatprep.subr.mxu0 %v1638
        %6252 = vmatpush2.msra.mxu0 %v1637
        %6253 = vmatprep.subr.mxu0 %v1634
        %6254 = vmatpush2.msra.mxu0 %v1633
        %6255 = vmatprep.subr.mxu0 %v1630
        %6256 = vmatpush2.msra.mxu0 %v1629
        %6257 = vmatprep.subr.mxu0 %v1626
        %6258 = vmatpush2.msra.mxu0 %v1625
        %6259 = vmatprep.subr.mxu0 %v1622
        %6260 = vmatpush2.msra.mxu0 %v1621
        %6261 = vmatprep.subr.mxu0 %v1618
        %6262 = vmatpush2.msra.mxu0 %v1617
        %6263 = vmatprep.subr.mxu0 %v1614
        %6264 = vmatpush2.msra.mxu0 %v1613
        %6265 = vmatprep.subr.mxu0 %v1610
        %6266 = vmatpush2.msra.mxu0 %v1609
        %6267 = vmatprep.subr.mxu0 %v1606
        %6268 = vmatpush2.msra.mxu0 %v1605
        %6269 = vmatprep.subr.mxu0 %v1602
        %6270 = vmatpush2.msra.mxu0 %v1601
        %6271 = vmatprep.mubr.f32.mxu0 %v3617
        %6272 = vmatmul.mubr.f32.gmra.mxu0 %v3615
        %v6273 = vpop.f32.mrf.mxu0
        %v6274 = vadd.f32 %v6203, %v6273
        %v6275 = vpop.f32.mrf.mxu0
        %v6276 = vadd.f32 %v6205, %v6275
        %6277 = vdwg.mxu0
        %6278 = vmatprep.subr.mxu0 %v1726
        %6279 = vmatpush1.msra.mxu0 %v1725
        %6280 = vmatprep.subr.mxu0 %v1722
        %6281 = vmatpush1.msra.mxu0 %v1721
        %6282 = vmatprep.subr.mxu0 %v1718
        %6283 = vmatpush1.msra.mxu0 %v1717
        %6284 = vmatprep.subr.mxu0 %v1714
        %6285 = vmatpush1.msra.mxu0 %v1713
        %6286 = vmatprep.subr.mxu0 %v1710
        %6287 = vmatpush1.msra.mxu0 %v1709
        %6288 = vmatprep.subr.mxu0 %v1706
        %6289 = vmatpush1.msra.mxu0 %v1705
        %6290 = vmatprep.subr.mxu0 %v1702
        %6291 = vmatpush1.msra.mxu0 %v1701
        %6292 = vmatprep.subr.mxu0 %v1698
        %6293 = vmatpush1.msra.mxu0 %v1697
        %6294 = vmatprep.subr.mxu0 %v1694
        %6295 = vmatpush1.msra.mxu0 %v1693
        %6296 = vmatprep.subr.mxu0 %v1690
        %6297 = vmatpush1.msra.mxu0 %v1689
        %6298 = vmatprep.subr.mxu0 %v1686
        %6299 = vmatpush1.msra.mxu0 %v1685
        %6300 = vmatprep.subr.mxu0 %v1682
        %6301 = vmatpush1.msra.mxu0 %v1681
        %6302 = vmatprep.subr.mxu0 %v1678
        %6303 = vmatpush1.msra.mxu0 %v1677
        %6304 = vmatprep.subr.mxu0 %v1674
        %6305 = vmatpush1.msra.mxu0 %v1673
        %6306 = vmatprep.subr.mxu0 %v1670
        %6307 = vmatpush1.msra.mxu0 %v1669
        %6308 = vmatprep.subr.mxu0 %v1666
        %6309 = vmatpush1.msra.mxu0 %v1665
        %6310 = vmatprep.subr.mxu0 %v1790
        %6311 = vmatpush2.msra.mxu0 %v1789
        %6312 = vmatprep.subr.mxu0 %v1786
        %6313 = vmatpush2.msra.mxu0 %v1785
        %6314 = vmatprep.subr.mxu0 %v1782
        %6315 = vmatpush2.msra.mxu0 %v1781
        %6316 = vmatprep.subr.mxu0 %v1778
        %6317 = vmatpush2.msra.mxu0 %v1777
        %6318 = vmatprep.subr.mxu0 %v1774
        %6319 = vmatpush2.msra.mxu0 %v1773
        %6320 = vmatprep.subr.mxu0 %v1770
        %6321 = vmatpush2.msra.mxu0 %v1769
        %6322 = vmatprep.subr.mxu0 %v1766
        %6323 = vmatpush2.msra.mxu0 %v1765
        %6324 = vmatprep.subr.mxu0 %v1762
        %6325 = vmatpush2.msra.mxu0 %v1761
        %6326 = vmatprep.subr.mxu0 %v1758
        %6327 = vmatpush2.msra.mxu0 %v1757
        %6328 = vmatprep.subr.mxu0 %v1754
        %6329 = vmatpush2.msra.mxu0 %v1753
        %6330 = vmatprep.subr.mxu0 %v1750
        %6331 = vmatpush2.msra.mxu0 %v1749
        %6332 = vmatprep.subr.mxu0 %v1746
        %6333 = vmatpush2.msra.mxu0 %v1745
        %6334 = vmatprep.subr.mxu0 %v1742
        %6335 = vmatpush2.msra.mxu0 %v1741
        %6336 = vmatprep.subr.mxu0 %v1738
        %6337 = vmatpush2.msra.mxu0 %v1737
        %6338 = vmatprep.subr.mxu0 %v1734
        %6339 = vmatpush2.msra.mxu0 %v1733
        %6340 = vmatprep.subr.mxu0 %v1730
        %6341 = vmatpush2.msra.mxu0 %v1729
        %6342 = vmatprep.mubr.f32.mxu0 %v3633
        %6343 = vmatmul.mubr.f32.gmra.mxu0 %v3625
        %v6344 = vpop.f32.mrf.mxu0
        %v6345 = vadd.f32 %v6274, %v6344
        %v6346 = vpop.f32.mrf.mxu0
        %v6347 = vadd.f32 %v6276, %v6346
        %6348 = vdwg.mxu0
        %6349 = vmatprep.subr.mxu0 %v1854
        %6350 = vmatpush1.msra.mxu0 %v1853
        %6351 = vmatprep.subr.mxu0 %v1850
        %6352 = vmatpush1.msra.mxu0 %v1849
        %6353 = vmatprep.subr.mxu0 %v1846
        %6354 = vmatpush1.msra.mxu0 %v1845
        %6355 = vmatprep.subr.mxu0 %v1842
        %6356 = vmatpush1.msra.mxu0 %v1841
        %6357 = vmatprep.subr.mxu0 %v1838
        %6358 = vmatpush1.msra.mxu0 %v1837
        %6359 = vmatprep.subr.mxu0 %v1834
        %6360 = vmatpush1.msra.mxu0 %v1833
        %6361 = vmatprep.subr.mxu0 %v1830
        %6362 = vmatpush1.msra.mxu0 %v1829
        %6363 = vmatprep.subr.mxu0 %v1826
        %6364 = vmatpush1.msra.mxu0 %v1825
        %6365 = vmatprep.subr.mxu0 %v1822
        %6366 = vmatpush1.msra.mxu0 %v1821
        %6367 = vmatprep.subr.mxu0 %v1818
        %6368 = vmatpush1.msra.mxu0 %v1817
        %6369 = vmatprep.subr.mxu0 %v1814
        %6370 = vmatpush1.msra.mxu0 %v1813
        %6371 = vmatprep.subr.mxu0 %v1810
        %6372 = vmatpush1.msra.mxu0 %v1809
        %6373 = vmatprep.subr.mxu0 %v1806
        %6374 = vmatpush1.msra.mxu0 %v1805
        %6375 = vmatprep.subr.mxu0 %v1802
        %6376 = vmatpush1.msra.mxu0 %v1801
        %6377 = vmatprep.subr.mxu0 %v1798
        %6378 = vmatpush1.msra.mxu0 %v1797
        %6379 = vmatprep.subr.mxu0 %v1794
        %6380 = vmatpush1.msra.mxu0 %v1793
        %6381 = vmatprep.subr.mxu0 %v1918
        %6382 = vmatpush2.msra.mxu0 %v1917
        %6383 = vmatprep.subr.mxu0 %v1914
        %6384 = vmatpush2.msra.mxu0 %v1913
        %6385 = vmatprep.subr.mxu0 %v1910
        %6386 = vmatpush2.msra.mxu0 %v1909
        %6387 = vmatprep.subr.mxu0 %v1906
        %6388 = vmatpush2.msra.mxu0 %v1905
        %6389 = vmatprep.subr.mxu0 %v1902
        %6390 = vmatpush2.msra.mxu0 %v1901
        %6391 = vmatprep.subr.mxu0 %v1898
        %6392 = vmatpush2.msra.mxu0 %v1897
        %6393 = vmatprep.subr.mxu0 %v1894
        %6394 = vmatpush2.msra.mxu0 %v1893
        %6395 = vmatprep.subr.mxu0 %v1890
        %6396 = vmatpush2.msra.mxu0 %v1889
        %6397 = vmatprep.subr.mxu0 %v1886
        %6398 = vmatpush2.msra.mxu0 %v1885
        %6399 = vmatprep.subr.mxu0 %v1882
        %6400 = vmatpush2.msra.mxu0 %v1881
        %6401 = vmatprep.subr.mxu0 %v1878
        %6402 = vmatpush2.msra.mxu0 %v1877
        %6403 = vmatprep.subr.mxu0 %v1874
        %6404 = vmatpush2.msra.mxu0 %v1873
        %6405 = vmatprep.subr.mxu0 %v1870
        %6406 = vmatpush2.msra.mxu0 %v1869
        %6407 = vmatprep.subr.mxu0 %v1866
        %6408 = vmatpush2.msra.mxu0 %v1865
        %6409 = vmatprep.subr.mxu0 %v1862
        %6410 = vmatpush2.msra.mxu0 %v1861
        %6411 = vmatprep.subr.mxu0 %v1858
        %6412 = vmatpush2.msra.mxu0 %v1857
        %6413 = vmatprep.mubr.f32.mxu0 %v3634
        %6414 = vmatmul.mubr.f32.gmra.mxu0 %v3632
        %v6415 = vpop.f32.mrf.mxu0
        %v6416 = vadd.f32 %v6345, %v6415
        %v6417 = vpop.f32.mrf.mxu0
        %v6418 = vadd.f32 %v6347, %v6417
        %6419 = vdwg.mxu0
        %6420 = vmatprep.subr.mxu0 %v1982
        %6421 = vmatpush1.msra.mxu0 %v1981
        %6422 = vmatprep.subr.mxu0 %v1978
        %6423 = vmatpush1.msra.mxu0 %v1977
        %6424 = vmatprep.subr.mxu0 %v1974
        %6425 = vmatpush1.msra.mxu0 %v1973
        %6426 = vmatprep.subr.mxu0 %v1970
        %6427 = vmatpush1.msra.mxu0 %v1969
        %6428 = vmatprep.subr.mxu0 %v1966
        %6429 = vmatpush1.msra.mxu0 %v1965
        %6430 = vmatprep.subr.mxu0 %v1962
        %6431 = vmatpush1.msra.mxu0 %v1961
        %6432 = vmatprep.subr.mxu0 %v1958
        %6433 = vmatpush1.msra.mxu0 %v1957
        %6434 = vmatprep.subr.mxu0 %v1954
        %6435 = vmatpush1.msra.mxu0 %v1953
        %6436 = vmatprep.subr.mxu0 %v1950
        %6437 = vmatpush1.msra.mxu0 %v1949
        %6438 = vmatprep.subr.mxu0 %v1946
        %6439 = vmatpush1.msra.mxu0 %v1945
        %6440 = vmatprep.subr.mxu0 %v1942
        %6441 = vmatpush1.msra.mxu0 %v1941
        %6442 = vmatprep.subr.mxu0 %v1938
        %6443 = vmatpush1.msra.mxu0 %v1937
        %6444 = vmatprep.subr.mxu0 %v1934
        %6445 = vmatpush1.msra.mxu0 %v1933
        %6446 = vmatprep.subr.mxu0 %v1930
        %6447 = vmatpush1.msra.mxu0 %v1929
        %6448 = vmatprep.subr.mxu0 %v1926
        %6449 = vmatpush1.msra.mxu0 %v1925
        %6450 = vmatprep.subr.mxu0 %v1922
        %6451 = vmatpush1.msra.mxu0 %v1921
        %6452 = vmatprep.subr.mxu0 %v2046
        %6453 = vmatpush2.msra.mxu0 %v2045
        %6454 = vmatprep.subr.mxu0 %v2042
        %6455 = vmatpush2.msra.mxu0 %v2041
        %6456 = vmatprep.subr.mxu0 %v2038
        %6457 = vmatpush2.msra.mxu0 %v2037
        %6458 = vmatprep.subr.mxu0 %v2034
        %6459 = vmatpush2.msra.mxu0 %v2033
        %6460 = vmatprep.subr.mxu0 %v2030
        %6461 = vmatpush2.msra.mxu0 %v2029
        %6462 = vmatprep.subr.mxu0 %v2026
        %6463 = vmatpush2.msra.mxu0 %v2025
        %6464 = vmatprep.subr.mxu0 %v2022
        %6465 = vmatpush2.msra.mxu0 %v2021
        %6466 = vmatprep.subr.mxu0 %v2018
        %6467 = vmatpush2.msra.mxu0 %v2017
        %6468 = vmatprep.subr.mxu0 %v2014
        %6469 = vmatpush2.msra.mxu0 %v2013
        %6470 = vmatprep.subr.mxu0 %v2010
        %6471 = vmatpush2.msra.mxu0 %v2009
        %6472 = vmatprep.subr.mxu0 %v2006
        %6473 = vmatpush2.msra.mxu0 %v2005
        %6474 = vmatprep.subr.mxu0 %v2002
        %6475 = vmatpush2.msra.mxu0 %v2001
        %6476 = vmatprep.subr.mxu0 %v1998
        %6477 = vmatpush2.msra.mxu0 %v1997
        %6478 = vmatprep.subr.mxu0 %v1994
        %6479 = vmatpush2.msra.mxu0 %v1993
        %6480 = vmatprep.subr.mxu0 %v1990
        %6481 = vmatpush2.msra.mxu0 %v1989
        %6482 = vmatprep.subr.mxu0 %v1986
        %6483 = vmatpush2.msra.mxu0 %v1985
        %6484 = vmatprep.mubr.f32.mxu0 %v3650
        %6485 = vmatmul.mubr.f32.gmra.mxu0 %v3642
        %v6486 = vpop.f32.mrf.mxu0
        %v6487 = vadd.f32 %v6416, %v6486
        %v6488 = vpop.f32.mrf.mxu0
        %v6489 = vadd.f32 %v6418, %v6488
        %6490 = vdwg.mxu0
        %6491 = vmatprep.subr.mxu0 %v2110
        %6492 = vmatpush1.msra.mxu0 %v2109
        %6493 = vmatprep.subr.mxu0 %v2106
        %6494 = vmatpush1.msra.mxu0 %v2105
        %6495 = vmatprep.subr.mxu0 %v2102
        %6496 = vmatpush1.msra.mxu0 %v2101
        %6497 = vmatprep.subr.mxu0 %v2098
        %6498 = vmatpush1.msra.mxu0 %v2097
        %6499 = vmatprep.subr.mxu0 %v2094
        %6500 = vmatpush1.msra.mxu0 %v2093
        %6501 = vmatprep.subr.mxu0 %v2090
        %6502 = vmatpush1.msra.mxu0 %v2089
        %6503 = vmatprep.subr.mxu0 %v2086
        %6504 = vmatpush1.msra.mxu0 %v2085
        %6505 = vmatprep.subr.mxu0 %v2082
        %6506 = vmatpush1.msra.mxu0 %v2081
        %6507 = vmatprep.subr.mxu0 %v2078
        %6508 = vmatpush1.msra.mxu0 %v2077
        %6509 = vmatprep.subr.mxu0 %v2074
        %6510 = vmatpush1.msra.mxu0 %v2073
        %6511 = vmatprep.subr.mxu0 %v2070
        %6512 = vmatpush1.msra.mxu0 %v2069
        %6513 = vmatprep.subr.mxu0 %v2066
        %6514 = vmatpush1.msra.mxu0 %v2065
        %6515 = vmatprep.subr.mxu0 %v2062
        %6516 = vmatpush1.msra.mxu0 %v2061
        %6517 = vmatprep.subr.mxu0 %v2058
        %6518 = vmatpush1.msra.mxu0 %v2057
        %6519 = vmatprep.subr.mxu0 %v2054
        %6520 = vmatpush1.msra.mxu0 %v2053
        %6521 = vmatprep.subr.mxu0 %v2050
        %6522 = vmatpush1.msra.mxu0 %v2049
        %6523 = vmatprep.subr.mxu0 %v2174
        %6524 = vmatpush2.msra.mxu0 %v2173
        %6525 = vmatprep.subr.mxu0 %v2170
        %6526 = vmatpush2.msra.mxu0 %v2169
        %6527 = vmatprep.subr.mxu0 %v2166
        %6528 = vmatpush2.msra.mxu0 %v2165
        %6529 = vmatprep.subr.mxu0 %v2162
        %6530 = vmatpush2.msra.mxu0 %v2161
        %6531 = vmatprep.subr.mxu0 %v2158
        %6532 = vmatpush2.msra.mxu0 %v2157
        %6533 = vmatprep.subr.mxu0 %v2154
        %6534 = vmatpush2.msra.mxu0 %v2153
        %6535 = vmatprep.subr.mxu0 %v2150
        %6536 = vmatpush2.msra.mxu0 %v2149
        %6537 = vmatprep.subr.mxu0 %v2146
        %6538 = vmatpush2.msra.mxu0 %v2145
        %6539 = vmatprep.subr.mxu0 %v2142
        %6540 = vmatpush2.msra.mxu0 %v2141
        %6541 = vmatprep.subr.mxu0 %v2138
        %6542 = vmatpush2.msra.mxu0 %v2137
        %6543 = vmatprep.subr.mxu0 %v2134
        %6544 = vmatpush2.msra.mxu0 %v2133
        %6545 = vmatprep.subr.mxu0 %v2130
        %6546 = vmatpush2.msra.mxu0 %v2129
        %6547 = vmatprep.subr.mxu0 %v2126
        %6548 = vmatpush2.msra.mxu0 %v2125
        %6549 = vmatprep.subr.mxu0 %v2122
        %6550 = vmatpush2.msra.mxu0 %v2121
        %6551 = vmatprep.subr.mxu0 %v2118
        %6552 = vmatpush2.msra.mxu0 %v2117
        %6553 = vmatprep.subr.mxu0 %v2114
        %6554 = vmatpush2.msra.mxu0 %v2113
        %6555 = vmatprep.mubr.f32.mxu0 %v3651
        %6556 = vmatmul.mubr.f32.gmra.mxu0 %v3649
        %v6557 = vpop.f32.mrf.mxu0
        %v6558 = vadd.f32 %v6487, %v6557
        %v6559 = vpop.f32.mrf.mxu0
        %v6560 = vadd.f32 %v6489, %v6559
        %6561 = vdwg.mxu0
        %6562 = vmatprep.subr.mxu0 %v2238
        %6563 = vmatpush1.msra.mxu0 %v2237
        %6564 = vmatprep.subr.mxu0 %v2234
        %6565 = vmatpush1.msra.mxu0 %v2233
        %6566 = vmatprep.subr.mxu0 %v2230
        %6567 = vmatpush1.msra.mxu0 %v2229
        %6568 = vmatprep.subr.mxu0 %v2226
        %6569 = vmatpush1.msra.mxu0 %v2225
        %6570 = vmatprep.subr.mxu0 %v2222
        %6571 = vmatpush1.msra.mxu0 %v2221
        %6572 = vmatprep.subr.mxu0 %v2218
        %6573 = vmatpush1.msra.mxu0 %v2217
        %6574 = vmatprep.subr.mxu0 %v2214
        %6575 = vmatpush1.msra.mxu0 %v2213
        %6576 = vmatprep.subr.mxu0 %v2210
        %6577 = vmatpush1.msra.mxu0 %v2209
        %6578 = vmatprep.subr.mxu0 %v2206
        %6579 = vmatpush1.msra.mxu0 %v2205
        %6580 = vmatprep.subr.mxu0 %v2202
        %6581 = vmatpush1.msra.mxu0 %v2201
        %6582 = vmatprep.subr.mxu0 %v2198
        %6583 = vmatpush1.msra.mxu0 %v2197
        %6584 = vmatprep.subr.mxu0 %v2194
        %6585 = vmatpush1.msra.mxu0 %v2193
        %6586 = vmatprep.subr.mxu0 %v2190
        %6587 = vmatpush1.msra.mxu0 %v2189
        %6588 = vmatprep.subr.mxu0 %v2186
        %6589 = vmatpush1.msra.mxu0 %v2185
        %6590 = vmatprep.subr.mxu0 %v2182
        %6591 = vmatpush1.msra.mxu0 %v2181
        %6592 = vmatprep.subr.mxu0 %v2178
        %6593 = vmatpush1.msra.mxu0 %v2177
        %6594 = vmatprep.subr.mxu0 %v2302
        %6595 = vmatpush2.msra.mxu0 %v2301
        %6596 = vmatprep.subr.mxu0 %v2298
        %6597 = vmatpush2.msra.mxu0 %v2297
        %6598 = vmatprep.subr.mxu0 %v2294
        %6599 = vmatpush2.msra.mxu0 %v2293
        %6600 = vmatprep.subr.mxu0 %v2290
        %6601 = vmatpush2.msra.mxu0 %v2289
        %6602 = vmatprep.subr.mxu0 %v2286
        %6603 = vmatpush2.msra.mxu0 %v2285
        %6604 = vmatprep.subr.mxu0 %v2282
        %6605 = vmatpush2.msra.mxu0 %v2281
        %6606 = vmatprep.subr.mxu0 %v2278
        %6607 = vmatpush2.msra.mxu0 %v2277
        %6608 = vmatprep.subr.mxu0 %v2274
        %6609 = vmatpush2.msra.mxu0 %v2273
        %6610 = vmatprep.subr.mxu0 %v2270
        %6611 = vmatpush2.msra.mxu0 %v2269
        %6612 = vmatprep.subr.mxu0 %v2266
        %6613 = vmatpush2.msra.mxu0 %v2265
        %6614 = vmatprep.subr.mxu0 %v2262
        %6615 = vmatpush2.msra.mxu0 %v2261
        %6616 = vmatprep.subr.mxu0 %v2258
        %6617 = vmatpush2.msra.mxu0 %v2257
        %6618 = vmatprep.subr.mxu0 %v2254
        %6619 = vmatpush2.msra.mxu0 %v2253
        %6620 = vmatprep.subr.mxu0 %v2250
        %6621 = vmatpush2.msra.mxu0 %v2249
        %6622 = vmatprep.subr.mxu0 %v2246
        %6623 = vmatpush2.msra.mxu0 %v2245
        %6624 = vmatprep.subr.mxu0 %v2242
        %6625 = vmatpush2.msra.mxu0 %v2241
        %6626 = vmatprep.mubr.f32.mxu0 %v3667
        %6627 = vmatmul.mubr.f32.gmra.mxu0 %v3659
        %v6628 = vpop.f32.mrf.mxu0
        %v6629 = vadd.f32 %v6558, %v6628
        %v6630 = vpop.f32.mrf.mxu0
        %v6631 = vadd.f32 %v6560, %v6630
        %6632 = vdwg.mxu0
        %6633 = vmatprep.subr.mxu0 %v2366
        %6634 = vmatpush1.msra.mxu0 %v2365
        %6635 = vmatprep.subr.mxu0 %v2362
        %6636 = vmatpush1.msra.mxu0 %v2361
        %6637 = vmatprep.subr.mxu0 %v2358
        %6638 = vmatpush1.msra.mxu0 %v2357
        %6639 = vmatprep.subr.mxu0 %v2354
        %6640 = vmatpush1.msra.mxu0 %v2353
        %6641 = vmatprep.subr.mxu0 %v2350
        %6642 = vmatpush1.msra.mxu0 %v2349
        %6643 = vmatprep.subr.mxu0 %v2346
        %6644 = vmatpush1.msra.mxu0 %v2345
        %6645 = vmatprep.subr.mxu0 %v2342
        %6646 = vmatpush1.msra.mxu0 %v2341
        %6647 = vmatprep.subr.mxu0 %v2338
        %6648 = vmatpush1.msra.mxu0 %v2337
        %6649 = vmatprep.subr.mxu0 %v2334
        %6650 = vmatpush1.msra.mxu0 %v2333
        %6651 = vmatprep.subr.mxu0 %v2330
        %6652 = vmatpush1.msra.mxu0 %v2329
        %6653 = vmatprep.subr.mxu0 %v2326
        %6654 = vmatpush1.msra.mxu0 %v2325
        %6655 = vmatprep.subr.mxu0 %v2322
        %6656 = vmatpush1.msra.mxu0 %v2321
        %6657 = vmatprep.subr.mxu0 %v2318
        %6658 = vmatpush1.msra.mxu0 %v2317
        %6659 = vmatprep.subr.mxu0 %v2314
        %6660 = vmatpush1.msra.mxu0 %v2313
        %6661 = vmatprep.subr.mxu0 %v2310
        %6662 = vmatpush1.msra.mxu0 %v2309
        %6663 = vmatprep.subr.mxu0 %v2306
        %6664 = vmatpush1.msra.mxu0 %v2305
        %6665 = vmatprep.subr.mxu0 %v2430
        %6666 = vmatpush2.msra.mxu0 %v2429
        %6667 = vmatprep.subr.mxu0 %v2426
        %6668 = vmatpush2.msra.mxu0 %v2425
        %6669 = vmatprep.subr.mxu0 %v2422
        %6670 = vmatpush2.msra.mxu0 %v2421
        %6671 = vmatprep.subr.mxu0 %v2418
        %6672 = vmatpush2.msra.mxu0 %v2417
        %6673 = vmatprep.subr.mxu0 %v2414
        %6674 = vmatpush2.msra.mxu0 %v2413
        %6675 = vmatprep.subr.mxu0 %v2410
        %6676 = vmatpush2.msra.mxu0 %v2409
        %6677 = vmatprep.subr.mxu0 %v2406
        %6678 = vmatpush2.msra.mxu0 %v2405
        %6679 = vmatprep.subr.mxu0 %v2402
        %6680 = vmatpush2.msra.mxu0 %v2401
        %6681 = vmatprep.subr.mxu0 %v2398
        %6682 = vmatpush2.msra.mxu0 %v2397
        %6683 = vmatprep.subr.mxu0 %v2394
        %6684 = vmatpush2.msra.mxu0 %v2393
        %6685 = vmatprep.subr.mxu0 %v2390
        %6686 = vmatpush2.msra.mxu0 %v2389
        %6687 = vmatprep.subr.mxu0 %v2386
        %6688 = vmatpush2.msra.mxu0 %v2385
        %6689 = vmatprep.subr.mxu0 %v2382
        %6690 = vmatpush2.msra.mxu0 %v2381
        %6691 = vmatprep.subr.mxu0 %v2378
        %6692 = vmatpush2.msra.mxu0 %v2377
        %6693 = vmatprep.subr.mxu0 %v2374
        %6694 = vmatpush2.msra.mxu0 %v2373
        %6695 = vmatprep.subr.mxu0 %v2370
        %6696 = vmatpush2.msra.mxu0 %v2369
        %6697 = vmatprep.mubr.f32.mxu0 %v3668
        %6698 = vmatmul.mubr.f32.gmra.mxu0 %v3666
        %v6699 = vpop.f32.mrf.mxu0
        %v6700 = vadd.f32 %v6629, %v6699
        %v6701 = vpop.f32.mrf.mxu0
        %v6702 = vadd.f32 %v6631, %v6701
        %6703 = vdwg.mxu0
        %6704 = vmatprep.subr.mxu0 %v2494
        %6705 = vmatpush1.msra.mxu0 %v2493
        %6706 = vmatprep.subr.mxu0 %v2490
        %6707 = vmatpush1.msra.mxu0 %v2489
        %6708 = vmatprep.subr.mxu0 %v2486
        %6709 = vmatpush1.msra.mxu0 %v2485
        %6710 = vmatprep.subr.mxu0 %v2482
        %6711 = vmatpush1.msra.mxu0 %v2481
        %6712 = vmatprep.subr.mxu0 %v2478
        %6713 = vmatpush1.msra.mxu0 %v2477
        %6714 = vmatprep.subr.mxu0 %v2474
        %6715 = vmatpush1.msra.mxu0 %v2473
        %6716 = vmatprep.subr.mxu0 %v2470
        %6717 = vmatpush1.msra.mxu0 %v2469
        %6718 = vmatprep.subr.mxu0 %v2466
        %6719 = vmatpush1.msra.mxu0 %v2465
        %6720 = vmatprep.subr.mxu0 %v2462
        %6721 = vmatpush1.msra.mxu0 %v2461
        %6722 = vmatprep.subr.mxu0 %v2458
        %6723 = vmatpush1.msra.mxu0 %v2457
        %6724 = vmatprep.subr.mxu0 %v2454
        %6725 = vmatpush1.msra.mxu0 %v2453
        %6726 = vmatprep.subr.mxu0 %v2450
        %6727 = vmatpush1.msra.mxu0 %v2449
        %6728 = vmatprep.subr.mxu0 %v2446
        %6729 = vmatpush1.msra.mxu0 %v2445
        %6730 = vmatprep.subr.mxu0 %v2442
        %6731 = vmatpush1.msra.mxu0 %v2441
        %6732 = vmatprep.subr.mxu0 %v2438
        %6733 = vmatpush1.msra.mxu0 %v2437
        %6734 = vmatprep.subr.mxu0 %v2434
        %6735 = vmatpush1.msra.mxu0 %v2433
        %6736 = vmatprep.subr.mxu0 %v2558
        %6737 = vmatpush2.msra.mxu0 %v2557
        %6738 = vmatprep.subr.mxu0 %v2554
        %6739 = vmatpush2.msra.mxu0 %v2553
        %6740 = vmatprep.subr.mxu0 %v2550
        %6741 = vmatpush2.msra.mxu0 %v2549
        %6742 = vmatprep.subr.mxu0 %v2546
        %6743 = vmatpush2.msra.mxu0 %v2545
        %6744 = vmatprep.subr.mxu0 %v2542
        %6745 = vmatpush2.msra.mxu0 %v2541
        %6746 = vmatprep.subr.mxu0 %v2538
        %6747 = vmatpush2.msra.mxu0 %v2537
        %6748 = vmatprep.subr.mxu0 %v2534
        %6749 = vmatpush2.msra.mxu0 %v2533
        %6750 = vmatprep.subr.mxu0 %v2530
        %6751 = vmatpush2.msra.mxu0 %v2529
        %6752 = vmatprep.subr.mxu0 %v2526
        %6753 = vmatpush2.msra.mxu0 %v2525
        %6754 = vmatprep.subr.mxu0 %v2522
        %6755 = vmatpush2.msra.mxu0 %v2521
        %6756 = vmatprep.subr.mxu0 %v2518
        %6757 = vmatpush2.msra.mxu0 %v2517
        %6758 = vmatprep.subr.mxu0 %v2514
        %6759 = vmatpush2.msra.mxu0 %v2513
        %6760 = vmatprep.subr.mxu0 %v2510
        %6761 = vmatpush2.msra.mxu0 %v2509
        %6762 = vmatprep.subr.mxu0 %v2506
        %6763 = vmatpush2.msra.mxu0 %v2505
        %6764 = vmatprep.subr.mxu0 %v2502
        %6765 = vmatpush2.msra.mxu0 %v2501
        %6766 = vmatprep.subr.mxu0 %v2498
        %6767 = vmatpush2.msra.mxu0 %v2497
        %6768 = vmatprep.mubr.f32.mxu0 %v3684
        %6769 = vmatmul.mubr.f32.gmra.mxu0 %v3676
        %v6770 = vpop.f32.mrf.mxu0
        %v6771 = vadd.f32 %v6700, %v6770
        %v6772 = vpop.f32.mrf.mxu0
        %v6773 = vadd.f32 %v6702, %v6772
        %6774 = vdwg.mxu0
        %6775 = vmatprep.subr.mxu0 %v2622
        %6776 = vmatpush1.msra.mxu0 %v2621
        %6777 = vmatprep.subr.mxu0 %v2618
        %6778 = vmatpush1.msra.mxu0 %v2617
        %6779 = vmatprep.subr.mxu0 %v2614
        %6780 = vmatpush1.msra.mxu0 %v2613
        %6781 = vmatprep.subr.mxu0 %v2610
        %6782 = vmatpush1.msra.mxu0 %v2609
        %6783 = vmatprep.subr.mxu0 %v2606
        %6784 = vmatpush1.msra.mxu0 %v2605
        %6785 = vmatprep.subr.mxu0 %v2602
        %6786 = vmatpush1.msra.mxu0 %v2601
        %6787 = vmatprep.subr.mxu0 %v2598
        %6788 = vmatpush1.msra.mxu0 %v2597
        %6789 = vmatprep.subr.mxu0 %v2594
        %6790 = vmatpush1.msra.mxu0 %v2593
        %6791 = vmatprep.subr.mxu0 %v2590
        %6792 = vmatpush1.msra.mxu0 %v2589
        %6793 = vmatprep.subr.mxu0 %v2586
        %6794 = vmatpush1.msra.mxu0 %v2585
        %6795 = vmatprep.subr.mxu0 %v2582
        %6796 = vmatpush1.msra.mxu0 %v2581
        %6797 = vmatprep.subr.mxu0 %v2578
        %6798 = vmatpush1.msra.mxu0 %v2577
        %6799 = vmatprep.subr.mxu0 %v2574
        %6800 = vmatpush1.msra.mxu0 %v2573
        %6801 = vmatprep.subr.mxu0 %v2570
        %6802 = vmatpush1.msra.mxu0 %v2569
        %6803 = vmatprep.subr.mxu0 %v2566
        %6804 = vmatpush1.msra.mxu0 %v2565
        %6805 = vmatprep.subr.mxu0 %v2562
        %6806 = vmatpush1.msra.mxu0 %v2561
        %6807 = vmatprep.subr.mxu0 %v2686
        %6808 = vmatpush2.msra.mxu0 %v2685
        %6809 = vmatprep.subr.mxu0 %v2682
        %6810 = vmatpush2.msra.mxu0 %v2681
        %6811 = vmatprep.subr.mxu0 %v2678
        %6812 = vmatpush2.msra.mxu0 %v2677
        %6813 = vmatprep.subr.mxu0 %v2674
        %6814 = vmatpush2.msra.mxu0 %v2673
        %6815 = vmatprep.subr.mxu0 %v2670
        %6816 = vmatpush2.msra.mxu0 %v2669
        %6817 = vmatprep.subr.mxu0 %v2666
        %6818 = vmatpush2.msra.mxu0 %v2665
        %6819 = vmatprep.subr.mxu0 %v2662
        %6820 = vmatpush2.msra.mxu0 %v2661
        %6821 = vmatprep.subr.mxu0 %v2658
        %6822 = vmatpush2.msra.mxu0 %v2657
        %6823 = vmatprep.subr.mxu0 %v2654
        %6824 = vmatpush2.msra.mxu0 %v2653
        %6825 = vmatprep.subr.mxu0 %v2650
        %6826 = vmatpush2.msra.mxu0 %v2649
        %6827 = vmatprep.subr.mxu0 %v2646
        %6828 = vmatpush2.msra.mxu0 %v2645
        %6829 = vmatprep.subr.mxu0 %v2642
        %6830 = vmatpush2.msra.mxu0 %v2641
        %6831 = vmatprep.subr.mxu0 %v2638
        %6832 = vmatpush2.msra.mxu0 %v2637
        %6833 = vmatprep.subr.mxu0 %v2634
        %6834 = vmatpush2.msra.mxu0 %v2633
        %6835 = vmatprep.subr.mxu0 %v2630
        %6836 = vmatpush2.msra.mxu0 %v2629
        %6837 = vmatprep.subr.mxu0 %v2626
        %6838 = vmatpush2.msra.mxu0 %v2625
        %6839 = vmatprep.mubr.f32.mxu0 %v3685
        %6840 = vmatmul.mubr.f32.gmra.mxu0 %v3683
        %v6841 = vpop.f32.mrf.mxu0
        %v6842 = vadd.f32 %v6771, %v6841
        %v6843 = vpop.f32.mrf.mxu0
        %v6844 = vadd.f32 %v6773, %v6843
        %6845 = vdwg.mxu0
        %6846 = vmatprep.subr.mxu0 %v2750
        %6847 = vmatpush1.msra.mxu0 %v2749
        %6848 = vmatprep.subr.mxu0 %v2746
        %6849 = vmatpush1.msra.mxu0 %v2745
        %6850 = vmatprep.subr.mxu0 %v2742
        %6851 = vmatpush1.msra.mxu0 %v2741
        %6852 = vmatprep.subr.mxu0 %v2738
        %6853 = vmatpush1.msra.mxu0 %v2737
        %6854 = vmatprep.subr.mxu0 %v2734
        %6855 = vmatpush1.msra.mxu0 %v2733
        %6856 = vmatprep.subr.mxu0 %v2730
        %6857 = vmatpush1.msra.mxu0 %v2729
        %6858 = vmatprep.subr.mxu0 %v2726
        %6859 = vmatpush1.msra.mxu0 %v2725
        %6860 = vmatprep.subr.mxu0 %v2722
        %6861 = vmatpush1.msra.mxu0 %v2721
        %6862 = vmatprep.subr.mxu0 %v2718
        %6863 = vmatpush1.msra.mxu0 %v2717
        %6864 = vmatprep.subr.mxu0 %v2714
        %6865 = vmatpush1.msra.mxu0 %v2713
        %6866 = vmatprep.subr.mxu0 %v2710
        %6867 = vmatpush1.msra.mxu0 %v2709
        %6868 = vmatprep.subr.mxu0 %v2706
        %6869 = vmatpush1.msra.mxu0 %v2705
        %6870 = vmatprep.subr.mxu0 %v2702
        %6871 = vmatpush1.msra.mxu0 %v2701
        %6872 = vmatprep.subr.mxu0 %v2698
        %6873 = vmatpush1.msra.mxu0 %v2697
        %6874 = vmatprep.subr.mxu0 %v2694
        %6875 = vmatpush1.msra.mxu0 %v2693
        %6876 = vmatprep.subr.mxu0 %v2690
        %6877 = vmatpush1.msra.mxu0 %v2689
        %6878 = vmatprep.subr.mxu0 %v2814
        %6879 = vmatpush2.msra.mxu0 %v2813
        %6880 = vmatprep.subr.mxu0 %v2810
        %6881 = vmatpush2.msra.mxu0 %v2809
        %6882 = vmatprep.subr.mxu0 %v2806
        %6883 = vmatpush2.msra.mxu0 %v2805
        %6884 = vmatprep.subr.mxu0 %v2802
        %6885 = vmatpush2.msra.mxu0 %v2801
        %6886 = vmatprep.subr.mxu0 %v2798
        %6887 = vmatpush2.msra.mxu0 %v2797
        %6888 = vmatprep.subr.mxu0 %v2794
        %6889 = vmatpush2.msra.mxu0 %v2793
        %6890 = vmatprep.subr.mxu0 %v2790
        %6891 = vmatpush2.msra.mxu0 %v2789
        %6892 = vmatprep.subr.mxu0 %v2786
        %6893 = vmatpush2.msra.mxu0 %v2785
        %6894 = vmatprep.subr.mxu0 %v2782
        %6895 = vmatpush2.msra.mxu0 %v2781
        %6896 = vmatprep.subr.mxu0 %v2778
        %6897 = vmatpush2.msra.mxu0 %v2777
        %6898 = vmatprep.subr.mxu0 %v2774
        %6899 = vmatpush2.msra.mxu0 %v2773
        %6900 = vmatprep.subr.mxu0 %v2770
        %6901 = vmatpush2.msra.mxu0 %v2769
        %6902 = vmatprep.subr.mxu0 %v2766
        %6903 = vmatpush2.msra.mxu0 %v2765
        %6904 = vmatprep.subr.mxu0 %v2762
        %6905 = vmatpush2.msra.mxu0 %v2761
        %6906 = vmatprep.subr.mxu0 %v2758
        %6907 = vmatpush2.msra.mxu0 %v2757
        %6908 = vmatprep.subr.mxu0 %v2754
        %6909 = vmatpush2.msra.mxu0 %v2753
        %6910 = vmatprep.mubr.f32.mxu0 %v3701
        %6911 = vmatmul.mubr.f32.gmra.mxu0 %v3693
        %v6912 = vpop.f32.mrf.mxu0
        %v6913 = vadd.f32 %v6842, %v6912
        %v6914 = vpop.f32.mrf.mxu0
        %v6915 = vadd.f32 %v6844, %v6914
        %6916 = vdwg.mxu0
        %6917 = vmatprep.subr.mxu0 %v2878
        %6918 = vmatpush1.msra.mxu0 %v2877
        %6919 = vmatprep.subr.mxu0 %v2874
        %6920 = vmatpush1.msra.mxu0 %v2873
        %6921 = vmatprep.subr.mxu0 %v2870
        %6922 = vmatpush1.msra.mxu0 %v2869
        %6923 = vmatprep.subr.mxu0 %v2866
        %6924 = vmatpush1.msra.mxu0 %v2865
        %6925 = vmatprep.subr.mxu0 %v2862
        %6926 = vmatpush1.msra.mxu0 %v2861
        %6927 = vmatprep.subr.mxu0 %v2858
        %6928 = vmatpush1.msra.mxu0 %v2857
        %6929 = vmatprep.subr.mxu0 %v2854
        %6930 = vmatpush1.msra.mxu0 %v2853
        %6931 = vmatprep.subr.mxu0 %v2850
        %6932 = vmatpush1.msra.mxu0 %v2849
        %6933 = vmatprep.subr.mxu0 %v2846
        %6934 = vmatpush1.msra.mxu0 %v2845
        %6935 = vmatprep.subr.mxu0 %v2842
        %6936 = vmatpush1.msra.mxu0 %v2841
        %6937 = vmatprep.subr.mxu0 %v2838
        %6938 = vmatpush1.msra.mxu0 %v2837
        %6939 = vmatprep.subr.mxu0 %v2834
        %6940 = vmatpush1.msra.mxu0 %v2833
        %6941 = vmatprep.subr.mxu0 %v2830
        %6942 = vmatpush1.msra.mxu0 %v2829
        %6943 = vmatprep.subr.mxu0 %v2826
        %6944 = vmatpush1.msra.mxu0 %v2825
        %6945 = vmatprep.subr.mxu0 %v2822
        %6946 = vmatpush1.msra.mxu0 %v2821
        %6947 = vmatprep.subr.mxu0 %v2818
        %6948 = vmatpush1.msra.mxu0 %v2817
        %6949 = vmatprep.subr.mxu0 %v2942
        %6950 = vmatpush2.msra.mxu0 %v2941
        %6951 = vmatprep.subr.mxu0 %v2938
        %6952 = vmatpush2.msra.mxu0 %v2937
        %6953 = vmatprep.subr.mxu0 %v2934
        %6954 = vmatpush2.msra.mxu0 %v2933
        %6955 = vmatprep.subr.mxu0 %v2930
        %6956 = vmatpush2.msra.mxu0 %v2929
        %6957 = vmatprep.subr.mxu0 %v2926
        %6958 = vmatpush2.msra.mxu0 %v2925
        %6959 = vmatprep.subr.mxu0 %v2922
        %6960 = vmatpush2.msra.mxu0 %v2921
        %6961 = vmatprep.subr.mxu0 %v2918
        %6962 = vmatpush2.msra.mxu0 %v2917
        %6963 = vmatprep.subr.mxu0 %v2914
        %6964 = vmatpush2.msra.mxu0 %v2913
        %6965 = vmatprep.subr.mxu0 %v2910
        %6966 = vmatpush2.msra.mxu0 %v2909
        %6967 = vmatprep.subr.mxu0 %v2906
        %6968 = vmatpush2.msra.mxu0 %v2905
        %6969 = vmatprep.subr.mxu0 %v2902
        %6970 = vmatpush2.msra.mxu0 %v2901
        %6971 = vmatprep.subr.mxu0 %v2898
        %6972 = vmatpush2.msra.mxu0 %v2897
        %6973 = vmatprep.subr.mxu0 %v2894
        %6974 = vmatpush2.msra.mxu0 %v2893
        %6975 = vmatprep.subr.mxu0 %v2890
        %6976 = vmatpush2.msra.mxu0 %v2889
        %6977 = vmatprep.subr.mxu0 %v2886
        %6978 = vmatpush2.msra.mxu0 %v2885
        %6979 = vmatprep.subr.mxu0 %v2882
        %6980 = vmatpush2.msra.mxu0 %v2881
        %6981 = vmatprep.mubr.f32.mxu0 %v3702
        %6982 = vmatmul.mubr.f32.gmra.mxu0 %v3700
        %v6983 = vpop.f32.mrf.mxu0
        %v6984 = vadd.f32 %v6913, %v6983
        %v6985 = vpop.f32.mrf.mxu0
        %v6986 = vadd.f32 %v6915, %v6985
        %6987 = vdwg.mxu0
        %6988 = vmatprep.subr.mxu0 %v3006
        %6989 = vmatpush1.msra.mxu0 %v3005
        %6990 = vmatprep.subr.mxu0 %v3002
        %6991 = vmatpush1.msra.mxu0 %v3001
        %6992 = vmatprep.subr.mxu0 %v2998
        %6993 = vmatpush1.msra.mxu0 %v2997
        %6994 = vmatprep.subr.mxu0 %v2994
        %6995 = vmatpush1.msra.mxu0 %v2993
        %6996 = vmatprep.subr.mxu0 %v2990
        %6997 = vmatpush1.msra.mxu0 %v2989
        %6998 = vmatprep.subr.mxu0 %v2986
        %6999 = vmatpush1.msra.mxu0 %v2985
        %7000 = vmatprep.subr.mxu0 %v2982
        %7001 = vmatpush1.msra.mxu0 %v2981
        %7002 = vmatprep.subr.mxu0 %v2978
        %7003 = vmatpush1.msra.mxu0 %v2977
        %7004 = vmatprep.subr.mxu0 %v2974
        %7005 = vmatpush1.msra.mxu0 %v2973
        %7006 = vmatprep.subr.mxu0 %v2970
        %7007 = vmatpush1.msra.mxu0 %v2969
        %7008 = vmatprep.subr.mxu0 %v2966
        %7009 = vmatpush1.msra.mxu0 %v2965
        %7010 = vmatprep.subr.mxu0 %v2962
        %7011 = vmatpush1.msra.mxu0 %v2961
        %7012 = vmatprep.subr.mxu0 %v2958
        %7013 = vmatpush1.msra.mxu0 %v2957
        %7014 = vmatprep.subr.mxu0 %v2954
        %7015 = vmatpush1.msra.mxu0 %v2953
        %7016 = vmatprep.subr.mxu0 %v2950
        %7017 = vmatpush1.msra.mxu0 %v2949
        %7018 = vmatprep.subr.mxu0 %v2946
        %7019 = vmatpush1.msra.mxu0 %v2945
        %7020 = vmatprep.subr.mxu0 %v3070
        %7021 = vmatpush2.msra.mxu0 %v3069
        %7022 = vmatprep.subr.mxu0 %v3066
        %7023 = vmatpush2.msra.mxu0 %v3065
        %7024 = vmatprep.subr.mxu0 %v3062
        %7025 = vmatpush2.msra.mxu0 %v3061
        %7026 = vmatprep.subr.mxu0 %v3058
        %7027 = vmatpush2.msra.mxu0 %v3057
        %7028 = vmatprep.subr.mxu0 %v3054
        %7029 = vmatpush2.msra.mxu0 %v3053
        %7030 = vmatprep.subr.mxu0 %v3050
        %7031 = vmatpush2.msra.mxu0 %v3049
        %7032 = vmatprep.subr.mxu0 %v3046
        %7033 = vmatpush2.msra.mxu0 %v3045
        %7034 = vmatprep.subr.mxu0 %v3042
        %7035 = vmatpush2.msra.mxu0 %v3041
        %7036 = vmatprep.subr.mxu0 %v3038
        %7037 = vmatpush2.msra.mxu0 %v3037
        %7038 = vmatprep.subr.mxu0 %v3034
        %7039 = vmatpush2.msra.mxu0 %v3033
        %7040 = vmatprep.subr.mxu0 %v3030
        %7041 = vmatpush2.msra.mxu0 %v3029
        %7042 = vmatprep.subr.mxu0 %v3026
        %7043 = vmatpush2.msra.mxu0 %v3025
        %7044 = vmatprep.subr.mxu0 %v3022
        %7045 = vmatpush2.msra.mxu0 %v3021
        %7046 = vmatprep.subr.mxu0 %v3018
        %7047 = vmatpush2.msra.mxu0 %v3017
        %7048 = vmatprep.subr.mxu0 %v3014
        %7049 = vmatpush2.msra.mxu0 %v3013
        %7050 = vmatprep.subr.mxu0 %v3010
        %7051 = vmatpush2.msra.mxu0 %v3009
        %7052 = vmatprep.mubr.f32.mxu0 %v3718
        %7053 = vmatmul.mubr.f32.gmra.mxu0 %v3710
        %v7054 = vpop.f32.mrf.mxu0
        %v7055 = vadd.f32 %v6984, %v7054
        %v7056 = vpop.f32.mrf.mxu0
        %v7057 = vadd.f32 %v6986, %v7056
        %7058 = vdwg.mxu0
        %7059 = vmatprep.subr.mxu0 %v3134
        %7060 = vmatpush1.msra.mxu0 %v3133
        %7061 = vmatprep.subr.mxu0 %v3130
        %7062 = vmatpush1.msra.mxu0 %v3129
        %7063 = vmatprep.subr.mxu0 %v3126
        %7064 = vmatpush1.msra.mxu0 %v3125
        %7065 = vmatprep.subr.mxu0 %v3122
        %7066 = vmatpush1.msra.mxu0 %v3121
        %7067 = vmatprep.subr.mxu0 %v3118
        %7068 = vmatpush1.msra.mxu0 %v3117
        %7069 = vmatprep.subr.mxu0 %v3114
        %7070 = vmatpush1.msra.mxu0 %v3113
        %7071 = vmatprep.subr.mxu0 %v3110
        %7072 = vmatpush1.msra.mxu0 %v3109
        %7073 = vmatprep.subr.mxu0 %v3106
        %7074 = vmatpush1.msra.mxu0 %v3105
        %7075 = vmatprep.subr.mxu0 %v3102
        %7076 = vmatpush1.msra.mxu0 %v3101
        %7077 = vmatprep.subr.mxu0 %v3098
        %7078 = vmatpush1.msra.mxu0 %v3097
        %7079 = vmatprep.subr.mxu0 %v3094
        %7080 = vmatpush1.msra.mxu0 %v3093
        %7081 = vmatprep.subr.mxu0 %v3090
        %7082 = vmatpush1.msra.mxu0 %v3089
        %7083 = vmatprep.subr.mxu0 %v3086
        %7084 = vmatpush1.msra.mxu0 %v3085
        %7085 = vmatprep.subr.mxu0 %v3082
        %7086 = vmatpush1.msra.mxu0 %v3081
        %7087 = vmatprep.subr.mxu0 %v3078
        %7088 = vmatpush1.msra.mxu0 %v3077
        %7089 = vmatprep.subr.mxu0 %v3074
        %7090 = vmatpush1.msra.mxu0 %v3073
        %7091 = vmatprep.subr.mxu0 %v3198
        %7092 = vmatpush2.msra.mxu0 %v3197
        %7093 = vmatprep.subr.mxu0 %v3194
        %7094 = vmatpush2.msra.mxu0 %v3193
        %7095 = vmatprep.subr.mxu0 %v3190
        %7096 = vmatpush2.msra.mxu0 %v3189
        %7097 = vmatprep.subr.mxu0 %v3186
        %7098 = vmatpush2.msra.mxu0 %v3185
        %7099 = vmatprep.subr.mxu0 %v3182
        %7100 = vmatpush2.msra.mxu0 %v3181
        %7101 = vmatprep.subr.mxu0 %v3178
        %7102 = vmatpush2.msra.mxu0 %v3177
        %7103 = vmatprep.subr.mxu0 %v3174
        %7104 = vmatpush2.msra.mxu0 %v3173
        %7105 = vmatprep.subr.mxu0 %v3170
        %7106 = vmatpush2.msra.mxu0 %v3169
        %7107 = vmatprep.subr.mxu0 %v3166
        %7108 = vmatpush2.msra.mxu0 %v3165
        %7109 = vmatprep.subr.mxu0 %v3162
        %7110 = vmatpush2.msra.mxu0 %v3161
        %7111 = vmatprep.subr.mxu0 %v3158
        %7112 = vmatpush2.msra.mxu0 %v3157
        %7113 = vmatprep.subr.mxu0 %v3154
        %7114 = vmatpush2.msra.mxu0 %v3153
        %7115 = vmatprep.subr.mxu0 %v3150
        %7116 = vmatpush2.msra.mxu0 %v3149
        %7117 = vmatprep.subr.mxu0 %v3146
        %7118 = vmatpush2.msra.mxu0 %v3145
        %7119 = vmatprep.subr.mxu0 %v3142
        %7120 = vmatpush2.msra.mxu0 %v3141
        %7121 = vmatprep.subr.mxu0 %v3138
        %7122 = vmatpush2.msra.mxu0 %v3137
        %7123 = vmatprep.mubr.f32.mxu0 %v3719
        %7124 = vmatmul.mubr.f32.gmra.mxu0 %v3717
        %v7125 = vpop.f32.mrf.mxu0
        %v7126 = vadd.f32 %v7055, %v7125
        %v7127 = vpop.f32.mrf.mxu0
        %v7128 = vadd.f32 %v7057, %v7127
        %7129 = vdwg.mxu0
        %7130 = vmatprep.subr.mxu0 %v3262
        %7131 = vmatpush1.msra.mxu0 %v3261
        %7132 = vmatprep.subr.mxu0 %v3258
        %7133 = vmatpush1.msra.mxu0 %v3257
        %7134 = vmatprep.subr.mxu0 %v3254
        %7135 = vmatpush1.msra.mxu0 %v3253
        %7136 = vmatprep.subr.mxu0 %v3250
        %7137 = vmatpush1.msra.mxu0 %v3249
        %7138 = vmatprep.subr.mxu0 %v3246
        %7139 = vmatpush1.msra.mxu0 %v3245
        %7140 = vmatprep.subr.mxu0 %v3242
        %7141 = vmatpush1.msra.mxu0 %v3241
        %7142 = vmatprep.subr.mxu0 %v3238
        %7143 = vmatpush1.msra.mxu0 %v3237
        %7144 = vmatprep.subr.mxu0 %v3234
        %7145 = vmatpush1.msra.mxu0 %v3233
        %7146 = vmatprep.subr.mxu0 %v3230
        %7147 = vmatpush1.msra.mxu0 %v3229
        %7148 = vmatprep.subr.mxu0 %v3226
        %7149 = vmatpush1.msra.mxu0 %v3225
        %7150 = vmatprep.subr.mxu0 %v3222
        %7151 = vmatpush1.msra.mxu0 %v3221
        %7152 = vmatprep.subr.mxu0 %v3218
        %7153 = vmatpush1.msra.mxu0 %v3217
        %7154 = vmatprep.subr.mxu0 %v3214
        %7155 = vmatpush1.msra.mxu0 %v3213
        %7156 = vmatprep.subr.mxu0 %v3210
        %7157 = vmatpush1.msra.mxu0 %v3209
        %7158 = vmatprep.subr.mxu0 %v3206
        %7159 = vmatpush1.msra.mxu0 %v3205
        %7160 = vmatprep.subr.mxu0 %v3202
        %7161 = vmatpush1.msra.mxu0 %v3201
        %7162 = vmatprep.subr.mxu0 %v3326
        %7163 = vmatpush2.msra.mxu0 %v3325
        %7164 = vmatprep.subr.mxu0 %v3322
        %7165 = vmatpush2.msra.mxu0 %v3321
        %7166 = vmatprep.subr.mxu0 %v3318
        %7167 = vmatpush2.msra.mxu0 %v3317
        %7168 = vmatprep.subr.mxu0 %v3314
        %7169 = vmatpush2.msra.mxu0 %v3313
        %7170 = vmatprep.subr.mxu0 %v3310
        %7171 = vmatpush2.msra.mxu0 %v3309
        %7172 = vmatprep.subr.mxu0 %v3306
        %7173 = vmatpush2.msra.mxu0 %v3305
        %7174 = vmatprep.subr.mxu0 %v3302
        %7175 = vmatpush2.msra.mxu0 %v3301
        %7176 = vmatprep.subr.mxu0 %v3298
        %7177 = vmatpush2.msra.mxu0 %v3297
        %7178 = vmatprep.subr.mxu0 %v3294
        %7179 = vmatpush2.msra.mxu0 %v3293
        %7180 = vmatprep.subr.mxu0 %v3290
        %7181 = vmatpush2.msra.mxu0 %v3289
        %7182 = vmatprep.subr.mxu0 %v3286
        %7183 = vmatpush2.msra.mxu0 %v3285
        %7184 = vmatprep.subr.mxu0 %v3282
        %7185 = vmatpush2.msra.mxu0 %v3281
        %7186 = vmatprep.subr.mxu0 %v3278
        %7187 = vmatpush2.msra.mxu0 %v3277
        %7188 = vmatprep.subr.mxu0 %v3274
        %7189 = vmatpush2.msra.mxu0 %v3273
        %7190 = vmatprep.subr.mxu0 %v3270
        %7191 = vmatpush2.msra.mxu0 %v3269
        %7192 = vmatprep.subr.mxu0 %v3266
        %7193 = vmatpush2.msra.mxu0 %v3265
        %7194 = vmatprep.mubr.f32.mxu0 %v3735
        %7195 = vmatmul.mubr.f32.gmra.mxu0 %v3727
        %v7196 = vpop.f32.mrf.mxu0
        %v7197 = vadd.f32 %v7126, %v7196
        %v7198 = vpop.f32.mrf.mxu0
        %v7199 = vadd.f32 %v7128, %v7198
        %7200 = vdwg.mxu0
        %7201 = vmatprep.subr.mxu0 %v3390
        %7202 = vmatpush1.msra.mxu0 %v3389
        %7203 = vmatprep.subr.mxu0 %v3386
        %7204 = vmatpush1.msra.mxu0 %v3385
        %7205 = vmatprep.subr.mxu0 %v3382
        %7206 = vmatpush1.msra.mxu0 %v3381
        %7207 = vmatprep.subr.mxu0 %v3378
        %7208 = vmatpush1.msra.mxu0 %v3377
        %7209 = vmatprep.subr.mxu0 %v3374
        %7210 = vmatpush1.msra.mxu0 %v3373
        %7211 = vmatprep.subr.mxu0 %v3370
        %7212 = vmatpush1.msra.mxu0 %v3369
        %7213 = vmatprep.subr.mxu0 %v3366
        %7214 = vmatpush1.msra.mxu0 %v3365
        %7215 = vmatprep.subr.mxu0 %v3362
        %7216 = vmatpush1.msra.mxu0 %v3361
        %7217 = vmatprep.subr.mxu0 %v3358
        %7218 = vmatpush1.msra.mxu0 %v3357
        %7219 = vmatprep.subr.mxu0 %v3354
        %7220 = vmatpush1.msra.mxu0 %v3353
        %7221 = vmatprep.subr.mxu0 %v3350
        %7222 = vmatpush1.msra.mxu0 %v3349
        %7223 = vmatprep.subr.mxu0 %v3346
        %7224 = vmatpush1.msra.mxu0 %v3345
        %7225 = vmatprep.subr.mxu0 %v3342
        %7226 = vmatpush1.msra.mxu0 %v3341
        %7227 = vmatprep.subr.mxu0 %v3338
        %7228 = vmatpush1.msra.mxu0 %v3337
        %7229 = vmatprep.subr.mxu0 %v3334
        %7230 = vmatpush1.msra.mxu0 %v3333
        %7231 = vmatprep.subr.mxu0 %v3330
        %7232 = vmatpush1.msra.mxu0 %v3329
        %7233 = vmatprep.subr.mxu0 %v3454
        %7234 = vmatpush2.msra.mxu0 %v3453
        %7235 = vmatprep.subr.mxu0 %v3450
        %7236 = vmatpush2.msra.mxu0 %v3449
        %7237 = vmatprep.subr.mxu0 %v3446
        %7238 = vmatpush2.msra.mxu0 %v3445
        %7239 = vmatprep.subr.mxu0 %v3442
        %7240 = vmatpush2.msra.mxu0 %v3441
        %7241 = vmatprep.subr.mxu0 %v3438
        %7242 = vmatpush2.msra.mxu0 %v3437
        %7243 = vmatprep.subr.mxu0 %v3434
        %7244 = vmatpush2.msra.mxu0 %v3433
        %7245 = vmatprep.subr.mxu0 %v3430
        %7246 = vmatpush2.msra.mxu0 %v3429
        %7247 = vmatprep.subr.mxu0 %v3426
        %7248 = vmatpush2.msra.mxu0 %v3425
        %7249 = vmatprep.subr.mxu0 %v3422
        %7250 = vmatpush2.msra.mxu0 %v3421
        %7251 = vmatprep.subr.mxu0 %v3418
        %7252 = vmatpush2.msra.mxu0 %v3417
        %7253 = vmatprep.subr.mxu0 %v3414
        %7254 = vmatpush2.msra.mxu0 %v3413
        %7255 = vmatprep.subr.mxu0 %v3410
        %7256 = vmatpush2.msra.mxu0 %v3409
        %7257 = vmatprep.subr.mxu0 %v3406
        %7258 = vmatpush2.msra.mxu0 %v3405
        %7259 = vmatprep.subr.mxu0 %v3402
        %7260 = vmatpush2.msra.mxu0 %v3401
        %7261 = vmatprep.subr.mxu0 %v3398
        %7262 = vmatpush2.msra.mxu0 %v3397
        %7263 = vmatprep.subr.mxu0 %v3394
        %7264 = vmatpush2.msra.mxu0 %v3393
        %7265 = vmatprep.mubr.f32.mxu0 %v3736
        %7266 = vmatmul.mubr.f32.gmra.mxu0 %v3734
        %v7267 = vpop.f32.mrf.mxu0
        %v7268 = vadd.f32 %v7197, %v7267
        %v7269 = vpop.f32.mrf.mxu0
        %v7270 = vadd.f32 %v7199, %v7269
        %7271 = vdwg.mxu0
        %7272 = vmatprep.subr.mxu0 %v3518
        %7273 = vmatpush1.msra.mxu0 %v3517
        %7274 = vmatprep.subr.mxu0 %v3514
        %7275 = vmatpush1.msra.mxu0 %v3513
        %7276 = vmatprep.subr.mxu0 %v3510
        %7277 = vmatpush1.msra.mxu0 %v3509
        %7278 = vmatprep.subr.mxu0 %v3506
        %7279 = vmatpush1.msra.mxu0 %v3505
        %7280 = vmatprep.subr.mxu0 %v3502
        %7281 = vmatpush1.msra.mxu0 %v3501
        %7282 = vmatprep.subr.mxu0 %v3498
        %7283 = vmatpush1.msra.mxu0 %v3497
        %7284 = vmatprep.subr.mxu0 %v3494
        %7285 = vmatpush1.msra.mxu0 %v3493
        %7286 = vmatprep.subr.mxu0 %v3490
        %7287 = vmatpush1.msra.mxu0 %v3489
        %7288 = vmatprep.subr.mxu0 %v3486
        %7289 = vmatpush1.msra.mxu0 %v3485
        %7290 = vmatprep.subr.mxu0 %v3482
        %7291 = vmatpush1.msra.mxu0 %v3481
        %7292 = vmatprep.subr.mxu0 %v3478
        %7293 = vmatpush1.msra.mxu0 %v3477
        %7294 = vmatprep.subr.mxu0 %v3474
        %7295 = vmatpush1.msra.mxu0 %v3473
        %7296 = vmatprep.subr.mxu0 %v3470
        %7297 = vmatpush1.msra.mxu0 %v3469
        %7298 = vmatprep.subr.mxu0 %v3466
        %7299 = vmatpush1.msra.mxu0 %v3465
        %7300 = vmatprep.subr.mxu0 %v3462
        %7301 = vmatpush1.msra.mxu0 %v3461
        %7302 = vmatprep.subr.mxu0 %v3458
        %7303 = vmatpush1.msra.mxu0 %v3457
        %7304 = vmatprep.subr.mxu0 0.0
        %7305 = vmatpush2.msra.mxu0 0.0
        %7306 = vmatprep.subr.mxu0 0.0
        %7307 = vmatpush2.msra.mxu0 0.0
        %7308 = vmatprep.subr.mxu0 0.0
        %7309 = vmatpush2.msra.mxu0 0.0
        %7310 = vmatprep.subr.mxu0 0.0
        %7311 = vmatpush2.msra.mxu0 0.0
        %7312 = vmatprep.subr.mxu0 0.0
        %7313 = vmatpush2.msra.mxu0 0.0
        %7314 = vmatprep.subr.mxu0 0.0
        %7315 = vmatpush2.msra.mxu0 0.0
        %7316 = vmatprep.subr.mxu0 0.0
        %7317 = vmatpush2.msra.mxu0 0.0
        %7318 = vmatprep.subr.mxu0 0.0
        %7319 = vmatpush2.msra.mxu0 0.0
        %7320 = vmatprep.subr.mxu0 0.0
        %7321 = vmatpush2.msra.mxu0 0.0
        %7322 = vmatprep.subr.mxu0 0.0
        %7323 = vmatpush2.msra.mxu0 0.0
        %7324 = vmatprep.subr.mxu0 0.0
        %7325 = vmatpush2.msra.mxu0 0.0
        %7326 = vmatprep.subr.mxu0 0.0
        %7327 = vmatpush2.msra.mxu0 0.0
        %7328 = vmatprep.subr.mxu0 0.0
        %7329 = vmatpush2.msra.mxu0 0.0
        %7330 = vmatprep.subr.mxu0 0.0
        %7331 = vmatpush2.msra.mxu0 0.0
        %7332 = vmatprep.subr.mxu0 0.0
        %7333 = vmatpush2.msra.mxu0 0.0
        %7334 = vmatprep.subr.mxu0 0.0
        %7335 = vmatpush2.msra.mxu0 0.0
        %7336 = vmatprep.mubr.f32.mxu0 0.0
        %7337 = vmatmul.mubr.f32.gmra.mxu0 %v3743
        %v7338 = vpop.f32.mrf.mxu0
        %v7339 = vadd.f32 %v7268, %v7338
        %v7340 = vpop.f32.mrf.mxu0
        %v7341 = vadd.f32 %v7270, %v7340
        %7342 = vdwg.mxu0
        %v7347 = vcombine.low %v5564, %v5566
        %v7348 = vcombine.low %v7339, %v7341
        %v7350 = vunpack.c.l.s4 1983009808
        %v7351 = vunpack.c.0.s8 %v7350
        %v7352 = vlaneseq
        %v7353 = vshrl.u32 %v7352, 7
        %v7354 = vsub.s32 %v7351, %v7353
        %v7355 = vrot.slane %v7347, %v7354
        %v7357 = vunpack.c.l.s4 1983009808
        %v7358 = vunpack.c.0.s8 %v7357
        %v7359 = vlaneseq
        %v7360 = vshrl.u32 %v7359, 7
        %v7361 = vsub.s32 %v7358, %v7360
        %v7362 = vrot.slane %v7348, %v7361
        %v7363 = vcombine.low %v7355, %v7362
        %v7365 = vadd.f32 %v3519, %v7363
        %7366 = vst [vmem:[#allocation2] sm:$0xff] %v7365
        %p7367 = scmp.eq.s32.totalorder %s28, 5
        // Predicated region
        $region65: #{tpu_custom_call.1} parent=39 // pred_check
          %p7368 = pneg %p7367
        $region66: #{tpu_custom_call.1} parent=39 // pred_check_branch
          %7370 = sbr.rel (%p7368) target = $region68
        $region67: #{tpu_custom_call.1} parent=39 // pred_region
          %v7371 = vld [vmem:[#allocation2] sm:$0xff]
          %v7372 = vld [vmem:[#allocation7] sm:$0xf]
          %v7374 = vlaneseq
          %v7375 = vshrl.u32 %v7374, 7
          %v7376 = vsub.s32 0, %v7375
          %v7377 = vrot.slane %v7372, %v7376
          %v7378 = vlaneseq
          %v7379 = vshrl.u32 %v7378, 7
          %v7380 = vsub.s32 1, %v7379
          %v7381 = vrot.slane %v7372, %v7380
          %v7382 = vlaneseq
          %v7383 = vshrl.u32 %v7382, 7
          %v7384 = vsub.s32 2, %v7383
          %v7385 = vrot.slane %v7372, %v7384
          %v7386 = vlaneseq
          %v7387 = vshrl.u32 %v7386, 7
          %v7388 = vsub.s32 3, %v7387
          %v7389 = vrot.slane %v7372, %v7388
          %v7390 = vcombine.low %v7377, %v7381
          %v7391 = vcombine.low %v7385, %v7389
          %v7393 = vunpack.c.l.s4 1983009808
          %v7394 = vunpack.c.0.s8 %v7393
          %v7395 = vlaneseq
          %v7396 = vshrl.u32 %v7395, 7
          %v7397 = vsub.s32 %v7394, %v7396
          %v7398 = vrot.slane %v7390, %v7397
          %v7400 = vunpack.c.l.s4 1983009808
          %v7401 = vunpack.c.0.s8 %v7400
          %v7402 = vlaneseq
          %v7403 = vshrl.u32 %v7402, 7
          %v7404 = vsub.s32 %v7401, %v7403
          %v7405 = vrot.slane %v7391, %v7404
          %v7406 = vcombine.low %v7398, %v7405
          %v7408 = vmul.f32 %v7371, %v7406
          %v7409 = vld [vmem:[#allocation8] sm:$0xf]
          %v7411 = vlaneseq
          %v7412 = vshrl.u32 %v7411, 7
          %v7413 = vsub.s32 0, %v7412
          %v7414 = vrot.slane %v7409, %v7413
          %v7415 = vlaneseq
          %v7416 = vshrl.u32 %v7415, 7
          %v7417 = vsub.s32 1, %v7416
          %v7418 = vrot.slane %v7409, %v7417
          %v7419 = vlaneseq
          %v7420 = vshrl.u32 %v7419, 7
          %v7421 = vsub.s32 2, %v7420
          %v7422 = vrot.slane %v7409, %v7421
          %v7423 = vlaneseq
          %v7424 = vshrl.u32 %v7423, 7
          %v7425 = vsub.s32 3, %v7424
          %v7426 = vrot.slane %v7409, %v7425
          %v7427 = vcombine.low %v7414, %v7418
          %v7428 = vcombine.low %v7422, %v7426
          %v7430 = vunpack.c.l.s4 1983009808
          %v7431 = vunpack.c.0.s8 %v7430
          %v7432 = vlaneseq
          %v7433 = vshrl.u32 %v7432, 7
          %v7434 = vsub.s32 %v7431, %v7433
          %v7435 = vrot.slane %v7427, %v7434
          %v7437 = vunpack.c.l.s4 1983009808
          %v7438 = vunpack.c.0.s8 %v7437
          %v7439 = vlaneseq
          %v7440 = vshrl.u32 %v7439, 7
          %v7441 = vsub.s32 %v7438, %v7440
          %v7442 = vrot.slane %v7428, %v7441
          %v7443 = vcombine.low %v7435, %v7442
          %v7445 = vadd.f32 %v7408, %v7443
          %vm7446 = vcmp.gt.f32.partialorder %v7445, 0.0
          %v7447 = vmul.f32 %v7445, 0.2
          %v7448 = vsel %vm7446, %v7445, %v7447
          %v7449 = vld [vmem:[#allocation10] sm:$0xf]
          %v7451 = vlaneseq
          %v7452 = vshrl.u32 %v7451, 7
          %v7453 = vsub.s32 0, %v7452
          %v7454 = vrot.slane %v7449, %v7453
          %v7455 = vlaneseq
          %v7456 = vshrl.u32 %v7455, 7
          %v7457 = vsub.s32 1, %v7456
          %v7458 = vrot.slane %v7449, %v7457
          %v7459 = vlaneseq
          %v7460 = vshrl.u32 %v7459, 7
          %v7461 = vsub.s32 2, %v7460
          %v7462 = vrot.slane %v7449, %v7461
          %v7463 = vlaneseq
          %v7464 = vshrl.u32 %v7463, 7
          %v7465 = vsub.s32 3, %v7464
          %v7466 = vrot.slane %v7449, %v7465
          %v7467 = vcombine.low %v7454, %v7458
          %v7468 = vcombine.low %v7462, %v7466
          %v7470 = vunpack.c.l.s4 1983009808
          %v7471 = vunpack.c.0.s8 %v7470
          %v7472 = vlaneseq
          %v7473 = vshrl.u32 %v7472, 7
          %v7474 = vsub.s32 %v7471, %v7473
          %v7475 = vrot.slane %v7467, %v7474
          %v7477 = vunpack.c.l.s4 1983009808
          %v7478 = vunpack.c.0.s8 %v7477
          %v7479 = vlaneseq
          %v7480 = vshrl.u32 %v7479, 7
          %v7481 = vsub.s32 %v7478, %v7480
          %v7482 = vrot.slane %v7468, %v7481
          %v7483 = vcombine.low %v7475, %v7482
          %v7485 = vmul.f32 %v7448, %v7483
          %v7487 = vcombine.high %v7485, %v7485
          %v7489 = vunpack.c.l.s4 1983009808
          %v7490 = vunpack.c.0.s8 %v7489
          %v7491 = vlaneseq
          %v7492 = vshrl.u32 %v7491, 7
          %v7493 = vsub.s32 %v7490, %v7492
          %v7494 = vrot.slane %v7485, %v7493
          %v7496 = vunpack.c.l.s4 1983009808
          %v7497 = vunpack.c.0.s8 %v7496
          %v7498 = vlaneseq
          %v7499 = vshrl.u32 %v7498, 7
          %v7500 = vsub.s32 %v7497, %v7499
          %v7501 = vrot.slane %v7487, %v7500
          %v7502 = vcombine.high %v7494, %v7494
          %v7503 = vcombine.high %v7501, %v7501
          %vm7508 = vcmask 1041408
          %v7509 = vsel %vm7508, %v7494, 0.0
          %v7510 = vsel %vm7508, %v7502, 0.0
          %v7511 = vadd.f32 %v7509, %v7510
          %v7512 = vsel %vm7508, %v7501, 0.0
          %v7513 = vadd.f32 %v7511, %v7512
          %v7514 = vsel %vm7508, %v7503, 0.0
          %v7515 = vadd.f32 %v7513, %v7514
          %7516 = vadd.xlane.f32.xlu0 %v7515
          %v7517 = vpop.xlane.xlu0 %7516
          %vm7518 = vcmask 1024
          %7519 = vst.msk [vmem:[%s364] sm:$0x3] %vm7518, %v7517
        $region68: #{tpu_custom_call.1} parent=39 // pred_fallthru
          _
        %p7520 = scmp.lt.s32.totalorder %s27, 0
        %s7521 = scalar_select %p7520, %s27, 0
        %s7522 = smul.addr %s7521, 2
        %s7523 = scalar_lea.vmem %s5, %s7522
        // Predicated region
        $region69: #{tpu_custom_call.1} parent=39 // pred_check
          %p7524 = pneg %p185
        $region70: #{tpu_custom_call.1} parent=39 // pred_check_branch
          %7526 = sbr.rel (%p7524) target = $region72
        $region71: #{tpu_custom_call.1} parent=39 // pred_region
          _
        $region72: #{tpu_custom_call.1} parent=39 // pred_fallthru
          _
        // Predicated region
        $region73: #{tpu_custom_call.1} parent=39 // pred_check
          %p7527 = pneg %p185
        $region74: #{tpu_custom_call.1} parent=39 // pred_check_branch
          %7529 = sbr.rel (%p7527) target = $region76
        $region75: #{tpu_custom_call.1} parent=39 // pred_region
          %p7530 = scmp.lt.s32.totalorder %s27, 0
          %s7531 = scalar_select %p7530, %s27, 0
          %s7532 = smul.addr %s7531, 2
          %s7533 = scalar_lea.vmem %s5, %s7532
        $region76: #{tpu_custom_call.1} parent=39 // pred_fallthru
          _
      $region40: #{tpu_custom_call.1} parent=5 // pred_fallthru
        _
      %p7534 = scmp.le.s32.totalorder 2, %s18
      // Predicated region
      $region77: #{tpu_custom_call.1} parent=5 // pred_check
        %p7535 = pneg %p7534
      $region78: #{tpu_custom_call.1} parent=5 // pred_check_branch
        %7537 = sbr.rel (%p7535) target = $region80
      $region79: #{tpu_custom_call.1} parent=5 // pred_region
        %s7538 = ssub.s32 %s18, 2
      $region80: #{tpu_custom_call.1} parent=5 // pred_fallthru
        _
    $region6: #{tpu_custom_call.1} parent=1 // loop_footer
      %s22 = sadd.s32 1, %s18
    $region7: #{tpu_custom_call.1} parent=1 // loop_footer_branch
      %17 = sbr.rel target = $region3
    $region8: #{tpu_custom_call.1} parent=1 // loop_exit
      _
    %7539 = vsyncpa [#allocation4], 1
    %s7540 = scalar_lea.sflag [#allocation4], 1
    %7541 = vsyncpa %s7540, 1
    %7542 = vsyncpa [#allocation6], 1
    %s7543 = scalar_lea.sflag [#allocation6], 1
    %7544 = vsyncpa %s7543, 1
    %7545 = vsyncpa [#allocation9], 1

</llo_original>
